<compile_context>
chip_gen: v5e
topology: v5e:2x2
jax: 0.10.0
libtpu: 0.0.40
codegen_flags: <defaults>
</compile_context>

<pallas_src>
import math

import jax
import jax.numpy as jnp
import numpy as np
from jax.experimental import pallas as pl
from jax.experimental.pallas import tpu as pltpu


# ----------------------------------------------------------------------------
# Fused Pallas kernel: the whole Discriminator forward in one launch.
# ----------------------------------------------------------------------------
def _discriminator_kernel(p1_ref, w1_ref, w2_ref, w3_ref, w4_ref, w5_ref,
                          gt2_ref, gt3_ref, gt4_ref, gt5_ref,
                          g2_ref, b2_ref, g3_ref, b3_ref, g4_ref, b4_ref,
                          out_ref):
    f32 = jnp.float32

    def leaky(z):                                       # LeakyReLU(0.2)
        return jnp.maximum(z, 0.2 * z)

    def bn(z, g_ref, b_ref, eps=1e-5):
        # Training-mode BatchNorm2d: biased batch stats over (N, H, W) = lanes.
        # One-pass statistics (sum & sum of squares), f32 throughout.
        m = z.shape[1]
        s1 = jnp.sum(z, axis=1, keepdims=True)
        s2 = jnp.sum(z * z, axis=1, keepdims=True)
        mean = s1 * (1.0 / m)
        var = s2 * (1.0 / m) - mean * mean
        inv = jax.lax.rsqrt(var + eps)
        return (z - mean) * (inv * g_ref[...]) + b_ref[...]

    def conv(x, w_ref, gt_ref):
        # x : (C_in, M_in)   f32, spatial (n, h, w) flattened on lanes.
        # w : (KK*C_out, C_in) bf16, tap-major stacked weights.
        # gt: (KK, M_in, M_out) bf16 0/1 gather: "input pixel m feeds output
        #     pixel o for tap t"; out-of-image taps are all-zero columns,
        #     which realizes the zero padding.
        kk, _, m_out = gt_ref.shape
        cout = w_ref.shape[0] // kk
        # All taps' channel mixing in one MXU matmul (bf16 in, f32 acc).
        y = jnp.dot(w_ref[...], x.astype(jnp.bfloat16),
                    preferred_element_type=f32)          # (KK*C_out, M_in)
        z = jnp.zeros((cout, m_out), f32)
        for t in range(kk):                              # static unroll
            yt = y[t * cout:(t + 1) * cout, :]           # static sublane slice
            # Gather matmul: exact 0/1 selection; keep it in f32 for accuracy.
            z = z + jnp.dot(yt, gt_ref[t].astype(f32),
                            preferred_element_type=f32)
        return z                                         # (C_out, M_out)

    # Layer 1: Conv(img_ch -> fm, 4, 2, 1) + LeakyReLU (no BN in the module);
    # its im2col patches are the kernel's HBM input.
    z = jnp.dot(w1_ref[...], p1_ref[...], preferred_element_type=f32)
    z = leaky(z)                                                    # (fm,  N*16*16)

    # Layers 2-4: Conv + BN(train) + LeakyReLU, all VMEM-resident.
    z = leaky(bn(conv(z, w2_ref, gt2_ref), g2_ref, b2_ref))         # (2fm, N*8*8)
    z = leaky(bn(conv(z, w3_ref, gt3_ref), g3_ref, b3_ref))         # (4fm, N*4*4)
    z = leaky(bn(conv(z, w4_ref, gt4_ref), g4_ref, b4_ref))         # (8fm, N*2*2)

    # Layer 5: Conv(8fm -> 1, 2, 1, 0) -> per-sample logits (1, N).
    out_ref[...] = conv(z, w5_ref, gt5_ref)


# ----------------------------------------------------------------------------
# Wrapper (jitted): layer-1 im2col + single pallas_call.
# ----------------------------------------------------------------------------
def _layer1_patches(imgs, k=4, stride=2, pad=1):
    # im2col for layer 1 only (cheap XLA glue on the tiny raw input).
    # Rows ordered (kh, kw, cin); columns ordered (n, oh, ow) to match w1/G.
    n, c, h, w = imgs.shape
    oh = (h + 2 * pad - k) // stride + 1
    ow = (w + 2 * pad - k) // stride + 1
    xp = jnp.pad(imgs, ((0, 0), (0, 0), (pad, pad), (pad, pad)))
    cols = []
    for kh in range(k):
        for kw in range(k):
            cols.append(xp[:, :, kh:kh + stride * oh:stride,
                           kw:kw + stride * ow:stride])              # (N,C,OH,OW)
    pat = jnp.stack(cols, axis=0)                                    # (KK,N,C,OH,OW)
    pat = jnp.transpose(pat, (0, 2, 1, 3, 4))                        # (KK,C,N,OH,OW)
    return pat.reshape(k * k * c, n * oh * ow).astype(jnp.bfloat16)


def discriminator_forward(imgs, packed):
    """imgs: (N, C, 32, 32) NCHW float32.  Returns (N,) logits (== .view(-1))."""
    n = imgs.shape[0]
    p1 = _layer1_patches(imgs)
    args = (p1,
            packed["w1"], packed["w2"], packed["w3"], packed["w4"], packed["w5"],
            packed["gt2"], packed["gt3"], packed["gt4"], packed["gt5"],
            packed["g2"], packed["b2"], packed["g3"], packed["b3"],
            packed["g4"], packed["b4"])
    vmem = pl.BlockSpec(memory_space=pltpu.MemorySpace.VMEM)
    out = pl.pallas_call(
        _discriminator_kernel,
        out_shape=jax.ShapeDtypeStruct((1, n), jnp.float32),
        in_specs=[vmem] * len(args),
        out_specs=vmem,
    )(*args)
    return out.reshape(-1)


# ----------------------------------------------------------------------------
# Parameters (PyTorch layout) + one-time pre-packing into kernel layouts.
# ----------------------------------------------------------------------------
def init_params(key, img_channels, feature_maps):
    """Conv weights (Cout, Cin, k, k) like PyTorch; BN gamma/beta per channel."""
    fm = feature_maps
    cfg = [(img_channels, fm, 4), (fm, fm * 2, 4), (fm * 2, fm * 4, 4),
           (fm * 4, fm * 8, 4), (fm * 8, 1, 2)]
    params = {}
    keys = jax.random.split(key, len(cfg))
    for i, ((cin, cout, k), sub) in enumerate(zip(cfg, keys), start=1):
        bound = 1.0 / math.sqrt(cin * k * k)   # ~ PyTorch kaiming-uniform bound
        params[f"w{i}"] = jax.random.uniform(sub, (cout, cin, k, k), jnp.float32,
                                             -bound, bound)
        if i in (2, 3, 4):                     # layers followed by BatchNorm2d
            params[f"g{i}"] = jnp.ones((cout,), jnp.float32)
            params[f"b{i}"] = jnp.zeros((cout,), jnp.float32)
    return params


def _gather_matrices(n, h, w, k, stride, pad):
    """G^T[t, m_in, m_out] = 1 iff input pixel m_in feeds output pixel m_out
    for tap t=(kh,kw); out-of-image taps stay 0 (== zero padding)."""
    oh = (h + 2 * pad - k) // stride + 1
    ow = (w + 2 * pad - k) // stride + 1
    gt = np.zeros((k * k, n * h * w, n * oh * ow), np.float32)
    for b in range(n):
        for oy in range(oh):
            for ox in range(ow):
                mo = (b * oh + oy) * ow + ox
                for kh in range(k):
                    ih = stride * oy - pad + kh
                    if ih < 0 or ih >= h:
                        continue
                    for kw in range(k):
                        iw = stride * ox - pad + kw
                        if iw < 0 or iw >= w:
                            continue
                        gt[kh * k + kw, (b * h + ih) * w + iw, mo] = 1.0
    return gt


def pack_params(params, batch, img_hw):
    """One-time pre-packing (outside the per-forward path)."""
    packed = {}
    # Layer 1: (Cout, Cin, k, k) -> (Cout, k*k*Cin); columns match patch rows.
    w1 = np.asarray(params["w1"])
    packed["w1"] = jnp.asarray(
        np.transpose(w1, (0, 2, 3, 1)).reshape(w1.shape[0], -1), jnp.bfloat16)
    # Layers 2-5: tap-major stacked weights (k*k*Cout, Cin).
    for i in (2, 3, 4, 5):
        wi = np.asarray(params[f"w{i}"])
        cout, cin, k, _ = wi.shape
        packed[f"w{i}"] = jnp.asarray(
            np.transpose(wi, (2, 3, 0, 1)).reshape(k * k * cout, cin), jnp.bfloat16)
    # Gather matrices for layers 2-5 (input spatial sizes 16, 8, 4, 2).
    specs = {2: (img_hw // 2, 4, 2, 1), 3: (img_hw // 4, 4, 2, 1),
             4: (img_hw // 8, 4, 2, 1), 5: (img_hw // 16, 2, 1, 0)}
    for i, (hw, k, s, p) in specs.items():
        packed[f"gt{i}"] = jnp.asarray(_gather_matrices(batch, hw, hw, k, s, p),
                                       jnp.bfloat16)
    for i in (2, 3, 4):
        packed[f"g{i}"] = jnp.asarray(params[f"g{i}"]).reshape(-1, 1)
        packed[f"b{i}"] = jnp.asarray(params[f"b{i}"]).reshape(-1, 1)
    return packed


# ----------------------------------------------------------------------------
# Pure-JAX (XLA conv, f32) reference for a numeric sanity check.
# ----------------------------------------------------------------------------
def reference_forward(imgs, params):
    def conv(x, w, s, p):
        return jax.lax.conv_general_dilated(
            x, w, window_strides=(s, s), padding=[(p, p), (p, p)],
            dimension_numbers=("NCHW", "OIHW", "NCHW"),
            precision=jax.lax.Precision.HIGHEST)

    def bn(x, g, b, eps=1e-5):
        mean = x.mean(axis=(0, 2, 3), keepdims=True)
        var = ((x - mean) ** 2).mean(axis=(0, 2, 3), keepdims=True)
        return (x - mean) * jax.lax.rsqrt(var + eps) * g.reshape(1, -1, 1, 1) \
               + b.reshape(1, -1, 1, 1)

    lrelu = lambda v: jnp.maximum(v, 0.2 * v)
    x = lrelu(conv(imgs, params["w1"], 2, 1))
    x = lrelu(bn(conv(x, params["w2"], 2, 1), params["g2"], params["b2"]))
    x = lrelu(bn(conv(x, params["w3"], 2, 1), params["g3"], params["b3"]))
    x = lrelu(bn(conv(x, params["w4"], 2, 1), params["g4"], params["b4"]))
    x = conv(x, params["w5"], 1, 0)
    return x.reshape(-1)


if __name__ == "__main__":
    # Small shapes consistent with the module: 32x32 input is required so the
    # conv stack reaches 1x1 before the final Conv2d(..., 1, 2, 1, 0).
    img_channels, num_classes, feature_maps = 3, 10, 8   # num_classes only feeds
    batch, img_hw = 2, 32                                # the unused label_emb.

    key = jax.random.PRNGKey(0)
    k_img, k_par = jax.random.split(key)
    imgs = jax.random.normal(k_img, (batch, img_channels, img_hw, img_hw), jnp.float32)
    params = init_params(k_par, img_channels, feature_maps)
    packed = pack_params(params, batch, img_hw)          # one-time pre-pack

    fwd = jax.jit(discriminator_forward)
    out = jax.block_until_ready(fwd(imgs, packed))
    assert out.shape == (batch,), out.shape

    ref = jax.block_until_ready(reference_forward(imgs, params))
    err = float(np.max(np.abs(np.asarray(out) - np.asarray(ref))))
    # bf16 matmul operands vs. an f32 reference: expected |err| ~ 1e-2 on
    # logits of magnitude ~0.3; real indexing/BN bugs give O(0.3+) errors.
    assert err < 7.5e-2, f"max |pallas - ref| = {err}"
    print("KERNEL_OK")
</pallas_src>

<mosaic_0001>
module attributes {stable_mosaic.version = 11 : i64} {
  func.func @_discriminator_kernel(%arg0: memref<48x512xbf16, #tpu.memory_space<vmem>>, %arg1: memref<8x48xbf16, #tpu.memory_space<vmem>>, %arg2: memref<256x8xbf16, #tpu.memory_space<vmem>>, %arg3: memref<512x16xbf16, #tpu.memory_space<vmem>>, %arg4: memref<1024x32xbf16, #tpu.memory_space<vmem>>, %arg5: memref<4x64xbf16, #tpu.memory_space<vmem>>, %arg6: memref<16x512x128xbf16, #tpu.memory_space<vmem>>, %arg7: memref<16x128x32xbf16, #tpu.memory_space<vmem>>, %arg8: memref<16x32x8xbf16, #tpu.memory_space<vmem>>, %arg9: memref<4x8x2xbf16, #tpu.memory_space<vmem>>, %arg10: memref<16x1xf32, #tpu.memory_space<vmem>>, %arg11: memref<16x1xf32, #tpu.memory_space<vmem>>, %arg12: memref<32x1xf32, #tpu.memory_space<vmem>>, %arg13: memref<32x1xf32, #tpu.memory_space<vmem>>, %arg14: memref<64x1xf32, #tpu.memory_space<vmem>>, %arg15: memref<64x1xf32, #tpu.memory_space<vmem>>, %arg16: memref<1x2xf32, #tpu.memory_space<vmem>>) attributes {dimension_semantics = [], scalar_prefetch = 0 : i64, scratch_operands = 0 : i64, tpu.core_type = #tpu.core_type<tc>} {
    %c0 = arith.constant 0 : index
    %c0_0 = arith.constant 0 : index
    %0 = vector.load %arg1[%c0, %c0_0] : memref<8x48xbf16, #tpu.memory_space<vmem>>, vector<8x48xbf16>
    %c0_1 = arith.constant 0 : index
    %c0_2 = arith.constant 0 : index
    %1 = vector.load %arg0[%c0_1, %c0_2] : memref<48x512xbf16, #tpu.memory_space<vmem>>, vector<48x512xbf16>
    %cst = arith.constant dense<0.000000e+00> : vector<8x512xf32>
    %2 = tpu.matmul %0, %1, %cst {dimension_numbers = #tpu.dot_dimension_numbers<[1], [0], [0], [1], [0, 0, 1, 1], [], []>} : vector<8x48xbf16>, vector<48x512xbf16>, vector<8x512xf32> -> vector<8x512xf32>
    %cst_3 = arith.constant 2.000000e-01 : f32
    %3 = vector.broadcast %cst_3 : f32 to vector<8x512xf32>
    %4 = arith.mulf %3, %2 : vector<8x512xf32>
    %5 = arith.maximumf %2, %4 : vector<8x512xf32>
    %c0_4 = arith.constant 0 : index
    %c0_5 = arith.constant 0 : index
    %6 = vector.load %arg2[%c0_4, %c0_5] : memref<256x8xbf16, #tpu.memory_space<vmem>>, vector<256x8xbf16>
    %7 = arith.truncf %5 : vector<8x512xf32> to vector<8x512xbf16>
    %cst_6 = arith.constant dense<0.000000e+00> : vector<256x512xf32>
    %8 = tpu.matmul %6, %7, %cst_6 {dimension_numbers = #tpu.dot_dimension_numbers<[1], [0], [0], [1], [0, 0, 1, 1], [], []>} : vector<256x8xbf16>, vector<8x512xbf16>, vector<256x512xf32> -> vector<256x512xf32>
    %cst_7 = arith.constant 0.000000e+00 : f32
    %9 = vector.broadcast %cst_7 : f32 to vector<16x128xf32>
    %10 = vector.extract_strided_slice %8 {offsets = [0, 0], sizes = [16, 512], strides = [1, 1]} : vector<256x512xf32> to vector<16x512xf32>
    %c0_8 = arith.constant 0 : index
    %c0_9 = arith.constant 0 : index
    %c0_10 = arith.constant 0 : index
    %11 = vector.load %arg6[%c0_8, %c0_9, %c0_10] : memref<16x512x128xbf16, #tpu.memory_space<vmem>>, vector<1x512x128xbf16>
    %12 = vector.shape_cast %11 : vector<1x512x128xbf16> to vector<512x128xbf16>
    %13 = arith.extf %12 : vector<512x128xbf16> to vector<512x128xf32>
    %cst_11 = arith.constant dense<0.000000e+00> : vector<16x128xf32>
    %14 = tpu.matmul %10, %13, %cst_11 {dimension_numbers = #tpu.dot_dimension_numbers<[1], [0], [0], [1], [0, 0, 1, 1], [], []>} : vector<16x512xf32>, vector<512x128xf32>, vector<16x128xf32> -> vector<16x128xf32>
    %15 = arith.addf %9, %14 : vector<16x128xf32>
    %16 = vector.extract_strided_slice %8 {offsets = [16, 0], sizes = [16, 512], strides = [1, 1]} : vector<256x512xf32> to vector<16x512xf32>
    %c1 = arith.constant 1 : index
    %c0_12 = arith.constant 0 : index
    %c0_13 = arith.constant 0 : index
    %17 = vector.load %arg6[%c1, %c0_12, %c0_13] : memref<16x512x128xbf16, #tpu.memory_space<vmem>>, vector<1x512x128xbf16>
    %18 = vector.shape_cast %17 : vector<1x512x128xbf16> to vector<512x128xbf16>
    %19 = arith.extf %18 : vector<512x128xbf16> to vector<512x128xf32>
    %cst_14 = arith.constant dense<0.000000e+00> : vector<16x128xf32>
    %20 = tpu.matmul %16, %19, %cst_14 {dimension_numbers = #tpu.dot_dimension_numbers<[1], [0], [0], [1], [0, 0, 1, 1], [], []>} : vector<16x512xf32>, vector<512x128xf32>, vector<16x128xf32> -> vector<16x128xf32>
    %21 = arith.addf %15, %20 : vector<16x128xf32>
    %22 = vector.extract_strided_slice %8 {offsets = [32, 0], sizes = [16, 512], strides = [1, 1]} : vector<256x512xf32> to vector<16x512xf32>
    %c2 = arith.constant 2 : index
    %c0_15 = arith.constant 0 : index
    %c0_16 = arith.constant 0 : index
    %23 = vector.load %arg6[%c2, %c0_15, %c0_16] : memref<16x512x128xbf16, #tpu.memory_space<vmem>>, vector<1x512x128xbf16>
    %24 = vector.shape_cast %23 : vector<1x512x128xbf16> to vector<512x128xbf16>
    %25 = arith.extf %24 : vector<512x128xbf16> to vector<512x128xf32>
    %cst_17 = arith.constant dense<0.000000e+00> : vector<16x128xf32>
    %26 = tpu.matmul %22, %25, %cst_17 {dimension_numbers = #tpu.dot_dimension_numbers<[1], [0], [0], [1], [0, 0, 1, 1], [], []>} : vector<16x512xf32>, vector<512x128xf32>, vector<16x128xf32> -> vector<16x128xf32>
    %27 = arith.addf %21, %26 : vector<16x128xf32>
    %28 = vector.extract_strided_slice %8 {offsets = [48, 0], sizes = [16, 512], strides = [1, 1]} : vector<256x512xf32> to vector<16x512xf32>
    %c3 = arith.constant 3 : index
    %c0_18 = arith.constant 0 : index
    %c0_19 = arith.constant 0 : index
    %29 = vector.load %arg6[%c3, %c0_18, %c0_19] : memref<16x512x128xbf16, #tpu.memory_space<vmem>>, vector<1x512x128xbf16>
    %30 = vector.shape_cast %29 : vector<1x512x128xbf16> to vector<512x128xbf16>
    %31 = arith.extf %30 : vector<512x128xbf16> to vector<512x128xf32>
    %cst_20 = arith.constant dense<0.000000e+00> : vector<16x128xf32>
    %32 = tpu.matmul %28, %31, %cst_20 {dimension_numbers = #tpu.dot_dimension_numbers<[1], [0], [0], [1], [0, 0, 1, 1], [], []>} : vector<16x512xf32>, vector<512x128xf32>, vector<16x128xf32> -> vector<16x128xf32>
    %33 = arith.addf %27, %32 : vector<16x128xf32>
    %34 = vector.extract_strided_slice %8 {offsets = [64, 0], sizes = [16, 512], strides = [1, 1]} : vector<256x512xf32> to vector<16x512xf32>
    %c4 = arith.constant 4 : index
    %c0_21 = arith.constant 0 : index
    %c0_22 = arith.constant 0 : index
    %35 = vector.load %arg6[%c4, %c0_21, %c0_22] : memref<16x512x128xbf16, #tpu.memory_space<vmem>>, vector<1x512x128xbf16>
    %36 = vector.shape_cast %35 : vector<1x512x128xbf16> to vector<512x128xbf16>
    %37 = arith.extf %36 : vector<512x128xbf16> to vector<512x128xf32>
    %cst_23 = arith.constant dense<0.000000e+00> : vector<16x128xf32>
    %38 = tpu.matmul %34, %37, %cst_23 {dimension_numbers = #tpu.dot_dimension_numbers<[1], [0], [0], [1], [0, 0, 1, 1], [], []>} : vector<16x512xf32>, vector<512x128xf32>, vector<16x128xf32> -> vector<16x128xf32>
    %39 = arith.addf %33, %38 : vector<16x128xf32>
    %40 = vector.extract_strided_slice %8 {offsets = [80, 0], sizes = [16, 512], strides = [1, 1]} : vector<256x512xf32> to vector<16x512xf32>
    %c5 = arith.constant 5 : index
    %c0_24 = arith.constant 0 : index
    %c0_25 = arith.constant 0 : index
    %41 = vector.load %arg6[%c5, %c0_24, %c0_25] : memref<16x512x128xbf16, #tpu.memory_space<vmem>>, vector<1x512x128xbf16>
    %42 = vector.shape_cast %41 : vector<1x512x128xbf16> to vector<512x128xbf16>
    %43 = arith.extf %42 : vector<512x128xbf16> to vector<512x128xf32>
    %cst_26 = arith.constant dense<0.000000e+00> : vector<16x128xf32>
    %44 = tpu.matmul %40, %43, %cst_26 {dimension_numbers = #tpu.dot_dimension_numbers<[1], [0], [0], [1], [0, 0, 1, 1], [], []>} : vector<16x512xf32>, vector<512x128xf32>, vector<16x128xf32> -> vector<16x128xf32>
    %45 = arith.addf %39, %44 : vector<16x128xf32>
    %46 = vector.extract_strided_slice %8 {offsets = [96, 0], sizes = [16, 512], strides = [1, 1]} : vector<256x512xf32> to vector<16x512xf32>
    %c6 = arith.constant 6 : index
    %c0_27 = arith.constant 0 : index
    %c0_28 = arith.constant 0 : index
    %47 = vector.load %arg6[%c6, %c0_27, %c0_28] : memref<16x512x128xbf16, #tpu.memory_space<vmem>>, vector<1x512x128xbf16>
    %48 = vector.shape_cast %47 : vector<1x512x128xbf16> to vector<512x128xbf16>
    %49 = arith.extf %48 : vector<512x128xbf16> to vector<512x128xf32>
    %cst_29 = arith.constant dense<0.000000e+00> : vector<16x128xf32>
    %50 = tpu.matmul %46, %49, %cst_29 {dimension_numbers = #tpu.dot_dimension_numbers<[1], [0], [0], [1], [0, 0, 1, 1], [], []>} : vector<16x512xf32>, vector<512x128xf32>, vector<16x128xf32> -> vector<16x128xf32>
    %51 = arith.addf %45, %50 : vector<16x128xf32>
    %52 = vector.extract_strided_slice %8 {offsets = [112, 0], sizes = [16, 512], strides = [1, 1]} : vector<256x512xf32> to vector<16x512xf32>
    %c7 = arith.constant 7 : index
    %c0_30 = arith.constant 0 : index
    %c0_31 = arith.constant 0 : index
    %53 = vector.load %arg6[%c7, %c0_30, %c0_31] : memref<16x512x128xbf16, #tpu.memory_space<vmem>>, vector<1x512x128xbf16>
    %54 = vector.shape_cast %53 : vector<1x512x128xbf16> to vector<512x128xbf16>
    %55 = arith.extf %54 : vector<512x128xbf16> to vector<512x128xf32>
    %cst_32 = arith.constant dense<0.000000e+00> : vector<16x128xf32>
    %56 = tpu.matmul %52, %55, %cst_32 {dimension_numbers = #tpu.dot_dimension_numbers<[1], [0], [0], [1], [0, 0, 1, 1], [], []>} : vector<16x512xf32>, vector<512x128xf32>, vector<16x128xf32> -> vector<16x128xf32>
    %57 = arith.addf %51, %56 : vector<16x128xf32>
    %58 = vector.extract_strided_slice %8 {offsets = [128, 0], sizes = [16, 512], strides = [1, 1]} : vector<256x512xf32> to vector<16x512xf32>
    %c8 = arith.constant 8 : index
    %c0_33 = arith.constant 0 : index
    %c0_34 = arith.constant 0 : index
    %59 = vector.load %arg6[%c8, %c0_33, %c0_34] : memref<16x512x128xbf16, #tpu.memory_space<vmem>>, vector<1x512x128xbf16>
    %60 = vector.shape_cast %59 : vector<1x512x128xbf16> to vector<512x128xbf16>
    %61 = arith.extf %60 : vector<512x128xbf16> to vector<512x128xf32>
    %cst_35 = arith.constant dense<0.000000e+00> : vector<16x128xf32>
    %62 = tpu.matmul %58, %61, %cst_35 {dimension_numbers = #tpu.dot_dimension_numbers<[1], [0], [0], [1], [0, 0, 1, 1], [], []>} : vector<16x512xf32>, vector<512x128xf32>, vector<16x128xf32> -> vector<16x128xf32>
    %63 = arith.addf %57, %62 : vector<16x128xf32>
    %64 = vector.extract_strided_slice %8 {offsets = [144, 0], sizes = [16, 512], strides = [1, 1]} : vector<256x512xf32> to vector<16x512xf32>
    %c9 = arith.constant 9 : index
    %c0_36 = arith.constant 0 : index
    %c0_37 = arith.constant 0 : index
    %65 = vector.load %arg6[%c9, %c0_36, %c0_37] : memref<16x512x128xbf16, #tpu.memory_space<vmem>>, vector<1x512x128xbf16>
    %66 = vector.shape_cast %65 : vector<1x512x128xbf16> to vector<512x128xbf16>
    %67 = arith.extf %66 : vector<512x128xbf16> to vector<512x128xf32>
    %cst_38 = arith.constant dense<0.000000e+00> : vector<16x128xf32>
    %68 = tpu.matmul %64, %67, %cst_38 {dimension_numbers = #tpu.dot_dimension_numbers<[1], [0], [0], [1], [0, 0, 1, 1], [], []>} : vector<16x512xf32>, vector<512x128xf32>, vector<16x128xf32> -> vector<16x128xf32>
    %69 = arith.addf %63, %68 : vector<16x128xf32>
    %70 = vector.extract_strided_slice %8 {offsets = [160, 0], sizes = [16, 512], strides = [1, 1]} : vector<256x512xf32> to vector<16x512xf32>
    %c10 = arith.constant 10 : index
    %c0_39 = arith.constant 0 : index
    %c0_40 = arith.constant 0 : index
    %71 = vector.load %arg6[%c10, %c0_39, %c0_40] : memref<16x512x128xbf16, #tpu.memory_space<vmem>>, vector<1x512x128xbf16>
    %72 = vector.shape_cast %71 : vector<1x512x128xbf16> to vector<512x128xbf16>
    %73 = arith.extf %72 : vector<512x128xbf16> to vector<512x128xf32>
    %cst_41 = arith.constant dense<0.000000e+00> : vector<16x128xf32>
    %74 = tpu.matmul %70, %73, %cst_41 {dimension_numbers = #tpu.dot_dimension_numbers<[1], [0], [0], [1], [0, 0, 1, 1], [], []>} : vector<16x512xf32>, vector<512x128xf32>, vector<16x128xf32> -> vector<16x128xf32>
    %75 = arith.addf %69, %74 : vector<16x128xf32>
    %76 = vector.extract_strided_slice %8 {offsets = [176, 0], sizes = [16, 512], strides = [1, 1]} : vector<256x512xf32> to vector<16x512xf32>
    %c11 = arith.constant 11 : index
    %c0_42 = arith.constant 0 : index
    %c0_43 = arith.constant 0 : index
    %77 = vector.load %arg6[%c11, %c0_42, %c0_43] : memref<16x512x128xbf16, #tpu.memory_space<vmem>>, vector<1x512x128xbf16>
    %78 = vector.shape_cast %77 : vector<1x512x128xbf16> to vector<512x128xbf16>
    %79 = arith.extf %78 : vector<512x128xbf16> to vector<512x128xf32>
    %cst_44 = arith.constant dense<0.000000e+00> : vector<16x128xf32>
    %80 = tpu.matmul %76, %79, %cst_44 {dimension_numbers = #tpu.dot_dimension_numbers<[1], [0], [0], [1], [0, 0, 1, 1], [], []>} : vector<16x512xf32>, vector<512x128xf32>, vector<16x128xf32> -> vector<16x128xf32>
    %81 = arith.addf %75, %80 : vector<16x128xf32>
    %82 = vector.extract_strided_slice %8 {offsets = [192, 0], sizes = [16, 512], strides = [1, 1]} : vector<256x512xf32> to vector<16x512xf32>
    %c12 = arith.constant 12 : index
    %c0_45 = arith.constant 0 : index
    %c0_46 = arith.constant 0 : index
    %83 = vector.load %arg6[%c12, %c0_45, %c0_46] : memref<16x512x128xbf16, #tpu.memory_space<vmem>>, vector<1x512x128xbf16>
    %84 = vector.shape_cast %83 : vector<1x512x128xbf16> to vector<512x128xbf16>
    %85 = arith.extf %84 : vector<512x128xbf16> to vector<512x128xf32>
    %cst_47 = arith.constant dense<0.000000e+00> : vector<16x128xf32>
    %86 = tpu.matmul %82, %85, %cst_47 {dimension_numbers = #tpu.dot_dimension_numbers<[1], [0], [0], [1], [0, 0, 1, 1], [], []>} : vector<16x512xf32>, vector<512x128xf32>, vector<16x128xf32> -> vector<16x128xf32>
    %87 = arith.addf %81, %86 : vector<16x128xf32>
    %88 = vector.extract_strided_slice %8 {offsets = [208, 0], sizes = [16, 512], strides = [1, 1]} : vector<256x512xf32> to vector<16x512xf32>
    %c13 = arith.constant 13 : index
    %c0_48 = arith.constant 0 : index
    %c0_49 = arith.constant 0 : index
    %89 = vector.load %arg6[%c13, %c0_48, %c0_49] : memref<16x512x128xbf16, #tpu.memory_space<vmem>>, vector<1x512x128xbf16>
    %90 = vector.shape_cast %89 : vector<1x512x128xbf16> to vector<512x128xbf16>
    %91 = arith.extf %90 : vector<512x128xbf16> to vector<512x128xf32>
    %cst_50 = arith.constant dense<0.000000e+00> : vector<16x128xf32>
    %92 = tpu.matmul %88, %91, %cst_50 {dimension_numbers = #tpu.dot_dimension_numbers<[1], [0], [0], [1], [0, 0, 1, 1], [], []>} : vector<16x512xf32>, vector<512x128xf32>, vector<16x128xf32> -> vector<16x128xf32>
    %93 = arith.addf %87, %92 : vector<16x128xf32>
    %94 = vector.extract_strided_slice %8 {offsets = [224, 0], sizes = [16, 512], strides = [1, 1]} : vector<256x512xf32> to vector<16x512xf32>
    %c14 = arith.constant 14 : index
    %c0_51 = arith.constant 0 : index
    %c0_52 = arith.constant 0 : index
    %95 = vector.load %arg6[%c14, %c0_51, %c0_52] : memref<16x512x128xbf16, #tpu.memory_space<vmem>>, vector<1x512x128xbf16>
    %96 = vector.shape_cast %95 : vector<1x512x128xbf16> to vector<512x128xbf16>
    %97 = arith.extf %96 : vector<512x128xbf16> to vector<512x128xf32>
    %cst_53 = arith.constant dense<0.000000e+00> : vector<16x128xf32>
    %98 = tpu.matmul %94, %97, %cst_53 {dimension_numbers = #tpu.dot_dimension_numbers<[1], [0], [0], [1], [0, 0, 1, 1], [], []>} : vector<16x512xf32>, vector<512x128xf32>, vector<16x128xf32> -> vector<16x128xf32>
    %99 = arith.addf %93, %98 : vector<16x128xf32>
    %100 = vector.extract_strided_slice %8 {offsets = [240, 0], sizes = [16, 512], strides = [1, 1]} : vector<256x512xf32> to vector<16x512xf32>
    %c15 = arith.constant 15 : index
    %c0_54 = arith.constant 0 : index
    %c0_55 = arith.constant 0 : index
    %101 = vector.load %arg6[%c15, %c0_54, %c0_55] : memref<16x512x128xbf16, #tpu.memory_space<vmem>>, vector<1x512x128xbf16>
    %102 = vector.shape_cast %101 : vector<1x512x128xbf16> to vector<512x128xbf16>
    %103 = arith.extf %102 : vector<512x128xbf16> to vector<512x128xf32>
    %cst_56 = arith.constant dense<0.000000e+00> : vector<16x128xf32>
    %104 = tpu.matmul %100, %103, %cst_56 {dimension_numbers = #tpu.dot_dimension_numbers<[1], [0], [0], [1], [0, 0, 1, 1], [], []>} : vector<16x512xf32>, vector<512x128xf32>, vector<16x128xf32> -> vector<16x128xf32>
    %105 = arith.addf %99, %104 : vector<16x128xf32>
    %cst_57 = arith.constant dense<0.000000e+00> : vector<16xf32>
    %106 = vector.multi_reduction <add>, %105, %cst_57 [1] : vector<16x128xf32> to vector<16xf32>
    %107 = vector.shape_cast %106 : vector<16xf32> to vector<16x1xf32>
    %108 = arith.mulf %105, %105 : vector<16x128xf32>
    %cst_58 = arith.constant dense<0.000000e+00> : vector<16xf32>
    %109 = vector.multi_reduction <add>, %108, %cst_58 [1] : vector<16x128xf32> to vector<16xf32>
    %110 = vector.shape_cast %109 : vector<16xf32> to vector<16x1xf32>
    %cst_59 = arith.constant 7.812500e-03 : f32
    %111 = vector.broadcast %cst_59 : f32 to vector<16x1xf32>
    %112 = arith.mulf %107, %111 : vector<16x1xf32>
    %cst_60 = arith.constant 7.812500e-03 : f32
    %113 = vector.broadcast %cst_60 : f32 to vector<16x1xf32>
    %114 = arith.mulf %110, %113 : vector<16x1xf32>
    %115 = arith.mulf %112, %112 : vector<16x1xf32>
    %116 = arith.subf %114, %115 : vector<16x1xf32>
    %cst_61 = arith.constant 9.99999974E-6 : f32
    %117 = vector.broadcast %cst_61 : f32 to vector<16x1xf32>
    %118 = arith.addf %116, %117 : vector<16x1xf32>
    %119 = math.rsqrt %118 : vector<16x1xf32>
    %120 = vector.broadcast %112 : vector<16x1xf32> to vector<16x128xf32>
    %121 = arith.subf %105, %120 : vector<16x128xf32>
    %c0_62 = arith.constant 0 : index
    %c0_63 = arith.constant 0 : index
    %122 = vector.load %arg10[%c0_62, %c0_63] : memref<16x1xf32, #tpu.memory_space<vmem>>, vector<16x1xf32>
    %123 = arith.mulf %119, %122 : vector<16x1xf32>
    %124 = vector.broadcast %123 : vector<16x1xf32> to vector<16x128xf32>
    %125 = arith.mulf %121, %124 : vector<16x128xf32>
    %c0_64 = arith.constant 0 : index
    %c0_65 = arith.constant 0 : index
    %126 = vector.load %arg11[%c0_64, %c0_65] : memref<16x1xf32, #tpu.memory_space<vmem>>, vector<16x1xf32>
    %127 = vector.broadcast %126 : vector<16x1xf32> to vector<16x128xf32>
    %128 = arith.addf %125, %127 : vector<16x128xf32>
    %cst_66 = arith.constant 2.000000e-01 : f32
    %129 = vector.broadcast %cst_66 : f32 to vector<16x128xf32>
    %130 = arith.mulf %129, %128 : vector<16x128xf32>
    %131 = arith.maximumf %128, %130 : vector<16x128xf32>
    %c0_67 = arith.constant 0 : index
    %c0_68 = arith.constant 0 : index
    %132 = vector.load %arg3[%c0_67, %c0_68] : memref<512x16xbf16, #tpu.memory_space<vmem>>, vector<512x16xbf16>
    %133 = arith.truncf %131 : vector<16x128xf32> to vector<16x128xbf16>
    %cst_69 = arith.constant dense<0.000000e+00> : vector<512x128xf32>
    %134 = tpu.matmul %132, %133, %cst_69 {dimension_numbers = #tpu.dot_dimension_numbers<[1], [0], [0], [1], [0, 0, 1, 1], [], []>} : vector<512x16xbf16>, vector<16x128xbf16>, vector<512x128xf32> -> vector<512x128xf32>
    %cst_70 = arith.constant 0.000000e+00 : f32
    %135 = vector.broadcast %cst_70 : f32 to vector<32x32xf32>
    %136 = vector.extract_strided_slice %134 {offsets = [0, 0], sizes = [32, 128], strides = [1, 1]} : vector<512x128xf32> to vector<32x128xf32>
    %c0_71 = arith.constant 0 : index
    %c0_72 = arith.constant 0 : index
    %c0_73 = arith.constant 0 : index
    %137 = vector.load %arg7[%c0_71, %c0_72, %c0_73] : memref<16x128x32xbf16, #tpu.memory_space<vmem>>, vector<1x128x32xbf16>
    %138 = vector.shape_cast %137 : vector<1x128x32xbf16> to vector<128x32xbf16>
    %139 = arith.extf %138 : vector<128x32xbf16> to vector<128x32xf32>
    %cst_74 = arith.constant dense<0.000000e+00> : vector<32x32xf32>
    %140 = tpu.matmul %136, %139, %cst_74 {dimension_numbers = #tpu.dot_dimension_numbers<[1], [0], [0], [1], [0, 0, 1, 1], [], []>} : vector<32x128xf32>, vector<128x32xf32>, vector<32x32xf32> -> vector<32x32xf32>
    %141 = arith.addf %135, %140 : vector<32x32xf32>
    %142 = vector.extract_strided_slice %134 {offsets = [32, 0], sizes = [32, 128], strides = [1, 1]} : vector<512x128xf32> to vector<32x128xf32>
    %c1_75 = arith.constant 1 : index
    %c0_76 = arith.constant 0 : index
    %c0_77 = arith.constant 0 : index
    %143 = vector.load %arg7[%c1_75, %c0_76, %c0_77] : memref<16x128x32xbf16, #tpu.memory_space<vmem>>, vector<1x128x32xbf16>
    %144 = vector.shape_cast %143 : vector<1x128x32xbf16> to vector<128x32xbf16>
    %145 = arith.extf %144 : vector<128x32xbf16> to vector<128x32xf32>
    %cst_78 = arith.constant dense<0.000000e+00> : vector<32x32xf32>
    %146 = tpu.matmul %142, %145, %cst_78 {dimension_numbers = #tpu.dot_dimension_numbers<[1], [0], [0], [1], [0, 0, 1, 1], [], []>} : vector<32x128xf32>, vector<128x32xf32>, vector<32x32xf32> -> vector<32x32xf32>
    %147 = arith.addf %141, %146 : vector<32x32xf32>
    %148 = vector.extract_strided_slice %134 {offsets = [64, 0], sizes = [32, 128], strides = [1, 1]} : vector<512x128xf32> to vector<32x128xf32>
    %c2_79 = arith.constant 2 : index
    %c0_80 = arith.constant 0 : index
    %c0_81 = arith.constant 0 : index
    %149 = vector.load %arg7[%c2_79, %c0_80, %c0_81] : memref<16x128x32xbf16, #tpu.memory_space<vmem>>, vector<1x128x32xbf16>
    %150 = vector.shape_cast %149 : vector<1x128x32xbf16> to vector<128x32xbf16>
    %151 = arith.extf %150 : vector<128x32xbf16> to vector<128x32xf32>
    %cst_82 = arith.constant dense<0.000000e+00> : vector<32x32xf32>
    %152 = tpu.matmul %148, %151, %cst_82 {dimension_numbers = #tpu.dot_dimension_numbers<[1], [0], [0], [1], [0, 0, 1, 1], [], []>} : vector<32x128xf32>, vector<128x32xf32>, vector<32x32xf32> -> vector<32x32xf32>
    %153 = arith.addf %147, %152 : vector<32x32xf32>
    %154 = vector.extract_strided_slice %134 {offsets = [96, 0], sizes = [32, 128], strides = [1, 1]} : vector<512x128xf32> to vector<32x128xf32>
    %c3_83 = arith.constant 3 : index
    %c0_84 = arith.constant 0 : index
    %c0_85 = arith.constant 0 : index
    %155 = vector.load %arg7[%c3_83, %c0_84, %c0_85] : memref<16x128x32xbf16, #tpu.memory_space<vmem>>, vector<1x128x32xbf16>
    %156 = vector.shape_cast %155 : vector<1x128x32xbf16> to vector<128x32xbf16>
    %157 = arith.extf %156 : vector<128x32xbf16> to vector<128x32xf32>
    %cst_86 = arith.constant dense<0.000000e+00> : vector<32x32xf32>
    %158 = tpu.matmul %154, %157, %cst_86 {dimension_numbers = #tpu.dot_dimension_numbers<[1], [0], [0], [1], [0, 0, 1, 1], [], []>} : vector<32x128xf32>, vector<128x32xf32>, vector<32x32xf32> -> vector<32x32xf32>
    %159 = arith.addf %153, %158 : vector<32x32xf32>
    %160 = vector.extract_strided_slice %134 {offsets = [128, 0], sizes = [32, 128], strides = [1, 1]} : vector<512x128xf32> to vector<32x128xf32>
    %c4_87 = arith.constant 4 : index
    %c0_88 = arith.constant 0 : index
    %c0_89 = arith.constant 0 : index
    %161 = vector.load %arg7[%c4_87, %c0_88, %c0_89] : memref<16x128x32xbf16, #tpu.memory_space<vmem>>, vector<1x128x32xbf16>
    %162 = vector.shape_cast %161 : vector<1x128x32xbf16> to vector<128x32xbf16>
    %163 = arith.extf %162 : vector<128x32xbf16> to vector<128x32xf32>
    %cst_90 = arith.constant dense<0.000000e+00> : vector<32x32xf32>
    %164 = tpu.matmul %160, %163, %cst_90 {dimension_numbers = #tpu.dot_dimension_numbers<[1], [0], [0], [1], [0, 0, 1, 1], [], []>} : vector<32x128xf32>, vector<128x32xf32>, vector<32x32xf32> -> vector<32x32xf32>
    %165 = arith.addf %159, %164 : vector<32x32xf32>
    %166 = vector.extract_strided_slice %134 {offsets = [160, 0], sizes = [32, 128], strides = [1, 1]} : vector<512x128xf32> to vector<32x128xf32>
    %c5_91 = arith.constant 5 : index
    %c0_92 = arith.constant 0 : index
    %c0_93 = arith.constant 0 : index
    %167 = vector.load %arg7[%c5_91, %c0_92, %c0_93] : memref<16x128x32xbf16, #tpu.memory_space<vmem>>, vector<1x128x32xbf16>
    %168 = vector.shape_cast %167 : vector<1x128x32xbf16> to vector<128x32xbf16>
    %169 = arith.extf %168 : vector<128x32xbf16> to vector<128x32xf32>
    %cst_94 = arith.constant dense<0.000000e+00> : vector<32x32xf32>
    %170 = tpu.matmul %166, %169, %cst_94 {dimension_numbers = #tpu.dot_dimension_numbers<[1], [0], [0], [1], [0, 0, 1, 1], [], []>} : vector<32x128xf32>, vector<128x32xf32>, vector<32x32xf32> -> vector<32x32xf32>
    %171 = arith.addf %165, %170 : vector<32x32xf32>
    %172 = vector.extract_strided_slice %134 {offsets = [192, 0], sizes = [32, 128], strides = [1, 1]} : vector<512x128xf32> to vector<32x128xf32>
    %c6_95 = arith.constant 6 : index
    %c0_96 = arith.constant 0 : index
    %c0_97 = arith.constant 0 : index
    %173 = vector.load %arg7[%c6_95, %c0_96, %c0_97] : memref<16x128x32xbf16, #tpu.memory_space<vmem>>, vector<1x128x32xbf16>
    %174 = vector.shape_cast %173 : vector<1x128x32xbf16> to vector<128x32xbf16>
    %175 = arith.extf %174 : vector<128x32xbf16> to vector<128x32xf32>
    %cst_98 = arith.constant dense<0.000000e+00> : vector<32x32xf32>
    %176 = tpu.matmul %172, %175, %cst_98 {dimension_numbers = #tpu.dot_dimension_numbers<[1], [0], [0], [1], [0, 0, 1, 1], [], []>} : vector<32x128xf32>, vector<128x32xf32>, vector<32x32xf32> -> vector<32x32xf32>
    %177 = arith.addf %171, %176 : vector<32x32xf32>
    %178 = vector.extract_strided_slice %134 {offsets = [224, 0], sizes = [32, 128], strides = [1, 1]} : vector<512x128xf32> to vector<32x128xf32>
    %c7_99 = arith.constant 7 : index
    %c0_100 = arith.constant 0 : index
    %c0_101 = arith.constant 0 : index
    %179 = vector.load %arg7[%c7_99, %c0_100, %c0_101] : memref<16x128x32xbf16, #tpu.memory_space<vmem>>, vector<1x128x32xbf16>
    %180 = vector.shape_cast %179 : vector<1x128x32xbf16> to vector<128x32xbf16>
    %181 = arith.extf %180 : vector<128x32xbf16> to vector<128x32xf32>
    %cst_102 = arith.constant dense<0.000000e+00> : vector<32x32xf32>
    %182 = tpu.matmul %178, %181, %cst_102 {dimension_numbers = #tpu.dot_dimension_numbers<[1], [0], [0], [1], [0, 0, 1, 1], [], []>} : vector<32x128xf32>, vector<128x32xf32>, vector<32x32xf32> -> vector<32x32xf32>
    %183 = arith.addf %177, %182 : vector<32x32xf32>
    %184 = vector.extract_strided_slice %134 {offsets = [256, 0], sizes = [32, 128], strides = [1, 1]} : vector<512x128xf32> to vector<32x128xf32>
    %c8_103 = arith.constant 8 : index
    %c0_104 = arith.constant 0 : index
    %c0_105 = arith.constant 0 : index
    %185 = vector.load %arg7[%c8_103, %c0_104, %c0_105] : memref<16x128x32xbf16, #tpu.memory_space<vmem>>, vector<1x128x32xbf16>
    %186 = vector.shape_cast %185 : vector<1x128x32xbf16> to vector<128x32xbf16>
    %187 = arith.extf %186 : vector<128x32xbf16> to vector<128x32xf32>
    %cst_106 = arith.constant dense<0.000000e+00> : vector<32x32xf32>
    %188 = tpu.matmul %184, %187, %cst_106 {dimension_numbers = #tpu.dot_dimension_numbers<[1], [0], [0], [1], [0, 0, 1, 1], [], []>} : vector<32x128xf32>, vector<128x32xf32>, vector<32x32xf32> -> vector<32x32xf32>
    %189 = arith.addf %183, %188 : vector<32x32xf32>
    %190 = vector.extract_strided_slice %134 {offsets = [288, 0], sizes = [32, 128], strides = [1, 1]} : vector<512x128xf32> to vector<32x128xf32>
    %c9_107 = arith.constant 9 : index
    %c0_108 = arith.constant 0 : index
    %c0_109 = arith.constant 0 : index
    %191 = vector.load %arg7[%c9_107, %c0_108, %c0_109] : memref<16x128x32xbf16, #tpu.memory_space<vmem>>, vector<1x128x32xbf16>
    %192 = vector.shape_cast %191 : vector<1x128x32xbf16> to vector<128x32xbf16>
    %193 = arith.extf %192 : vector<128x32xbf16> to vector<128x32xf32>
    %cst_110 = arith.constant dense<0.000000e+00> : vector<32x32xf32>
    %194 = tpu.matmul %190, %193, %cst_110 {dimension_numbers = #tpu.dot_dimension_numbers<[1], [0], [0], [1], [0, 0, 1, 1], [], []>} : vector<32x128xf32>, vector<128x32xf32>, vector<32x32xf32> -> vector<32x32xf32>
    %195 = arith.addf %189, %194 : vector<32x32xf32>
    %196 = vector.extract_strided_slice %134 {offsets = [320, 0], sizes = [32, 128], strides = [1, 1]} : vector<512x128xf32> to vector<32x128xf32>
    %c10_111 = arith.constant 10 : index
    %c0_112 = arith.constant 0 : index
    %c0_113 = arith.constant 0 : index
    %197 = vector.load %arg7[%c10_111, %c0_112, %c0_113] : memref<16x128x32xbf16, #tpu.memory_space<vmem>>, vector<1x128x32xbf16>
    %198 = vector.shape_cast %197 : vector<1x128x32xbf16> to vector<128x32xbf16>
    %199 = arith.extf %198 : vector<128x32xbf16> to vector<128x32xf32>
    %cst_114 = arith.constant dense<0.000000e+00> : vector<32x32xf32>
    %200 = tpu.matmul %196, %199, %cst_114 {dimension_numbers = #tpu.dot_dimension_numbers<[1], [0], [0], [1], [0, 0, 1, 1], [], []>} : vector<32x128xf32>, vector<128x32xf32>, vector<32x32xf32> -> vector<32x32xf32>
    %201 = arith.addf %195, %200 : vector<32x32xf32>
    %202 = vector.extract_strided_slice %134 {offsets = [352, 0], sizes = [32, 128], strides = [1, 1]} : vector<512x128xf32> to vector<32x128xf32>
    %c11_115 = arith.constant 11 : index
    %c0_116 = arith.constant 0 : index
    %c0_117 = arith.constant 0 : index
    %203 = vector.load %arg7[%c11_115, %c0_116, %c0_117] : memref<16x128x32xbf16, #tpu.memory_space<vmem>>, vector<1x128x32xbf16>
    %204 = vector.shape_cast %203 : vector<1x128x32xbf16> to vector<128x32xbf16>
    %205 = arith.extf %204 : vector<128x32xbf16> to vector<128x32xf32>
    %cst_118 = arith.constant dense<0.000000e+00> : vector<32x32xf32>
    %206 = tpu.matmul %202, %205, %cst_118 {dimension_numbers = #tpu.dot_dimension_numbers<[1], [0], [0], [1], [0, 0, 1, 1], [], []>} : vector<32x128xf32>, vector<128x32xf32>, vector<32x32xf32> -> vector<32x32xf32>
    %207 = arith.addf %201, %206 : vector<32x32xf32>
    %208 = vector.extract_strided_slice %134 {offsets = [384, 0], sizes = [32, 128], strides = [1, 1]} : vector<512x128xf32> to vector<32x128xf32>
    %c12_119 = arith.constant 12 : index
    %c0_120 = arith.constant 0 : index
    %c0_121 = arith.constant 0 : index
    %209 = vector.load %arg7[%c12_119, %c0_120, %c0_121] : memref<16x128x32xbf16, #tpu.memory_space<vmem>>, vector<1x128x32xbf16>
    %210 = vector.shape_cast %209 : vector<1x128x32xbf16> to vector<128x32xbf16>
    %211 = arith.extf %210 : vector<128x32xbf16> to vector<128x32xf32>
    %cst_122 = arith.constant dense<0.000000e+00> : vector<32x32xf32>
    %212 = tpu.matmul %208, %211, %cst_122 {dimension_numbers = #tpu.dot_dimension_numbers<[1], [0], [0], [1], [0, 0, 1, 1], [], []>} : vector<32x128xf32>, vector<128x32xf32>, vector<32x32xf32> -> vector<32x32xf32>
    %213 = arith.addf %207, %212 : vector<32x32xf32>
    %214 = vector.extract_strided_slice %134 {offsets = [416, 0], sizes = [32, 128], strides = [1, 1]} : vector<512x128xf32> to vector<32x128xf32>
    %c13_123 = arith.constant 13 : index
    %c0_124 = arith.constant 0 : index
    %c0_125 = arith.constant 0 : index
    %215 = vector.load %arg7[%c13_123, %c0_124, %c0_125] : memref<16x128x32xbf16, #tpu.memory_space<vmem>>, vector<1x128x32xbf16>
    %216 = vector.shape_cast %215 : vector<1x128x32xbf16> to vector<128x32xbf16>
    %217 = arith.extf %216 : vector<128x32xbf16> to vector<128x32xf32>
    %cst_126 = arith.constant dense<0.000000e+00> : vector<32x32xf32>
    %218 = tpu.matmul %214, %217, %cst_126 {dimension_numbers = #tpu.dot_dimension_numbers<[1], [0], [0], [1], [0, 0, 1, 1], [], []>} : vector<32x128xf32>, vector<128x32xf32>, vector<32x32xf32> -> vector<32x32xf32>
    %219 = arith.addf %213, %218 : vector<32x32xf32>
    %220 = vector.extract_strided_slice %134 {offsets = [448, 0], sizes = [32, 128], strides = [1, 1]} : vector<512x128xf32> to vector<32x128xf32>
    %c14_127 = arith.constant 14 : index
    %c0_128 = arith.constant 0 : index
    %c0_129 = arith.constant 0 : index
    %221 = vector.load %arg7[%c14_127, %c0_128, %c0_129] : memref<16x128x32xbf16, #tpu.memory_space<vmem>>, vector<1x128x32xbf16>
    %222 = vector.shape_cast %221 : vector<1x128x32xbf16> to vector<128x32xbf16>
    %223 = arith.extf %222 : vector<128x32xbf16> to vector<128x32xf32>
    %cst_130 = arith.constant dense<0.000000e+00> : vector<32x32xf32>
    %224 = tpu.matmul %220, %223, %cst_130 {dimension_numbers = #tpu.dot_dimension_numbers<[1], [0], [0], [1], [0, 0, 1, 1], [], []>} : vector<32x128xf32>, vector<128x32xf32>, vector<32x32xf32> -> vector<32x32xf32>
    %225 = arith.addf %219, %224 : vector<32x32xf32>
    %226 = vector.extract_strided_slice %134 {offsets = [480, 0], sizes = [32, 128], strides = [1, 1]} : vector<512x128xf32> to vector<32x128xf32>
    %c15_131 = arith.constant 15 : index
    %c0_132 = arith.constant 0 : index
    %c0_133 = arith.constant 0 : index
    %227 = vector.load %arg7[%c15_131, %c0_132, %c0_133] : memref<16x128x32xbf16, #tpu.memory_space<vmem>>, vector<1x128x32xbf16>
    %228 = vector.shape_cast %227 : vector<1x128x32xbf16> to vector<128x32xbf16>
    %229 = arith.extf %228 : vector<128x32xbf16> to vector<128x32xf32>
    %cst_134 = arith.constant dense<0.000000e+00> : vector<32x32xf32>
    %230 = tpu.matmul %226, %229, %cst_134 {dimension_numbers = #tpu.dot_dimension_numbers<[1], [0], [0], [1], [0, 0, 1, 1], [], []>} : vector<32x128xf32>, vector<128x32xf32>, vector<32x32xf32> -> vector<32x32xf32>
    %231 = arith.addf %225, %230 : vector<32x32xf32>
    %cst_135 = arith.constant dense<0.000000e+00> : vector<32xf32>
    %232 = vector.multi_reduction <add>, %231, %cst_135 [1] : vector<32x32xf32> to vector<32xf32>
    %233 = vector.shape_cast %232 : vector<32xf32> to vector<32x1xf32>
    %234 = arith.mulf %231, %231 : vector<32x32xf32>
    %cst_136 = arith.constant dense<0.000000e+00> : vector<32xf32>
    %235 = vector.multi_reduction <add>, %234, %cst_136 [1] : vector<32x32xf32> to vector<32xf32>
    %236 = vector.shape_cast %235 : vector<32xf32> to vector<32x1xf32>
    %cst_137 = arith.constant 3.125000e-02 : f32
    %237 = vector.broadcast %cst_137 : f32 to vector<32x1xf32>
    %238 = arith.mulf %233, %237 : vector<32x1xf32>
    %cst_138 = arith.constant 3.125000e-02 : f32
    %239 = vector.broadcast %cst_138 : f32 to vector<32x1xf32>
    %240 = arith.mulf %236, %239 : vector<32x1xf32>
    %241 = arith.mulf %238, %238 : vector<32x1xf32>
    %242 = arith.subf %240, %241 : vector<32x1xf32>
    %cst_139 = arith.constant 9.99999974E-6 : f32
    %243 = vector.broadcast %cst_139 : f32 to vector<32x1xf32>
    %244 = arith.addf %242, %243 : vector<32x1xf32>
    %245 = math.rsqrt %244 : vector<32x1xf32>
    %246 = vector.broadcast %238 : vector<32x1xf32> to vector<32x32xf32>
    %247 = arith.subf %231, %246 : vector<32x32xf32>
    %c0_140 = arith.constant 0 : index
    %c0_141 = arith.constant 0 : index
    %248 = vector.load %arg12[%c0_140, %c0_141] : memref<32x1xf32, #tpu.memory_space<vmem>>, vector<32x1xf32>
    %249 = arith.mulf %245, %248 : vector<32x1xf32>
    %250 = vector.broadcast %249 : vector<32x1xf32> to vector<32x32xf32>
    %251 = arith.mulf %247, %250 : vector<32x32xf32>
    %c0_142 = arith.constant 0 : index
    %c0_143 = arith.constant 0 : index
    %252 = vector.load %arg13[%c0_142, %c0_143] : memref<32x1xf32, #tpu.memory_space<vmem>>, vector<32x1xf32>
    %253 = vector.broadcast %252 : vector<32x1xf32> to vector<32x32xf32>
    %254 = arith.addf %251, %253 : vector<32x32xf32>
    %cst_144 = arith.constant 2.000000e-01 : f32
    %255 = vector.broadcast %cst_144 : f32 to vector<32x32xf32>
    %256 = arith.mulf %255, %254 : vector<32x32xf32>
    %257 = arith.maximumf %254, %256 : vector<32x32xf32>
    %c0_145 = arith.constant 0 : index
    %c0_146 = arith.constant 0 : index
    %258 = vector.load %arg4[%c0_145, %c0_146] : memref<1024x32xbf16, #tpu.memory_space<vmem>>, vector<1024x32xbf16>
    %259 = arith.truncf %257 : vector<32x32xf32> to vector<32x32xbf16>
    %cst_147 = arith.constant dense<0.000000e+00> : vector<1024x32xf32>
    %260 = tpu.matmul %258, %259, %cst_147 {dimension_numbers = #tpu.dot_dimension_numbers<[1], [0], [0], [1], [0, 0, 1, 1], [], []>} : vector<1024x32xbf16>, vector<32x32xbf16>, vector<1024x32xf32> -> vector<1024x32xf32>
    %cst_148 = arith.constant 0.000000e+00 : f32
    %261 = vector.broadcast %cst_148 : f32 to vector<64x8xf32>
    %262 = vector.extract_strided_slice %260 {offsets = [0, 0], sizes = [64, 32], strides = [1, 1]} : vector<1024x32xf32> to vector<64x32xf32>
    %c0_149 = arith.constant 0 : index
    %c0_150 = arith.constant 0 : index
    %c0_151 = arith.constant 0 : index
    %263 = vector.load %arg8[%c0_149, %c0_150, %c0_151] : memref<16x32x8xbf16, #tpu.memory_space<vmem>>, vector<1x32x8xbf16>
    %264 = vector.shape_cast %263 : vector<1x32x8xbf16> to vector<32x8xbf16>
    %265 = arith.extf %264 : vector<32x8xbf16> to vector<32x8xf32>
    %cst_152 = arith.constant dense<0.000000e+00> : vector<64x8xf32>
    %266 = tpu.matmul %262, %265, %cst_152 {dimension_numbers = #tpu.dot_dimension_numbers<[1], [0], [0], [1], [0, 0, 1, 1], [], []>} : vector<64x32xf32>, vector<32x8xf32>, vector<64x8xf32> -> vector<64x8xf32>
    %267 = arith.addf %261, %266 : vector<64x8xf32>
    %268 = vector.extract_strided_slice %260 {offsets = [64, 0], sizes = [64, 32], strides = [1, 1]} : vector<1024x32xf32> to vector<64x32xf32>
    %c1_153 = arith.constant 1 : index
    %c0_154 = arith.constant 0 : index
    %c0_155 = arith.constant 0 : index
    %269 = vector.load %arg8[%c1_153, %c0_154, %c0_155] : memref<16x32x8xbf16, #tpu.memory_space<vmem>>, vector<1x32x8xbf16>
    %270 = vector.shape_cast %269 : vector<1x32x8xbf16> to vector<32x8xbf16>
    %271 = arith.extf %270 : vector<32x8xbf16> to vector<32x8xf32>
    %cst_156 = arith.constant dense<0.000000e+00> : vector<64x8xf32>
    %272 = tpu.matmul %268, %271, %cst_156 {dimension_numbers = #tpu.dot_dimension_numbers<[1], [0], [0], [1], [0, 0, 1, 1], [], []>} : vector<64x32xf32>, vector<32x8xf32>, vector<64x8xf32> -> vector<64x8xf32>
    %273 = arith.addf %267, %272 : vector<64x8xf32>
    %274 = vector.extract_strided_slice %260 {offsets = [128, 0], sizes = [64, 32], strides = [1, 1]} : vector<1024x32xf32> to vector<64x32xf32>
    %c2_157 = arith.constant 2 : index
    %c0_158 = arith.constant 0 : index
    %c0_159 = arith.constant 0 : index
    %275 = vector.load %arg8[%c2_157, %c0_158, %c0_159] : memref<16x32x8xbf16, #tpu.memory_space<vmem>>, vector<1x32x8xbf16>
    %276 = vector.shape_cast %275 : vector<1x32x8xbf16> to vector<32x8xbf16>
    %277 = arith.extf %276 : vector<32x8xbf16> to vector<32x8xf32>
    %cst_160 = arith.constant dense<0.000000e+00> : vector<64x8xf32>
    %278 = tpu.matmul %274, %277, %cst_160 {dimension_numbers = #tpu.dot_dimension_numbers<[1], [0], [0], [1], [0, 0, 1, 1], [], []>} : vector<64x32xf32>, vector<32x8xf32>, vector<64x8xf32> -> vector<64x8xf32>
    %279 = arith.addf %273, %278 : vector<64x8xf32>
    %280 = vector.extract_strided_slice %260 {offsets = [192, 0], sizes = [64, 32], strides = [1, 1]} : vector<1024x32xf32> to vector<64x32xf32>
    %c3_161 = arith.constant 3 : index
    %c0_162 = arith.constant 0 : index
    %c0_163 = arith.constant 0 : index
    %281 = vector.load %arg8[%c3_161, %c0_162, %c0_163] : memref<16x32x8xbf16, #tpu.memory_space<vmem>>, vector<1x32x8xbf16>
    %282 = vector.shape_cast %281 : vector<1x32x8xbf16> to vector<32x8xbf16>
    %283 = arith.extf %282 : vector<32x8xbf16> to vector<32x8xf32>
    %cst_164 = arith.constant dense<0.000000e+00> : vector<64x8xf32>
    %284 = tpu.matmul %280, %283, %cst_164 {dimension_numbers = #tpu.dot_dimension_numbers<[1], [0], [0], [1], [0, 0, 1, 1], [], []>} : vector<64x32xf32>, vector<32x8xf32>, vector<64x8xf32> -> vector<64x8xf32>
    %285 = arith.addf %279, %284 : vector<64x8xf32>
    %286 = vector.extract_strided_slice %260 {offsets = [256, 0], sizes = [64, 32], strides = [1, 1]} : vector<1024x32xf32> to vector<64x32xf32>
    %c4_165 = arith.constant 4 : index
    %c0_166 = arith.constant 0 : index
    %c0_167 = arith.constant 0 : index
    %287 = vector.load %arg8[%c4_165, %c0_166, %c0_167] : memref<16x32x8xbf16, #tpu.memory_space<vmem>>, vector<1x32x8xbf16>
    %288 = vector.shape_cast %287 : vector<1x32x8xbf16> to vector<32x8xbf16>
    %289 = arith.extf %288 : vector<32x8xbf16> to vector<32x8xf32>
    %cst_168 = arith.constant dense<0.000000e+00> : vector<64x8xf32>
    %290 = tpu.matmul %286, %289, %cst_168 {dimension_numbers = #tpu.dot_dimension_numbers<[1], [0], [0], [1], [0, 0, 1, 1], [], []>} : vector<64x32xf32>, vector<32x8xf32>, vector<64x8xf32> -> vector<64x8xf32>
    %291 = arith.addf %285, %290 : vector<64x8xf32>
    %292 = vector.extract_strided_slice %260 {offsets = [320, 0], sizes = [64, 32], strides = [1, 1]} : vector<1024x32xf32> to vector<64x32xf32>
    %c5_169 = arith.constant 5 : index
    %c0_170 = arith.constant 0 : index
    %c0_171 = arith.constant 0 : index
    %293 = vector.load %arg8[%c5_169, %c0_170, %c0_171] : memref<16x32x8xbf16, #tpu.memory_space<vmem>>, vector<1x32x8xbf16>
    %294 = vector.shape_cast %293 : vector<1x32x8xbf16> to vector<32x8xbf16>
    %295 = arith.extf %294 : vector<32x8xbf16> to vector<32x8xf32>
    %cst_172 = arith.constant dense<0.000000e+00> : vector<64x8xf32>
    %296 = tpu.matmul %292, %295, %cst_172 {dimension_numbers = #tpu.dot_dimension_numbers<[1], [0], [0], [1], [0, 0, 1, 1], [], []>} : vector<64x32xf32>, vector<32x8xf32>, vector<64x8xf32> -> vector<64x8xf32>
    %297 = arith.addf %291, %296 : vector<64x8xf32>
    %298 = vector.extract_strided_slice %260 {offsets = [384, 0], sizes = [64, 32], strides = [1, 1]} : vector<1024x32xf32> to vector<64x32xf32>
    %c6_173 = arith.constant 6 : index
    %c0_174 = arith.constant 0 : index
    %c0_175 = arith.constant 0 : index
    %299 = vector.load %arg8[%c6_173, %c0_174, %c0_175] : memref<16x32x8xbf16, #tpu.memory_space<vmem>>, vector<1x32x8xbf16>
    %300 = vector.shape_cast %299 : vector<1x32x8xbf16> to vector<32x8xbf16>
    %301 = arith.extf %300 : vector<32x8xbf16> to vector<32x8xf32>
    %cst_176 = arith.constant dense<0.000000e+00> : vector<64x8xf32>
    %302 = tpu.matmul %298, %301, %cst_176 {dimension_numbers = #tpu.dot_dimension_numbers<[1], [0], [0], [1], [0, 0, 1, 1], [], []>} : vector<64x32xf32>, vector<32x8xf32>, vector<64x8xf32> -> vector<64x8xf32>
    %303 = arith.addf %297, %302 : vector<64x8xf32>
    %304 = vector.extract_strided_slice %260 {offsets = [448, 0], sizes = [64, 32], strides = [1, 1]} : vector<1024x32xf32> to vector<64x32xf32>
    %c7_177 = arith.constant 7 : index
    %c0_178 = arith.constant 0 : index
    %c0_179 = arith.constant 0 : index
    %305 = vector.load %arg8[%c7_177, %c0_178, %c0_179] : memref<16x32x8xbf16, #tpu.memory_space<vmem>>, vector<1x32x8xbf16>
    %306 = vector.shape_cast %305 : vector<1x32x8xbf16> to vector<32x8xbf16>
    %307 = arith.extf %306 : vector<32x8xbf16> to vector<32x8xf32>
    %cst_180 = arith.constant dense<0.000000e+00> : vector<64x8xf32>
    %308 = tpu.matmul %304, %307, %cst_180 {dimension_numbers = #tpu.dot_dimension_numbers<[1], [0], [0], [1], [0, 0, 1, 1], [], []>} : vector<64x32xf32>, vector<32x8xf32>, vector<64x8xf32> -> vector<64x8xf32>
    %309 = arith.addf %303, %308 : vector<64x8xf32>
    %310 = vector.extract_strided_slice %260 {offsets = [512, 0], sizes = [64, 32], strides = [1, 1]} : vector<1024x32xf32> to vector<64x32xf32>
    %c8_181 = arith.constant 8 : index
    %c0_182 = arith.constant 0 : index
    %c0_183 = arith.constant 0 : index
    %311 = vector.load %arg8[%c8_181, %c0_182, %c0_183] : memref<16x32x8xbf16, #tpu.memory_space<vmem>>, vector<1x32x8xbf16>
    %312 = vector.shape_cast %311 : vector<1x32x8xbf16> to vector<32x8xbf16>
    %313 = arith.extf %312 : vector<32x8xbf16> to vector<32x8xf32>
    %cst_184 = arith.constant dense<0.000000e+00> : vector<64x8xf32>
    %314 = tpu.matmul %310, %313, %cst_184 {dimension_numbers = #tpu.dot_dimension_numbers<[1], [0], [0], [1], [0, 0, 1, 1], [], []>} : vector<64x32xf32>, vector<32x8xf32>, vector<64x8xf32> -> vector<64x8xf32>
    %315 = arith.addf %309, %314 : vector<64x8xf32>
    %316 = vector.extract_strided_slice %260 {offsets = [576, 0], sizes = [64, 32], strides = [1, 1]} : vector<1024x32xf32> to vector<64x32xf32>
    %c9_185 = arith.constant 9 : index
    %c0_186 = arith.constant 0 : index
    %c0_187 = arith.constant 0 : index
    %317 = vector.load %arg8[%c9_185, %c0_186, %c0_187] : memref<16x32x8xbf16, #tpu.memory_space<vmem>>, vector<1x32x8xbf16>
    %318 = vector.shape_cast %317 : vector<1x32x8xbf16> to vector<32x8xbf16>
    %319 = arith.extf %318 : vector<32x8xbf16> to vector<32x8xf32>
    %cst_188 = arith.constant dense<0.000000e+00> : vector<64x8xf32>
    %320 = tpu.matmul %316, %319, %cst_188 {dimension_numbers = #tpu.dot_dimension_numbers<[1], [0], [0], [1], [0, 0, 1, 1], [], []>} : vector<64x32xf32>, vector<32x8xf32>, vector<64x8xf32> -> vector<64x8xf32>
    %321 = arith.addf %315, %320 : vector<64x8xf32>
    %322 = vector.extract_strided_slice %260 {offsets = [640, 0], sizes = [64, 32], strides = [1, 1]} : vector<1024x32xf32> to vector<64x32xf32>
    %c10_189 = arith.constant 10 : index
    %c0_190 = arith.constant 0 : index
    %c0_191 = arith.constant 0 : index
    %323 = vector.load %arg8[%c10_189, %c0_190, %c0_191] : memref<16x32x8xbf16, #tpu.memory_space<vmem>>, vector<1x32x8xbf16>
    %324 = vector.shape_cast %323 : vector<1x32x8xbf16> to vector<32x8xbf16>
    %325 = arith.extf %324 : vector<32x8xbf16> to vector<32x8xf32>
    %cst_192 = arith.constant dense<0.000000e+00> : vector<64x8xf32>
    %326 = tpu.matmul %322, %325, %cst_192 {dimension_numbers = #tpu.dot_dimension_numbers<[1], [0], [0], [1], [0, 0, 1, 1], [], []>} : vector<64x32xf32>, vector<32x8xf32>, vector<64x8xf32> -> vector<64x8xf32>
    %327 = arith.addf %321, %326 : vector<64x8xf32>
    %328 = vector.extract_strided_slice %260 {offsets = [704, 0], sizes = [64, 32], strides = [1, 1]} : vector<1024x32xf32> to vector<64x32xf32>
    %c11_193 = arith.constant 11 : index
    %c0_194 = arith.constant 0 : index
    %c0_195 = arith.constant 0 : index
    %329 = vector.load %arg8[%c11_193, %c0_194, %c0_195] : memref<16x32x8xbf16, #tpu.memory_space<vmem>>, vector<1x32x8xbf16>
    %330 = vector.shape_cast %329 : vector<1x32x8xbf16> to vector<32x8xbf16>
    %331 = arith.extf %330 : vector<32x8xbf16> to vector<32x8xf32>
    %cst_196 = arith.constant dense<0.000000e+00> : vector<64x8xf32>
    %332 = tpu.matmul %328, %331, %cst_196 {dimension_numbers = #tpu.dot_dimension_numbers<[1], [0], [0], [1], [0, 0, 1, 1], [], []>} : vector<64x32xf32>, vector<32x8xf32>, vector<64x8xf32> -> vector<64x8xf32>
    %333 = arith.addf %327, %332 : vector<64x8xf32>
    %334 = vector.extract_strided_slice %260 {offsets = [768, 0], sizes = [64, 32], strides = [1, 1]} : vector<1024x32xf32> to vector<64x32xf32>
    %c12_197 = arith.constant 12 : index
    %c0_198 = arith.constant 0 : index
    %c0_199 = arith.constant 0 : index
    %335 = vector.load %arg8[%c12_197, %c0_198, %c0_199] : memref<16x32x8xbf16, #tpu.memory_space<vmem>>, vector<1x32x8xbf16>
    %336 = vector.shape_cast %335 : vector<1x32x8xbf16> to vector<32x8xbf16>
    %337 = arith.extf %336 : vector<32x8xbf16> to vector<32x8xf32>
    %cst_200 = arith.constant dense<0.000000e+00> : vector<64x8xf32>
    %338 = tpu.matmul %334, %337, %cst_200 {dimension_numbers = #tpu.dot_dimension_numbers<[1], [0], [0], [1], [0, 0, 1, 1], [], []>} : vector<64x32xf32>, vector<32x8xf32>, vector<64x8xf32> -> vector<64x8xf32>
    %339 = arith.addf %333, %338 : vector<64x8xf32>
    %340 = vector.extract_strided_slice %260 {offsets = [832, 0], sizes = [64, 32], strides = [1, 1]} : vector<1024x32xf32> to vector<64x32xf32>
    %c13_201 = arith.constant 13 : index
    %c0_202 = arith.constant 0 : index
    %c0_203 = arith.constant 0 : index
    %341 = vector.load %arg8[%c13_201, %c0_202, %c0_203] : memref<16x32x8xbf16, #tpu.memory_space<vmem>>, vector<1x32x8xbf16>
    %342 = vector.shape_cast %341 : vector<1x32x8xbf16> to vector<32x8xbf16>
    %343 = arith.extf %342 : vector<32x8xbf16> to vector<32x8xf32>
    %cst_204 = arith.constant dense<0.000000e+00> : vector<64x8xf32>
    %344 = tpu.matmul %340, %343, %cst_204 {dimension_numbers = #tpu.dot_dimension_numbers<[1], [0], [0], [1], [0, 0, 1, 1], [], []>} : vector<64x32xf32>, vector<32x8xf32>, vector<64x8xf32> -> vector<64x8xf32>
    %345 = arith.addf %339, %344 : vector<64x8xf32>
    %346 = vector.extract_strided_slice %260 {offsets = [896, 0], sizes = [64, 32], strides = [1, 1]} : vector<1024x32xf32> to vector<64x32xf32>
    %c14_205 = arith.constant 14 : index
    %c0_206 = arith.constant 0 : index
    %c0_207 = arith.constant 0 : index
    %347 = vector.load %arg8[%c14_205, %c0_206, %c0_207] : memref<16x32x8xbf16, #tpu.memory_space<vmem>>, vector<1x32x8xbf16>
    %348 = vector.shape_cast %347 : vector<1x32x8xbf16> to vector<32x8xbf16>
    %349 = arith.extf %348 : vector<32x8xbf16> to vector<32x8xf32>
    %cst_208 = arith.constant dense<0.000000e+00> : vector<64x8xf32>
    %350 = tpu.matmul %346, %349, %cst_208 {dimension_numbers = #tpu.dot_dimension_numbers<[1], [0], [0], [1], [0, 0, 1, 1], [], []>} : vector<64x32xf32>, vector<32x8xf32>, vector<64x8xf32> -> vector<64x8xf32>
    %351 = arith.addf %345, %350 : vector<64x8xf32>
    %352 = vector.extract_strided_slice %260 {offsets = [960, 0], sizes = [64, 32], strides = [1, 1]} : vector<1024x32xf32> to vector<64x32xf32>
    %c15_209 = arith.constant 15 : index
    %c0_210 = arith.constant 0 : index
    %c0_211 = arith.constant 0 : index
    %353 = vector.load %arg8[%c15_209, %c0_210, %c0_211] : memref<16x32x8xbf16, #tpu.memory_space<vmem>>, vector<1x32x8xbf16>
    %354 = vector.shape_cast %353 : vector<1x32x8xbf16> to vector<32x8xbf16>
    %355 = arith.extf %354 : vector<32x8xbf16> to vector<32x8xf32>
    %cst_212 = arith.constant dense<0.000000e+00> : vector<64x8xf32>
    %356 = tpu.matmul %352, %355, %cst_212 {dimension_numbers = #tpu.dot_dimension_numbers<[1], [0], [0], [1], [0, 0, 1, 1], [], []>} : vector<64x32xf32>, vector<32x8xf32>, vector<64x8xf32> -> vector<64x8xf32>
    %357 = arith.addf %351, %356 : vector<64x8xf32>
    %cst_213 = arith.constant dense<0.000000e+00> : vector<64xf32>
    %358 = vector.multi_reduction <add>, %357, %cst_213 [1] : vector<64x8xf32> to vector<64xf32>
    %359 = vector.shape_cast %358 : vector<64xf32> to vector<64x1xf32>
    %360 = arith.mulf %357, %357 : vector<64x8xf32>
    %cst_214 = arith.constant dense<0.000000e+00> : vector<64xf32>
    %361 = vector.multi_reduction <add>, %360, %cst_214 [1] : vector<64x8xf32> to vector<64xf32>
    %362 = vector.shape_cast %361 : vector<64xf32> to vector<64x1xf32>
    %cst_215 = arith.constant 1.250000e-01 : f32
    %363 = vector.broadcast %cst_215 : f32 to vector<64x1xf32>
    %364 = arith.mulf %359, %363 : vector<64x1xf32>
    %cst_216 = arith.constant 1.250000e-01 : f32
    %365 = vector.broadcast %cst_216 : f32 to vector<64x1xf32>
    %366 = arith.mulf %362, %365 : vector<64x1xf32>
    %367 = arith.mulf %364, %364 : vector<64x1xf32>
    %368 = arith.subf %366, %367 : vector<64x1xf32>
    %cst_217 = arith.constant 9.99999974E-6 : f32
    %369 = vector.broadcast %cst_217 : f32 to vector<64x1xf32>
    %370 = arith.addf %368, %369 : vector<64x1xf32>
    %371 = math.rsqrt %370 : vector<64x1xf32>
    %372 = vector.broadcast %364 : vector<64x1xf32> to vector<64x8xf32>
    %373 = arith.subf %357, %372 : vector<64x8xf32>
    %c0_218 = arith.constant 0 : index
    %c0_219 = arith.constant 0 : index
    %374 = vector.load %arg14[%c0_218, %c0_219] : memref<64x1xf32, #tpu.memory_space<vmem>>, vector<64x1xf32>
    %375 = arith.mulf %371, %374 : vector<64x1xf32>
    %376 = vector.broadcast %375 : vector<64x1xf32> to vector<64x8xf32>
    %377 = arith.mulf %373, %376 : vector<64x8xf32>
    %c0_220 = arith.constant 0 : index
    %c0_221 = arith.constant 0 : index
    %378 = vector.load %arg15[%c0_220, %c0_221] : memref<64x1xf32, #tpu.memory_space<vmem>>, vector<64x1xf32>
    %379 = vector.broadcast %378 : vector<64x1xf32> to vector<64x8xf32>
    %380 = arith.addf %377, %379 : vector<64x8xf32>
    %cst_222 = arith.constant 2.000000e-01 : f32
    %381 = vector.broadcast %cst_222 : f32 to vector<64x8xf32>
    %382 = arith.mulf %381, %380 : vector<64x8xf32>
    %383 = arith.maximumf %380, %382 : vector<64x8xf32>
    %c0_223 = arith.constant 0 : index
    %c0_224 = arith.constant 0 : index
    %384 = vector.load %arg5[%c0_223, %c0_224] : memref<4x64xbf16, #tpu.memory_space<vmem>>, vector<4x64xbf16>
    %385 = arith.truncf %383 : vector<64x8xf32> to vector<64x8xbf16>
    %cst_225 = arith.constant dense<0.000000e+00> : vector<4x8xf32>
    %386 = tpu.matmul %384, %385, %cst_225 {dimension_numbers = #tpu.dot_dimension_numbers<[1], [0], [0], [1], [0, 0, 1, 1], [], []>} : vector<4x64xbf16>, vector<64x8xbf16>, vector<4x8xf32> -> vector<4x8xf32>
    %cst_226 = arith.constant 0.000000e+00 : f32
    %387 = vector.broadcast %cst_226 : f32 to vector<1x2xf32>
    %388 = vector.extract_strided_slice %386 {offsets = [0, 0], sizes = [1, 8], strides = [1, 1]} : vector<4x8xf32> to vector<1x8xf32>
    %c0_227 = arith.constant 0 : index
    %c0_228 = arith.constant 0 : index
    %c0_229 = arith.constant 0 : index
    %389 = vector.load %arg9[%c0_227, %c0_228, %c0_229] : memref<4x8x2xbf16, #tpu.memory_space<vmem>>, vector<1x8x2xbf16>
    %390 = vector.shape_cast %389 : vector<1x8x2xbf16> to vector<8x2xbf16>
    %391 = arith.extf %390 : vector<8x2xbf16> to vector<8x2xf32>
    %cst_230 = arith.constant dense<0.000000e+00> : vector<1x2xf32>
    %392 = tpu.matmul %388, %391, %cst_230 {dimension_numbers = #tpu.dot_dimension_numbers<[1], [0], [0], [1], [0, 0, 1, 1], [], []>} : vector<1x8xf32>, vector<8x2xf32>, vector<1x2xf32> -> vector<1x2xf32>
    %393 = arith.addf %387, %392 : vector<1x2xf32>
    %394 = vector.extract_strided_slice %386 {offsets = [1, 0], sizes = [1, 8], strides = [1, 1]} : vector<4x8xf32> to vector<1x8xf32>
    %c1_231 = arith.constant 1 : index
    %c0_232 = arith.constant 0 : index
    %c0_233 = arith.constant 0 : index
    %395 = vector.load %arg9[%c1_231, %c0_232, %c0_233] : memref<4x8x2xbf16, #tpu.memory_space<vmem>>, vector<1x8x2xbf16>
    %396 = vector.shape_cast %395 : vector<1x8x2xbf16> to vector<8x2xbf16>
    %397 = arith.extf %396 : vector<8x2xbf16> to vector<8x2xf32>
    %cst_234 = arith.constant dense<0.000000e+00> : vector<1x2xf32>
    %398 = tpu.matmul %394, %397, %cst_234 {dimension_numbers = #tpu.dot_dimension_numbers<[1], [0], [0], [1], [0, 0, 1, 1], [], []>} : vector<1x8xf32>, vector<8x2xf32>, vector<1x2xf32> -> vector<1x2xf32>
    %399 = arith.addf %393, %398 : vector<1x2xf32>
    %400 = vector.extract_strided_slice %386 {offsets = [2, 0], sizes = [1, 8], strides = [1, 1]} : vector<4x8xf32> to vector<1x8xf32>
    %c2_235 = arith.constant 2 : index
    %c0_236 = arith.constant 0 : index
    %c0_237 = arith.constant 0 : index
    %401 = vector.load %arg9[%c2_235, %c0_236, %c0_237] : memref<4x8x2xbf16, #tpu.memory_space<vmem>>, vector<1x8x2xbf16>
    %402 = vector.shape_cast %401 : vector<1x8x2xbf16> to vector<8x2xbf16>
    %403 = arith.extf %402 : vector<8x2xbf16> to vector<8x2xf32>
    %cst_238 = arith.constant dense<0.000000e+00> : vector<1x2xf32>
    %404 = tpu.matmul %400, %403, %cst_238 {dimension_numbers = #tpu.dot_dimension_numbers<[1], [0], [0], [1], [0, 0, 1, 1], [], []>} : vector<1x8xf32>, vector<8x2xf32>, vector<1x2xf32> -> vector<1x2xf32>
    %405 = arith.addf %399, %404 : vector<1x2xf32>
    %406 = vector.extract_strided_slice %386 {offsets = [3, 0], sizes = [1, 8], strides = [1, 1]} : vector<4x8xf32> to vector<1x8xf32>
    %c3_239 = arith.constant 3 : index
    %c0_240 = arith.constant 0 : index
    %c0_241 = arith.constant 0 : index
    %407 = vector.load %arg9[%c3_239, %c0_240, %c0_241] : memref<4x8x2xbf16, #tpu.memory_space<vmem>>, vector<1x8x2xbf16>
    %408 = vector.shape_cast %407 : vector<1x8x2xbf16> to vector<8x2xbf16>
    %409 = arith.extf %408 : vector<8x2xbf16> to vector<8x2xf32>
    %cst_242 = arith.constant dense<0.000000e+00> : vector<1x2xf32>
    %410 = tpu.matmul %406, %409, %cst_242 {dimension_numbers = #tpu.dot_dimension_numbers<[1], [0], [0], [1], [0, 0, 1, 1], [], []>} : vector<1x8xf32>, vector<8x2xf32>, vector<1x2xf32> -> vector<1x2xf32>
    %411 = arith.addf %405, %410 : vector<1x2xf32>
    %c0_243 = arith.constant 0 : index
    %c0_244 = arith.constant 0 : index
    %412 = vector.load %arg16[%c0_243, %c0_244] : memref<1x2xf32, #tpu.memory_space<vmem>>, vector<1x2xf32>
    tpu.vector_store %arg16[%c0_243, %c0_244], %411 {strides = array<i32>} : memref<1x2xf32, #tpu.memory_space<vmem>>, vector<1x2xf32>,
    return
  }
}

</mosaic_0001>

<llo_original>
// kernel: discriminator_forward.1
$region0: #{discriminator_forward.1}
  #allocation0 [shape = 'u32[]', space=smem, size = 0x4, offset = 0x4, fixed_abs, tag = 'smem constant byte address 0x4 - core index']
  #allocation1 [shape = 'u32[72,128]{1,0:T(1,128)}', space=vmem, size = 0x9000, scoped, tag = 'internal scratch']
  %s0 = inlined_call_operand.vmem [shape: bf16[48,512], index: 0, kind: input, shape index: {}]
  %s1 = inlined_call_operand.vmem [shape: bf16[8,48], index: 1, kind: input, shape index: {}]
  %s2 = inlined_call_operand.vmem [shape: bf16[256,8], index: 2, kind: input, shape index: {}]
  %s3 = inlined_call_operand.vmem [shape: bf16[512,16], index: 3, kind: input, shape index: {}]
  %s4 = inlined_call_operand.vmem [shape: bf16[1024,32], index: 4, kind: input, shape index: {}]
  %s5 = inlined_call_operand.vmem [shape: bf16[4,64], index: 5, kind: input, shape index: {}]
  %s6 = inlined_call_operand.vmem [shape: bf16[16,512,128], index: 6, kind: input, shape index: {}]
  %s7 = inlined_call_operand.vmem [shape: bf16[16,128,32], index: 7, kind: input, shape index: {}]
  %s8 = inlined_call_operand.vmem [shape: bf16[16,32,8], index: 8, kind: input, shape index: {}]
  %s9 = inlined_call_operand.vmem [shape: bf16[4,8,2], index: 9, kind: input, shape index: {}]
  %s10 = inlined_call_operand.vmem [shape: f32[16,1], index: 10, kind: input, shape index: {}]
  %s11 = inlined_call_operand.vmem [shape: f32[16,1], index: 11, kind: input, shape index: {}]
  %s12 = inlined_call_operand.vmem [shape: f32[32,1], index: 12, kind: input, shape index: {}]
  %s13 = inlined_call_operand.vmem [shape: f32[32,1], index: 13, kind: input, shape index: {}]
  %s14 = inlined_call_operand.vmem [shape: f32[64,1], index: 14, kind: input, shape index: {}]
  %s15 = inlined_call_operand.vmem [shape: f32[64,1], index: 15, kind: input, shape index: {}]
  %s16 = inlined_call_operand.hbm [shape: f32[1,2], index: 16, kind: output, shape index: {}]
  %s17 = sld [smem:[#allocation0]]
  $region74: #{discriminator_forward.1} parent=0
    _
  %s19 = ssub.s32 1, %s17
  %s20 = scalar_select 0, %s19, %s17
  $region1: #{discriminator_forward.1} parent=0
    #allocation2 [shape = 'u8[512]{0}', space=vmem, size = 0x400, scoped, tag = 'output window, operand 0, single buffered']
    #allocation3 [shape = 's32[1]{0}', space=sflag, size = 0x4, scoped, tag = 'scoped memory for discriminator_forward.1']
    %21 = vsyncpa [#allocation3], 0
    // Predicated region
    $region2: #{discriminator_forward.1} parent=1 // pred_check
      _
    $region3: #{discriminator_forward.1} parent=1 // pred_check_branch
      %23 = sbr.rel (0) target = $region5
    $region4: #{discriminator_forward.1} parent=1 // pred_region
      _
    $region5: #{discriminator_forward.1} parent=1 // pred_fallthru
      _
    // Predicated region
    $region6: #{discriminator_forward.1} parent=1 // pred_check
      _
    $region7: #{discriminator_forward.1} parent=1 // pred_check_branch
      %25 = sbr.rel (0) target = $region9
    $region8: #{discriminator_forward.1} parent=1 // pred_region
      _
    $region9: #{discriminator_forward.1} parent=1 // pred_fallthru
      _
    // Predicated region
    $region10: #{discriminator_forward.1} parent=1 // pred_check
      _
    $region11: #{discriminator_forward.1} parent=1 // pred_check_branch
      %27 = sbr.rel (0) target = $region13
    $region12: #{discriminator_forward.1} parent=1 // pred_region
      _
    $region13: #{discriminator_forward.1} parent=1 // pred_fallthru
      _
    // Predicated region
    $region14: #{discriminator_forward.1} parent=1 // pred_check
      _
    $region15: #{discriminator_forward.1} parent=1 // pred_check_branch
      %29 = sbr.rel (0) target = $region17
    $region16: #{discriminator_forward.1} parent=1 // pred_region
      _
    $region17: #{discriminator_forward.1} parent=1 // pred_fallthru
      _
    // Predicated region
    $region18: #{discriminator_forward.1} parent=1 // pred_check
      _
    $region19: #{discriminator_forward.1} parent=1 // pred_check_branch
      %31 = sbr.rel (0) target = $region21
    $region20: #{discriminator_forward.1} parent=1 // pred_region
      _
    $region21: #{discriminator_forward.1} parent=1 // pred_fallthru
      _
    // Predicated region
    $region22: #{discriminator_forward.1} parent=1 // pred_check
      _
    $region23: #{discriminator_forward.1} parent=1 // pred_check_branch
      %33 = sbr.rel (0) target = $region25
    $region24: #{discriminator_forward.1} parent=1 // pred_region
      _
    $region25: #{discriminator_forward.1} parent=1 // pred_fallthru
      _
    // Predicated region
    $region26: #{discriminator_forward.1} parent=1 // pred_check
      _
    $region27: #{discriminator_forward.1} parent=1 // pred_check_branch
      %35 = sbr.rel (0) target = $region29
    $region28: #{discriminator_forward.1} parent=1 // pred_region
      _
    $region29: #{discriminator_forward.1} parent=1 // pred_fallthru
      _
    // Predicated region
    $region30: #{discriminator_forward.1} parent=1 // pred_check
      _
    $region31: #{discriminator_forward.1} parent=1 // pred_check_branch
      %37 = sbr.rel (0) target = $region33
    $region32: #{discriminator_forward.1} parent=1 // pred_region
      _
    $region33: #{discriminator_forward.1} parent=1 // pred_fallthru
      _
    // Predicated region
    $region34: #{discriminator_forward.1} parent=1 // pred_check
      _
    $region35: #{discriminator_forward.1} parent=1 // pred_check_branch
      %39 = sbr.rel (0) target = $region37
    $region36: #{discriminator_forward.1} parent=1 // pred_region
      _
    $region37: #{discriminator_forward.1} parent=1 // pred_fallthru
      _
    // Predicated region
    $region38: #{discriminator_forward.1} parent=1 // pred_check
      _
    $region39: #{discriminator_forward.1} parent=1 // pred_check_branch
      %41 = sbr.rel (0) target = $region41
    $region40: #{discriminator_forward.1} parent=1 // pred_region
      _
    $region41: #{discriminator_forward.1} parent=1 // pred_fallthru
      _
    // Predicated region
    $region42: #{discriminator_forward.1} parent=1 // pred_check
      _
    $region43: #{discriminator_forward.1} parent=1 // pred_check_branch
      %43 = sbr.rel (0) target = $region45
    $region44: #{discriminator_forward.1} parent=1 // pred_region
      _
    $region45: #{discriminator_forward.1} parent=1 // pred_fallthru
      _
    // Predicated region
    $region46: #{discriminator_forward.1} parent=1 // pred_check
      _
    $region47: #{discriminator_forward.1} parent=1 // pred_check_branch
      %45 = sbr.rel (0) target = $region49
    $region48: #{discriminator_forward.1} parent=1 // pred_region
      _
    $region49: #{discriminator_forward.1} parent=1 // pred_fallthru
      _
    // Predicated region
    $region50: #{discriminator_forward.1} parent=1 // pred_check
      _
    $region51: #{discriminator_forward.1} parent=1 // pred_check_branch
      %47 = sbr.rel (0) target = $region53
    $region52: #{discriminator_forward.1} parent=1 // pred_region
      _
    $region53: #{discriminator_forward.1} parent=1 // pred_fallthru
      _
    // Predicated region
    $region54: #{discriminator_forward.1} parent=1 // pred_check
      _
    $region55: #{discriminator_forward.1} parent=1 // pred_check_branch
      %49 = sbr.rel (0) target = $region57
    $region56: #{discriminator_forward.1} parent=1 // pred_region
      _
    $region57: #{discriminator_forward.1} parent=1 // pred_fallthru
      _
    // Predicated region
    $region58: #{discriminator_forward.1} parent=1 // pred_check
      _
    $region59: #{discriminator_forward.1} parent=1 // pred_check_branch
      %51 = sbr.rel (0) target = $region61
    $region60: #{discriminator_forward.1} parent=1 // pred_region
      _
    $region61: #{discriminator_forward.1} parent=1 // pred_fallthru
      _
    // Predicated region
    $region62: #{discriminator_forward.1} parent=1 // pred_check
      _
    $region63: #{discriminator_forward.1} parent=1 // pred_check_branch
      %53 = sbr.rel (0) target = $region65
    $region64: #{discriminator_forward.1} parent=1 // pred_region
      _
    $region65: #{discriminator_forward.1} parent=1 // pred_fallthru
      _
    %v55 = vld [vmem:[%s1] sm:$0xf]
    %v56 = vld [vmem:[%s0] sm:$0xff]
    %v57 = vld [vmem:[%s0 + $0x8] sm:$0xff]
    %v58 = vld [vmem:[%s0 + $0x10] sm:$0xff]
    %v59 = vld [vmem:[%s0 + $0x18] sm:$0xff]
    %v60 = vld [vmem:[%s0 + $0x20] sm:$0xff]
    %v61 = vld [vmem:[%s0 + $0x28] sm:$0xff]
    %v62 = vld [vmem:[%s0 + $0x30] sm:$0xff]
    %v63 = vld [vmem:[%s0 + $0x38] sm:$0xff]
    %v64 = vld [vmem:[%s0 + $0x40] sm:$0xff]
    %v65 = vld [vmem:[%s0 + $0x48] sm:$0xff]
    %v66 = vld [vmem:[%s0 + $0x50] sm:$0xff]
    %v67 = vld [vmem:[%s0 + $0x58] sm:$0xff]
    %v80 = vunpack.c.l.b16 %v56
    %v81 = vunpack.c.h.b16 %v56
    %v82 = vunpack.c.l.b16 %v57
    %v83 = vunpack.c.h.b16 %v57
    %v84 = vunpack.c.l.b16 %v58
    %v85 = vunpack.c.h.b16 %v58
    %v86 = vunpack.c.l.b16 %v59
    %v87 = vunpack.c.h.b16 %v59
    %v88 = vunpack.c.l.b16 %v60
    %v89 = vunpack.c.h.b16 %v60
    %v90 = vunpack.c.l.b16 %v61
    %v91 = vunpack.c.h.b16 %v61
    %v92 = vunpack.c.l.b16 %v62
    %v93 = vunpack.c.h.b16 %v62
    %v94 = vunpack.c.l.b16 %v63
    %v95 = vunpack.c.h.b16 %v63
    %v96 = vunpack.c.l.b16 %v64
    %v97 = vunpack.c.h.b16 %v64
    %v98 = vunpack.c.l.b16 %v65
    %v99 = vunpack.c.h.b16 %v65
    %v100 = vunpack.c.l.b16 %v66
    %v101 = vunpack.c.h.b16 %v66
    %v102 = vunpack.c.l.b16 %v67
    %v103 = vunpack.c.h.b16 %v67
    %v104 = vpack.c.b16 %v84, %v80
    %v105 = vpack.c.b16 %v85, %v81
    %v106 = vpack.c.b16 %v86, %v82
    %v107 = vpack.c.b16 %v87, %v83
    %v108 = vpack.c.b16 %v92, %v88
    %v109 = vpack.c.b16 %v93, %v89
    %v110 = vpack.c.b16 %v94, %v90
    %v111 = vpack.c.b16 %v95, %v91
    %v112 = vpack.c.b16 %v100, %v96
    %v113 = vpack.c.b16 %v101, %v97
    %v114 = vpack.c.b16 %v102, %v98
    %v115 = vpack.c.b16 %v103, %v99
    %vm128 = vcmask 392192
    %v130 = vsel %vm128, %v55, 0
    %132 = vmatpush.bf16.msra.mxu0 0
    %133 = vmatpush.bf16.msra.mxu0 0
    %134 = vmatpush.bf16.msra.mxu0 0
    %135 = vmatpush.bf16.msra.mxu0 0
    %136 = vmatpush.bf16.msra.mxu0 0
    %137 = vmatpush.bf16.msra.mxu0 %v112
    %138 = vmatpush.bf16.msra.mxu0 %v108
    %139 = vmatpush.bf16.msra.mxu0 %v104
    %140 = vmatmul.bf16.gmra.mxu0 %v130
    %v141 = vpop.f32.mrf.mxu0
    %v142 = vadd.f32 0.0, %v141
    %v143 = vpop.f32.mrf.mxu0
    %144 = vdwg.mxu0
    %145 = vmatpush.bf16.msra.mxu0 0
    %146 = vmatpush.bf16.msra.mxu0 0
    %147 = vmatpush.bf16.msra.mxu0 0
    %148 = vmatpush.bf16.msra.mxu0 0
    %149 = vmatpush.bf16.msra.mxu0 0
    %150 = vmatpush.bf16.msra.mxu0 %v113
    %151 = vmatpush.bf16.msra.mxu0 %v109
    %152 = vmatpush.bf16.msra.mxu0 %v105
    %153 = vmatmul.bf16.gmra.mxu0 %v130
    %v154 = vpop.f32.mrf.mxu0
    %v155 = vadd.f32 0.0, %v154
    %v156 = vpop.f32.mrf.mxu0
    %157 = vdwg.mxu0
    %158 = vmatpush.bf16.msra.mxu0 0
    %159 = vmatpush.bf16.msra.mxu0 0
    %160 = vmatpush.bf16.msra.mxu0 0
    %161 = vmatpush.bf16.msra.mxu0 0
    %162 = vmatpush.bf16.msra.mxu0 0
    %163 = vmatpush.bf16.msra.mxu0 %v114
    %164 = vmatpush.bf16.msra.mxu0 %v110
    %165 = vmatpush.bf16.msra.mxu0 %v106
    %166 = vmatmul.bf16.gmra.mxu0 %v130
    %v167 = vpop.f32.mrf.mxu0
    %v168 = vadd.f32 0.0, %v167
    %v169 = vpop.f32.mrf.mxu0
    %170 = vdwg.mxu0
    %171 = vmatpush.bf16.msra.mxu0 0
    %172 = vmatpush.bf16.msra.mxu0 0
    %173 = vmatpush.bf16.msra.mxu0 0
    %174 = vmatpush.bf16.msra.mxu0 0
    %175 = vmatpush.bf16.msra.mxu0 0
    %176 = vmatpush.bf16.msra.mxu0 %v115
    %177 = vmatpush.bf16.msra.mxu0 %v111
    %178 = vmatpush.bf16.msra.mxu0 %v107
    %179 = vmatmul.bf16.gmra.mxu0 %v130
    %v180 = vpop.f32.mrf.mxu0
    %v181 = vadd.f32 0.0, %v180
    %v182 = vpop.f32.mrf.mxu0
    %183 = vdwg.mxu0
    %v184 = vmul.f32 %v142, 0.2
    %v185 = vmul.f32 %v155, 0.2
    %v186 = vmul.f32 %v168, 0.2
    %v187 = vmul.f32 %v181, 0.2
    %v188 = vmax.f32 %v142, %v184
    %v189 = vmax.f32 %v155, %v185
    %v190 = vmax.f32 %v168, %v186
    %v191 = vmax.f32 %v181, %v187
    %v192 = vld [vmem:[%s2] sm:$0xf]
    %v193 = vld [vmem:[%s2 + $0x4] sm:$0xf]
    %v194 = vld [vmem:[%s2 + $0x8] sm:$0xf]
    %v195 = vld [vmem:[%s2 + $0xc] sm:$0xf]
    %v196 = vld [vmem:[%s2 + $0x10] sm:$0xf]
    %v197 = vld [vmem:[%s2 + $0x14] sm:$0xf]
    %v198 = vld [vmem:[%s2 + $0x18] sm:$0xf]
    %v199 = vld [vmem:[%s2 + $0x1c] sm:$0xf]
    %v200 = vld [vmem:[%s2 + $0x20] sm:$0xf]
    %v201 = vld [vmem:[%s2 + $0x24] sm:$0xf]
    %v202 = vld [vmem:[%s2 + $0x28] sm:$0xf]
    %v203 = vld [vmem:[%s2 + $0x2c] sm:$0xf]
    %v204 = vld [vmem:[%s2 + $0x30] sm:$0xf]
    %v205 = vld [vmem:[%s2 + $0x34] sm:$0xf]
    %v206 = vld [vmem:[%s2 + $0x38] sm:$0xf]
    %v207 = vld [vmem:[%s2 + $0x3c] sm:$0xf]
    %v208 = vld [vmem:[%s2 + $0x40] sm:$0xf]
    %v209 = vld [vmem:[%s2 + $0x44] sm:$0xf]
    %v210 = vld [vmem:[%s2 + $0x48] sm:$0xf]
    %v211 = vld [vmem:[%s2 + $0x4c] sm:$0xf]
    %v212 = vld [vmem:[%s2 + $0x50] sm:$0xf]
    %v213 = vld [vmem:[%s2 + $0x54] sm:$0xf]
    %v214 = vld [vmem:[%s2 + $0x58] sm:$0xf]
    %v215 = vld [vmem:[%s2 + $0x5c] sm:$0xf]
    %v216 = vld [vmem:[%s2 + $0x60] sm:$0xf]
    %v217 = vld [vmem:[%s2 + $0x64] sm:$0xf]
    %v218 = vld [vmem:[%s2 + $0x68] sm:$0xf]
    %v219 = vld [vmem:[%s2 + $0x6c] sm:$0xf]
    %v220 = vld [vmem:[%s2 + $0x70] sm:$0xf]
    %v221 = vld [vmem:[%s2 + $0x74] sm:$0xf]
    %v222 = vld [vmem:[%s2 + $0x78] sm:$0xf]
    %v223 = vld [vmem:[%s2 + $0x7c] sm:$0xf]
    %v224 = vpack.c.bf16 %v188, %v188
    %v225 = vpack.c.bf16 %v189, %v189
    %v226 = vpack.c.bf16 %v190, %v190
    %v227 = vpack.c.bf16 %v191, %v191
    %v260 = vunpack.c.l.b16 %v192
    %v261 = vunpack.c.l.b16 %v193
    %v262 = vunpack.c.l.b16 %v194
    %v263 = vunpack.c.l.b16 %v195
    %v264 = vunpack.c.l.b16 %v196
    %v265 = vunpack.c.l.b16 %v197
    %v266 = vunpack.c.l.b16 %v198
    %v267 = vunpack.c.l.b16 %v199
    %v268 = vunpack.c.l.b16 %v200
    %v269 = vunpack.c.l.b16 %v201
    %v270 = vunpack.c.l.b16 %v202
    %v271 = vunpack.c.l.b16 %v203
    %v272 = vunpack.c.l.b16 %v204
    %v273 = vunpack.c.l.b16 %v205
    %v274 = vunpack.c.l.b16 %v206
    %v275 = vunpack.c.l.b16 %v207
    %v276 = vunpack.c.l.b16 %v208
    %v277 = vunpack.c.l.b16 %v209
    %v278 = vunpack.c.l.b16 %v210
    %v279 = vunpack.c.l.b16 %v211
    %v280 = vunpack.c.l.b16 %v212
    %v281 = vunpack.c.l.b16 %v213
    %v282 = vunpack.c.l.b16 %v214
    %v283 = vunpack.c.l.b16 %v215
    %v284 = vunpack.c.l.b16 %v216
    %v285 = vunpack.c.l.b16 %v217
    %v286 = vunpack.c.l.b16 %v218
    %v287 = vunpack.c.l.b16 %v219
    %v288 = vunpack.c.l.b16 %v220
    %v289 = vunpack.c.l.b16 %v221
    %v290 = vunpack.c.l.b16 %v222
    %v291 = vunpack.c.l.b16 %v223
    %v292 = vpack.c.b16 %v261, %v260
    %v293 = vpack.c.b16 %v263, %v262
    %v294 = vpack.c.b16 %v265, %v264
    %v295 = vpack.c.b16 %v267, %v266
    %v296 = vpack.c.b16 %v269, %v268
    %v297 = vpack.c.b16 %v271, %v270
    %v298 = vpack.c.b16 %v273, %v272
    %v299 = vpack.c.b16 %v275, %v274
    %v300 = vpack.c.b16 %v277, %v276
    %v301 = vpack.c.b16 %v279, %v278
    %v302 = vpack.c.b16 %v281, %v280
    %v303 = vpack.c.b16 %v283, %v282
    %v304 = vpack.c.b16 %v285, %v284
    %v305 = vpack.c.b16 %v287, %v286
    %v306 = vpack.c.b16 %v289, %v288
    %v307 = vpack.c.b16 %v291, %v290
    %vm308 = vcmask 64512
    %v310 = vsel %vm308, %v292, 0
    %v313 = vsel %vm308, %v293, 0
    %v316 = vsel %vm308, %v294, 0
    %v319 = vsel %vm308, %v295, 0
    %v322 = vsel %vm308, %v296, 0
    %v325 = vsel %vm308, %v297, 0
    %v328 = vsel %vm308, %v298, 0
    %v331 = vsel %vm308, %v299, 0
    %v334 = vsel %vm308, %v300, 0
    %v337 = vsel %vm308, %v301, 0
    %v340 = vsel %vm308, %v302, 0
    %v343 = vsel %vm308, %v303, 0
    %v346 = vsel %vm308, %v304, 0
    %v349 = vsel %vm308, %v305, 0
    %v352 = vsel %vm308, %v306, 0
    %v355 = vsel %vm308, %v307, 0
    %vm357 = vcmask 1043456
    %v359 = vsel %vm357, %v224, 0
    %v362 = vsel %vm357, %v225, 0
    %v365 = vsel %vm357, %v226, 0
    %v368 = vsel %vm357, %v227, 0
    %370 = vmatpush.bf16.msra.mxu0 0
    %371 = vmatpush.bf16.msra.mxu0 0
    %372 = vmatpush.bf16.msra.mxu0 0
    %373 = vmatpush.bf16.msra.mxu0 0
    %374 = vmatpush.bf16.msra.mxu0 0
    %375 = vmatpush.bf16.msra.mxu0 0
    %376 = vmatpush.bf16.msra.mxu0 0
    %377 = vmatpush.bf16.msra.mxu0 %v359
    %378 = vmatmul.bf16.gmra.mxu0 %v310
    %v379 = vpop.f32.mrf.mxu0
    %v380 = vadd.f32 0.0, %v379
    %v381 = vpop.f32.mrf.mxu0
    %v382 = vadd.f32 0.0, %v381
    %383 = vmatmul.bf16.gmra.mxu0 %v313
    %v384 = vpop.f32.mrf.mxu0
    %v385 = vadd.f32 0.0, %v384
    %v386 = vpop.f32.mrf.mxu0
    %v387 = vadd.f32 0.0, %v386
    %388 = vmatmul.bf16.gmra.mxu0 %v316
    %v389 = vpop.f32.mrf.mxu0
    %v390 = vadd.f32 0.0, %v389
    %v391 = vpop.f32.mrf.mxu0
    %v392 = vadd.f32 0.0, %v391
    %393 = vmatmul.bf16.gmra.mxu0 %v319
    %v394 = vpop.f32.mrf.mxu0
    %v395 = vadd.f32 0.0, %v394
    %v396 = vpop.f32.mrf.mxu0
    %v397 = vadd.f32 0.0, %v396
    %398 = vmatmul.bf16.gmra.mxu0 %v322
    %v399 = vpop.f32.mrf.mxu0
    %v400 = vadd.f32 0.0, %v399
    %v401 = vpop.f32.mrf.mxu0
    %v402 = vadd.f32 0.0, %v401
    %403 = vmatmul.bf16.gmra.mxu0 %v325
    %v404 = vpop.f32.mrf.mxu0
    %v405 = vadd.f32 0.0, %v404
    %v406 = vpop.f32.mrf.mxu0
    %v407 = vadd.f32 0.0, %v406
    %408 = vmatmul.bf16.gmra.mxu0 %v328
    %v409 = vpop.f32.mrf.mxu0
    %v410 = vadd.f32 0.0, %v409
    %v411 = vpop.f32.mrf.mxu0
    %v412 = vadd.f32 0.0, %v411
    %413 = vmatmul.bf16.gmra.mxu0 %v331
    %v414 = vpop.f32.mrf.mxu0
    %v415 = vadd.f32 0.0, %v414
    %v416 = vpop.f32.mrf.mxu0
    %v417 = vadd.f32 0.0, %v416
    %418 = vmatmul.bf16.gmra.mxu0 %v334
    %v419 = vpop.f32.mrf.mxu0
    %v420 = vadd.f32 0.0, %v419
    %v421 = vpop.f32.mrf.mxu0
    %v422 = vadd.f32 0.0, %v421
    %423 = vmatmul.bf16.gmra.mxu0 %v337
    %v424 = vpop.f32.mrf.mxu0
    %v425 = vadd.f32 0.0, %v424
    %v426 = vpop.f32.mrf.mxu0
    %v427 = vadd.f32 0.0, %v426
    %428 = vmatmul.bf16.gmra.mxu0 %v340
    %v429 = vpop.f32.mrf.mxu0
    %v430 = vadd.f32 0.0, %v429
    %v431 = vpop.f32.mrf.mxu0
    %v432 = vadd.f32 0.0, %v431
    %433 = vmatmul.bf16.gmra.mxu0 %v343
    %v434 = vpop.f32.mrf.mxu0
    %v435 = vadd.f32 0.0, %v434
    %v436 = vpop.f32.mrf.mxu0
    %v437 = vadd.f32 0.0, %v436
    %438 = vmatmul.bf16.gmra.mxu0 %v346
    %v439 = vpop.f32.mrf.mxu0
    %v440 = vadd.f32 0.0, %v439
    %v441 = vpop.f32.mrf.mxu0
    %v442 = vadd.f32 0.0, %v441
    %443 = vmatmul.bf16.gmra.mxu0 %v349
    %v444 = vpop.f32.mrf.mxu0
    %v445 = vadd.f32 0.0, %v444
    %v446 = vpop.f32.mrf.mxu0
    %v447 = vadd.f32 0.0, %v446
    %448 = vmatmul.bf16.gmra.mxu0 %v352
    %v449 = vpop.f32.mrf.mxu0
    %v450 = vadd.f32 0.0, %v449
    %v451 = vpop.f32.mrf.mxu0
    %v452 = vadd.f32 0.0, %v451
    %453 = vmatmul.bf16.gmra.mxu0 %v355
    %v454 = vpop.f32.mrf.mxu0
    %v455 = vadd.f32 0.0, %v454
    %v456 = vpop.f32.mrf.mxu0
    %v457 = vadd.f32 0.0, %v456
    %458 = vdwg.mxu0
    %459 = vmatpush.bf16.msra.mxu0 0
    %460 = vmatpush.bf16.msra.mxu0 0
    %461 = vmatpush.bf16.msra.mxu0 0
    %462 = vmatpush.bf16.msra.mxu0 0
    %463 = vmatpush.bf16.msra.mxu0 0
    %464 = vmatpush.bf16.msra.mxu0 0
    %465 = vmatpush.bf16.msra.mxu0 0
    %466 = vmatpush.bf16.msra.mxu0 %v362
    %467 = vmatmul.bf16.gmra.mxu0 %v310
    %v468 = vpop.f32.mrf.mxu0
    %v469 = vadd.f32 0.0, %v468
    %v470 = vpop.f32.mrf.mxu0
    %v471 = vadd.f32 0.0, %v470
    %472 = vmatmul.bf16.gmra.mxu0 %v313
    %v473 = vpop.f32.mrf.mxu0
    %v474 = vadd.f32 0.0, %v473
    %v475 = vpop.f32.mrf.mxu0
    %v476 = vadd.f32 0.0, %v475
    %477 = vmatmul.bf16.gmra.mxu0 %v316
    %v478 = vpop.f32.mrf.mxu0
    %v479 = vadd.f32 0.0, %v478
    %v480 = vpop.f32.mrf.mxu0
    %v481 = vadd.f32 0.0, %v480
    %482 = vmatmul.bf16.gmra.mxu0 %v319
    %v483 = vpop.f32.mrf.mxu0
    %v484 = vadd.f32 0.0, %v483
    %v485 = vpop.f32.mrf.mxu0
    %v486 = vadd.f32 0.0, %v485
    %487 = vmatmul.bf16.gmra.mxu0 %v322
    %v488 = vpop.f32.mrf.mxu0
    %v489 = vadd.f32 0.0, %v488
    %v490 = vpop.f32.mrf.mxu0
    %v491 = vadd.f32 0.0, %v490
    %492 = vmatmul.bf16.gmra.mxu0 %v325
    %v493 = vpop.f32.mrf.mxu0
    %v494 = vadd.f32 0.0, %v493
    %v495 = vpop.f32.mrf.mxu0
    %v496 = vadd.f32 0.0, %v495
    %497 = vmatmul.bf16.gmra.mxu0 %v328
    %v498 = vpop.f32.mrf.mxu0
    %v499 = vadd.f32 0.0, %v498
    %v500 = vpop.f32.mrf.mxu0
    %v501 = vadd.f32 0.0, %v500
    %502 = vmatmul.bf16.gmra.mxu0 %v331
    %v503 = vpop.f32.mrf.mxu0
    %v504 = vadd.f32 0.0, %v503
    %v505 = vpop.f32.mrf.mxu0
    %v506 = vadd.f32 0.0, %v505
    %507 = vmatmul.bf16.gmra.mxu0 %v334
    %v508 = vpop.f32.mrf.mxu0
    %v509 = vadd.f32 0.0, %v508
    %v510 = vpop.f32.mrf.mxu0
    %v511 = vadd.f32 0.0, %v510
    %512 = vmatmul.bf16.gmra.mxu0 %v337
    %v513 = vpop.f32.mrf.mxu0
    %v514 = vadd.f32 0.0, %v513
    %v515 = vpop.f32.mrf.mxu0
    %v516 = vadd.f32 0.0, %v515
    %517 = vmatmul.bf16.gmra.mxu0 %v340
    %v518 = vpop.f32.mrf.mxu0
    %v519 = vadd.f32 0.0, %v518
    %v520 = vpop.f32.mrf.mxu0
    %v521 = vadd.f32 0.0, %v520
    %522 = vmatmul.bf16.gmra.mxu0 %v343
    %v523 = vpop.f32.mrf.mxu0
    %v524 = vadd.f32 0.0, %v523
    %v525 = vpop.f32.mrf.mxu0
    %v526 = vadd.f32 0.0, %v525
    %527 = vmatmul.bf16.gmra.mxu0 %v346
    %v528 = vpop.f32.mrf.mxu0
    %v529 = vadd.f32 0.0, %v528
    %v530 = vpop.f32.mrf.mxu0
    %v531 = vadd.f32 0.0, %v530
    %532 = vmatmul.bf16.gmra.mxu0 %v349
    %v533 = vpop.f32.mrf.mxu0
    %v534 = vadd.f32 0.0, %v533
    %v535 = vpop.f32.mrf.mxu0
    %v536 = vadd.f32 0.0, %v535
    %537 = vmatmul.bf16.gmra.mxu0 %v352
    %v538 = vpop.f32.mrf.mxu0
    %v539 = vadd.f32 0.0, %v538
    %v540 = vpop.f32.mrf.mxu0
    %v541 = vadd.f32 0.0, %v540
    %542 = vmatmul.bf16.gmra.mxu0 %v355
    %v543 = vpop.f32.mrf.mxu0
    %v544 = vadd.f32 0.0, %v543
    %v545 = vpop.f32.mrf.mxu0
    %v546 = vadd.f32 0.0, %v545
    %547 = vdwg.mxu0
    %548 = vmatpush.bf16.msra.mxu0 0
    %549 = vmatpush.bf16.msra.mxu0 0
    %550 = vmatpush.bf16.msra.mxu0 0
    %551 = vmatpush.bf16.msra.mxu0 0
    %552 = vmatpush.bf16.msra.mxu0 0
    %553 = vmatpush.bf16.msra.mxu0 0
    %554 = vmatpush.bf16.msra.mxu0 0
    %555 = vmatpush.bf16.msra.mxu0 %v365
    %556 = vmatmul.bf16.gmra.mxu0 %v310
    %v557 = vpop.f32.mrf.mxu0
    %v558 = vadd.f32 0.0, %v557
    %v559 = vpop.f32.mrf.mxu0
    %v560 = vadd.f32 0.0, %v559
    %561 = vmatmul.bf16.gmra.mxu0 %v313
    %v562 = vpop.f32.mrf.mxu0
    %v563 = vadd.f32 0.0, %v562
    %v564 = vpop.f32.mrf.mxu0
    %v565 = vadd.f32 0.0, %v564
    %566 = vmatmul.bf16.gmra.mxu0 %v316
    %v567 = vpop.f32.mrf.mxu0
    %v568 = vadd.f32 0.0, %v567
    %v569 = vpop.f32.mrf.mxu0
    %v570 = vadd.f32 0.0, %v569
    %571 = vmatmul.bf16.gmra.mxu0 %v319
    %v572 = vpop.f32.mrf.mxu0
    %v573 = vadd.f32 0.0, %v572
    %v574 = vpop.f32.mrf.mxu0
    %v575 = vadd.f32 0.0, %v574
    %576 = vmatmul.bf16.gmra.mxu0 %v322
    %v577 = vpop.f32.mrf.mxu0
    %v578 = vadd.f32 0.0, %v577
    %v579 = vpop.f32.mrf.mxu0
    %v580 = vadd.f32 0.0, %v579
    %581 = vmatmul.bf16.gmra.mxu0 %v325
    %v582 = vpop.f32.mrf.mxu0
    %v583 = vadd.f32 0.0, %v582
    %v584 = vpop.f32.mrf.mxu0
    %v585 = vadd.f32 0.0, %v584
    %586 = vmatmul.bf16.gmra.mxu0 %v328
    %v587 = vpop.f32.mrf.mxu0
    %v588 = vadd.f32 0.0, %v587
    %v589 = vpop.f32.mrf.mxu0
    %v590 = vadd.f32 0.0, %v589
    %591 = vmatmul.bf16.gmra.mxu0 %v331
    %v592 = vpop.f32.mrf.mxu0
    %v593 = vadd.f32 0.0, %v592
    %v594 = vpop.f32.mrf.mxu0
    %v595 = vadd.f32 0.0, %v594
    %596 = vmatmul.bf16.gmra.mxu0 %v334
    %v597 = vpop.f32.mrf.mxu0
    %v598 = vadd.f32 0.0, %v597
    %v599 = vpop.f32.mrf.mxu0
    %v600 = vadd.f32 0.0, %v599
    %601 = vmatmul.bf16.gmra.mxu0 %v337
    %v602 = vpop.f32.mrf.mxu0
    %v603 = vadd.f32 0.0, %v602
    %v604 = vpop.f32.mrf.mxu0
    %v605 = vadd.f32 0.0, %v604
    %606 = vmatmul.bf16.gmra.mxu0 %v340
    %v607 = vpop.f32.mrf.mxu0
    %v608 = vadd.f32 0.0, %v607
    %v609 = vpop.f32.mrf.mxu0
    %v610 = vadd.f32 0.0, %v609
    %611 = vmatmul.bf16.gmra.mxu0 %v343
    %v612 = vpop.f32.mrf.mxu0
    %v613 = vadd.f32 0.0, %v612
    %v614 = vpop.f32.mrf.mxu0
    %v615 = vadd.f32 0.0, %v614
    %616 = vmatmul.bf16.gmra.mxu0 %v346
    %v617 = vpop.f32.mrf.mxu0
    %v618 = vadd.f32 0.0, %v617
    %v619 = vpop.f32.mrf.mxu0
    %v620 = vadd.f32 0.0, %v619
    %621 = vmatmul.bf16.gmra.mxu0 %v349
    %v622 = vpop.f32.mrf.mxu0
    %v623 = vadd.f32 0.0, %v622
    %v624 = vpop.f32.mrf.mxu0
    %v625 = vadd.f32 0.0, %v624
    %626 = vmatmul.bf16.gmra.mxu0 %v352
    %v627 = vpop.f32.mrf.mxu0
    %v628 = vadd.f32 0.0, %v627
    %v629 = vpop.f32.mrf.mxu0
    %v630 = vadd.f32 0.0, %v629
    %631 = vmatmul.bf16.gmra.mxu0 %v355
    %v632 = vpop.f32.mrf.mxu0
    %v633 = vadd.f32 0.0, %v632
    %v634 = vpop.f32.mrf.mxu0
    %v635 = vadd.f32 0.0, %v634
    %636 = vdwg.mxu0
    %637 = vmatpush.bf16.msra.mxu0 0
    %638 = vmatpush.bf16.msra.mxu0 0
    %639 = vmatpush.bf16.msra.mxu0 0
    %640 = vmatpush.bf16.msra.mxu0 0
    %641 = vmatpush.bf16.msra.mxu0 0
    %642 = vmatpush.bf16.msra.mxu0 0
    %643 = vmatpush.bf16.msra.mxu0 0
    %644 = vmatpush.bf16.msra.mxu0 %v368
    %645 = vmatmul.bf16.gmra.mxu0 %v310
    %v646 = vpop.f32.mrf.mxu0
    %v647 = vadd.f32 0.0, %v646
    %v648 = vpop.f32.mrf.mxu0
    %v649 = vadd.f32 0.0, %v648
    %650 = vmatmul.bf16.gmra.mxu0 %v313
    %v651 = vpop.f32.mrf.mxu0
    %v652 = vadd.f32 0.0, %v651
    %v653 = vpop.f32.mrf.mxu0
    %v654 = vadd.f32 0.0, %v653
    %655 = vmatmul.bf16.gmra.mxu0 %v316
    %v656 = vpop.f32.mrf.mxu0
    %v657 = vadd.f32 0.0, %v656
    %v658 = vpop.f32.mrf.mxu0
    %v659 = vadd.f32 0.0, %v658
    %660 = vmatmul.bf16.gmra.mxu0 %v319
    %v661 = vpop.f32.mrf.mxu0
    %v662 = vadd.f32 0.0, %v661
    %v663 = vpop.f32.mrf.mxu0
    %v664 = vadd.f32 0.0, %v663
    %665 = vmatmul.bf16.gmra.mxu0 %v322
    %v666 = vpop.f32.mrf.mxu0
    %v667 = vadd.f32 0.0, %v666
    %v668 = vpop.f32.mrf.mxu0
    %v669 = vadd.f32 0.0, %v668
    %670 = vmatmul.bf16.gmra.mxu0 %v325
    %v671 = vpop.f32.mrf.mxu0
    %v672 = vadd.f32 0.0, %v671
    %v673 = vpop.f32.mrf.mxu0
    %v674 = vadd.f32 0.0, %v673
    %675 = vmatmul.bf16.gmra.mxu0 %v328
    %v676 = vpop.f32.mrf.mxu0
    %v677 = vadd.f32 0.0, %v676
    %v678 = vpop.f32.mrf.mxu0
    %v679 = vadd.f32 0.0, %v678
    %680 = vmatmul.bf16.gmra.mxu0 %v331
    %v681 = vpop.f32.mrf.mxu0
    %v682 = vadd.f32 0.0, %v681
    %v683 = vpop.f32.mrf.mxu0
    %v684 = vadd.f32 0.0, %v683
    %685 = vmatmul.bf16.gmra.mxu0 %v334
    %v686 = vpop.f32.mrf.mxu0
    %v687 = vadd.f32 0.0, %v686
    %v688 = vpop.f32.mrf.mxu0
    %v689 = vadd.f32 0.0, %v688
    %690 = vmatmul.bf16.gmra.mxu0 %v337
    %v691 = vpop.f32.mrf.mxu0
    %v692 = vadd.f32 0.0, %v691
    %v693 = vpop.f32.mrf.mxu0
    %v694 = vadd.f32 0.0, %v693
    %695 = vmatmul.bf16.gmra.mxu0 %v340
    %v696 = vpop.f32.mrf.mxu0
    %v697 = vadd.f32 0.0, %v696
    %v698 = vpop.f32.mrf.mxu0
    %v699 = vadd.f32 0.0, %v698
    %700 = vmatmul.bf16.gmra.mxu0 %v343
    %v701 = vpop.f32.mrf.mxu0
    %v702 = vadd.f32 0.0, %v701
    %v703 = vpop.f32.mrf.mxu0
    %v704 = vadd.f32 0.0, %v703
    %705 = vmatmul.bf16.gmra.mxu0 %v346
    %v706 = vpop.f32.mrf.mxu0
    %v707 = vadd.f32 0.0, %v706
    %v708 = vpop.f32.mrf.mxu0
    %v709 = vadd.f32 0.0, %v708
    %710 = vmatmul.bf16.gmra.mxu0 %v349
    %v711 = vpop.f32.mrf.mxu0
    %v712 = vadd.f32 0.0, %v711
    %v713 = vpop.f32.mrf.mxu0
    %v714 = vadd.f32 0.0, %v713
    %715 = vmatmul.bf16.gmra.mxu0 %v352
    %v716 = vpop.f32.mrf.mxu0
    %v717 = vadd.f32 0.0, %v716
    %v718 = vpop.f32.mrf.mxu0
    %v719 = vadd.f32 0.0, %v718
    %720 = vmatmul.bf16.gmra.mxu0 %v355
    %v721 = vpop.f32.mrf.mxu0
    %v722 = vadd.f32 0.0, %v721
    %v723 = vpop.f32.mrf.mxu0
    %v724 = vadd.f32 0.0, %v723
    %725 = vdwg.mxu0
    %v726 = vld [vmem:[%s6] sm:$0xf]
    %v727 = vld [vmem:[%s6 + $0x4] sm:$0xf]
    %v728 = vld [vmem:[%s6 + $0x8] sm:$0xf]
    %v729 = vld [vmem:[%s6 + $0xc] sm:$0xf]
    %v730 = vld [vmem:[%s6 + $0x10] sm:$0xf]
    %v731 = vld [vmem:[%s6 + $0x14] sm:$0xf]
    %v732 = vld [vmem:[%s6 + $0x18] sm:$0xf]
    %v733 = vld [vmem:[%s6 + $0x1c] sm:$0xf]
    %v734 = vld [vmem:[%s6 + $0x20] sm:$0xf]
    %v735 = vld [vmem:[%s6 + $0x24] sm:$0xf]
    %v736 = vld [vmem:[%s6 + $0x28] sm:$0xf]
    %v737 = vld [vmem:[%s6 + $0x2c] sm:$0xf]
    %v738 = vld [vmem:[%s6 + $0x30] sm:$0xf]
    %v739 = vld [vmem:[%s6 + $0x34] sm:$0xf]
    %v740 = vld [vmem:[%s6 + $0x38] sm:$0xf]
    %v741 = vld [vmem:[%s6 + $0x3c] sm:$0xf]
    %v742 = vld [vmem:[%s6 + $0x40] sm:$0xf]
    %v743 = vld [vmem:[%s6 + $0x44] sm:$0xf]
    %v744 = vld [vmem:[%s6 + $0x48] sm:$0xf]
    %v745 = vld [vmem:[%s6 + $0x4c] sm:$0xf]
    %v746 = vld [vmem:[%s6 + $0x50] sm:$0xf]
    %v747 = vld [vmem:[%s6 + $0x54] sm:$0xf]
    %v748 = vld [vmem:[%s6 + $0x58] sm:$0xf]
    %v749 = vld [vmem:[%s6 + $0x5c] sm:$0xf]
    %v750 = vld [vmem:[%s6 + $0x60] sm:$0xf]
    %v751 = vld [vmem:[%s6 + $0x64] sm:$0xf]
    %v752 = vld [vmem:[%s6 + $0x68] sm:$0xf]
    %v753 = vld [vmem:[%s6 + $0x6c] sm:$0xf]
    %v754 = vld [vmem:[%s6 + $0x70] sm:$0xf]
    %v755 = vld [vmem:[%s6 + $0x74] sm:$0xf]
    %v756 = vld [vmem:[%s6 + $0x78] sm:$0xf]
    %v757 = vld [vmem:[%s6 + $0x7c] sm:$0xf]
    %v758 = vld [vmem:[%s6 + $0x80] sm:$0xf]
    %v759 = vld [vmem:[%s6 + $0x84] sm:$0xf]
    %v760 = vld [vmem:[%s6 + $0x88] sm:$0xf]
    %v761 = vld [vmem:[%s6 + $0x8c] sm:$0xf]
    %v762 = vld [vmem:[%s6 + $0x90] sm:$0xf]
    %v763 = vld [vmem:[%s6 + $0x94] sm:$0xf]
    %v764 = vld [vmem:[%s6 + $0x98] sm:$0xf]
    %v765 = vld [vmem:[%s6 + $0x9c] sm:$0xf]
    %v766 = vld [vmem:[%s6 + $0xa0] sm:$0xf]
    %v767 = vld [vmem:[%s6 + $0xa4] sm:$0xf]
    %v768 = vld [vmem:[%s6 + $0xa8] sm:$0xf]
    %v769 = vld [vmem:[%s6 + $0xac] sm:$0xf]
    %v770 = vld [vmem:[%s6 + $0xb0] sm:$0xf]
    %v771 = vld [vmem:[%s6 + $0xb4] sm:$0xf]
    %v772 = vld [vmem:[%s6 + $0xb8] sm:$0xf]
    %v773 = vld [vmem:[%s6 + $0xbc] sm:$0xf]
    %v774 = vld [vmem:[%s6 + $0xc0] sm:$0xf]
    %v775 = vld [vmem:[%s6 + $0xc4] sm:$0xf]
    %v776 = vld [vmem:[%s6 + $0xc8] sm:$0xf]
    %v777 = vld [vmem:[%s6 + $0xcc] sm:$0xf]
    %v778 = vld [vmem:[%s6 + $0xd0] sm:$0xf]
    %v779 = vld [vmem:[%s6 + $0xd4] sm:$0xf]
    %v780 = vld [vmem:[%s6 + $0xd8] sm:$0xf]
    %v781 = vld [vmem:[%s6 + $0xdc] sm:$0xf]
    %v782 = vld [vmem:[%s6 + $0xe0] sm:$0xf]
    %v783 = vld [vmem:[%s6 + $0xe4] sm:$0xf]
    %v784 = vld [vmem:[%s6 + $0xe8] sm:$0xf]
    %v785 = vld [vmem:[%s6 + $0xec] sm:$0xf]
    %v786 = vld [vmem:[%s6 + $0xf0] sm:$0xf]
    %v787 = vld [vmem:[%s6 + $0xf4] sm:$0xf]
    %v788 = vld [vmem:[%s6 + $0xf8] sm:$0xf]
    %v789 = vld [vmem:[%s6 + $0xfc] sm:$0xf]
    %v790 = vunpack.c.l.bf16 %v726
    %v791 = vunpack.c.l.bf16 %v727
    %v792 = vunpack.c.l.bf16 %v728
    %v793 = vunpack.c.l.bf16 %v729
    %v794 = vunpack.c.l.bf16 %v730
    %v795 = vunpack.c.l.bf16 %v731
    %v796 = vunpack.c.l.bf16 %v732
    %v797 = vunpack.c.l.bf16 %v733
    %v798 = vunpack.c.l.bf16 %v734
    %v799 = vunpack.c.l.bf16 %v735
    %v800 = vunpack.c.l.bf16 %v736
    %v801 = vunpack.c.l.bf16 %v737
    %v802 = vunpack.c.l.bf16 %v738
    %v803 = vunpack.c.l.bf16 %v739
    %v804 = vunpack.c.l.bf16 %v740
    %v805 = vunpack.c.l.bf16 %v741
    %v806 = vunpack.c.l.bf16 %v742
    %v807 = vunpack.c.l.bf16 %v743
    %v808 = vunpack.c.l.bf16 %v744
    %v809 = vunpack.c.l.bf16 %v745
    %v810 = vunpack.c.l.bf16 %v746
    %v811 = vunpack.c.l.bf16 %v747
    %v812 = vunpack.c.l.bf16 %v748
    %v813 = vunpack.c.l.bf16 %v749
    %v814 = vunpack.c.l.bf16 %v750
    %v815 = vunpack.c.l.bf16 %v751
    %v816 = vunpack.c.l.bf16 %v752
    %v817 = vunpack.c.l.bf16 %v753
    %v818 = vunpack.c.l.bf16 %v754
    %v819 = vunpack.c.l.bf16 %v755
    %v820 = vunpack.c.l.bf16 %v756
    %v821 = vunpack.c.l.bf16 %v757
    %v822 = vunpack.c.l.bf16 %v758
    %v823 = vunpack.c.l.bf16 %v759
    %v824 = vunpack.c.l.bf16 %v760
    %v825 = vunpack.c.l.bf16 %v761
    %v826 = vunpack.c.l.bf16 %v762
    %v827 = vunpack.c.l.bf16 %v763
    %v828 = vunpack.c.l.bf16 %v764
    %v829 = vunpack.c.l.bf16 %v765
    %v830 = vunpack.c.l.bf16 %v766
    %v831 = vunpack.c.l.bf16 %v767
    %v832 = vunpack.c.l.bf16 %v768
    %v833 = vunpack.c.l.bf16 %v769
    %v834 = vunpack.c.l.bf16 %v770
    %v835 = vunpack.c.l.bf16 %v771
    %v836 = vunpack.c.l.bf16 %v772
    %v837 = vunpack.c.l.bf16 %v773
    %v838 = vunpack.c.l.bf16 %v774
    %v839 = vunpack.c.l.bf16 %v775
    %v840 = vunpack.c.l.bf16 %v776
    %v841 = vunpack.c.l.bf16 %v777
    %v842 = vunpack.c.l.bf16 %v778
    %v843 = vunpack.c.l.bf16 %v779
    %v844 = vunpack.c.l.bf16 %v780
    %v845 = vunpack.c.l.bf16 %v781
    %v846 = vunpack.c.l.bf16 %v782
    %v847 = vunpack.c.l.bf16 %v783
    %v848 = vunpack.c.l.bf16 %v784
    %v849 = vunpack.c.l.bf16 %v785
    %v850 = vunpack.c.l.bf16 %v786
    %v851 = vunpack.c.l.bf16 %v787
    %v852 = vunpack.c.l.bf16 %v788
    %v853 = vunpack.c.l.bf16 %v789
    %s854 = scalar_lea.vmem %s6, 256
    %v855 = vld [vmem:[%s854] sm:$0xf]
    %v856 = vld [vmem:[%s854 + $0x4] sm:$0xf]
    %v857 = vld [vmem:[%s854 + $0x8] sm:$0xf]
    %v858 = vld [vmem:[%s854 + $0xc] sm:$0xf]
    %v859 = vld [vmem:[%s854 + $0x10] sm:$0xf]
    %v860 = vld [vmem:[%s854 + $0x14] sm:$0xf]
    %v861 = vld [vmem:[%s854 + $0x18] sm:$0xf]
    %v862 = vld [vmem:[%s854 + $0x1c] sm:$0xf]
    %v863 = vld [vmem:[%s854 + $0x20] sm:$0xf]
    %v864 = vld [vmem:[%s854 + $0x24] sm:$0xf]
    %v865 = vld [vmem:[%s854 + $0x28] sm:$0xf]
    %v866 = vld [vmem:[%s854 + $0x2c] sm:$0xf]
    %v867 = vld [vmem:[%s854 + $0x30] sm:$0xf]
    %v868 = vld [vmem:[%s854 + $0x34] sm:$0xf]
    %v869 = vld [vmem:[%s854 + $0x38] sm:$0xf]
    %v870 = vld [vmem:[%s854 + $0x3c] sm:$0xf]
    %v871 = vld [vmem:[%s854 + $0x40] sm:$0xf]
    %v872 = vld [vmem:[%s854 + $0x44] sm:$0xf]
    %v873 = vld [vmem:[%s854 + $0x48] sm:$0xf]
    %v874 = vld [vmem:[%s854 + $0x4c] sm:$0xf]
    %v875 = vld [vmem:[%s854 + $0x50] sm:$0xf]
    %v876 = vld [vmem:[%s854 + $0x54] sm:$0xf]
    %v877 = vld [vmem:[%s854 + $0x58] sm:$0xf]
    %v878 = vld [vmem:[%s854 + $0x5c] sm:$0xf]
    %v879 = vld [vmem:[%s854 + $0x60] sm:$0xf]
    %v880 = vld [vmem:[%s854 + $0x64] sm:$0xf]
    %v881 = vld [vmem:[%s854 + $0x68] sm:$0xf]
    %v882 = vld [vmem:[%s854 + $0x6c] sm:$0xf]
    %v883 = vld [vmem:[%s854 + $0x70] sm:$0xf]
    %v884 = vld [vmem:[%s854 + $0x74] sm:$0xf]
    %v885 = vld [vmem:[%s854 + $0x78] sm:$0xf]
    %v886 = vld [vmem:[%s854 + $0x7c] sm:$0xf]
    %v887 = vld [vmem:[%s854 + $0x80] sm:$0xf]
    %v888 = vld [vmem:[%s854 + $0x84] sm:$0xf]
    %v889 = vld [vmem:[%s854 + $0x88] sm:$0xf]
    %v890 = vld [vmem:[%s854 + $0x8c] sm:$0xf]
    %v891 = vld [vmem:[%s854 + $0x90] sm:$0xf]
    %v892 = vld [vmem:[%s854 + $0x94] sm:$0xf]
    %v893 = vld [vmem:[%s854 + $0x98] sm:$0xf]
    %v894 = vld [vmem:[%s854 + $0x9c] sm:$0xf]
    %v895 = vld [vmem:[%s854 + $0xa0] sm:$0xf]
    %v896 = vld [vmem:[%s854 + $0xa4] sm:$0xf]
    %v897 = vld [vmem:[%s854 + $0xa8] sm:$0xf]
    %v898 = vld [vmem:[%s854 + $0xac] sm:$0xf]
    %v899 = vld [vmem:[%s854 + $0xb0] sm:$0xf]
    %v900 = vld [vmem:[%s854 + $0xb4] sm:$0xf]
    %v901 = vld [vmem:[%s854 + $0xb8] sm:$0xf]
    %v902 = vld [vmem:[%s854 + $0xbc] sm:$0xf]
    %v903 = vld [vmem:[%s854 + $0xc0] sm:$0xf]
    %v904 = vld [vmem:[%s854 + $0xc4] sm:$0xf]
    %v905 = vld [vmem:[%s854 + $0xc8] sm:$0xf]
    %v906 = vld [vmem:[%s854 + $0xcc] sm:$0xf]
    %v907 = vld [vmem:[%s854 + $0xd0] sm:$0xf]
    %v908 = vld [vmem:[%s854 + $0xd4] sm:$0xf]
    %v909 = vld [vmem:[%s854 + $0xd8] sm:$0xf]
    %v910 = vld [vmem:[%s854 + $0xdc] sm:$0xf]
    %v911 = vld [vmem:[%s854 + $0xe0] sm:$0xf]
    %v912 = vld [vmem:[%s854 + $0xe4] sm:$0xf]
    %v913 = vld [vmem:[%s854 + $0xe8] sm:$0xf]
    %v914 = vld [vmem:[%s854 + $0xec] sm:$0xf]
    %v915 = vld [vmem:[%s854 + $0xf0] sm:$0xf]
    %v916 = vld [vmem:[%s854 + $0xf4] sm:$0xf]
    %v917 = vld [vmem:[%s854 + $0xf8] sm:$0xf]
    %v918 = vld [vmem:[%s854 + $0xfc] sm:$0xf]
    %v919 = vunpack.c.l.bf16 %v855
    %v920 = vunpack.c.l.bf16 %v856
    %v921 = vunpack.c.l.bf16 %v857
    %v922 = vunpack.c.l.bf16 %v858
    %v923 = vunpack.c.l.bf16 %v859
    %v924 = vunpack.c.l.bf16 %v860
    %v925 = vunpack.c.l.bf16 %v861
    %v926 = vunpack.c.l.bf16 %v862
    %v927 = vunpack.c.l.bf16 %v863
    %v928 = vunpack.c.l.bf16 %v864
    %v929 = vunpack.c.l.bf16 %v865
    %v930 = vunpack.c.l.bf16 %v866
    %v931 = vunpack.c.l.bf16 %v867
    %v932 = vunpack.c.l.bf16 %v868
    %v933 = vunpack.c.l.bf16 %v869
    %v934 = vunpack.c.l.bf16 %v870
    %v935 = vunpack.c.l.bf16 %v871
    %v936 = vunpack.c.l.bf16 %v872
    %v937 = vunpack.c.l.bf16 %v873
    %v938 = vunpack.c.l.bf16 %v874
    %v939 = vunpack.c.l.bf16 %v875
    %v940 = vunpack.c.l.bf16 %v876
    %v941 = vunpack.c.l.bf16 %v877
    %v942 = vunpack.c.l.bf16 %v878
    %v943 = vunpack.c.l.bf16 %v879
    %v944 = vunpack.c.l.bf16 %v880
    %v945 = vunpack.c.l.bf16 %v881
    %v946 = vunpack.c.l.bf16 %v882
    %v947 = vunpack.c.l.bf16 %v883
    %v948 = vunpack.c.l.bf16 %v884
    %v949 = vunpack.c.l.bf16 %v885
    %v950 = vunpack.c.l.bf16 %v886
    %v951 = vunpack.c.l.bf16 %v887
    %v952 = vunpack.c.l.bf16 %v888
    %v953 = vunpack.c.l.bf16 %v889
    %v954 = vunpack.c.l.bf16 %v890
    %v955 = vunpack.c.l.bf16 %v891
    %v956 = vunpack.c.l.bf16 %v892
    %v957 = vunpack.c.l.bf16 %v893
    %v958 = vunpack.c.l.bf16 %v894
    %v959 = vunpack.c.l.bf16 %v895
    %v960 = vunpack.c.l.bf16 %v896
    %v961 = vunpack.c.l.bf16 %v897
    %v962 = vunpack.c.l.bf16 %v898
    %v963 = vunpack.c.l.bf16 %v899
    %v964 = vunpack.c.l.bf16 %v900
    %v965 = vunpack.c.l.bf16 %v901
    %v966 = vunpack.c.l.bf16 %v902
    %v967 = vunpack.c.l.bf16 %v903
    %v968 = vunpack.c.l.bf16 %v904
    %v969 = vunpack.c.l.bf16 %v905
    %v970 = vunpack.c.l.bf16 %v906
    %v971 = vunpack.c.l.bf16 %v907
    %v972 = vunpack.c.l.bf16 %v908
    %v973 = vunpack.c.l.bf16 %v909
    %v974 = vunpack.c.l.bf16 %v910
    %v975 = vunpack.c.l.bf16 %v911
    %v976 = vunpack.c.l.bf16 %v912
    %v977 = vunpack.c.l.bf16 %v913
    %v978 = vunpack.c.l.bf16 %v914
    %v979 = vunpack.c.l.bf16 %v915
    %v980 = vunpack.c.l.bf16 %v916
    %v981 = vunpack.c.l.bf16 %v917
    %v982 = vunpack.c.l.bf16 %v918
    %983 = vmatpush.msra.mxu0 %v934
    %984 = vmatpush.msra.mxu0 %v933
    %985 = vmatpush.msra.mxu0 %v932
    %986 = vmatpush.msra.mxu0 %v931
    %987 = vmatpush.msra.mxu0 %v930
    %988 = vmatpush.msra.mxu0 %v929
    %989 = vmatpush.msra.mxu0 %v928
    %990 = vmatpush.msra.mxu0 %v927
    %991 = vmatpush.msra.mxu0 %v926
    %992 = vmatpush.msra.mxu0 %v925
    %993 = vmatpush.msra.mxu0 %v924
    %994 = vmatpush.msra.mxu0 %v923
    %995 = vmatpush.msra.mxu0 %v922
    %996 = vmatpush.msra.mxu0 %v921
    %997 = vmatpush.msra.mxu0 %v920
    %998 = vmatpush.msra.mxu0 %v919
    %999 = vmatmul.f32.gmra.mxu0 %v385
    %v1000 = vpop.f32.mrf.mxu0
    %v1001 = vadd.f32 0.0, %v1000
    %1002 = vmatmul.f32.gmra.mxu0 %v387
    %v1003 = vpop.f32.mrf.mxu0
    %v1004 = vadd.f32 0.0, %v1003
    %1005 = vdwg.mxu0
    %1006 = vmatpush.msra.mxu0 %v950
    %1007 = vmatpush.msra.mxu0 %v949
    %1008 = vmatpush.msra.mxu0 %v948
    %1009 = vmatpush.msra.mxu0 %v947
    %1010 = vmatpush.msra.mxu0 %v946
    %1011 = vmatpush.msra.mxu0 %v945
    %1012 = vmatpush.msra.mxu0 %v944
    %1013 = vmatpush.msra.mxu0 %v943
    %1014 = vmatpush.msra.mxu0 %v942
    %1015 = vmatpush.msra.mxu0 %v941
    %1016 = vmatpush.msra.mxu0 %v940
    %1017 = vmatpush.msra.mxu0 %v939
    %1018 = vmatpush.msra.mxu0 %v938
    %1019 = vmatpush.msra.mxu0 %v937
    %1020 = vmatpush.msra.mxu0 %v936
    %1021 = vmatpush.msra.mxu0 %v935
    %1022 = vmatmul.f32.gmra.mxu0 %v474
    %v1023 = vpop.f32.mrf.mxu0
    %v1024 = vadd.f32 %v1001, %v1023
    %1025 = vmatmul.f32.gmra.mxu0 %v476
    %v1026 = vpop.f32.mrf.mxu0
    %v1027 = vadd.f32 %v1004, %v1026
    %1028 = vdwg.mxu0
    %1029 = vmatpush.msra.mxu0 %v966
    %1030 = vmatpush.msra.mxu0 %v965
    %1031 = vmatpush.msra.mxu0 %v964
    %1032 = vmatpush.msra.mxu0 %v963
    %1033 = vmatpush.msra.mxu0 %v962
    %1034 = vmatpush.msra.mxu0 %v961
    %1035 = vmatpush.msra.mxu0 %v960
    %1036 = vmatpush.msra.mxu0 %v959
    %1037 = vmatpush.msra.mxu0 %v958
    %1038 = vmatpush.msra.mxu0 %v957
    %1039 = vmatpush.msra.mxu0 %v956
    %1040 = vmatpush.msra.mxu0 %v955
    %1041 = vmatpush.msra.mxu0 %v954
    %1042 = vmatpush.msra.mxu0 %v953
    %1043 = vmatpush.msra.mxu0 %v952
    %1044 = vmatpush.msra.mxu0 %v951
    %1045 = vmatmul.f32.gmra.mxu0 %v563
    %v1046 = vpop.f32.mrf.mxu0
    %v1047 = vadd.f32 %v1024, %v1046
    %1048 = vmatmul.f32.gmra.mxu0 %v565
    %v1049 = vpop.f32.mrf.mxu0
    %v1050 = vadd.f32 %v1027, %v1049
    %1051 = vdwg.mxu0
    %1052 = vmatpush.msra.mxu0 %v982
    %1053 = vmatpush.msra.mxu0 %v981
    %1054 = vmatpush.msra.mxu0 %v980
    %1055 = vmatpush.msra.mxu0 %v979
    %1056 = vmatpush.msra.mxu0 %v978
    %1057 = vmatpush.msra.mxu0 %v977
    %1058 = vmatpush.msra.mxu0 %v976
    %1059 = vmatpush.msra.mxu0 %v975
    %1060 = vmatpush.msra.mxu0 %v974
    %1061 = vmatpush.msra.mxu0 %v973
    %1062 = vmatpush.msra.mxu0 %v972
    %1063 = vmatpush.msra.mxu0 %v971
    %1064 = vmatpush.msra.mxu0 %v970
    %1065 = vmatpush.msra.mxu0 %v969
    %1066 = vmatpush.msra.mxu0 %v968
    %1067 = vmatpush.msra.mxu0 %v967
    %1068 = vmatmul.f32.gmra.mxu0 %v652
    %v1069 = vpop.f32.mrf.mxu0
    %v1070 = vadd.f32 %v1047, %v1069
    %1071 = vmatmul.f32.gmra.mxu0 %v654
    %v1072 = vpop.f32.mrf.mxu0
    %v1073 = vadd.f32 %v1050, %v1072
    %1074 = vdwg.mxu0
    %1075 = vmatpush.msra.mxu0 %v805
    %1076 = vmatpush.msra.mxu0 %v804
    %1077 = vmatpush.msra.mxu0 %v803
    %1078 = vmatpush.msra.mxu0 %v802
    %1079 = vmatpush.msra.mxu0 %v801
    %1080 = vmatpush.msra.mxu0 %v800
    %1081 = vmatpush.msra.mxu0 %v799
    %1082 = vmatpush.msra.mxu0 %v798
    %1083 = vmatpush.msra.mxu0 %v797
    %1084 = vmatpush.msra.mxu0 %v796
    %1085 = vmatpush.msra.mxu0 %v795
    %1086 = vmatpush.msra.mxu0 %v794
    %1087 = vmatpush.msra.mxu0 %v793
    %1088 = vmatpush.msra.mxu0 %v792
    %1089 = vmatpush.msra.mxu0 %v791
    %1090 = vmatpush.msra.mxu0 %v790
    %1091 = vmatmul.f32.gmra.mxu0 %v380
    %v1092 = vpop.f32.mrf.mxu0
    %v1093 = vadd.f32 %v1070, %v1092
    %1094 = vmatmul.f32.gmra.mxu0 %v382
    %v1095 = vpop.f32.mrf.mxu0
    %v1096 = vadd.f32 %v1073, %v1095
    %1097 = vdwg.mxu0
    %1098 = vmatpush.msra.mxu0 %v821
    %1099 = vmatpush.msra.mxu0 %v820
    %1100 = vmatpush.msra.mxu0 %v819
    %1101 = vmatpush.msra.mxu0 %v818
    %1102 = vmatpush.msra.mxu0 %v817
    %1103 = vmatpush.msra.mxu0 %v816
    %1104 = vmatpush.msra.mxu0 %v815
    %1105 = vmatpush.msra.mxu0 %v814
    %1106 = vmatpush.msra.mxu0 %v813
    %1107 = vmatpush.msra.mxu0 %v812
    %1108 = vmatpush.msra.mxu0 %v811
    %1109 = vmatpush.msra.mxu0 %v810
    %1110 = vmatpush.msra.mxu0 %v809
    %1111 = vmatpush.msra.mxu0 %v808
    %1112 = vmatpush.msra.mxu0 %v807
    %1113 = vmatpush.msra.mxu0 %v806
    %1114 = vmatmul.f32.gmra.mxu0 %v469
    %v1115 = vpop.f32.mrf.mxu0
    %v1116 = vadd.f32 %v1093, %v1115
    %1117 = vmatmul.f32.gmra.mxu0 %v471
    %v1118 = vpop.f32.mrf.mxu0
    %v1119 = vadd.f32 %v1096, %v1118
    %1120 = vdwg.mxu0
    %1121 = vmatpush.msra.mxu0 %v837
    %1122 = vmatpush.msra.mxu0 %v836
    %1123 = vmatpush.msra.mxu0 %v835
    %1124 = vmatpush.msra.mxu0 %v834
    %1125 = vmatpush.msra.mxu0 %v833
    %1126 = vmatpush.msra.mxu0 %v832
    %1127 = vmatpush.msra.mxu0 %v831
    %1128 = vmatpush.msra.mxu0 %v830
    %1129 = vmatpush.msra.mxu0 %v829
    %1130 = vmatpush.msra.mxu0 %v828
    %1131 = vmatpush.msra.mxu0 %v827
    %1132 = vmatpush.msra.mxu0 %v826
    %1133 = vmatpush.msra.mxu0 %v825
    %1134 = vmatpush.msra.mxu0 %v824
    %1135 = vmatpush.msra.mxu0 %v823
    %1136 = vmatpush.msra.mxu0 %v822
    %1137 = vmatmul.f32.gmra.mxu0 %v558
    %v1138 = vpop.f32.mrf.mxu0
    %v1139 = vadd.f32 %v1116, %v1138
    %1140 = vmatmul.f32.gmra.mxu0 %v560
    %v1141 = vpop.f32.mrf.mxu0
    %v1142 = vadd.f32 %v1119, %v1141
    %1143 = vdwg.mxu0
    %1144 = vmatpush.msra.mxu0 %v853
    %1145 = vmatpush.msra.mxu0 %v852
    %1146 = vmatpush.msra.mxu0 %v851
    %1147 = vmatpush.msra.mxu0 %v850
    %1148 = vmatpush.msra.mxu0 %v849
    %1149 = vmatpush.msra.mxu0 %v848
    %1150 = vmatpush.msra.mxu0 %v847
    %1151 = vmatpush.msra.mxu0 %v846
    %1152 = vmatpush.msra.mxu0 %v845
    %1153 = vmatpush.msra.mxu0 %v844
    %1154 = vmatpush.msra.mxu0 %v843
    %1155 = vmatpush.msra.mxu0 %v842
    %1156 = vmatpush.msra.mxu0 %v841
    %1157 = vmatpush.msra.mxu0 %v840
    %1158 = vmatpush.msra.mxu0 %v839
    %1159 = vmatpush.msra.mxu0 %v838
    %1160 = vmatmul.f32.gmra.mxu0 %v647
    %v1161 = vpop.f32.mrf.mxu0
    %v1162 = vadd.f32 %v1139, %v1161
    %1163 = vmatmul.f32.gmra.mxu0 %v649
    %v1164 = vpop.f32.mrf.mxu0
    %v1165 = vadd.f32 %v1142, %v1164
    %1166 = vdwg.mxu0
    %s1167 = scalar_lea.vmem %s6, 512
    %v1168 = vld [vmem:[%s1167] sm:$0xf]
    %v1169 = vld [vmem:[%s1167 + $0x4] sm:$0xf]
    %v1170 = vld [vmem:[%s1167 + $0x8] sm:$0xf]
    %v1171 = vld [vmem:[%s1167 + $0xc] sm:$0xf]
    %v1172 = vld [vmem:[%s1167 + $0x10] sm:$0xf]
    %v1173 = vld [vmem:[%s1167 + $0x14] sm:$0xf]
    %v1174 = vld [vmem:[%s1167 + $0x18] sm:$0xf]
    %v1175 = vld [vmem:[%s1167 + $0x1c] sm:$0xf]
    %v1176 = vld [vmem:[%s1167 + $0x20] sm:$0xf]
    %v1177 = vld [vmem:[%s1167 + $0x24] sm:$0xf]
    %v1178 = vld [vmem:[%s1167 + $0x28] sm:$0xf]
    %v1179 = vld [vmem:[%s1167 + $0x2c] sm:$0xf]
    %v1180 = vld [vmem:[%s1167 + $0x30] sm:$0xf]
    %v1181 = vld [vmem:[%s1167 + $0x34] sm:$0xf]
    %v1182 = vld [vmem:[%s1167 + $0x38] sm:$0xf]
    %v1183 = vld [vmem:[%s1167 + $0x3c] sm:$0xf]
    %v1184 = vld [vmem:[%s1167 + $0x40] sm:$0xf]
    %v1185 = vld [vmem:[%s1167 + $0x44] sm:$0xf]
    %v1186 = vld [vmem:[%s1167 + $0x48] sm:$0xf]
    %v1187 = vld [vmem:[%s1167 + $0x4c] sm:$0xf]
    %v1188 = vld [vmem:[%s1167 + $0x50] sm:$0xf]
    %v1189 = vld [vmem:[%s1167 + $0x54] sm:$0xf]
    %v1190 = vld [vmem:[%s1167 + $0x58] sm:$0xf]
    %v1191 = vld [vmem:[%s1167 + $0x5c] sm:$0xf]
    %v1192 = vld [vmem:[%s1167 + $0x60] sm:$0xf]
    %v1193 = vld [vmem:[%s1167 + $0x64] sm:$0xf]
    %v1194 = vld [vmem:[%s1167 + $0x68] sm:$0xf]
    %v1195 = vld [vmem:[%s1167 + $0x6c] sm:$0xf]
    %v1196 = vld [vmem:[%s1167 + $0x70] sm:$0xf]
    %v1197 = vld [vmem:[%s1167 + $0x74] sm:$0xf]
    %v1198 = vld [vmem:[%s1167 + $0x78] sm:$0xf]
    %v1199 = vld [vmem:[%s1167 + $0x7c] sm:$0xf]
    %v1200 = vld [vmem:[%s1167 + $0x80] sm:$0xf]
    %v1201 = vld [vmem:[%s1167 + $0x84] sm:$0xf]
    %v1202 = vld [vmem:[%s1167 + $0x88] sm:$0xf]
    %v1203 = vld [vmem:[%s1167 + $0x8c] sm:$0xf]
    %v1204 = vld [vmem:[%s1167 + $0x90] sm:$0xf]
    %v1205 = vld [vmem:[%s1167 + $0x94] sm:$0xf]
    %v1206 = vld [vmem:[%s1167 + $0x98] sm:$0xf]
    %v1207 = vld [vmem:[%s1167 + $0x9c] sm:$0xf]
    %v1208 = vld [vmem:[%s1167 + $0xa0] sm:$0xf]
    %v1209 = vld [vmem:[%s1167 + $0xa4] sm:$0xf]
    %v1210 = vld [vmem:[%s1167 + $0xa8] sm:$0xf]
    %v1211 = vld [vmem:[%s1167 + $0xac] sm:$0xf]
    %v1212 = vld [vmem:[%s1167 + $0xb0] sm:$0xf]
    %v1213 = vld [vmem:[%s1167 + $0xb4] sm:$0xf]
    %v1214 = vld [vmem:[%s1167 + $0xb8] sm:$0xf]
    %v1215 = vld [vmem:[%s1167 + $0xbc] sm:$0xf]
    %v1216 = vld [vmem:[%s1167 + $0xc0] sm:$0xf]
    %v1217 = vld [vmem:[%s1167 + $0xc4] sm:$0xf]
    %v1218 = vld [vmem:[%s1167 + $0xc8] sm:$0xf]
    %v1219 = vld [vmem:[%s1167 + $0xcc] sm:$0xf]
    %v1220 = vld [vmem:[%s1167 + $0xd0] sm:$0xf]
    %v1221 = vld [vmem:[%s1167 + $0xd4] sm:$0xf]
    %v1222 = vld [vmem:[%s1167 + $0xd8] sm:$0xf]
    %v1223 = vld [vmem:[%s1167 + $0xdc] sm:$0xf]
    %v1224 = vld [vmem:[%s1167 + $0xe0] sm:$0xf]
    %v1225 = vld [vmem:[%s1167 + $0xe4] sm:$0xf]
    %v1226 = vld [vmem:[%s1167 + $0xe8] sm:$0xf]
    %v1227 = vld [vmem:[%s1167 + $0xec] sm:$0xf]
    %v1228 = vld [vmem:[%s1167 + $0xf0] sm:$0xf]
    %v1229 = vld [vmem:[%s1167 + $0xf4] sm:$0xf]
    %v1230 = vld [vmem:[%s1167 + $0xf8] sm:$0xf]
    %v1231 = vld [vmem:[%s1167 + $0xfc] sm:$0xf]
    %v1232 = vunpack.c.l.bf16 %v1168
    %v1233 = vunpack.c.l.bf16 %v1169
    %v1234 = vunpack.c.l.bf16 %v1170
    %v1235 = vunpack.c.l.bf16 %v1171
    %v1236 = vunpack.c.l.bf16 %v1172
    %v1237 = vunpack.c.l.bf16 %v1173
    %v1238 = vunpack.c.l.bf16 %v1174
    %v1239 = vunpack.c.l.bf16 %v1175
    %v1240 = vunpack.c.l.bf16 %v1176
    %v1241 = vunpack.c.l.bf16 %v1177
    %v1242 = vunpack.c.l.bf16 %v1178
    %v1243 = vunpack.c.l.bf16 %v1179
    %v1244 = vunpack.c.l.bf16 %v1180
    %v1245 = vunpack.c.l.bf16 %v1181
    %v1246 = vunpack.c.l.bf16 %v1182
    %v1247 = vunpack.c.l.bf16 %v1183
    %v1248 = vunpack.c.l.bf16 %v1184
    %v1249 = vunpack.c.l.bf16 %v1185
    %v1250 = vunpack.c.l.bf16 %v1186
    %v1251 = vunpack.c.l.bf16 %v1187
    %v1252 = vunpack.c.l.bf16 %v1188
    %v1253 = vunpack.c.l.bf16 %v1189
    %v1254 = vunpack.c.l.bf16 %v1190
    %v1255 = vunpack.c.l.bf16 %v1191
    %v1256 = vunpack.c.l.bf16 %v1192
    %v1257 = vunpack.c.l.bf16 %v1193
    %v1258 = vunpack.c.l.bf16 %v1194
    %v1259 = vunpack.c.l.bf16 %v1195
    %v1260 = vunpack.c.l.bf16 %v1196
    %v1261 = vunpack.c.l.bf16 %v1197
    %v1262 = vunpack.c.l.bf16 %v1198
    %v1263 = vunpack.c.l.bf16 %v1199
    %v1264 = vunpack.c.l.bf16 %v1200
    %v1265 = vunpack.c.l.bf16 %v1201
    %v1266 = vunpack.c.l.bf16 %v1202
    %v1267 = vunpack.c.l.bf16 %v1203
    %v1268 = vunpack.c.l.bf16 %v1204
    %v1269 = vunpack.c.l.bf16 %v1205
    %v1270 = vunpack.c.l.bf16 %v1206
    %v1271 = vunpack.c.l.bf16 %v1207
    %v1272 = vunpack.c.l.bf16 %v1208
    %v1273 = vunpack.c.l.bf16 %v1209
    %v1274 = vunpack.c.l.bf16 %v1210
    %v1275 = vunpack.c.l.bf16 %v1211
    %v1276 = vunpack.c.l.bf16 %v1212
    %v1277 = vunpack.c.l.bf16 %v1213
    %v1278 = vunpack.c.l.bf16 %v1214
    %v1279 = vunpack.c.l.bf16 %v1215
    %v1280 = vunpack.c.l.bf16 %v1216
    %v1281 = vunpack.c.l.bf16 %v1217
    %v1282 = vunpack.c.l.bf16 %v1218
    %v1283 = vunpack.c.l.bf16 %v1219
    %v1284 = vunpack.c.l.bf16 %v1220
    %v1285 = vunpack.c.l.bf16 %v1221
    %v1286 = vunpack.c.l.bf16 %v1222
    %v1287 = vunpack.c.l.bf16 %v1223
    %v1288 = vunpack.c.l.bf16 %v1224
    %v1289 = vunpack.c.l.bf16 %v1225
    %v1290 = vunpack.c.l.bf16 %v1226
    %v1291 = vunpack.c.l.bf16 %v1227
    %v1292 = vunpack.c.l.bf16 %v1228
    %v1293 = vunpack.c.l.bf16 %v1229
    %v1294 = vunpack.c.l.bf16 %v1230
    %v1295 = vunpack.c.l.bf16 %v1231
    %1296 = vmatpush.msra.mxu0 %v1247
    %1297 = vmatpush.msra.mxu0 %v1246
    %1298 = vmatpush.msra.mxu0 %v1245
    %1299 = vmatpush.msra.mxu0 %v1244
    %1300 = vmatpush.msra.mxu0 %v1243
    %1301 = vmatpush.msra.mxu0 %v1242
    %1302 = vmatpush.msra.mxu0 %v1241
    %1303 = vmatpush.msra.mxu0 %v1240
    %1304 = vmatpush.msra.mxu0 %v1239
    %1305 = vmatpush.msra.mxu0 %v1238
    %1306 = vmatpush.msra.mxu0 %v1237
    %1307 = vmatpush.msra.mxu0 %v1236
    %1308 = vmatpush.msra.mxu0 %v1235
    %1309 = vmatpush.msra.mxu0 %v1234
    %1310 = vmatpush.msra.mxu0 %v1233
    %1311 = vmatpush.msra.mxu0 %v1232
    %1312 = vmatmul.f32.gmra.mxu0 %v390
    %v1313 = vpop.f32.mrf.mxu0
    %v1314 = vadd.f32 0.0, %v1313
    %1315 = vmatmul.f32.gmra.mxu0 %v392
    %v1316 = vpop.f32.mrf.mxu0
    %v1317 = vadd.f32 0.0, %v1316
    %1318 = vdwg.mxu0
    %1319 = vmatpush.msra.mxu0 %v1263
    %1320 = vmatpush.msra.mxu0 %v1262
    %1321 = vmatpush.msra.mxu0 %v1261
    %1322 = vmatpush.msra.mxu0 %v1260
    %1323 = vmatpush.msra.mxu0 %v1259
    %1324 = vmatpush.msra.mxu0 %v1258
    %1325 = vmatpush.msra.mxu0 %v1257
    %1326 = vmatpush.msra.mxu0 %v1256
    %1327 = vmatpush.msra.mxu0 %v1255
    %1328 = vmatpush.msra.mxu0 %v1254
    %1329 = vmatpush.msra.mxu0 %v1253
    %1330 = vmatpush.msra.mxu0 %v1252
    %1331 = vmatpush.msra.mxu0 %v1251
    %1332 = vmatpush.msra.mxu0 %v1250
    %1333 = vmatpush.msra.mxu0 %v1249
    %1334 = vmatpush.msra.mxu0 %v1248
    %1335 = vmatmul.f32.gmra.mxu0 %v479
    %v1336 = vpop.f32.mrf.mxu0
    %v1337 = vadd.f32 %v1314, %v1336
    %1338 = vmatmul.f32.gmra.mxu0 %v481
    %v1339 = vpop.f32.mrf.mxu0
    %v1340 = vadd.f32 %v1317, %v1339
    %1341 = vdwg.mxu0
    %1342 = vmatpush.msra.mxu0 %v1279
    %1343 = vmatpush.msra.mxu0 %v1278
    %1344 = vmatpush.msra.mxu0 %v1277
    %1345 = vmatpush.msra.mxu0 %v1276
    %1346 = vmatpush.msra.mxu0 %v1275
    %1347 = vmatpush.msra.mxu0 %v1274
    %1348 = vmatpush.msra.mxu0 %v1273
    %1349 = vmatpush.msra.mxu0 %v1272
    %1350 = vmatpush.msra.mxu0 %v1271
    %1351 = vmatpush.msra.mxu0 %v1270
    %1352 = vmatpush.msra.mxu0 %v1269
    %1353 = vmatpush.msra.mxu0 %v1268
    %1354 = vmatpush.msra.mxu0 %v1267
    %1355 = vmatpush.msra.mxu0 %v1266
    %1356 = vmatpush.msra.mxu0 %v1265
    %1357 = vmatpush.msra.mxu0 %v1264
    %1358 = vmatmul.f32.gmra.mxu0 %v568
    %v1359 = vpop.f32.mrf.mxu0
    %v1360 = vadd.f32 %v1337, %v1359
    %1361 = vmatmul.f32.gmra.mxu0 %v570
    %v1362 = vpop.f32.mrf.mxu0
    %v1363 = vadd.f32 %v1340, %v1362
    %1364 = vdwg.mxu0
    %1365 = vmatpush.msra.mxu0 %v1295
    %1366 = vmatpush.msra.mxu0 %v1294
    %1367 = vmatpush.msra.mxu0 %v1293
    %1368 = vmatpush.msra.mxu0 %v1292
    %1369 = vmatpush.msra.mxu0 %v1291
    %1370 = vmatpush.msra.mxu0 %v1290
    %1371 = vmatpush.msra.mxu0 %v1289
    %1372 = vmatpush.msra.mxu0 %v1288
    %1373 = vmatpush.msra.mxu0 %v1287
    %1374 = vmatpush.msra.mxu0 %v1286
    %1375 = vmatpush.msra.mxu0 %v1285
    %1376 = vmatpush.msra.mxu0 %v1284
    %1377 = vmatpush.msra.mxu0 %v1283
    %1378 = vmatpush.msra.mxu0 %v1282
    %1379 = vmatpush.msra.mxu0 %v1281
    %1380 = vmatpush.msra.mxu0 %v1280
    %1381 = vmatmul.f32.gmra.mxu0 %v657
    %v1382 = vpop.f32.mrf.mxu0
    %v1383 = vadd.f32 %v1360, %v1382
    %1384 = vmatmul.f32.gmra.mxu0 %v659
    %v1385 = vpop.f32.mrf.mxu0
    %v1386 = vadd.f32 %v1363, %v1385
    %1387 = vdwg.mxu0
    %v1388 = vadd.f32 %v1162, %v1383
    %v1389 = vadd.f32 %v1165, %v1386
    %s1390 = scalar_lea.vmem %s6, 768
    %v1391 = vld [vmem:[%s1390] sm:$0xf]
    %v1392 = vld [vmem:[%s1390 + $0x4] sm:$0xf]
    %v1393 = vld [vmem:[%s1390 + $0x8] sm:$0xf]
    %v1394 = vld [vmem:[%s1390 + $0xc] sm:$0xf]
    %v1395 = vld [vmem:[%s1390 + $0x10] sm:$0xf]
    %v1396 = vld [vmem:[%s1390 + $0x14] sm:$0xf]
    %v1397 = vld [vmem:[%s1390 + $0x18] sm:$0xf]
    %v1398 = vld [vmem:[%s1390 + $0x1c] sm:$0xf]
    %v1399 = vld [vmem:[%s1390 + $0x20] sm:$0xf]
    %v1400 = vld [vmem:[%s1390 + $0x24] sm:$0xf]
    %v1401 = vld [vmem:[%s1390 + $0x28] sm:$0xf]
    %v1402 = vld [vmem:[%s1390 + $0x2c] sm:$0xf]
    %v1403 = vld [vmem:[%s1390 + $0x30] sm:$0xf]
    %v1404 = vld [vmem:[%s1390 + $0x34] sm:$0xf]
    %v1405 = vld [vmem:[%s1390 + $0x38] sm:$0xf]
    %v1406 = vld [vmem:[%s1390 + $0x3c] sm:$0xf]
    %v1407 = vld [vmem:[%s1390 + $0x40] sm:$0xf]
    %v1408 = vld [vmem:[%s1390 + $0x44] sm:$0xf]
    %v1409 = vld [vmem:[%s1390 + $0x48] sm:$0xf]
    %v1410 = vld [vmem:[%s1390 + $0x4c] sm:$0xf]
    %v1411 = vld [vmem:[%s1390 + $0x50] sm:$0xf]
    %v1412 = vld [vmem:[%s1390 + $0x54] sm:$0xf]
    %v1413 = vld [vmem:[%s1390 + $0x58] sm:$0xf]
    %v1414 = vld [vmem:[%s1390 + $0x5c] sm:$0xf]
    %v1415 = vld [vmem:[%s1390 + $0x60] sm:$0xf]
    %v1416 = vld [vmem:[%s1390 + $0x64] sm:$0xf]
    %v1417 = vld [vmem:[%s1390 + $0x68] sm:$0xf]
    %v1418 = vld [vmem:[%s1390 + $0x6c] sm:$0xf]
    %v1419 = vld [vmem:[%s1390 + $0x70] sm:$0xf]
    %v1420 = vld [vmem:[%s1390 + $0x74] sm:$0xf]
    %v1421 = vld [vmem:[%s1390 + $0x78] sm:$0xf]
    %v1422 = vld [vmem:[%s1390 + $0x7c] sm:$0xf]
    %v1423 = vld [vmem:[%s1390 + $0x80] sm:$0xf]
    %v1424 = vld [vmem:[%s1390 + $0x84] sm:$0xf]
    %v1425 = vld [vmem:[%s1390 + $0x88] sm:$0xf]
    %v1426 = vld [vmem:[%s1390 + $0x8c] sm:$0xf]
    %v1427 = vld [vmem:[%s1390 + $0x90] sm:$0xf]
    %v1428 = vld [vmem:[%s1390 + $0x94] sm:$0xf]
    %v1429 = vld [vmem:[%s1390 + $0x98] sm:$0xf]
    %v1430 = vld [vmem:[%s1390 + $0x9c] sm:$0xf]
    %v1431 = vld [vmem:[%s1390 + $0xa0] sm:$0xf]
    %v1432 = vld [vmem:[%s1390 + $0xa4] sm:$0xf]
    %v1433 = vld [vmem:[%s1390 + $0xa8] sm:$0xf]
    %v1434 = vld [vmem:[%s1390 + $0xac] sm:$0xf]
    %v1435 = vld [vmem:[%s1390 + $0xb0] sm:$0xf]
    %v1436 = vld [vmem:[%s1390 + $0xb4] sm:$0xf]
    %v1437 = vld [vmem:[%s1390 + $0xb8] sm:$0xf]
    %v1438 = vld [vmem:[%s1390 + $0xbc] sm:$0xf]
    %v1439 = vld [vmem:[%s1390 + $0xc0] sm:$0xf]
    %v1440 = vld [vmem:[%s1390 + $0xc4] sm:$0xf]
    %v1441 = vld [vmem:[%s1390 + $0xc8] sm:$0xf]
    %v1442 = vld [vmem:[%s1390 + $0xcc] sm:$0xf]
    %v1443 = vld [vmem:[%s1390 + $0xd0] sm:$0xf]
    %v1444 = vld [vmem:[%s1390 + $0xd4] sm:$0xf]
    %v1445 = vld [vmem:[%s1390 + $0xd8] sm:$0xf]
    %v1446 = vld [vmem:[%s1390 + $0xdc] sm:$0xf]
    %v1447 = vld [vmem:[%s1390 + $0xe0] sm:$0xf]
    %v1448 = vld [vmem:[%s1390 + $0xe4] sm:$0xf]
    %v1449 = vld [vmem:[%s1390 + $0xe8] sm:$0xf]
    %v1450 = vld [vmem:[%s1390 + $0xec] sm:$0xf]
    %v1451 = vld [vmem:[%s1390 + $0xf0] sm:$0xf]
    %v1452 = vld [vmem:[%s1390 + $0xf4] sm:$0xf]
    %v1453 = vld [vmem:[%s1390 + $0xf8] sm:$0xf]
    %v1454 = vld [vmem:[%s1390 + $0xfc] sm:$0xf]
    %v1455 = vunpack.c.l.bf16 %v1391
    %v1456 = vunpack.c.l.bf16 %v1392
    %v1457 = vunpack.c.l.bf16 %v1393
    %v1458 = vunpack.c.l.bf16 %v1394
    %v1459 = vunpack.c.l.bf16 %v1395
    %v1460 = vunpack.c.l.bf16 %v1396
    %v1461 = vunpack.c.l.bf16 %v1397
    %v1462 = vunpack.c.l.bf16 %v1398
    %v1463 = vunpack.c.l.bf16 %v1399
    %v1464 = vunpack.c.l.bf16 %v1400
    %v1465 = vunpack.c.l.bf16 %v1401
    %v1466 = vunpack.c.l.bf16 %v1402
    %v1467 = vunpack.c.l.bf16 %v1403
    %v1468 = vunpack.c.l.bf16 %v1404
    %v1469 = vunpack.c.l.bf16 %v1405
    %v1470 = vunpack.c.l.bf16 %v1406
    %v1471 = vunpack.c.l.bf16 %v1407
    %v1472 = vunpack.c.l.bf16 %v1408
    %v1473 = vunpack.c.l.bf16 %v1409
    %v1474 = vunpack.c.l.bf16 %v1410
    %v1475 = vunpack.c.l.bf16 %v1411
    %v1476 = vunpack.c.l.bf16 %v1412
    %v1477 = vunpack.c.l.bf16 %v1413
    %v1478 = vunpack.c.l.bf16 %v1414
    %v1479 = vunpack.c.l.bf16 %v1415
    %v1480 = vunpack.c.l.bf16 %v1416
    %v1481 = vunpack.c.l.bf16 %v1417
    %v1482 = vunpack.c.l.bf16 %v1418
    %v1483 = vunpack.c.l.bf16 %v1419
    %v1484 = vunpack.c.l.bf16 %v1420
    %v1485 = vunpack.c.l.bf16 %v1421
    %v1486 = vunpack.c.l.bf16 %v1422
    %v1487 = vunpack.c.l.bf16 %v1423
    %v1488 = vunpack.c.l.bf16 %v1424
    %v1489 = vunpack.c.l.bf16 %v1425
    %v1490 = vunpack.c.l.bf16 %v1426
    %v1491 = vunpack.c.l.bf16 %v1427
    %v1492 = vunpack.c.l.bf16 %v1428
    %v1493 = vunpack.c.l.bf16 %v1429
    %v1494 = vunpack.c.l.bf16 %v1430
    %v1495 = vunpack.c.l.bf16 %v1431
    %v1496 = vunpack.c.l.bf16 %v1432
    %v1497 = vunpack.c.l.bf16 %v1433
    %v1498 = vunpack.c.l.bf16 %v1434
    %v1499 = vunpack.c.l.bf16 %v1435
    %v1500 = vunpack.c.l.bf16 %v1436
    %v1501 = vunpack.c.l.bf16 %v1437
    %v1502 = vunpack.c.l.bf16 %v1438
    %v1503 = vunpack.c.l.bf16 %v1439
    %v1504 = vunpack.c.l.bf16 %v1440
    %v1505 = vunpack.c.l.bf16 %v1441
    %v1506 = vunpack.c.l.bf16 %v1442
    %v1507 = vunpack.c.l.bf16 %v1443
    %v1508 = vunpack.c.l.bf16 %v1444
    %v1509 = vunpack.c.l.bf16 %v1445
    %v1510 = vunpack.c.l.bf16 %v1446
    %v1511 = vunpack.c.l.bf16 %v1447
    %v1512 = vunpack.c.l.bf16 %v1448
    %v1513 = vunpack.c.l.bf16 %v1449
    %v1514 = vunpack.c.l.bf16 %v1450
    %v1515 = vunpack.c.l.bf16 %v1451
    %v1516 = vunpack.c.l.bf16 %v1452
    %v1517 = vunpack.c.l.bf16 %v1453
    %v1518 = vunpack.c.l.bf16 %v1454
    %1519 = vmatpush.msra.mxu0 %v1470
    %1520 = vmatpush.msra.mxu0 %v1469
    %1521 = vmatpush.msra.mxu0 %v1468
    %1522 = vmatpush.msra.mxu0 %v1467
    %1523 = vmatpush.msra.mxu0 %v1466
    %1524 = vmatpush.msra.mxu0 %v1465
    %1525 = vmatpush.msra.mxu0 %v1464
    %1526 = vmatpush.msra.mxu0 %v1463
    %1527 = vmatpush.msra.mxu0 %v1462
    %1528 = vmatpush.msra.mxu0 %v1461
    %1529 = vmatpush.msra.mxu0 %v1460
    %1530 = vmatpush.msra.mxu0 %v1459
    %1531 = vmatpush.msra.mxu0 %v1458
    %1532 = vmatpush.msra.mxu0 %v1457
    %1533 = vmatpush.msra.mxu0 %v1456
    %1534 = vmatpush.msra.mxu0 %v1455
    %1535 = vmatmul.f32.gmra.mxu0 %v395
    %v1536 = vpop.f32.mrf.mxu0
    %v1537 = vadd.f32 0.0, %v1536
    %1538 = vmatmul.f32.gmra.mxu0 %v397
    %v1539 = vpop.f32.mrf.mxu0
    %v1540 = vadd.f32 0.0, %v1539
    %1541 = vdwg.mxu0
    %1542 = vmatpush.msra.mxu0 %v1486
    %1543 = vmatpush.msra.mxu0 %v1485
    %1544 = vmatpush.msra.mxu0 %v1484
    %1545 = vmatpush.msra.mxu0 %v1483
    %1546 = vmatpush.msra.mxu0 %v1482
    %1547 = vmatpush.msra.mxu0 %v1481
    %1548 = vmatpush.msra.mxu0 %v1480
    %1549 = vmatpush.msra.mxu0 %v1479
    %1550 = vmatpush.msra.mxu0 %v1478
    %1551 = vmatpush.msra.mxu0 %v1477
    %1552 = vmatpush.msra.mxu0 %v1476
    %1553 = vmatpush.msra.mxu0 %v1475
    %1554 = vmatpush.msra.mxu0 %v1474
    %1555 = vmatpush.msra.mxu0 %v1473
    %1556 = vmatpush.msra.mxu0 %v1472
    %1557 = vmatpush.msra.mxu0 %v1471
    %1558 = vmatmul.f32.gmra.mxu0 %v484
    %v1559 = vpop.f32.mrf.mxu0
    %v1560 = vadd.f32 %v1537, %v1559
    %1561 = vmatmul.f32.gmra.mxu0 %v486
    %v1562 = vpop.f32.mrf.mxu0
    %v1563 = vadd.f32 %v1540, %v1562
    %1564 = vdwg.mxu0
    %1565 = vmatpush.msra.mxu0 %v1502
    %1566 = vmatpush.msra.mxu0 %v1501
    %1567 = vmatpush.msra.mxu0 %v1500
    %1568 = vmatpush.msra.mxu0 %v1499
    %1569 = vmatpush.msra.mxu0 %v1498
    %1570 = vmatpush.msra.mxu0 %v1497
    %1571 = vmatpush.msra.mxu0 %v1496
    %1572 = vmatpush.msra.mxu0 %v1495
    %1573 = vmatpush.msra.mxu0 %v1494
    %1574 = vmatpush.msra.mxu0 %v1493
    %1575 = vmatpush.msra.mxu0 %v1492
    %1576 = vmatpush.msra.mxu0 %v1491
    %1577 = vmatpush.msra.mxu0 %v1490
    %1578 = vmatpush.msra.mxu0 %v1489
    %1579 = vmatpush.msra.mxu0 %v1488
    %1580 = vmatpush.msra.mxu0 %v1487
    %1581 = vmatmul.f32.gmra.mxu0 %v573
    %v1582 = vpop.f32.mrf.mxu0
    %v1583 = vadd.f32 %v1560, %v1582
    %1584 = vmatmul.f32.gmra.mxu0 %v575
    %v1585 = vpop.f32.mrf.mxu0
    %v1586 = vadd.f32 %v1563, %v1585
    %1587 = vdwg.mxu0
    %1588 = vmatpush.msra.mxu0 %v1518
    %1589 = vmatpush.msra.mxu0 %v1517
    %1590 = vmatpush.msra.mxu0 %v1516
    %1591 = vmatpush.msra.mxu0 %v1515
    %1592 = vmatpush.msra.mxu0 %v1514
    %1593 = vmatpush.msra.mxu0 %v1513
    %1594 = vmatpush.msra.mxu0 %v1512
    %1595 = vmatpush.msra.mxu0 %v1511
    %1596 = vmatpush.msra.mxu0 %v1510
    %1597 = vmatpush.msra.mxu0 %v1509
    %1598 = vmatpush.msra.mxu0 %v1508
    %1599 = vmatpush.msra.mxu0 %v1507
    %1600 = vmatpush.msra.mxu0 %v1506
    %1601 = vmatpush.msra.mxu0 %v1505
    %1602 = vmatpush.msra.mxu0 %v1504
    %1603 = vmatpush.msra.mxu0 %v1503
    %1604 = vmatmul.f32.gmra.mxu0 %v662
    %v1605 = vpop.f32.mrf.mxu0
    %v1606 = vadd.f32 %v1583, %v1605
    %1607 = vmatmul.f32.gmra.mxu0 %v664
    %v1608 = vpop.f32.mrf.mxu0
    %v1609 = vadd.f32 %v1586, %v1608
    %1610 = vdwg.mxu0
    %v1611 = vadd.f32 %v1388, %v1606
    %v1612 = vadd.f32 %v1389, %v1609
    %s1613 = scalar_lea.vmem %s6, 1024
    %v1614 = vld [vmem:[%s1613] sm:$0xf]
    %v1615 = vld [vmem:[%s1613 + $0x4] sm:$0xf]
    %v1616 = vld [vmem:[%s1613 + $0x8] sm:$0xf]
    %v1617 = vld [vmem:[%s1613 + $0xc] sm:$0xf]
    %v1618 = vld [vmem:[%s1613 + $0x10] sm:$0xf]
    %v1619 = vld [vmem:[%s1613 + $0x14] sm:$0xf]
    %v1620 = vld [vmem:[%s1613 + $0x18] sm:$0xf]
    %v1621 = vld [vmem:[%s1613 + $0x1c] sm:$0xf]
    %v1622 = vld [vmem:[%s1613 + $0x20] sm:$0xf]
    %v1623 = vld [vmem:[%s1613 + $0x24] sm:$0xf]
    %v1624 = vld [vmem:[%s1613 + $0x28] sm:$0xf]
    %v1625 = vld [vmem:[%s1613 + $0x2c] sm:$0xf]
    %v1626 = vld [vmem:[%s1613 + $0x30] sm:$0xf]
    %v1627 = vld [vmem:[%s1613 + $0x34] sm:$0xf]
    %v1628 = vld [vmem:[%s1613 + $0x38] sm:$0xf]
    %v1629 = vld [vmem:[%s1613 + $0x3c] sm:$0xf]
    %v1630 = vld [vmem:[%s1613 + $0x40] sm:$0xf]
    %v1631 = vld [vmem:[%s1613 + $0x44] sm:$0xf]
    %v1632 = vld [vmem:[%s1613 + $0x48] sm:$0xf]
    %v1633 = vld [vmem:[%s1613 + $0x4c] sm:$0xf]
    %v1634 = vld [vmem:[%s1613 + $0x50] sm:$0xf]
    %v1635 = vld [vmem:[%s1613 + $0x54] sm:$0xf]
    %v1636 = vld [vmem:[%s1613 + $0x58] sm:$0xf]
    %v1637 = vld [vmem:[%s1613 + $0x5c] sm:$0xf]
    %v1638 = vld [vmem:[%s1613 + $0x60] sm:$0xf]
    %v1639 = vld [vmem:[%s1613 + $0x64] sm:$0xf]
    %v1640 = vld [vmem:[%s1613 + $0x68] sm:$0xf]
    %v1641 = vld [vmem:[%s1613 + $0x6c] sm:$0xf]
    %v1642 = vld [vmem:[%s1613 + $0x70] sm:$0xf]
    %v1643 = vld [vmem:[%s1613 + $0x74] sm:$0xf]
    %v1644 = vld [vmem:[%s1613 + $0x78] sm:$0xf]
    %v1645 = vld [vmem:[%s1613 + $0x7c] sm:$0xf]
    %v1646 = vld [vmem:[%s1613 + $0x80] sm:$0xf]
    %v1647 = vld [vmem:[%s1613 + $0x84] sm:$0xf]
    %v1648 = vld [vmem:[%s1613 + $0x88] sm:$0xf]
    %v1649 = vld [vmem:[%s1613 + $0x8c] sm:$0xf]
    %v1650 = vld [vmem:[%s1613 + $0x90] sm:$0xf]
    %v1651 = vld [vmem:[%s1613 + $0x94] sm:$0xf]
    %v1652 = vld [vmem:[%s1613 + $0x98] sm:$0xf]
    %v1653 = vld [vmem:[%s1613 + $0x9c] sm:$0xf]
    %v1654 = vld [vmem:[%s1613 + $0xa0] sm:$0xf]
    %v1655 = vld [vmem:[%s1613 + $0xa4] sm:$0xf]
    %v1656 = vld [vmem:[%s1613 + $0xa8] sm:$0xf]
    %v1657 = vld [vmem:[%s1613 + $0xac] sm:$0xf]
    %v1658 = vld [vmem:[%s1613 + $0xb0] sm:$0xf]
    %v1659 = vld [vmem:[%s1613 + $0xb4] sm:$0xf]
    %v1660 = vld [vmem:[%s1613 + $0xb8] sm:$0xf]
    %v1661 = vld [vmem:[%s1613 + $0xbc] sm:$0xf]
    %v1662 = vld [vmem:[%s1613 + $0xc0] sm:$0xf]
    %v1663 = vld [vmem:[%s1613 + $0xc4] sm:$0xf]
    %v1664 = vld [vmem:[%s1613 + $0xc8] sm:$0xf]
    %v1665 = vld [vmem:[%s1613 + $0xcc] sm:$0xf]
    %v1666 = vld [vmem:[%s1613 + $0xd0] sm:$0xf]
    %v1667 = vld [vmem:[%s1613 + $0xd4] sm:$0xf]
    %v1668 = vld [vmem:[%s1613 + $0xd8] sm:$0xf]
    %v1669 = vld [vmem:[%s1613 + $0xdc] sm:$0xf]
    %v1670 = vld [vmem:[%s1613 + $0xe0] sm:$0xf]
    %v1671 = vld [vmem:[%s1613 + $0xe4] sm:$0xf]
    %v1672 = vld [vmem:[%s1613 + $0xe8] sm:$0xf]
    %v1673 = vld [vmem:[%s1613 + $0xec] sm:$0xf]
    %v1674 = vld [vmem:[%s1613 + $0xf0] sm:$0xf]
    %v1675 = vld [vmem:[%s1613 + $0xf4] sm:$0xf]
    %v1676 = vld [vmem:[%s1613 + $0xf8] sm:$0xf]
    %v1677 = vld [vmem:[%s1613 + $0xfc] sm:$0xf]
    %v1678 = vunpack.c.l.bf16 %v1614
    %v1679 = vunpack.c.l.bf16 %v1615
    %v1680 = vunpack.c.l.bf16 %v1616
    %v1681 = vunpack.c.l.bf16 %v1617
    %v1682 = vunpack.c.l.bf16 %v1618
    %v1683 = vunpack.c.l.bf16 %v1619
    %v1684 = vunpack.c.l.bf16 %v1620
    %v1685 = vunpack.c.l.bf16 %v1621
    %v1686 = vunpack.c.l.bf16 %v1622
    %v1687 = vunpack.c.l.bf16 %v1623
    %v1688 = vunpack.c.l.bf16 %v1624
    %v1689 = vunpack.c.l.bf16 %v1625
    %v1690 = vunpack.c.l.bf16 %v1626
    %v1691 = vunpack.c.l.bf16 %v1627
    %v1692 = vunpack.c.l.bf16 %v1628
    %v1693 = vunpack.c.l.bf16 %v1629
    %v1694 = vunpack.c.l.bf16 %v1630
    %v1695 = vunpack.c.l.bf16 %v1631
    %v1696 = vunpack.c.l.bf16 %v1632
    %v1697 = vunpack.c.l.bf16 %v1633
    %v1698 = vunpack.c.l.bf16 %v1634
    %v1699 = vunpack.c.l.bf16 %v1635
    %v1700 = vunpack.c.l.bf16 %v1636
    %v1701 = vunpack.c.l.bf16 %v1637
    %v1702 = vunpack.c.l.bf16 %v1638
    %v1703 = vunpack.c.l.bf16 %v1639
    %v1704 = vunpack.c.l.bf16 %v1640
    %v1705 = vunpack.c.l.bf16 %v1641
    %v1706 = vunpack.c.l.bf16 %v1642
    %v1707 = vunpack.c.l.bf16 %v1643
    %v1708 = vunpack.c.l.bf16 %v1644
    %v1709 = vunpack.c.l.bf16 %v1645
    %v1710 = vunpack.c.l.bf16 %v1646
    %v1711 = vunpack.c.l.bf16 %v1647
    %v1712 = vunpack.c.l.bf16 %v1648
    %v1713 = vunpack.c.l.bf16 %v1649
    %v1714 = vunpack.c.l.bf16 %v1650
    %v1715 = vunpack.c.l.bf16 %v1651
    %v1716 = vunpack.c.l.bf16 %v1652
    %v1717 = vunpack.c.l.bf16 %v1653
    %v1718 = vunpack.c.l.bf16 %v1654
    %v1719 = vunpack.c.l.bf16 %v1655
    %v1720 = vunpack.c.l.bf16 %v1656
    %v1721 = vunpack.c.l.bf16 %v1657
    %v1722 = vunpack.c.l.bf16 %v1658
    %v1723 = vunpack.c.l.bf16 %v1659
    %v1724 = vunpack.c.l.bf16 %v1660
    %v1725 = vunpack.c.l.bf16 %v1661
    %v1726 = vunpack.c.l.bf16 %v1662
    %v1727 = vunpack.c.l.bf16 %v1663
    %v1728 = vunpack.c.l.bf16 %v1664
    %v1729 = vunpack.c.l.bf16 %v1665
    %v1730 = vunpack.c.l.bf16 %v1666
    %v1731 = vunpack.c.l.bf16 %v1667
    %v1732 = vunpack.c.l.bf16 %v1668
    %v1733 = vunpack.c.l.bf16 %v1669
    %v1734 = vunpack.c.l.bf16 %v1670
    %v1735 = vunpack.c.l.bf16 %v1671
    %v1736 = vunpack.c.l.bf16 %v1672
    %v1737 = vunpack.c.l.bf16 %v1673
    %v1738 = vunpack.c.l.bf16 %v1674
    %v1739 = vunpack.c.l.bf16 %v1675
    %v1740 = vunpack.c.l.bf16 %v1676
    %v1741 = vunpack.c.l.bf16 %v1677
    %1742 = vmatpush.msra.mxu0 %v1693
    %1743 = vmatpush.msra.mxu0 %v1692
    %1744 = vmatpush.msra.mxu0 %v1691
    %1745 = vmatpush.msra.mxu0 %v1690
    %1746 = vmatpush.msra.mxu0 %v1689
    %1747 = vmatpush.msra.mxu0 %v1688
    %1748 = vmatpush.msra.mxu0 %v1687
    %1749 = vmatpush.msra.mxu0 %v1686
    %1750 = vmatpush.msra.mxu0 %v1685
    %1751 = vmatpush.msra.mxu0 %v1684
    %1752 = vmatpush.msra.mxu0 %v1683
    %1753 = vmatpush.msra.mxu0 %v1682
    %1754 = vmatpush.msra.mxu0 %v1681
    %1755 = vmatpush.msra.mxu0 %v1680
    %1756 = vmatpush.msra.mxu0 %v1679
    %1757 = vmatpush.msra.mxu0 %v1678
    %1758 = vmatmul.f32.gmra.mxu0 %v400
    %v1759 = vpop.f32.mrf.mxu0
    %v1760 = vadd.f32 0.0, %v1759
    %1761 = vmatmul.f32.gmra.mxu0 %v402
    %v1762 = vpop.f32.mrf.mxu0
    %v1763 = vadd.f32 0.0, %v1762
    %1764 = vdwg.mxu0
    %1765 = vmatpush.msra.mxu0 %v1709
    %1766 = vmatpush.msra.mxu0 %v1708
    %1767 = vmatpush.msra.mxu0 %v1707
    %1768 = vmatpush.msra.mxu0 %v1706
    %1769 = vmatpush.msra.mxu0 %v1705
    %1770 = vmatpush.msra.mxu0 %v1704
    %1771 = vmatpush.msra.mxu0 %v1703
    %1772 = vmatpush.msra.mxu0 %v1702
    %1773 = vmatpush.msra.mxu0 %v1701
    %1774 = vmatpush.msra.mxu0 %v1700
    %1775 = vmatpush.msra.mxu0 %v1699
    %1776 = vmatpush.msra.mxu0 %v1698
    %1777 = vmatpush.msra.mxu0 %v1697
    %1778 = vmatpush.msra.mxu0 %v1696
    %1779 = vmatpush.msra.mxu0 %v1695
    %1780 = vmatpush.msra.mxu0 %v1694
    %1781 = vmatmul.f32.gmra.mxu0 %v489
    %v1782 = vpop.f32.mrf.mxu0
    %v1783 = vadd.f32 %v1760, %v1782
    %1784 = vmatmul.f32.gmra.mxu0 %v491
    %v1785 = vpop.f32.mrf.mxu0
    %v1786 = vadd.f32 %v1763, %v1785
    %1787 = vdwg.mxu0
    %1788 = vmatpush.msra.mxu0 %v1725
    %1789 = vmatpush.msra.mxu0 %v1724
    %1790 = vmatpush.msra.mxu0 %v1723
    %1791 = vmatpush.msra.mxu0 %v1722
    %1792 = vmatpush.msra.mxu0 %v1721
    %1793 = vmatpush.msra.mxu0 %v1720
    %1794 = vmatpush.msra.mxu0 %v1719
    %1795 = vmatpush.msra.mxu0 %v1718
    %1796 = vmatpush.msra.mxu0 %v1717
    %1797 = vmatpush.msra.mxu0 %v1716
    %1798 = vmatpush.msra.mxu0 %v1715
    %1799 = vmatpush.msra.mxu0 %v1714
    %1800 = vmatpush.msra.mxu0 %v1713
    %1801 = vmatpush.msra.mxu0 %v1712
    %1802 = vmatpush.msra.mxu0 %v1711
    %1803 = vmatpush.msra.mxu0 %v1710
    %1804 = vmatmul.f32.gmra.mxu0 %v578
    %v1805 = vpop.f32.mrf.mxu0
    %v1806 = vadd.f32 %v1783, %v1805
    %1807 = vmatmul.f32.gmra.mxu0 %v580
    %v1808 = vpop.f32.mrf.mxu0
    %v1809 = vadd.f32 %v1786, %v1808
    %1810 = vdwg.mxu0
    %1811 = vmatpush.msra.mxu0 %v1741
    %1812 = vmatpush.msra.mxu0 %v1740
    %1813 = vmatpush.msra.mxu0 %v1739
    %1814 = vmatpush.msra.mxu0 %v1738
    %1815 = vmatpush.msra.mxu0 %v1737
    %1816 = vmatpush.msra.mxu0 %v1736
    %1817 = vmatpush.msra.mxu0 %v1735
    %1818 = vmatpush.msra.mxu0 %v1734
    %1819 = vmatpush.msra.mxu0 %v1733
    %1820 = vmatpush.msra.mxu0 %v1732
    %1821 = vmatpush.msra.mxu0 %v1731
    %1822 = vmatpush.msra.mxu0 %v1730
    %1823 = vmatpush.msra.mxu0 %v1729
    %1824 = vmatpush.msra.mxu0 %v1728
    %1825 = vmatpush.msra.mxu0 %v1727
    %1826 = vmatpush.msra.mxu0 %v1726
    %1827 = vmatmul.f32.gmra.mxu0 %v667
    %v1828 = vpop.f32.mrf.mxu0
    %v1829 = vadd.f32 %v1806, %v1828
    %1830 = vmatmul.f32.gmra.mxu0 %v669
    %v1831 = vpop.f32.mrf.mxu0
    %v1832 = vadd.f32 %v1809, %v1831
    %1833 = vdwg.mxu0
    %v1834 = vadd.f32 %v1611, %v1829
    %v1835 = vadd.f32 %v1612, %v1832
    %s1836 = scalar_lea.vmem %s6, 1280
    %v1837 = vld [vmem:[%s1836] sm:$0xf]
    %v1838 = vld [vmem:[%s1836 + $0x4] sm:$0xf]
    %v1839 = vld [vmem:[%s1836 + $0x8] sm:$0xf]
    %v1840 = vld [vmem:[%s1836 + $0xc] sm:$0xf]
    %v1841 = vld [vmem:[%s1836 + $0x10] sm:$0xf]
    %v1842 = vld [vmem:[%s1836 + $0x14] sm:$0xf]
    %v1843 = vld [vmem:[%s1836 + $0x18] sm:$0xf]
    %v1844 = vld [vmem:[%s1836 + $0x1c] sm:$0xf]
    %v1845 = vld [vmem:[%s1836 + $0x20] sm:$0xf]
    %v1846 = vld [vmem:[%s1836 + $0x24] sm:$0xf]
    %v1847 = vld [vmem:[%s1836 + $0x28] sm:$0xf]
    %v1848 = vld [vmem:[%s1836 + $0x2c] sm:$0xf]
    %v1849 = vld [vmem:[%s1836 + $0x30] sm:$0xf]
    %v1850 = vld [vmem:[%s1836 + $0x34] sm:$0xf]
    %v1851 = vld [vmem:[%s1836 + $0x38] sm:$0xf]
    %v1852 = vld [vmem:[%s1836 + $0x3c] sm:$0xf]
    %v1853 = vld [vmem:[%s1836 + $0x40] sm:$0xf]
    %v1854 = vld [vmem:[%s1836 + $0x44] sm:$0xf]
    %v1855 = vld [vmem:[%s1836 + $0x48] sm:$0xf]
    %v1856 = vld [vmem:[%s1836 + $0x4c] sm:$0xf]
    %v1857 = vld [vmem:[%s1836 + $0x50] sm:$0xf]
    %v1858 = vld [vmem:[%s1836 + $0x54] sm:$0xf]
    %v1859 = vld [vmem:[%s1836 + $0x58] sm:$0xf]
    %v1860 = vld [vmem:[%s1836 + $0x5c] sm:$0xf]
    %v1861 = vld [vmem:[%s1836 + $0x60] sm:$0xf]
    %v1862 = vld [vmem:[%s1836 + $0x64] sm:$0xf]
    %v1863 = vld [vmem:[%s1836 + $0x68] sm:$0xf]
    %v1864 = vld [vmem:[%s1836 + $0x6c] sm:$0xf]
    %v1865 = vld [vmem:[%s1836 + $0x70] sm:$0xf]
    %v1866 = vld [vmem:[%s1836 + $0x74] sm:$0xf]
    %v1867 = vld [vmem:[%s1836 + $0x78] sm:$0xf]
    %v1868 = vld [vmem:[%s1836 + $0x7c] sm:$0xf]
    %v1869 = vld [vmem:[%s1836 + $0x80] sm:$0xf]
    %v1870 = vld [vmem:[%s1836 + $0x84] sm:$0xf]
    %v1871 = vld [vmem:[%s1836 + $0x88] sm:$0xf]
    %v1872 = vld [vmem:[%s1836 + $0x8c] sm:$0xf]
    %v1873 = vld [vmem:[%s1836 + $0x90] sm:$0xf]
    %v1874 = vld [vmem:[%s1836 + $0x94] sm:$0xf]
    %v1875 = vld [vmem:[%s1836 + $0x98] sm:$0xf]
    %v1876 = vld [vmem:[%s1836 + $0x9c] sm:$0xf]
    %v1877 = vld [vmem:[%s1836 + $0xa0] sm:$0xf]
    %v1878 = vld [vmem:[%s1836 + $0xa4] sm:$0xf]
    %v1879 = vld [vmem:[%s1836 + $0xa8] sm:$0xf]
    %v1880 = vld [vmem:[%s1836 + $0xac] sm:$0xf]
    %v1881 = vld [vmem:[%s1836 + $0xb0] sm:$0xf]
    %v1882 = vld [vmem:[%s1836 + $0xb4] sm:$0xf]
    %v1883 = vld [vmem:[%s1836 + $0xb8] sm:$0xf]
    %v1884 = vld [vmem:[%s1836 + $0xbc] sm:$0xf]
    %v1885 = vld [vmem:[%s1836 + $0xc0] sm:$0xf]
    %v1886 = vld [vmem:[%s1836 + $0xc4] sm:$0xf]
    %v1887 = vld [vmem:[%s1836 + $0xc8] sm:$0xf]
    %v1888 = vld [vmem:[%s1836 + $0xcc] sm:$0xf]
    %v1889 = vld [vmem:[%s1836 + $0xd0] sm:$0xf]
    %v1890 = vld [vmem:[%s1836 + $0xd4] sm:$0xf]
    %v1891 = vld [vmem:[%s1836 + $0xd8] sm:$0xf]
    %v1892 = vld [vmem:[%s1836 + $0xdc] sm:$0xf]
    %v1893 = vld [vmem:[%s1836 + $0xe0] sm:$0xf]
    %v1894 = vld [vmem:[%s1836 + $0xe4] sm:$0xf]
    %v1895 = vld [vmem:[%s1836 + $0xe8] sm:$0xf]
    %v1896 = vld [vmem:[%s1836 + $0xec] sm:$0xf]
    %v1897 = vld [vmem:[%s1836 + $0xf0] sm:$0xf]
    %v1898 = vld [vmem:[%s1836 + $0xf4] sm:$0xf]
    %v1899 = vld [vmem:[%s1836 + $0xf8] sm:$0xf]
    %v1900 = vld [vmem:[%s1836 + $0xfc] sm:$0xf]
    %v1901 = vunpack.c.l.bf16 %v1837
    %v1902 = vunpack.c.l.bf16 %v1838
    %v1903 = vunpack.c.l.bf16 %v1839
    %v1904 = vunpack.c.l.bf16 %v1840
    %v1905 = vunpack.c.l.bf16 %v1841
    %v1906 = vunpack.c.l.bf16 %v1842
    %v1907 = vunpack.c.l.bf16 %v1843
    %v1908 = vunpack.c.l.bf16 %v1844
    %v1909 = vunpack.c.l.bf16 %v1845
    %v1910 = vunpack.c.l.bf16 %v1846
    %v1911 = vunpack.c.l.bf16 %v1847
    %v1912 = vunpack.c.l.bf16 %v1848
    %v1913 = vunpack.c.l.bf16 %v1849
    %v1914 = vunpack.c.l.bf16 %v1850
    %v1915 = vunpack.c.l.bf16 %v1851
    %v1916 = vunpack.c.l.bf16 %v1852
    %v1917 = vunpack.c.l.bf16 %v1853
    %v1918 = vunpack.c.l.bf16 %v1854
    %v1919 = vunpack.c.l.bf16 %v1855
    %v1920 = vunpack.c.l.bf16 %v1856
    %v1921 = vunpack.c.l.bf16 %v1857
    %v1922 = vunpack.c.l.bf16 %v1858
    %v1923 = vunpack.c.l.bf16 %v1859
    %v1924 = vunpack.c.l.bf16 %v1860
    %v1925 = vunpack.c.l.bf16 %v1861
    %v1926 = vunpack.c.l.bf16 %v1862
    %v1927 = vunpack.c.l.bf16 %v1863
    %v1928 = vunpack.c.l.bf16 %v1864
    %v1929 = vunpack.c.l.bf16 %v1865
    %v1930 = vunpack.c.l.bf16 %v1866
    %v1931 = vunpack.c.l.bf16 %v1867
    %v1932 = vunpack.c.l.bf16 %v1868
    %v1933 = vunpack.c.l.bf16 %v1869
    %v1934 = vunpack.c.l.bf16 %v1870
    %v1935 = vunpack.c.l.bf16 %v1871
    %v1936 = vunpack.c.l.bf16 %v1872
    %v1937 = vunpack.c.l.bf16 %v1873
    %v1938 = vunpack.c.l.bf16 %v1874
    %v1939 = vunpack.c.l.bf16 %v1875
    %v1940 = vunpack.c.l.bf16 %v1876
    %v1941 = vunpack.c.l.bf16 %v1877
    %v1942 = vunpack.c.l.bf16 %v1878
    %v1943 = vunpack.c.l.bf16 %v1879
    %v1944 = vunpack.c.l.bf16 %v1880
    %v1945 = vunpack.c.l.bf16 %v1881
    %v1946 = vunpack.c.l.bf16 %v1882
    %v1947 = vunpack.c.l.bf16 %v1883
    %v1948 = vunpack.c.l.bf16 %v1884
    %v1949 = vunpack.c.l.bf16 %v1885
    %v1950 = vunpack.c.l.bf16 %v1886
    %v1951 = vunpack.c.l.bf16 %v1887
    %v1952 = vunpack.c.l.bf16 %v1888
    %v1953 = vunpack.c.l.bf16 %v1889
    %v1954 = vunpack.c.l.bf16 %v1890
    %v1955 = vunpack.c.l.bf16 %v1891
    %v1956 = vunpack.c.l.bf16 %v1892
    %v1957 = vunpack.c.l.bf16 %v1893
    %v1958 = vunpack.c.l.bf16 %v1894
    %v1959 = vunpack.c.l.bf16 %v1895
    %v1960 = vunpack.c.l.bf16 %v1896
    %v1961 = vunpack.c.l.bf16 %v1897
    %v1962 = vunpack.c.l.bf16 %v1898
    %v1963 = vunpack.c.l.bf16 %v1899
    %v1964 = vunpack.c.l.bf16 %v1900
    %1965 = vmatpush.msra.mxu0 %v1916
    %1966 = vmatpush.msra.mxu0 %v1915
    %1967 = vmatpush.msra.mxu0 %v1914
    %1968 = vmatpush.msra.mxu0 %v1913
    %1969 = vmatpush.msra.mxu0 %v1912
    %1970 = vmatpush.msra.mxu0 %v1911
    %1971 = vmatpush.msra.mxu0 %v1910
    %1972 = vmatpush.msra.mxu0 %v1909
    %1973 = vmatpush.msra.mxu0 %v1908
    %1974 = vmatpush.msra.mxu0 %v1907
    %1975 = vmatpush.msra.mxu0 %v1906
    %1976 = vmatpush.msra.mxu0 %v1905
    %1977 = vmatpush.msra.mxu0 %v1904
    %1978 = vmatpush.msra.mxu0 %v1903
    %1979 = vmatpush.msra.mxu0 %v1902
    %1980 = vmatpush.msra.mxu0 %v1901
    %1981 = vmatmul.f32.gmra.mxu0 %v405
    %v1982 = vpop.f32.mrf.mxu0
    %v1983 = vadd.f32 0.0, %v1982
    %1984 = vmatmul.f32.gmra.mxu0 %v407
    %v1985 = vpop.f32.mrf.mxu0
    %v1986 = vadd.f32 0.0, %v1985
    %1987 = vdwg.mxu0
    %1988 = vmatpush.msra.mxu0 %v1932
    %1989 = vmatpush.msra.mxu0 %v1931
    %1990 = vmatpush.msra.mxu0 %v1930
    %1991 = vmatpush.msra.mxu0 %v1929
    %1992 = vmatpush.msra.mxu0 %v1928
    %1993 = vmatpush.msra.mxu0 %v1927
    %1994 = vmatpush.msra.mxu0 %v1926
    %1995 = vmatpush.msra.mxu0 %v1925
    %1996 = vmatpush.msra.mxu0 %v1924
    %1997 = vmatpush.msra.mxu0 %v1923
    %1998 = vmatpush.msra.mxu0 %v1922
    %1999 = vmatpush.msra.mxu0 %v1921
    %2000 = vmatpush.msra.mxu0 %v1920
    %2001 = vmatpush.msra.mxu0 %v1919
    %2002 = vmatpush.msra.mxu0 %v1918
    %2003 = vmatpush.msra.mxu0 %v1917
    %2004 = vmatmul.f32.gmra.mxu0 %v494
    %v2005 = vpop.f32.mrf.mxu0
    %v2006 = vadd.f32 %v1983, %v2005
    %2007 = vmatmul.f32.gmra.mxu0 %v496
    %v2008 = vpop.f32.mrf.mxu0
    %v2009 = vadd.f32 %v1986, %v2008
    %2010 = vdwg.mxu0
    %2011 = vmatpush.msra.mxu0 %v1948
    %2012 = vmatpush.msra.mxu0 %v1947
    %2013 = vmatpush.msra.mxu0 %v1946
    %2014 = vmatpush.msra.mxu0 %v1945
    %2015 = vmatpush.msra.mxu0 %v1944
    %2016 = vmatpush.msra.mxu0 %v1943
    %2017 = vmatpush.msra.mxu0 %v1942
    %2018 = vmatpush.msra.mxu0 %v1941
    %2019 = vmatpush.msra.mxu0 %v1940
    %2020 = vmatpush.msra.mxu0 %v1939
    %2021 = vmatpush.msra.mxu0 %v1938
    %2022 = vmatpush.msra.mxu0 %v1937
    %2023 = vmatpush.msra.mxu0 %v1936
    %2024 = vmatpush.msra.mxu0 %v1935
    %2025 = vmatpush.msra.mxu0 %v1934
    %2026 = vmatpush.msra.mxu0 %v1933
    %2027 = vmatmul.f32.gmra.mxu0 %v583
    %v2028 = vpop.f32.mrf.mxu0
    %v2029 = vadd.f32 %v2006, %v2028
    %2030 = vmatmul.f32.gmra.mxu0 %v585
    %v2031 = vpop.f32.mrf.mxu0
    %v2032 = vadd.f32 %v2009, %v2031
    %2033 = vdwg.mxu0
    %2034 = vmatpush.msra.mxu0 %v1964
    %2035 = vmatpush.msra.mxu0 %v1963
    %2036 = vmatpush.msra.mxu0 %v1962
    %2037 = vmatpush.msra.mxu0 %v1961
    %2038 = vmatpush.msra.mxu0 %v1960
    %2039 = vmatpush.msra.mxu0 %v1959
    %2040 = vmatpush.msra.mxu0 %v1958
    %2041 = vmatpush.msra.mxu0 %v1957
    %2042 = vmatpush.msra.mxu0 %v1956
    %2043 = vmatpush.msra.mxu0 %v1955
    %2044 = vmatpush.msra.mxu0 %v1954
    %2045 = vmatpush.msra.mxu0 %v1953
    %2046 = vmatpush.msra.mxu0 %v1952
    %2047 = vmatpush.msra.mxu0 %v1951
    %2048 = vmatpush.msra.mxu0 %v1950
    %2049 = vmatpush.msra.mxu0 %v1949
    %2050 = vmatmul.f32.gmra.mxu0 %v672
    %v2051 = vpop.f32.mrf.mxu0
    %v2052 = vadd.f32 %v2029, %v2051
    %2053 = vmatmul.f32.gmra.mxu0 %v674
    %v2054 = vpop.f32.mrf.mxu0
    %v2055 = vadd.f32 %v2032, %v2054
    %2056 = vdwg.mxu0
    %v2057 = vadd.f32 %v1834, %v2052
    %v2058 = vadd.f32 %v1835, %v2055
    %s2059 = scalar_lea.vmem %s6, 1536
    %v2060 = vld [vmem:[%s2059] sm:$0xf]
    %v2061 = vld [vmem:[%s2059 + $0x4] sm:$0xf]
    %v2062 = vld [vmem:[%s2059 + $0x8] sm:$0xf]
    %v2063 = vld [vmem:[%s2059 + $0xc] sm:$0xf]
    %v2064 = vld [vmem:[%s2059 + $0x10] sm:$0xf]
    %v2065 = vld [vmem:[%s2059 + $0x14] sm:$0xf]
    %v2066 = vld [vmem:[%s2059 + $0x18] sm:$0xf]
    %v2067 = vld [vmem:[%s2059 + $0x1c] sm:$0xf]
    %v2068 = vld [vmem:[%s2059 + $0x20] sm:$0xf]
    %v2069 = vld [vmem:[%s2059 + $0x24] sm:$0xf]
    %v2070 = vld [vmem:[%s2059 + $0x28] sm:$0xf]
    %v2071 = vld [vmem:[%s2059 + $0x2c] sm:$0xf]
    %v2072 = vld [vmem:[%s2059 + $0x30] sm:$0xf]
    %v2073 = vld [vmem:[%s2059 + $0x34] sm:$0xf]
    %v2074 = vld [vmem:[%s2059 + $0x38] sm:$0xf]
    %v2075 = vld [vmem:[%s2059 + $0x3c] sm:$0xf]
    %v2076 = vld [vmem:[%s2059 + $0x40] sm:$0xf]
    %v2077 = vld [vmem:[%s2059 + $0x44] sm:$0xf]
    %v2078 = vld [vmem:[%s2059 + $0x48] sm:$0xf]
    %v2079 = vld [vmem:[%s2059 + $0x4c] sm:$0xf]
    %v2080 = vld [vmem:[%s2059 + $0x50] sm:$0xf]
    %v2081 = vld [vmem:[%s2059 + $0x54] sm:$0xf]
    %v2082 = vld [vmem:[%s2059 + $0x58] sm:$0xf]
    %v2083 = vld [vmem:[%s2059 + $0x5c] sm:$0xf]
    %v2084 = vld [vmem:[%s2059 + $0x60] sm:$0xf]
    %v2085 = vld [vmem:[%s2059 + $0x64] sm:$0xf]
    %v2086 = vld [vmem:[%s2059 + $0x68] sm:$0xf]
    %v2087 = vld [vmem:[%s2059 + $0x6c] sm:$0xf]
    %v2088 = vld [vmem:[%s2059 + $0x70] sm:$0xf]
    %v2089 = vld [vmem:[%s2059 + $0x74] sm:$0xf]
    %v2090 = vld [vmem:[%s2059 + $0x78] sm:$0xf]
    %v2091 = vld [vmem:[%s2059 + $0x7c] sm:$0xf]
    %v2092 = vld [vmem:[%s2059 + $0x80] sm:$0xf]
    %v2093 = vld [vmem:[%s2059 + $0x84] sm:$0xf]
    %v2094 = vld [vmem:[%s2059 + $0x88] sm:$0xf]
    %v2095 = vld [vmem:[%s2059 + $0x8c] sm:$0xf]
    %v2096 = vld [vmem:[%s2059 + $0x90] sm:$0xf]
    %v2097 = vld [vmem:[%s2059 + $0x94] sm:$0xf]
    %v2098 = vld [vmem:[%s2059 + $0x98] sm:$0xf]
    %v2099 = vld [vmem:[%s2059 + $0x9c] sm:$0xf]
    %v2100 = vld [vmem:[%s2059 + $0xa0] sm:$0xf]
    %v2101 = vld [vmem:[%s2059 + $0xa4] sm:$0xf]
    %v2102 = vld [vmem:[%s2059 + $0xa8] sm:$0xf]
    %v2103 = vld [vmem:[%s2059 + $0xac] sm:$0xf]
    %v2104 = vld [vmem:[%s2059 + $0xb0] sm:$0xf]
    %v2105 = vld [vmem:[%s2059 + $0xb4] sm:$0xf]
    %v2106 = vld [vmem:[%s2059 + $0xb8] sm:$0xf]
    %v2107 = vld [vmem:[%s2059 + $0xbc] sm:$0xf]
    %v2108 = vld [vmem:[%s2059 + $0xc0] sm:$0xf]
    %v2109 = vld [vmem:[%s2059 + $0xc4] sm:$0xf]
    %v2110 = vld [vmem:[%s2059 + $0xc8] sm:$0xf]
    %v2111 = vld [vmem:[%s2059 + $0xcc] sm:$0xf]
    %v2112 = vld [vmem:[%s2059 + $0xd0] sm:$0xf]
    %v2113 = vld [vmem:[%s2059 + $0xd4] sm:$0xf]
    %v2114 = vld [vmem:[%s2059 + $0xd8] sm:$0xf]
    %v2115 = vld [vmem:[%s2059 + $0xdc] sm:$0xf]
    %v2116 = vld [vmem:[%s2059 + $0xe0] sm:$0xf]
    %v2117 = vld [vmem:[%s2059 + $0xe4] sm:$0xf]
    %v2118 = vld [vmem:[%s2059 + $0xe8] sm:$0xf]
    %v2119 = vld [vmem:[%s2059 + $0xec] sm:$0xf]
    %v2120 = vld [vmem:[%s2059 + $0xf0] sm:$0xf]
    %v2121 = vld [vmem:[%s2059 + $0xf4] sm:$0xf]
    %v2122 = vld [vmem:[%s2059 + $0xf8] sm:$0xf]
    %v2123 = vld [vmem:[%s2059 + $0xfc] sm:$0xf]
    %v2124 = vunpack.c.l.bf16 %v2060
    %v2125 = vunpack.c.l.bf16 %v2061
    %v2126 = vunpack.c.l.bf16 %v2062
    %v2127 = vunpack.c.l.bf16 %v2063
    %v2128 = vunpack.c.l.bf16 %v2064
    %v2129 = vunpack.c.l.bf16 %v2065
    %v2130 = vunpack.c.l.bf16 %v2066
    %v2131 = vunpack.c.l.bf16 %v2067
    %v2132 = vunpack.c.l.bf16 %v2068
    %v2133 = vunpack.c.l.bf16 %v2069
    %v2134 = vunpack.c.l.bf16 %v2070
    %v2135 = vunpack.c.l.bf16 %v2071
    %v2136 = vunpack.c.l.bf16 %v2072
    %v2137 = vunpack.c.l.bf16 %v2073
    %v2138 = vunpack.c.l.bf16 %v2074
    %v2139 = vunpack.c.l.bf16 %v2075
    %v2140 = vunpack.c.l.bf16 %v2076
    %v2141 = vunpack.c.l.bf16 %v2077
    %v2142 = vunpack.c.l.bf16 %v2078
    %v2143 = vunpack.c.l.bf16 %v2079
    %v2144 = vunpack.c.l.bf16 %v2080
    %v2145 = vunpack.c.l.bf16 %v2081
    %v2146 = vunpack.c.l.bf16 %v2082
    %v2147 = vunpack.c.l.bf16 %v2083
    %v2148 = vunpack.c.l.bf16 %v2084
    %v2149 = vunpack.c.l.bf16 %v2085
    %v2150 = vunpack.c.l.bf16 %v2086
    %v2151 = vunpack.c.l.bf16 %v2087
    %v2152 = vunpack.c.l.bf16 %v2088
    %v2153 = vunpack.c.l.bf16 %v2089
    %v2154 = vunpack.c.l.bf16 %v2090
    %v2155 = vunpack.c.l.bf16 %v2091
    %v2156 = vunpack.c.l.bf16 %v2092
    %v2157 = vunpack.c.l.bf16 %v2093
    %v2158 = vunpack.c.l.bf16 %v2094
    %v2159 = vunpack.c.l.bf16 %v2095
    %v2160 = vunpack.c.l.bf16 %v2096
    %v2161 = vunpack.c.l.bf16 %v2097
    %v2162 = vunpack.c.l.bf16 %v2098
    %v2163 = vunpack.c.l.bf16 %v2099
    %v2164 = vunpack.c.l.bf16 %v2100
    %v2165 = vunpack.c.l.bf16 %v2101
    %v2166 = vunpack.c.l.bf16 %v2102
    %v2167 = vunpack.c.l.bf16 %v2103
    %v2168 = vunpack.c.l.bf16 %v2104
    %v2169 = vunpack.c.l.bf16 %v2105
    %v2170 = vunpack.c.l.bf16 %v2106
    %v2171 = vunpack.c.l.bf16 %v2107
    %v2172 = vunpack.c.l.bf16 %v2108
    %v2173 = vunpack.c.l.bf16 %v2109
    %v2174 = vunpack.c.l.bf16 %v2110
    %v2175 = vunpack.c.l.bf16 %v2111
    %v2176 = vunpack.c.l.bf16 %v2112
    %v2177 = vunpack.c.l.bf16 %v2113
    %v2178 = vunpack.c.l.bf16 %v2114
    %v2179 = vunpack.c.l.bf16 %v2115
    %v2180 = vunpack.c.l.bf16 %v2116
    %v2181 = vunpack.c.l.bf16 %v2117
    %v2182 = vunpack.c.l.bf16 %v2118
    %v2183 = vunpack.c.l.bf16 %v2119
    %v2184 = vunpack.c.l.bf16 %v2120
    %v2185 = vunpack.c.l.bf16 %v2121
    %v2186 = vunpack.c.l.bf16 %v2122
    %v2187 = vunpack.c.l.bf16 %v2123
    %2188 = vmatpush.msra.mxu0 %v2139
    %2189 = vmatpush.msra.mxu0 %v2138
    %2190 = vmatpush.msra.mxu0 %v2137
    %2191 = vmatpush.msra.mxu0 %v2136
    %2192 = vmatpush.msra.mxu0 %v2135
    %2193 = vmatpush.msra.mxu0 %v2134
    %2194 = vmatpush.msra.mxu0 %v2133
    %2195 = vmatpush.msra.mxu0 %v2132
    %2196 = vmatpush.msra.mxu0 %v2131
    %2197 = vmatpush.msra.mxu0 %v2130
    %2198 = vmatpush.msra.mxu0 %v2129
    %2199 = vmatpush.msra.mxu0 %v2128
    %2200 = vmatpush.msra.mxu0 %v2127
    %2201 = vmatpush.msra.mxu0 %v2126
    %2202 = vmatpush.msra.mxu0 %v2125
    %2203 = vmatpush.msra.mxu0 %v2124
    %2204 = vmatmul.f32.gmra.mxu0 %v410
    %v2205 = vpop.f32.mrf.mxu0
    %v2206 = vadd.f32 0.0, %v2205
    %2207 = vmatmul.f32.gmra.mxu0 %v412
    %v2208 = vpop.f32.mrf.mxu0
    %v2209 = vadd.f32 0.0, %v2208
    %2210 = vdwg.mxu0
    %2211 = vmatpush.msra.mxu0 %v2155
    %2212 = vmatpush.msra.mxu0 %v2154
    %2213 = vmatpush.msra.mxu0 %v2153
    %2214 = vmatpush.msra.mxu0 %v2152
    %2215 = vmatpush.msra.mxu0 %v2151
    %2216 = vmatpush.msra.mxu0 %v2150
    %2217 = vmatpush.msra.mxu0 %v2149
    %2218 = vmatpush.msra.mxu0 %v2148
    %2219 = vmatpush.msra.mxu0 %v2147
    %2220 = vmatpush.msra.mxu0 %v2146
    %2221 = vmatpush.msra.mxu0 %v2145
    %2222 = vmatpush.msra.mxu0 %v2144
    %2223 = vmatpush.msra.mxu0 %v2143
    %2224 = vmatpush.msra.mxu0 %v2142
    %2225 = vmatpush.msra.mxu0 %v2141
    %2226 = vmatpush.msra.mxu0 %v2140
    %2227 = vmatmul.f32.gmra.mxu0 %v499
    %v2228 = vpop.f32.mrf.mxu0
    %v2229 = vadd.f32 %v2206, %v2228
    %2230 = vmatmul.f32.gmra.mxu0 %v501
    %v2231 = vpop.f32.mrf.mxu0
    %v2232 = vadd.f32 %v2209, %v2231
    %2233 = vdwg.mxu0
    %2234 = vmatpush.msra.mxu0 %v2171
    %2235 = vmatpush.msra.mxu0 %v2170
    %2236 = vmatpush.msra.mxu0 %v2169
    %2237 = vmatpush.msra.mxu0 %v2168
    %2238 = vmatpush.msra.mxu0 %v2167
    %2239 = vmatpush.msra.mxu0 %v2166
    %2240 = vmatpush.msra.mxu0 %v2165
    %2241 = vmatpush.msra.mxu0 %v2164
    %2242 = vmatpush.msra.mxu0 %v2163
    %2243 = vmatpush.msra.mxu0 %v2162
    %2244 = vmatpush.msra.mxu0 %v2161
    %2245 = vmatpush.msra.mxu0 %v2160
    %2246 = vmatpush.msra.mxu0 %v2159
    %2247 = vmatpush.msra.mxu0 %v2158
    %2248 = vmatpush.msra.mxu0 %v2157
    %2249 = vmatpush.msra.mxu0 %v2156
    %2250 = vmatmul.f32.gmra.mxu0 %v588
    %v2251 = vpop.f32.mrf.mxu0
    %v2252 = vadd.f32 %v2229, %v2251
    %2253 = vmatmul.f32.gmra.mxu0 %v590
    %v2254 = vpop.f32.mrf.mxu0
    %v2255 = vadd.f32 %v2232, %v2254
    %2256 = vdwg.mxu0
    %2257 = vmatpush.msra.mxu0 %v2187
    %2258 = vmatpush.msra.mxu0 %v2186
    %2259 = vmatpush.msra.mxu0 %v2185
    %2260 = vmatpush.msra.mxu0 %v2184
    %2261 = vmatpush.msra.mxu0 %v2183
    %2262 = vmatpush.msra.mxu0 %v2182
    %2263 = vmatpush.msra.mxu0 %v2181
    %2264 = vmatpush.msra.mxu0 %v2180
    %2265 = vmatpush.msra.mxu0 %v2179
    %2266 = vmatpush.msra.mxu0 %v2178
    %2267 = vmatpush.msra.mxu0 %v2177
    %2268 = vmatpush.msra.mxu0 %v2176
    %2269 = vmatpush.msra.mxu0 %v2175
    %2270 = vmatpush.msra.mxu0 %v2174
    %2271 = vmatpush.msra.mxu0 %v2173
    %2272 = vmatpush.msra.mxu0 %v2172
    %2273 = vmatmul.f32.gmra.mxu0 %v677
    %v2274 = vpop.f32.mrf.mxu0
    %v2275 = vadd.f32 %v2252, %v2274
    %2276 = vmatmul.f32.gmra.mxu0 %v679
    %v2277 = vpop.f32.mrf.mxu0
    %v2278 = vadd.f32 %v2255, %v2277
    %2279 = vdwg.mxu0
    %v2280 = vadd.f32 %v2057, %v2275
    %v2281 = vadd.f32 %v2058, %v2278
    %s2282 = scalar_lea.vmem %s6, 1792
    %v2283 = vld [vmem:[%s2282] sm:$0xf]
    %v2284 = vld [vmem:[%s2282 + $0x4] sm:$0xf]
    %v2285 = vld [vmem:[%s2282 + $0x8] sm:$0xf]
    %v2286 = vld [vmem:[%s2282 + $0xc] sm:$0xf]
    %v2287 = vld [vmem:[%s2282 + $0x10] sm:$0xf]
    %v2288 = vld [vmem:[%s2282 + $0x14] sm:$0xf]
    %v2289 = vld [vmem:[%s2282 + $0x18] sm:$0xf]
    %v2290 = vld [vmem:[%s2282 + $0x1c] sm:$0xf]
    %v2291 = vld [vmem:[%s2282 + $0x20] sm:$0xf]
    %v2292 = vld [vmem:[%s2282 + $0x24] sm:$0xf]
    %v2293 = vld [vmem:[%s2282 + $0x28] sm:$0xf]
    %v2294 = vld [vmem:[%s2282 + $0x2c] sm:$0xf]
    %v2295 = vld [vmem:[%s2282 + $0x30] sm:$0xf]
    %v2296 = vld [vmem:[%s2282 + $0x34] sm:$0xf]
    %v2297 = vld [vmem:[%s2282 + $0x38] sm:$0xf]
    %v2298 = vld [vmem:[%s2282 + $0x3c] sm:$0xf]
    %v2299 = vld [vmem:[%s2282 + $0x40] sm:$0xf]
    %v2300 = vld [vmem:[%s2282 + $0x44] sm:$0xf]
    %v2301 = vld [vmem:[%s2282 + $0x48] sm:$0xf]
    %v2302 = vld [vmem:[%s2282 + $0x4c] sm:$0xf]
    %v2303 = vld [vmem:[%s2282 + $0x50] sm:$0xf]
    %v2304 = vld [vmem:[%s2282 + $0x54] sm:$0xf]
    %v2305 = vld [vmem:[%s2282 + $0x58] sm:$0xf]
    %v2306 = vld [vmem:[%s2282 + $0x5c] sm:$0xf]
    %v2307 = vld [vmem:[%s2282 + $0x60] sm:$0xf]
    %v2308 = vld [vmem:[%s2282 + $0x64] sm:$0xf]
    %v2309 = vld [vmem:[%s2282 + $0x68] sm:$0xf]
    %v2310 = vld [vmem:[%s2282 + $0x6c] sm:$0xf]
    %v2311 = vld [vmem:[%s2282 + $0x70] sm:$0xf]
    %v2312 = vld [vmem:[%s2282 + $0x74] sm:$0xf]
    %v2313 = vld [vmem:[%s2282 + $0x78] sm:$0xf]
    %v2314 = vld [vmem:[%s2282 + $0x7c] sm:$0xf]
    %v2315 = vld [vmem:[%s2282 + $0x80] sm:$0xf]
    %v2316 = vld [vmem:[%s2282 + $0x84] sm:$0xf]
    %v2317 = vld [vmem:[%s2282 + $0x88] sm:$0xf]
    %v2318 = vld [vmem:[%s2282 + $0x8c] sm:$0xf]
    %v2319 = vld [vmem:[%s2282 + $0x90] sm:$0xf]
    %v2320 = vld [vmem:[%s2282 + $0x94] sm:$0xf]
    %v2321 = vld [vmem:[%s2282 + $0x98] sm:$0xf]
    %v2322 = vld [vmem:[%s2282 + $0x9c] sm:$0xf]
    %v2323 = vld [vmem:[%s2282 + $0xa0] sm:$0xf]
    %v2324 = vld [vmem:[%s2282 + $0xa4] sm:$0xf]
    %v2325 = vld [vmem:[%s2282 + $0xa8] sm:$0xf]
    %v2326 = vld [vmem:[%s2282 + $0xac] sm:$0xf]
    %v2327 = vld [vmem:[%s2282 + $0xb0] sm:$0xf]
    %v2328 = vld [vmem:[%s2282 + $0xb4] sm:$0xf]
    %v2329 = vld [vmem:[%s2282 + $0xb8] sm:$0xf]
    %v2330 = vld [vmem:[%s2282 + $0xbc] sm:$0xf]
    %v2331 = vld [vmem:[%s2282 + $0xc0] sm:$0xf]
    %v2332 = vld [vmem:[%s2282 + $0xc4] sm:$0xf]
    %v2333 = vld [vmem:[%s2282 + $0xc8] sm:$0xf]
    %v2334 = vld [vmem:[%s2282 + $0xcc] sm:$0xf]
    %v2335 = vld [vmem:[%s2282 + $0xd0] sm:$0xf]
    %v2336 = vld [vmem:[%s2282 + $0xd4] sm:$0xf]
    %v2337 = vld [vmem:[%s2282 + $0xd8] sm:$0xf]
    %v2338 = vld [vmem:[%s2282 + $0xdc] sm:$0xf]
    %v2339 = vld [vmem:[%s2282 + $0xe0] sm:$0xf]
    %v2340 = vld [vmem:[%s2282 + $0xe4] sm:$0xf]
    %v2341 = vld [vmem:[%s2282 + $0xe8] sm:$0xf]
    %v2342 = vld [vmem:[%s2282 + $0xec] sm:$0xf]
    %v2343 = vld [vmem:[%s2282 + $0xf0] sm:$0xf]
    %v2344 = vld [vmem:[%s2282 + $0xf4] sm:$0xf]
    %v2345 = vld [vmem:[%s2282 + $0xf8] sm:$0xf]
    %v2346 = vld [vmem:[%s2282 + $0xfc] sm:$0xf]
    %v2347 = vunpack.c.l.bf16 %v2283
    %v2348 = vunpack.c.l.bf16 %v2284
    %v2349 = vunpack.c.l.bf16 %v2285
    %v2350 = vunpack.c.l.bf16 %v2286
    %v2351 = vunpack.c.l.bf16 %v2287
    %v2352 = vunpack.c.l.bf16 %v2288
    %v2353 = vunpack.c.l.bf16 %v2289
    %v2354 = vunpack.c.l.bf16 %v2290
    %v2355 = vunpack.c.l.bf16 %v2291
    %v2356 = vunpack.c.l.bf16 %v2292
    %v2357 = vunpack.c.l.bf16 %v2293
    %v2358 = vunpack.c.l.bf16 %v2294
    %v2359 = vunpack.c.l.bf16 %v2295
    %v2360 = vunpack.c.l.bf16 %v2296
    %v2361 = vunpack.c.l.bf16 %v2297
    %v2362 = vunpack.c.l.bf16 %v2298
    %v2363 = vunpack.c.l.bf16 %v2299
    %v2364 = vunpack.c.l.bf16 %v2300
    %v2365 = vunpack.c.l.bf16 %v2301
    %v2366 = vunpack.c.l.bf16 %v2302
    %v2367 = vunpack.c.l.bf16 %v2303
    %v2368 = vunpack.c.l.bf16 %v2304
    %v2369 = vunpack.c.l.bf16 %v2305
    %v2370 = vunpack.c.l.bf16 %v2306
    %v2371 = vunpack.c.l.bf16 %v2307
    %v2372 = vunpack.c.l.bf16 %v2308
    %v2373 = vunpack.c.l.bf16 %v2309
    %v2374 = vunpack.c.l.bf16 %v2310
    %v2375 = vunpack.c.l.bf16 %v2311
    %v2376 = vunpack.c.l.bf16 %v2312
    %v2377 = vunpack.c.l.bf16 %v2313
    %v2378 = vunpack.c.l.bf16 %v2314
    %v2379 = vunpack.c.l.bf16 %v2315
    %v2380 = vunpack.c.l.bf16 %v2316
    %v2381 = vunpack.c.l.bf16 %v2317
    %v2382 = vunpack.c.l.bf16 %v2318
    %v2383 = vunpack.c.l.bf16 %v2319
    %v2384 = vunpack.c.l.bf16 %v2320
    %v2385 = vunpack.c.l.bf16 %v2321
    %v2386 = vunpack.c.l.bf16 %v2322
    %v2387 = vunpack.c.l.bf16 %v2323
    %v2388 = vunpack.c.l.bf16 %v2324
    %v2389 = vunpack.c.l.bf16 %v2325
    %v2390 = vunpack.c.l.bf16 %v2326
    %v2391 = vunpack.c.l.bf16 %v2327
    %v2392 = vunpack.c.l.bf16 %v2328
    %v2393 = vunpack.c.l.bf16 %v2329
    %v2394 = vunpack.c.l.bf16 %v2330
    %v2395 = vunpack.c.l.bf16 %v2331
    %v2396 = vunpack.c.l.bf16 %v2332
    %v2397 = vunpack.c.l.bf16 %v2333
    %v2398 = vunpack.c.l.bf16 %v2334
    %v2399 = vunpack.c.l.bf16 %v2335
    %v2400 = vunpack.c.l.bf16 %v2336
    %v2401 = vunpack.c.l.bf16 %v2337
    %v2402 = vunpack.c.l.bf16 %v2338
    %v2403 = vunpack.c.l.bf16 %v2339
    %v2404 = vunpack.c.l.bf16 %v2340
    %v2405 = vunpack.c.l.bf16 %v2341
    %v2406 = vunpack.c.l.bf16 %v2342
    %v2407 = vunpack.c.l.bf16 %v2343
    %v2408 = vunpack.c.l.bf16 %v2344
    %v2409 = vunpack.c.l.bf16 %v2345
    %v2410 = vunpack.c.l.bf16 %v2346
    %2411 = vmatpush.msra.mxu0 %v2362
    %2412 = vmatpush.msra.mxu0 %v2361
    %2413 = vmatpush.msra.mxu0 %v2360
    %2414 = vmatpush.msra.mxu0 %v2359
    %2415 = vmatpush.msra.mxu0 %v2358
    %2416 = vmatpush.msra.mxu0 %v2357
    %2417 = vmatpush.msra.mxu0 %v2356
    %2418 = vmatpush.msra.mxu0 %v2355
    %2419 = vmatpush.msra.mxu0 %v2354
    %2420 = vmatpush.msra.mxu0 %v2353
    %2421 = vmatpush.msra.mxu0 %v2352
    %2422 = vmatpush.msra.mxu0 %v2351
    %2423 = vmatpush.msra.mxu0 %v2350
    %2424 = vmatpush.msra.mxu0 %v2349
    %2425 = vmatpush.msra.mxu0 %v2348
    %2426 = vmatpush.msra.mxu0 %v2347
    %2427 = vmatmul.f32.gmra.mxu0 %v415
    %v2428 = vpop.f32.mrf.mxu0
    %v2429 = vadd.f32 0.0, %v2428
    %2430 = vmatmul.f32.gmra.mxu0 %v417
    %v2431 = vpop.f32.mrf.mxu0
    %v2432 = vadd.f32 0.0, %v2431
    %2433 = vdwg.mxu0
    %2434 = vmatpush.msra.mxu0 %v2378
    %2435 = vmatpush.msra.mxu0 %v2377
    %2436 = vmatpush.msra.mxu0 %v2376
    %2437 = vmatpush.msra.mxu0 %v2375
    %2438 = vmatpush.msra.mxu0 %v2374
    %2439 = vmatpush.msra.mxu0 %v2373
    %2440 = vmatpush.msra.mxu0 %v2372
    %2441 = vmatpush.msra.mxu0 %v2371
    %2442 = vmatpush.msra.mxu0 %v2370
    %2443 = vmatpush.msra.mxu0 %v2369
    %2444 = vmatpush.msra.mxu0 %v2368
    %2445 = vmatpush.msra.mxu0 %v2367
    %2446 = vmatpush.msra.mxu0 %v2366
    %2447 = vmatpush.msra.mxu0 %v2365
    %2448 = vmatpush.msra.mxu0 %v2364
    %2449 = vmatpush.msra.mxu0 %v2363
    %2450 = vmatmul.f32.gmra.mxu0 %v504
    %v2451 = vpop.f32.mrf.mxu0
    %v2452 = vadd.f32 %v2429, %v2451
    %2453 = vmatmul.f32.gmra.mxu0 %v506
    %v2454 = vpop.f32.mrf.mxu0
    %v2455 = vadd.f32 %v2432, %v2454
    %2456 = vdwg.mxu0
    %2457 = vmatpush.msra.mxu0 %v2394
    %2458 = vmatpush.msra.mxu0 %v2393
    %2459 = vmatpush.msra.mxu0 %v2392
    %2460 = vmatpush.msra.mxu0 %v2391
    %2461 = vmatpush.msra.mxu0 %v2390
    %2462 = vmatpush.msra.mxu0 %v2389
    %2463 = vmatpush.msra.mxu0 %v2388
    %2464 = vmatpush.msra.mxu0 %v2387
    %2465 = vmatpush.msra.mxu0 %v2386
    %2466 = vmatpush.msra.mxu0 %v2385
    %2467 = vmatpush.msra.mxu0 %v2384
    %2468 = vmatpush.msra.mxu0 %v2383
    %2469 = vmatpush.msra.mxu0 %v2382
    %2470 = vmatpush.msra.mxu0 %v2381
    %2471 = vmatpush.msra.mxu0 %v2380
    %2472 = vmatpush.msra.mxu0 %v2379
    %2473 = vmatmul.f32.gmra.mxu0 %v593
    %v2474 = vpop.f32.mrf.mxu0
    %v2475 = vadd.f32 %v2452, %v2474
    %2476 = vmatmul.f32.gmra.mxu0 %v595
    %v2477 = vpop.f32.mrf.mxu0
    %v2478 = vadd.f32 %v2455, %v2477
    %2479 = vdwg.mxu0
    %2480 = vmatpush.msra.mxu0 %v2410
    %2481 = vmatpush.msra.mxu0 %v2409
    %2482 = vmatpush.msra.mxu0 %v2408
    %2483 = vmatpush.msra.mxu0 %v2407
    %2484 = vmatpush.msra.mxu0 %v2406
    %2485 = vmatpush.msra.mxu0 %v2405
    %2486 = vmatpush.msra.mxu0 %v2404
    %2487 = vmatpush.msra.mxu0 %v2403
    %2488 = vmatpush.msra.mxu0 %v2402
    %2489 = vmatpush.msra.mxu0 %v2401
    %2490 = vmatpush.msra.mxu0 %v2400
    %2491 = vmatpush.msra.mxu0 %v2399
    %2492 = vmatpush.msra.mxu0 %v2398
    %2493 = vmatpush.msra.mxu0 %v2397
    %2494 = vmatpush.msra.mxu0 %v2396
    %2495 = vmatpush.msra.mxu0 %v2395
    %2496 = vmatmul.f32.gmra.mxu0 %v682
    %v2497 = vpop.f32.mrf.mxu0
    %v2498 = vadd.f32 %v2475, %v2497
    %2499 = vmatmul.f32.gmra.mxu0 %v684
    %v2500 = vpop.f32.mrf.mxu0
    %v2501 = vadd.f32 %v2478, %v2500
    %2502 = vdwg.mxu0
    %v2503 = vadd.f32 %v2280, %v2498
    %v2504 = vadd.f32 %v2281, %v2501
    %s2505 = scalar_lea.vmem %s6, 2048
    %v2506 = vld [vmem:[%s2505] sm:$0xf]
    %v2507 = vld [vmem:[%s2505 + $0x4] sm:$0xf]
    %v2508 = vld [vmem:[%s2505 + $0x8] sm:$0xf]
    %v2509 = vld [vmem:[%s2505 + $0xc] sm:$0xf]
    %v2510 = vld [vmem:[%s2505 + $0x10] sm:$0xf]
    %v2511 = vld [vmem:[%s2505 + $0x14] sm:$0xf]
    %v2512 = vld [vmem:[%s2505 + $0x18] sm:$0xf]
    %v2513 = vld [vmem:[%s2505 + $0x1c] sm:$0xf]
    %v2514 = vld [vmem:[%s2505 + $0x20] sm:$0xf]
    %v2515 = vld [vmem:[%s2505 + $0x24] sm:$0xf]
    %v2516 = vld [vmem:[%s2505 + $0x28] sm:$0xf]
    %v2517 = vld [vmem:[%s2505 + $0x2c] sm:$0xf]
    %v2518 = vld [vmem:[%s2505 + $0x30] sm:$0xf]
    %v2519 = vld [vmem:[%s2505 + $0x34] sm:$0xf]
    %v2520 = vld [vmem:[%s2505 + $0x38] sm:$0xf]
    %v2521 = vld [vmem:[%s2505 + $0x3c] sm:$0xf]
    %v2522 = vld [vmem:[%s2505 + $0x40] sm:$0xf]
    %v2523 = vld [vmem:[%s2505 + $0x44] sm:$0xf]
    %v2524 = vld [vmem:[%s2505 + $0x48] sm:$0xf]
    %v2525 = vld [vmem:[%s2505 + $0x4c] sm:$0xf]
    %v2526 = vld [vmem:[%s2505 + $0x50] sm:$0xf]
    %v2527 = vld [vmem:[%s2505 + $0x54] sm:$0xf]
    %v2528 = vld [vmem:[%s2505 + $0x58] sm:$0xf]
    %v2529 = vld [vmem:[%s2505 + $0x5c] sm:$0xf]
    %v2530 = vld [vmem:[%s2505 + $0x60] sm:$0xf]
    %v2531 = vld [vmem:[%s2505 + $0x64] sm:$0xf]
    %v2532 = vld [vmem:[%s2505 + $0x68] sm:$0xf]
    %v2533 = vld [vmem:[%s2505 + $0x6c] sm:$0xf]
    %v2534 = vld [vmem:[%s2505 + $0x70] sm:$0xf]
    %v2535 = vld [vmem:[%s2505 + $0x74] sm:$0xf]
    %v2536 = vld [vmem:[%s2505 + $0x78] sm:$0xf]
    %v2537 = vld [vmem:[%s2505 + $0x7c] sm:$0xf]
    %v2538 = vld [vmem:[%s2505 + $0x80] sm:$0xf]
    %v2539 = vld [vmem:[%s2505 + $0x84] sm:$0xf]
    %v2540 = vld [vmem:[%s2505 + $0x88] sm:$0xf]
    %v2541 = vld [vmem:[%s2505 + $0x8c] sm:$0xf]
    %v2542 = vld [vmem:[%s2505 + $0x90] sm:$0xf]
    %v2543 = vld [vmem:[%s2505 + $0x94] sm:$0xf]
    %v2544 = vld [vmem:[%s2505 + $0x98] sm:$0xf]
    %v2545 = vld [vmem:[%s2505 + $0x9c] sm:$0xf]
    %v2546 = vld [vmem:[%s2505 + $0xa0] sm:$0xf]
    %v2547 = vld [vmem:[%s2505 + $0xa4] sm:$0xf]
    %v2548 = vld [vmem:[%s2505 + $0xa8] sm:$0xf]
    %v2549 = vld [vmem:[%s2505 + $0xac] sm:$0xf]
    %v2550 = vld [vmem:[%s2505 + $0xb0] sm:$0xf]
    %v2551 = vld [vmem:[%s2505 + $0xb4] sm:$0xf]
    %v2552 = vld [vmem:[%s2505 + $0xb8] sm:$0xf]
    %v2553 = vld [vmem:[%s2505 + $0xbc] sm:$0xf]
    %v2554 = vld [vmem:[%s2505 + $0xc0] sm:$0xf]
    %v2555 = vld [vmem:[%s2505 + $0xc4] sm:$0xf]
    %v2556 = vld [vmem:[%s2505 + $0xc8] sm:$0xf]
    %v2557 = vld [vmem:[%s2505 + $0xcc] sm:$0xf]
    %v2558 = vld [vmem:[%s2505 + $0xd0] sm:$0xf]
    %v2559 = vld [vmem:[%s2505 + $0xd4] sm:$0xf]
    %v2560 = vld [vmem:[%s2505 + $0xd8] sm:$0xf]
    %v2561 = vld [vmem:[%s2505 + $0xdc] sm:$0xf]
    %v2562 = vld [vmem:[%s2505 + $0xe0] sm:$0xf]
    %v2563 = vld [vmem:[%s2505 + $0xe4] sm:$0xf]
    %v2564 = vld [vmem:[%s2505 + $0xe8] sm:$0xf]
    %v2565 = vld [vmem:[%s2505 + $0xec] sm:$0xf]
    %v2566 = vld [vmem:[%s2505 + $0xf0] sm:$0xf]
    %v2567 = vld [vmem:[%s2505 + $0xf4] sm:$0xf]
    %v2568 = vld [vmem:[%s2505 + $0xf8] sm:$0xf]
    %v2569 = vld [vmem:[%s2505 + $0xfc] sm:$0xf]
    %v2570 = vunpack.c.l.bf16 %v2506
    %v2571 = vunpack.c.l.bf16 %v2507
    %v2572 = vunpack.c.l.bf16 %v2508
    %v2573 = vunpack.c.l.bf16 %v2509
    %v2574 = vunpack.c.l.bf16 %v2510
    %v2575 = vunpack.c.l.bf16 %v2511
    %v2576 = vunpack.c.l.bf16 %v2512
    %v2577 = vunpack.c.l.bf16 %v2513
    %v2578 = vunpack.c.l.bf16 %v2514
    %v2579 = vunpack.c.l.bf16 %v2515
    %v2580 = vunpack.c.l.bf16 %v2516
    %v2581 = vunpack.c.l.bf16 %v2517
    %v2582 = vunpack.c.l.bf16 %v2518
    %v2583 = vunpack.c.l.bf16 %v2519
    %v2584 = vunpack.c.l.bf16 %v2520
    %v2585 = vunpack.c.l.bf16 %v2521
    %v2586 = vunpack.c.l.bf16 %v2522
    %v2587 = vunpack.c.l.bf16 %v2523
    %v2588 = vunpack.c.l.bf16 %v2524
    %v2589 = vunpack.c.l.bf16 %v2525
    %v2590 = vunpack.c.l.bf16 %v2526
    %v2591 = vunpack.c.l.bf16 %v2527
    %v2592 = vunpack.c.l.bf16 %v2528
    %v2593 = vunpack.c.l.bf16 %v2529
    %v2594 = vunpack.c.l.bf16 %v2530
    %v2595 = vunpack.c.l.bf16 %v2531
    %v2596 = vunpack.c.l.bf16 %v2532
    %v2597 = vunpack.c.l.bf16 %v2533
    %v2598 = vunpack.c.l.bf16 %v2534
    %v2599 = vunpack.c.l.bf16 %v2535
    %v2600 = vunpack.c.l.bf16 %v2536
    %v2601 = vunpack.c.l.bf16 %v2537
    %v2602 = vunpack.c.l.bf16 %v2538
    %v2603 = vunpack.c.l.bf16 %v2539
    %v2604 = vunpack.c.l.bf16 %v2540
    %v2605 = vunpack.c.l.bf16 %v2541
    %v2606 = vunpack.c.l.bf16 %v2542
    %v2607 = vunpack.c.l.bf16 %v2543
    %v2608 = vunpack.c.l.bf16 %v2544
    %v2609 = vunpack.c.l.bf16 %v2545
    %v2610 = vunpack.c.l.bf16 %v2546
    %v2611 = vunpack.c.l.bf16 %v2547
    %v2612 = vunpack.c.l.bf16 %v2548
    %v2613 = vunpack.c.l.bf16 %v2549
    %v2614 = vunpack.c.l.bf16 %v2550
    %v2615 = vunpack.c.l.bf16 %v2551
    %v2616 = vunpack.c.l.bf16 %v2552
    %v2617 = vunpack.c.l.bf16 %v2553
    %v2618 = vunpack.c.l.bf16 %v2554
    %v2619 = vunpack.c.l.bf16 %v2555
    %v2620 = vunpack.c.l.bf16 %v2556
    %v2621 = vunpack.c.l.bf16 %v2557
    %v2622 = vunpack.c.l.bf16 %v2558
    %v2623 = vunpack.c.l.bf16 %v2559
    %v2624 = vunpack.c.l.bf16 %v2560
    %v2625 = vunpack.c.l.bf16 %v2561
    %v2626 = vunpack.c.l.bf16 %v2562
    %v2627 = vunpack.c.l.bf16 %v2563
    %v2628 = vunpack.c.l.bf16 %v2564
    %v2629 = vunpack.c.l.bf16 %v2565
    %v2630 = vunpack.c.l.bf16 %v2566
    %v2631 = vunpack.c.l.bf16 %v2567
    %v2632 = vunpack.c.l.bf16 %v2568
    %v2633 = vunpack.c.l.bf16 %v2569
    %2634 = vmatpush.msra.mxu0 %v2585
    %2635 = vmatpush.msra.mxu0 %v2584
    %2636 = vmatpush.msra.mxu0 %v2583
    %2637 = vmatpush.msra.mxu0 %v2582
    %2638 = vmatpush.msra.mxu0 %v2581
    %2639 = vmatpush.msra.mxu0 %v2580
    %2640 = vmatpush.msra.mxu0 %v2579
    %2641 = vmatpush.msra.mxu0 %v2578
    %2642 = vmatpush.msra.mxu0 %v2577
    %2643 = vmatpush.msra.mxu0 %v2576
    %2644 = vmatpush.msra.mxu0 %v2575
    %2645 = vmatpush.msra.mxu0 %v2574
    %2646 = vmatpush.msra.mxu0 %v2573
    %2647 = vmatpush.msra.mxu0 %v2572
    %2648 = vmatpush.msra.mxu0 %v2571
    %2649 = vmatpush.msra.mxu0 %v2570
    %2650 = vmatmul.f32.gmra.mxu0 %v420
    %v2651 = vpop.f32.mrf.mxu0
    %v2652 = vadd.f32 0.0, %v2651
    %2653 = vmatmul.f32.gmra.mxu0 %v422
    %v2654 = vpop.f32.mrf.mxu0
    %v2655 = vadd.f32 0.0, %v2654
    %2656 = vdwg.mxu0
    %2657 = vmatpush.msra.mxu0 %v2601
    %2658 = vmatpush.msra.mxu0 %v2600
    %2659 = vmatpush.msra.mxu0 %v2599
    %2660 = vmatpush.msra.mxu0 %v2598
    %2661 = vmatpush.msra.mxu0 %v2597
    %2662 = vmatpush.msra.mxu0 %v2596
    %2663 = vmatpush.msra.mxu0 %v2595
    %2664 = vmatpush.msra.mxu0 %v2594
    %2665 = vmatpush.msra.mxu0 %v2593
    %2666 = vmatpush.msra.mxu0 %v2592
    %2667 = vmatpush.msra.mxu0 %v2591
    %2668 = vmatpush.msra.mxu0 %v2590
    %2669 = vmatpush.msra.mxu0 %v2589
    %2670 = vmatpush.msra.mxu0 %v2588
    %2671 = vmatpush.msra.mxu0 %v2587
    %2672 = vmatpush.msra.mxu0 %v2586
    %2673 = vmatmul.f32.gmra.mxu0 %v509
    %v2674 = vpop.f32.mrf.mxu0
    %v2675 = vadd.f32 %v2652, %v2674
    %2676 = vmatmul.f32.gmra.mxu0 %v511
    %v2677 = vpop.f32.mrf.mxu0
    %v2678 = vadd.f32 %v2655, %v2677
    %2679 = vdwg.mxu0
    %2680 = vmatpush.msra.mxu0 %v2617
    %2681 = vmatpush.msra.mxu0 %v2616
    %2682 = vmatpush.msra.mxu0 %v2615
    %2683 = vmatpush.msra.mxu0 %v2614
    %2684 = vmatpush.msra.mxu0 %v2613
    %2685 = vmatpush.msra.mxu0 %v2612
    %2686 = vmatpush.msra.mxu0 %v2611
    %2687 = vmatpush.msra.mxu0 %v2610
    %2688 = vmatpush.msra.mxu0 %v2609
    %2689 = vmatpush.msra.mxu0 %v2608
    %2690 = vmatpush.msra.mxu0 %v2607
    %2691 = vmatpush.msra.mxu0 %v2606
    %2692 = vmatpush.msra.mxu0 %v2605
    %2693 = vmatpush.msra.mxu0 %v2604
    %2694 = vmatpush.msra.mxu0 %v2603
    %2695 = vmatpush.msra.mxu0 %v2602
    %2696 = vmatmul.f32.gmra.mxu0 %v598
    %v2697 = vpop.f32.mrf.mxu0
    %v2698 = vadd.f32 %v2675, %v2697
    %2699 = vmatmul.f32.gmra.mxu0 %v600
    %v2700 = vpop.f32.mrf.mxu0
    %v2701 = vadd.f32 %v2678, %v2700
    %2702 = vdwg.mxu0
    %2703 = vmatpush.msra.mxu0 %v2633
    %2704 = vmatpush.msra.mxu0 %v2632
    %2705 = vmatpush.msra.mxu0 %v2631
    %2706 = vmatpush.msra.mxu0 %v2630
    %2707 = vmatpush.msra.mxu0 %v2629
    %2708 = vmatpush.msra.mxu0 %v2628
    %2709 = vmatpush.msra.mxu0 %v2627
    %2710 = vmatpush.msra.mxu0 %v2626
    %2711 = vmatpush.msra.mxu0 %v2625
    %2712 = vmatpush.msra.mxu0 %v2624
    %2713 = vmatpush.msra.mxu0 %v2623
    %2714 = vmatpush.msra.mxu0 %v2622
    %2715 = vmatpush.msra.mxu0 %v2621
    %2716 = vmatpush.msra.mxu0 %v2620
    %2717 = vmatpush.msra.mxu0 %v2619
    %2718 = vmatpush.msra.mxu0 %v2618
    %2719 = vmatmul.f32.gmra.mxu0 %v687
    %v2720 = vpop.f32.mrf.mxu0
    %v2721 = vadd.f32 %v2698, %v2720
    %2722 = vmatmul.f32.gmra.mxu0 %v689
    %v2723 = vpop.f32.mrf.mxu0
    %v2724 = vadd.f32 %v2701, %v2723
    %2725 = vdwg.mxu0
    %v2726 = vadd.f32 %v2503, %v2721
    %v2727 = vadd.f32 %v2504, %v2724
    %s2728 = scalar_lea.vmem %s6, 2304
    %v2729 = vld [vmem:[%s2728] sm:$0xf]
    %v2730 = vld [vmem:[%s2728 + $0x4] sm:$0xf]
    %v2731 = vld [vmem:[%s2728 + $0x8] sm:$0xf]
    %v2732 = vld [vmem:[%s2728 + $0xc] sm:$0xf]
    %v2733 = vld [vmem:[%s2728 + $0x10] sm:$0xf]
    %v2734 = vld [vmem:[%s2728 + $0x14] sm:$0xf]
    %v2735 = vld [vmem:[%s2728 + $0x18] sm:$0xf]
    %v2736 = vld [vmem:[%s2728 + $0x1c] sm:$0xf]
    %v2737 = vld [vmem:[%s2728 + $0x20] sm:$0xf]
    %v2738 = vld [vmem:[%s2728 + $0x24] sm:$0xf]
    %v2739 = vld [vmem:[%s2728 + $0x28] sm:$0xf]
    %v2740 = vld [vmem:[%s2728 + $0x2c] sm:$0xf]
    %v2741 = vld [vmem:[%s2728 + $0x30] sm:$0xf]
    %v2742 = vld [vmem:[%s2728 + $0x34] sm:$0xf]
    %v2743 = vld [vmem:[%s2728 + $0x38] sm:$0xf]
    %v2744 = vld [vmem:[%s2728 + $0x3c] sm:$0xf]
    %v2745 = vld [vmem:[%s2728 + $0x40] sm:$0xf]
    %v2746 = vld [vmem:[%s2728 + $0x44] sm:$0xf]
    %v2747 = vld [vmem:[%s2728 + $0x48] sm:$0xf]
    %v2748 = vld [vmem:[%s2728 + $0x4c] sm:$0xf]
    %v2749 = vld [vmem:[%s2728 + $0x50] sm:$0xf]
    %v2750 = vld [vmem:[%s2728 + $0x54] sm:$0xf]
    %v2751 = vld [vmem:[%s2728 + $0x58] sm:$0xf]
    %v2752 = vld [vmem:[%s2728 + $0x5c] sm:$0xf]
    %v2753 = vld [vmem:[%s2728 + $0x60] sm:$0xf]
    %v2754 = vld [vmem:[%s2728 + $0x64] sm:$0xf]
    %v2755 = vld [vmem:[%s2728 + $0x68] sm:$0xf]
    %v2756 = vld [vmem:[%s2728 + $0x6c] sm:$0xf]
    %v2757 = vld [vmem:[%s2728 + $0x70] sm:$0xf]
    %v2758 = vld [vmem:[%s2728 + $0x74] sm:$0xf]
    %v2759 = vld [vmem:[%s2728 + $0x78] sm:$0xf]
    %v2760 = vld [vmem:[%s2728 + $0x7c] sm:$0xf]
    %v2761 = vld [vmem:[%s2728 + $0x80] sm:$0xf]
    %v2762 = vld [vmem:[%s2728 + $0x84] sm:$0xf]
    %v2763 = vld [vmem:[%s2728 + $0x88] sm:$0xf]
    %v2764 = vld [vmem:[%s2728 + $0x8c] sm:$0xf]
    %v2765 = vld [vmem:[%s2728 + $0x90] sm:$0xf]
    %v2766 = vld [vmem:[%s2728 + $0x94] sm:$0xf]
    %v2767 = vld [vmem:[%s2728 + $0x98] sm:$0xf]
    %v2768 = vld [vmem:[%s2728 + $0x9c] sm:$0xf]
    %v2769 = vld [vmem:[%s2728 + $0xa0] sm:$0xf]
    %v2770 = vld [vmem:[%s2728 + $0xa4] sm:$0xf]
    %v2771 = vld [vmem:[%s2728 + $0xa8] sm:$0xf]
    %v2772 = vld [vmem:[%s2728 + $0xac] sm:$0xf]
    %v2773 = vld [vmem:[%s2728 + $0xb0] sm:$0xf]
    %v2774 = vld [vmem:[%s2728 + $0xb4] sm:$0xf]
    %v2775 = vld [vmem:[%s2728 + $0xb8] sm:$0xf]
    %v2776 = vld [vmem:[%s2728 + $0xbc] sm:$0xf]
    %v2777 = vld [vmem:[%s2728 + $0xc0] sm:$0xf]
    %v2778 = vld [vmem:[%s2728 + $0xc4] sm:$0xf]
    %v2779 = vld [vmem:[%s2728 + $0xc8] sm:$0xf]
    %v2780 = vld [vmem:[%s2728 + $0xcc] sm:$0xf]
    %v2781 = vld [vmem:[%s2728 + $0xd0] sm:$0xf]
    %v2782 = vld [vmem:[%s2728 + $0xd4] sm:$0xf]
    %v2783 = vld [vmem:[%s2728 + $0xd8] sm:$0xf]
    %v2784 = vld [vmem:[%s2728 + $0xdc] sm:$0xf]
    %v2785 = vld [vmem:[%s2728 + $0xe0] sm:$0xf]
    %v2786 = vld [vmem:[%s2728 + $0xe4] sm:$0xf]
    %v2787 = vld [vmem:[%s2728 + $0xe8] sm:$0xf]
    %v2788 = vld [vmem:[%s2728 + $0xec] sm:$0xf]
    %v2789 = vld [vmem:[%s2728 + $0xf0] sm:$0xf]
    %v2790 = vld [vmem:[%s2728 + $0xf4] sm:$0xf]
    %v2791 = vld [vmem:[%s2728 + $0xf8] sm:$0xf]
    %v2792 = vld [vmem:[%s2728 + $0xfc] sm:$0xf]
    %v2793 = vunpack.c.l.bf16 %v2729
    %v2794 = vunpack.c.l.bf16 %v2730
    %v2795 = vunpack.c.l.bf16 %v2731
    %v2796 = vunpack.c.l.bf16 %v2732
    %v2797 = vunpack.c.l.bf16 %v2733
    %v2798 = vunpack.c.l.bf16 %v2734
    %v2799 = vunpack.c.l.bf16 %v2735
    %v2800 = vunpack.c.l.bf16 %v2736
    %v2801 = vunpack.c.l.bf16 %v2737
    %v2802 = vunpack.c.l.bf16 %v2738
    %v2803 = vunpack.c.l.bf16 %v2739
    %v2804 = vunpack.c.l.bf16 %v2740
    %v2805 = vunpack.c.l.bf16 %v2741
    %v2806 = vunpack.c.l.bf16 %v2742
    %v2807 = vunpack.c.l.bf16 %v2743
    %v2808 = vunpack.c.l.bf16 %v2744
    %v2809 = vunpack.c.l.bf16 %v2745
    %v2810 = vunpack.c.l.bf16 %v2746
    %v2811 = vunpack.c.l.bf16 %v2747
    %v2812 = vunpack.c.l.bf16 %v2748
    %v2813 = vunpack.c.l.bf16 %v2749
    %v2814 = vunpack.c.l.bf16 %v2750
    %v2815 = vunpack.c.l.bf16 %v2751
    %v2816 = vunpack.c.l.bf16 %v2752
    %v2817 = vunpack.c.l.bf16 %v2753
    %v2818 = vunpack.c.l.bf16 %v2754
    %v2819 = vunpack.c.l.bf16 %v2755
    %v2820 = vunpack.c.l.bf16 %v2756
    %v2821 = vunpack.c.l.bf16 %v2757
    %v2822 = vunpack.c.l.bf16 %v2758
    %v2823 = vunpack.c.l.bf16 %v2759
    %v2824 = vunpack.c.l.bf16 %v2760
    %v2825 = vunpack.c.l.bf16 %v2761
    %v2826 = vunpack.c.l.bf16 %v2762
    %v2827 = vunpack.c.l.bf16 %v2763
    %v2828 = vunpack.c.l.bf16 %v2764
    %v2829 = vunpack.c.l.bf16 %v2765
    %v2830 = vunpack.c.l.bf16 %v2766
    %v2831 = vunpack.c.l.bf16 %v2767
    %v2832 = vunpack.c.l.bf16 %v2768
    %v2833 = vunpack.c.l.bf16 %v2769
    %v2834 = vunpack.c.l.bf16 %v2770
    %v2835 = vunpack.c.l.bf16 %v2771
    %v2836 = vunpack.c.l.bf16 %v2772
    %v2837 = vunpack.c.l.bf16 %v2773
    %v2838 = vunpack.c.l.bf16 %v2774
    %v2839 = vunpack.c.l.bf16 %v2775
    %v2840 = vunpack.c.l.bf16 %v2776
    %v2841 = vunpack.c.l.bf16 %v2777
    %v2842 = vunpack.c.l.bf16 %v2778
    %v2843 = vunpack.c.l.bf16 %v2779
    %v2844 = vunpack.c.l.bf16 %v2780
    %v2845 = vunpack.c.l.bf16 %v2781
    %v2846 = vunpack.c.l.bf16 %v2782
    %v2847 = vunpack.c.l.bf16 %v2783
    %v2848 = vunpack.c.l.bf16 %v2784
    %v2849 = vunpack.c.l.bf16 %v2785
    %v2850 = vunpack.c.l.bf16 %v2786
    %v2851 = vunpack.c.l.bf16 %v2787
    %v2852 = vunpack.c.l.bf16 %v2788
    %v2853 = vunpack.c.l.bf16 %v2789
    %v2854 = vunpack.c.l.bf16 %v2790
    %v2855 = vunpack.c.l.bf16 %v2791
    %v2856 = vunpack.c.l.bf16 %v2792
    %2857 = vmatpush.msra.mxu0 %v2808
    %2858 = vmatpush.msra.mxu0 %v2807
    %2859 = vmatpush.msra.mxu0 %v2806
    %2860 = vmatpush.msra.mxu0 %v2805
    %2861 = vmatpush.msra.mxu0 %v2804
    %2862 = vmatpush.msra.mxu0 %v2803
    %2863 = vmatpush.msra.mxu0 %v2802
    %2864 = vmatpush.msra.mxu0 %v2801
    %2865 = vmatpush.msra.mxu0 %v2800
    %2866 = vmatpush.msra.mxu0 %v2799
    %2867 = vmatpush.msra.mxu0 %v2798
    %2868 = vmatpush.msra.mxu0 %v2797
    %2869 = vmatpush.msra.mxu0 %v2796
    %2870 = vmatpush.msra.mxu0 %v2795
    %2871 = vmatpush.msra.mxu0 %v2794
    %2872 = vmatpush.msra.mxu0 %v2793
    %2873 = vmatmul.f32.gmra.mxu0 %v425
    %v2874 = vpop.f32.mrf.mxu0
    %v2875 = vadd.f32 0.0, %v2874
    %2876 = vmatmul.f32.gmra.mxu0 %v427
    %v2877 = vpop.f32.mrf.mxu0
    %v2878 = vadd.f32 0.0, %v2877
    %2879 = vdwg.mxu0
    %2880 = vmatpush.msra.mxu0 %v2824
    %2881 = vmatpush.msra.mxu0 %v2823
    %2882 = vmatpush.msra.mxu0 %v2822
    %2883 = vmatpush.msra.mxu0 %v2821
    %2884 = vmatpush.msra.mxu0 %v2820
    %2885 = vmatpush.msra.mxu0 %v2819
    %2886 = vmatpush.msra.mxu0 %v2818
    %2887 = vmatpush.msra.mxu0 %v2817
    %2888 = vmatpush.msra.mxu0 %v2816
    %2889 = vmatpush.msra.mxu0 %v2815
    %2890 = vmatpush.msra.mxu0 %v2814
    %2891 = vmatpush.msra.mxu0 %v2813
    %2892 = vmatpush.msra.mxu0 %v2812
    %2893 = vmatpush.msra.mxu0 %v2811
    %2894 = vmatpush.msra.mxu0 %v2810
    %2895 = vmatpush.msra.mxu0 %v2809
    %2896 = vmatmul.f32.gmra.mxu0 %v514
    %v2897 = vpop.f32.mrf.mxu0
    %v2898 = vadd.f32 %v2875, %v2897
    %2899 = vmatmul.f32.gmra.mxu0 %v516
    %v2900 = vpop.f32.mrf.mxu0
    %v2901 = vadd.f32 %v2878, %v2900
    %2902 = vdwg.mxu0
    %2903 = vmatpush.msra.mxu0 %v2840
    %2904 = vmatpush.msra.mxu0 %v2839
    %2905 = vmatpush.msra.mxu0 %v2838
    %2906 = vmatpush.msra.mxu0 %v2837
    %2907 = vmatpush.msra.mxu0 %v2836
    %2908 = vmatpush.msra.mxu0 %v2835
    %2909 = vmatpush.msra.mxu0 %v2834
    %2910 = vmatpush.msra.mxu0 %v2833
    %2911 = vmatpush.msra.mxu0 %v2832
    %2912 = vmatpush.msra.mxu0 %v2831
    %2913 = vmatpush.msra.mxu0 %v2830
    %2914 = vmatpush.msra.mxu0 %v2829
    %2915 = vmatpush.msra.mxu0 %v2828
    %2916 = vmatpush.msra.mxu0 %v2827
    %2917 = vmatpush.msra.mxu0 %v2826
    %2918 = vmatpush.msra.mxu0 %v2825
    %2919 = vmatmul.f32.gmra.mxu0 %v603
    %v2920 = vpop.f32.mrf.mxu0
    %v2921 = vadd.f32 %v2898, %v2920
    %2922 = vmatmul.f32.gmra.mxu0 %v605
    %v2923 = vpop.f32.mrf.mxu0
    %v2924 = vadd.f32 %v2901, %v2923
    %2925 = vdwg.mxu0
    %2926 = vmatpush.msra.mxu0 %v2856
    %2927 = vmatpush.msra.mxu0 %v2855
    %2928 = vmatpush.msra.mxu0 %v2854
    %2929 = vmatpush.msra.mxu0 %v2853
    %2930 = vmatpush.msra.mxu0 %v2852
    %2931 = vmatpush.msra.mxu0 %v2851
    %2932 = vmatpush.msra.mxu0 %v2850
    %2933 = vmatpush.msra.mxu0 %v2849
    %2934 = vmatpush.msra.mxu0 %v2848
    %2935 = vmatpush.msra.mxu0 %v2847
    %2936 = vmatpush.msra.mxu0 %v2846
    %2937 = vmatpush.msra.mxu0 %v2845
    %2938 = vmatpush.msra.mxu0 %v2844
    %2939 = vmatpush.msra.mxu0 %v2843
    %2940 = vmatpush.msra.mxu0 %v2842
    %2941 = vmatpush.msra.mxu0 %v2841
    %2942 = vmatmul.f32.gmra.mxu0 %v692
    %v2943 = vpop.f32.mrf.mxu0
    %v2944 = vadd.f32 %v2921, %v2943
    %2945 = vmatmul.f32.gmra.mxu0 %v694
    %v2946 = vpop.f32.mrf.mxu0
    %v2947 = vadd.f32 %v2924, %v2946
    %2948 = vdwg.mxu0
    %v2949 = vadd.f32 %v2726, %v2944
    %v2950 = vadd.f32 %v2727, %v2947
    %s2951 = scalar_lea.vmem %s6, 2560
    %v2952 = vld [vmem:[%s2951] sm:$0xf]
    %v2953 = vld [vmem:[%s2951 + $0x4] sm:$0xf]
    %v2954 = vld [vmem:[%s2951 + $0x8] sm:$0xf]
    %v2955 = vld [vmem:[%s2951 + $0xc] sm:$0xf]
    %v2956 = vld [vmem:[%s2951 + $0x10] sm:$0xf]
    %v2957 = vld [vmem:[%s2951 + $0x14] sm:$0xf]
    %v2958 = vld [vmem:[%s2951 + $0x18] sm:$0xf]
    %v2959 = vld [vmem:[%s2951 + $0x1c] sm:$0xf]
    %v2960 = vld [vmem:[%s2951 + $0x20] sm:$0xf]
    %v2961 = vld [vmem:[%s2951 + $0x24] sm:$0xf]
    %v2962 = vld [vmem:[%s2951 + $0x28] sm:$0xf]
    %v2963 = vld [vmem:[%s2951 + $0x2c] sm:$0xf]
    %v2964 = vld [vmem:[%s2951 + $0x30] sm:$0xf]
    %v2965 = vld [vmem:[%s2951 + $0x34] sm:$0xf]
    %v2966 = vld [vmem:[%s2951 + $0x38] sm:$0xf]
    %v2967 = vld [vmem:[%s2951 + $0x3c] sm:$0xf]
    %v2968 = vld [vmem:[%s2951 + $0x40] sm:$0xf]
    %v2969 = vld [vmem:[%s2951 + $0x44] sm:$0xf]
    %v2970 = vld [vmem:[%s2951 + $0x48] sm:$0xf]
    %v2971 = vld [vmem:[%s2951 + $0x4c] sm:$0xf]
    %v2972 = vld [vmem:[%s2951 + $0x50] sm:$0xf]
    %v2973 = vld [vmem:[%s2951 + $0x54] sm:$0xf]
    %v2974 = vld [vmem:[%s2951 + $0x58] sm:$0xf]
    %v2975 = vld [vmem:[%s2951 + $0x5c] sm:$0xf]
    %v2976 = vld [vmem:[%s2951 + $0x60] sm:$0xf]
    %v2977 = vld [vmem:[%s2951 + $0x64] sm:$0xf]
    %v2978 = vld [vmem:[%s2951 + $0x68] sm:$0xf]
    %v2979 = vld [vmem:[%s2951 + $0x6c] sm:$0xf]
    %v2980 = vld [vmem:[%s2951 + $0x70] sm:$0xf]
    %v2981 = vld [vmem:[%s2951 + $0x74] sm:$0xf]
    %v2982 = vld [vmem:[%s2951 + $0x78] sm:$0xf]
    %v2983 = vld [vmem:[%s2951 + $0x7c] sm:$0xf]
    %v2984 = vld [vmem:[%s2951 + $0x80] sm:$0xf]
    %v2985 = vld [vmem:[%s2951 + $0x84] sm:$0xf]
    %v2986 = vld [vmem:[%s2951 + $0x88] sm:$0xf]
    %v2987 = vld [vmem:[%s2951 + $0x8c] sm:$0xf]
    %v2988 = vld [vmem:[%s2951 + $0x90] sm:$0xf]
    %v2989 = vld [vmem:[%s2951 + $0x94] sm:$0xf]
    %v2990 = vld [vmem:[%s2951 + $0x98] sm:$0xf]
    %v2991 = vld [vmem:[%s2951 + $0x9c] sm:$0xf]
    %v2992 = vld [vmem:[%s2951 + $0xa0] sm:$0xf]
    %v2993 = vld [vmem:[%s2951 + $0xa4] sm:$0xf]
    %v2994 = vld [vmem:[%s2951 + $0xa8] sm:$0xf]
    %v2995 = vld [vmem:[%s2951 + $0xac] sm:$0xf]
    %v2996 = vld [vmem:[%s2951 + $0xb0] sm:$0xf]
    %v2997 = vld [vmem:[%s2951 + $0xb4] sm:$0xf]
    %v2998 = vld [vmem:[%s2951 + $0xb8] sm:$0xf]
    %v2999 = vld [vmem:[%s2951 + $0xbc] sm:$0xf]
    %v3000 = vld [vmem:[%s2951 + $0xc0] sm:$0xf]
    %v3001 = vld [vmem:[%s2951 + $0xc4] sm:$0xf]
    %v3002 = vld [vmem:[%s2951 + $0xc8] sm:$0xf]
    %v3003 = vld [vmem:[%s2951 + $0xcc] sm:$0xf]
    %v3004 = vld [vmem:[%s2951 + $0xd0] sm:$0xf]
    %v3005 = vld [vmem:[%s2951 + $0xd4] sm:$0xf]
    %v3006 = vld [vmem:[%s2951 + $0xd8] sm:$0xf]
    %v3007 = vld [vmem:[%s2951 + $0xdc] sm:$0xf]
    %v3008 = vld [vmem:[%s2951 + $0xe0] sm:$0xf]
    %v3009 = vld [vmem:[%s2951 + $0xe4] sm:$0xf]
    %v3010 = vld [vmem:[%s2951 + $0xe8] sm:$0xf]
    %v3011 = vld [vmem:[%s2951 + $0xec] sm:$0xf]
    %v3012 = vld [vmem:[%s2951 + $0xf0] sm:$0xf]
    %v3013 = vld [vmem:[%s2951 + $0xf4] sm:$0xf]
    %v3014 = vld [vmem:[%s2951 + $0xf8] sm:$0xf]
    %v3015 = vld [vmem:[%s2951 + $0xfc] sm:$0xf]
    %v3016 = vunpack.c.l.bf16 %v2952
    %v3017 = vunpack.c.l.bf16 %v2953
    %v3018 = vunpack.c.l.bf16 %v2954
    %v3019 = vunpack.c.l.bf16 %v2955
    %v3020 = vunpack.c.l.bf16 %v2956
    %v3021 = vunpack.c.l.bf16 %v2957
    %v3022 = vunpack.c.l.bf16 %v2958
    %v3023 = vunpack.c.l.bf16 %v2959
    %v3024 = vunpack.c.l.bf16 %v2960
    %v3025 = vunpack.c.l.bf16 %v2961
    %v3026 = vunpack.c.l.bf16 %v2962
    %v3027 = vunpack.c.l.bf16 %v2963
    %v3028 = vunpack.c.l.bf16 %v2964
    %v3029 = vunpack.c.l.bf16 %v2965
    %v3030 = vunpack.c.l.bf16 %v2966
    %v3031 = vunpack.c.l.bf16 %v2967
    %v3032 = vunpack.c.l.bf16 %v2968
    %v3033 = vunpack.c.l.bf16 %v2969
    %v3034 = vunpack.c.l.bf16 %v2970
    %v3035 = vunpack.c.l.bf16 %v2971
    %v3036 = vunpack.c.l.bf16 %v2972
    %v3037 = vunpack.c.l.bf16 %v2973
    %v3038 = vunpack.c.l.bf16 %v2974
    %v3039 = vunpack.c.l.bf16 %v2975
    %v3040 = vunpack.c.l.bf16 %v2976
    %v3041 = vunpack.c.l.bf16 %v2977
    %v3042 = vunpack.c.l.bf16 %v2978
    %v3043 = vunpack.c.l.bf16 %v2979
    %v3044 = vunpack.c.l.bf16 %v2980
    %v3045 = vunpack.c.l.bf16 %v2981
    %v3046 = vunpack.c.l.bf16 %v2982
    %v3047 = vunpack.c.l.bf16 %v2983
    %v3048 = vunpack.c.l.bf16 %v2984
    %v3049 = vunpack.c.l.bf16 %v2985
    %v3050 = vunpack.c.l.bf16 %v2986
    %v3051 = vunpack.c.l.bf16 %v2987
    %v3052 = vunpack.c.l.bf16 %v2988
    %v3053 = vunpack.c.l.bf16 %v2989
    %v3054 = vunpack.c.l.bf16 %v2990
    %v3055 = vunpack.c.l.bf16 %v2991
    %v3056 = vunpack.c.l.bf16 %v2992
    %v3057 = vunpack.c.l.bf16 %v2993
    %v3058 = vunpack.c.l.bf16 %v2994
    %v3059 = vunpack.c.l.bf16 %v2995
    %v3060 = vunpack.c.l.bf16 %v2996
    %v3061 = vunpack.c.l.bf16 %v2997
    %v3062 = vunpack.c.l.bf16 %v2998
    %v3063 = vunpack.c.l.bf16 %v2999
    %v3064 = vunpack.c.l.bf16 %v3000
    %v3065 = vunpack.c.l.bf16 %v3001
    %v3066 = vunpack.c.l.bf16 %v3002
    %v3067 = vunpack.c.l.bf16 %v3003
    %v3068 = vunpack.c.l.bf16 %v3004
    %v3069 = vunpack.c.l.bf16 %v3005
    %v3070 = vunpack.c.l.bf16 %v3006
    %v3071 = vunpack.c.l.bf16 %v3007
    %v3072 = vunpack.c.l.bf16 %v3008
    %v3073 = vunpack.c.l.bf16 %v3009
    %v3074 = vunpack.c.l.bf16 %v3010
    %v3075 = vunpack.c.l.bf16 %v3011
    %v3076 = vunpack.c.l.bf16 %v3012
    %v3077 = vunpack.c.l.bf16 %v3013
    %v3078 = vunpack.c.l.bf16 %v3014
    %v3079 = vunpack.c.l.bf16 %v3015
    %3080 = vmatpush.msra.mxu0 %v3031
    %3081 = vmatpush.msra.mxu0 %v3030
    %3082 = vmatpush.msra.mxu0 %v3029
    %3083 = vmatpush.msra.mxu0 %v3028
    %3084 = vmatpush.msra.mxu0 %v3027
    %3085 = vmatpush.msra.mxu0 %v3026
    %3086 = vmatpush.msra.mxu0 %v3025
    %3087 = vmatpush.msra.mxu0 %v3024
    %3088 = vmatpush.msra.mxu0 %v3023
    %3089 = vmatpush.msra.mxu0 %v3022
    %3090 = vmatpush.msra.mxu0 %v3021
    %3091 = vmatpush.msra.mxu0 %v3020
    %3092 = vmatpush.msra.mxu0 %v3019
    %3093 = vmatpush.msra.mxu0 %v3018
    %3094 = vmatpush.msra.mxu0 %v3017
    %3095 = vmatpush.msra.mxu0 %v3016
    %3096 = vmatmul.f32.gmra.mxu0 %v430
    %v3097 = vpop.f32.mrf.mxu0
    %v3098 = vadd.f32 0.0, %v3097
    %3099 = vmatmul.f32.gmra.mxu0 %v432
    %v3100 = vpop.f32.mrf.mxu0
    %v3101 = vadd.f32 0.0, %v3100
    %3102 = vdwg.mxu0
    %3103 = vmatpush.msra.mxu0 %v3047
    %3104 = vmatpush.msra.mxu0 %v3046
    %3105 = vmatpush.msra.mxu0 %v3045
    %3106 = vmatpush.msra.mxu0 %v3044
    %3107 = vmatpush.msra.mxu0 %v3043
    %3108 = vmatpush.msra.mxu0 %v3042
    %3109 = vmatpush.msra.mxu0 %v3041
    %3110 = vmatpush.msra.mxu0 %v3040
    %3111 = vmatpush.msra.mxu0 %v3039
    %3112 = vmatpush.msra.mxu0 %v3038
    %3113 = vmatpush.msra.mxu0 %v3037
    %3114 = vmatpush.msra.mxu0 %v3036
    %3115 = vmatpush.msra.mxu0 %v3035
    %3116 = vmatpush.msra.mxu0 %v3034
    %3117 = vmatpush.msra.mxu0 %v3033
    %3118 = vmatpush.msra.mxu0 %v3032
    %3119 = vmatmul.f32.gmra.mxu0 %v519
    %v3120 = vpop.f32.mrf.mxu0
    %v3121 = vadd.f32 %v3098, %v3120
    %3122 = vmatmul.f32.gmra.mxu0 %v521
    %v3123 = vpop.f32.mrf.mxu0
    %v3124 = vadd.f32 %v3101, %v3123
    %3125 = vdwg.mxu0
    %3126 = vmatpush.msra.mxu0 %v3063
    %3127 = vmatpush.msra.mxu0 %v3062
    %3128 = vmatpush.msra.mxu0 %v3061
    %3129 = vmatpush.msra.mxu0 %v3060
    %3130 = vmatpush.msra.mxu0 %v3059
    %3131 = vmatpush.msra.mxu0 %v3058
    %3132 = vmatpush.msra.mxu0 %v3057
    %3133 = vmatpush.msra.mxu0 %v3056
    %3134 = vmatpush.msra.mxu0 %v3055
    %3135 = vmatpush.msra.mxu0 %v3054
    %3136 = vmatpush.msra.mxu0 %v3053
    %3137 = vmatpush.msra.mxu0 %v3052
    %3138 = vmatpush.msra.mxu0 %v3051
    %3139 = vmatpush.msra.mxu0 %v3050
    %3140 = vmatpush.msra.mxu0 %v3049
    %3141 = vmatpush.msra.mxu0 %v3048
    %3142 = vmatmul.f32.gmra.mxu0 %v608
    %v3143 = vpop.f32.mrf.mxu0
    %v3144 = vadd.f32 %v3121, %v3143
    %3145 = vmatmul.f32.gmra.mxu0 %v610
    %v3146 = vpop.f32.mrf.mxu0
    %v3147 = vadd.f32 %v3124, %v3146
    %3148 = vdwg.mxu0
    %3149 = vmatpush.msra.mxu0 %v3079
    %3150 = vmatpush.msra.mxu0 %v3078
    %3151 = vmatpush.msra.mxu0 %v3077
    %3152 = vmatpush.msra.mxu0 %v3076
    %3153 = vmatpush.msra.mxu0 %v3075
    %3154 = vmatpush.msra.mxu0 %v3074
    %3155 = vmatpush.msra.mxu0 %v3073
    %3156 = vmatpush.msra.mxu0 %v3072
    %3157 = vmatpush.msra.mxu0 %v3071
    %3158 = vmatpush.msra.mxu0 %v3070
    %3159 = vmatpush.msra.mxu0 %v3069
    %3160 = vmatpush.msra.mxu0 %v3068
    %3161 = vmatpush.msra.mxu0 %v3067
    %3162 = vmatpush.msra.mxu0 %v3066
    %3163 = vmatpush.msra.mxu0 %v3065
    %3164 = vmatpush.msra.mxu0 %v3064
    %3165 = vmatmul.f32.gmra.mxu0 %v697
    %v3166 = vpop.f32.mrf.mxu0
    %v3167 = vadd.f32 %v3144, %v3166
    %3168 = vmatmul.f32.gmra.mxu0 %v699
    %v3169 = vpop.f32.mrf.mxu0
    %v3170 = vadd.f32 %v3147, %v3169
    %3171 = vdwg.mxu0
    %v3172 = vadd.f32 %v2949, %v3167
    %v3173 = vadd.f32 %v2950, %v3170
    %s3174 = scalar_lea.vmem %s6, 2816
    %v3175 = vld [vmem:[%s3174] sm:$0xf]
    %v3176 = vld [vmem:[%s3174 + $0x4] sm:$0xf]
    %v3177 = vld [vmem:[%s3174 + $0x8] sm:$0xf]
    %v3178 = vld [vmem:[%s3174 + $0xc] sm:$0xf]
    %v3179 = vld [vmem:[%s3174 + $0x10] sm:$0xf]
    %v3180 = vld [vmem:[%s3174 + $0x14] sm:$0xf]
    %v3181 = vld [vmem:[%s3174 + $0x18] sm:$0xf]
    %v3182 = vld [vmem:[%s3174 + $0x1c] sm:$0xf]
    %v3183 = vld [vmem:[%s3174 + $0x20] sm:$0xf]
    %v3184 = vld [vmem:[%s3174 + $0x24] sm:$0xf]
    %v3185 = vld [vmem:[%s3174 + $0x28] sm:$0xf]
    %v3186 = vld [vmem:[%s3174 + $0x2c] sm:$0xf]
    %v3187 = vld [vmem:[%s3174 + $0x30] sm:$0xf]
    %v3188 = vld [vmem:[%s3174 + $0x34] sm:$0xf]
    %v3189 = vld [vmem:[%s3174 + $0x38] sm:$0xf]
    %v3190 = vld [vmem:[%s3174 + $0x3c] sm:$0xf]
    %v3191 = vld [vmem:[%s3174 + $0x40] sm:$0xf]
    %v3192 = vld [vmem:[%s3174 + $0x44] sm:$0xf]
    %v3193 = vld [vmem:[%s3174 + $0x48] sm:$0xf]
    %v3194 = vld [vmem:[%s3174 + $0x4c] sm:$0xf]
    %v3195 = vld [vmem:[%s3174 + $0x50] sm:$0xf]
    %v3196 = vld [vmem:[%s3174 + $0x54] sm:$0xf]
    %v3197 = vld [vmem:[%s3174 + $0x58] sm:$0xf]
    %v3198 = vld [vmem:[%s3174 + $0x5c] sm:$0xf]
    %v3199 = vld [vmem:[%s3174 + $0x60] sm:$0xf]
    %v3200 = vld [vmem:[%s3174 + $0x64] sm:$0xf]
    %v3201 = vld [vmem:[%s3174 + $0x68] sm:$0xf]
    %v3202 = vld [vmem:[%s3174 + $0x6c] sm:$0xf]
    %v3203 = vld [vmem:[%s3174 + $0x70] sm:$0xf]
    %v3204 = vld [vmem:[%s3174 + $0x74] sm:$0xf]
    %v3205 = vld [vmem:[%s3174 + $0x78] sm:$0xf]
    %v3206 = vld [vmem:[%s3174 + $0x7c] sm:$0xf]
    %v3207 = vld [vmem:[%s3174 + $0x80] sm:$0xf]
    %v3208 = vld [vmem:[%s3174 + $0x84] sm:$0xf]
    %v3209 = vld [vmem:[%s3174 + $0x88] sm:$0xf]
    %v3210 = vld [vmem:[%s3174 + $0x8c] sm:$0xf]
    %v3211 = vld [vmem:[%s3174 + $0x90] sm:$0xf]
    %v3212 = vld [vmem:[%s3174 + $0x94] sm:$0xf]
    %v3213 = vld [vmem:[%s3174 + $0x98] sm:$0xf]
    %v3214 = vld [vmem:[%s3174 + $0x9c] sm:$0xf]
    %v3215 = vld [vmem:[%s3174 + $0xa0] sm:$0xf]
    %v3216 = vld [vmem:[%s3174 + $0xa4] sm:$0xf]
    %v3217 = vld [vmem:[%s3174 + $0xa8] sm:$0xf]
    %v3218 = vld [vmem:[%s3174 + $0xac] sm:$0xf]
    %v3219 = vld [vmem:[%s3174 + $0xb0] sm:$0xf]
    %v3220 = vld [vmem:[%s3174 + $0xb4] sm:$0xf]
    %v3221 = vld [vmem:[%s3174 + $0xb8] sm:$0xf]
    %v3222 = vld [vmem:[%s3174 + $0xbc] sm:$0xf]
    %v3223 = vld [vmem:[%s3174 + $0xc0] sm:$0xf]
    %v3224 = vld [vmem:[%s3174 + $0xc4] sm:$0xf]
    %v3225 = vld [vmem:[%s3174 + $0xc8] sm:$0xf]
    %v3226 = vld [vmem:[%s3174 + $0xcc] sm:$0xf]
    %v3227 = vld [vmem:[%s3174 + $0xd0] sm:$0xf]
    %v3228 = vld [vmem:[%s3174 + $0xd4] sm:$0xf]
    %v3229 = vld [vmem:[%s3174 + $0xd8] sm:$0xf]
    %v3230 = vld [vmem:[%s3174 + $0xdc] sm:$0xf]
    %v3231 = vld [vmem:[%s3174 + $0xe0] sm:$0xf]
    %v3232 = vld [vmem:[%s3174 + $0xe4] sm:$0xf]
    %v3233 = vld [vmem:[%s3174 + $0xe8] sm:$0xf]
    %v3234 = vld [vmem:[%s3174 + $0xec] sm:$0xf]
    %v3235 = vld [vmem:[%s3174 + $0xf0] sm:$0xf]
    %v3236 = vld [vmem:[%s3174 + $0xf4] sm:$0xf]
    %v3237 = vld [vmem:[%s3174 + $0xf8] sm:$0xf]
    %v3238 = vld [vmem:[%s3174 + $0xfc] sm:$0xf]
    %v3239 = vunpack.c.l.bf16 %v3175
    %v3240 = vunpack.c.l.bf16 %v3176
    %v3241 = vunpack.c.l.bf16 %v3177
    %v3242 = vunpack.c.l.bf16 %v3178
    %v3243 = vunpack.c.l.bf16 %v3179
    %v3244 = vunpack.c.l.bf16 %v3180
    %v3245 = vunpack.c.l.bf16 %v3181
    %v3246 = vunpack.c.l.bf16 %v3182
    %v3247 = vunpack.c.l.bf16 %v3183
    %v3248 = vunpack.c.l.bf16 %v3184
    %v3249 = vunpack.c.l.bf16 %v3185
    %v3250 = vunpack.c.l.bf16 %v3186
    %v3251 = vunpack.c.l.bf16 %v3187
    %v3252 = vunpack.c.l.bf16 %v3188
    %v3253 = vunpack.c.l.bf16 %v3189
    %v3254 = vunpack.c.l.bf16 %v3190
    %v3255 = vunpack.c.l.bf16 %v3191
    %v3256 = vunpack.c.l.bf16 %v3192
    %v3257 = vunpack.c.l.bf16 %v3193
    %v3258 = vunpack.c.l.bf16 %v3194
    %v3259 = vunpack.c.l.bf16 %v3195
    %v3260 = vunpack.c.l.bf16 %v3196
    %v3261 = vunpack.c.l.bf16 %v3197
    %v3262 = vunpack.c.l.bf16 %v3198
    %v3263 = vunpack.c.l.bf16 %v3199
    %v3264 = vunpack.c.l.bf16 %v3200
    %v3265 = vunpack.c.l.bf16 %v3201
    %v3266 = vunpack.c.l.bf16 %v3202
    %v3267 = vunpack.c.l.bf16 %v3203
    %v3268 = vunpack.c.l.bf16 %v3204
    %v3269 = vunpack.c.l.bf16 %v3205
    %v3270 = vunpack.c.l.bf16 %v3206
    %v3271 = vunpack.c.l.bf16 %v3207
    %v3272 = vunpack.c.l.bf16 %v3208
    %v3273 = vunpack.c.l.bf16 %v3209
    %v3274 = vunpack.c.l.bf16 %v3210
    %v3275 = vunpack.c.l.bf16 %v3211
    %v3276 = vunpack.c.l.bf16 %v3212
    %v3277 = vunpack.c.l.bf16 %v3213
    %v3278 = vunpack.c.l.bf16 %v3214
    %v3279 = vunpack.c.l.bf16 %v3215
    %v3280 = vunpack.c.l.bf16 %v3216
    %v3281 = vunpack.c.l.bf16 %v3217
    %v3282 = vunpack.c.l.bf16 %v3218
    %v3283 = vunpack.c.l.bf16 %v3219
    %v3284 = vunpack.c.l.bf16 %v3220
    %v3285 = vunpack.c.l.bf16 %v3221
    %v3286 = vunpack.c.l.bf16 %v3222
    %v3287 = vunpack.c.l.bf16 %v3223
    %v3288 = vunpack.c.l.bf16 %v3224
    %v3289 = vunpack.c.l.bf16 %v3225
    %v3290 = vunpack.c.l.bf16 %v3226
    %v3291 = vunpack.c.l.bf16 %v3227
    %v3292 = vunpack.c.l.bf16 %v3228
    %v3293 = vunpack.c.l.bf16 %v3229
    %v3294 = vunpack.c.l.bf16 %v3230
    %v3295 = vunpack.c.l.bf16 %v3231
    %v3296 = vunpack.c.l.bf16 %v3232
    %v3297 = vunpack.c.l.bf16 %v3233
    %v3298 = vunpack.c.l.bf16 %v3234
    %v3299 = vunpack.c.l.bf16 %v3235
    %v3300 = vunpack.c.l.bf16 %v3236
    %v3301 = vunpack.c.l.bf16 %v3237
    %v3302 = vunpack.c.l.bf16 %v3238
    %3303 = vmatpush.msra.mxu0 %v3254
    %3304 = vmatpush.msra.mxu0 %v3253
    %3305 = vmatpush.msra.mxu0 %v3252
    %3306 = vmatpush.msra.mxu0 %v3251
    %3307 = vmatpush.msra.mxu0 %v3250
    %3308 = vmatpush.msra.mxu0 %v3249
    %3309 = vmatpush.msra.mxu0 %v3248
    %3310 = vmatpush.msra.mxu0 %v3247
    %3311 = vmatpush.msra.mxu0 %v3246
    %3312 = vmatpush.msra.mxu0 %v3245
    %3313 = vmatpush.msra.mxu0 %v3244
    %3314 = vmatpush.msra.mxu0 %v3243
    %3315 = vmatpush.msra.mxu0 %v3242
    %3316 = vmatpush.msra.mxu0 %v3241
    %3317 = vmatpush.msra.mxu0 %v3240
    %3318 = vmatpush.msra.mxu0 %v3239
    %3319 = vmatmul.f32.gmra.mxu0 %v435
    %v3320 = vpop.f32.mrf.mxu0
    %v3321 = vadd.f32 0.0, %v3320
    %3322 = vmatmul.f32.gmra.mxu0 %v437
    %v3323 = vpop.f32.mrf.mxu0
    %v3324 = vadd.f32 0.0, %v3323
    %3325 = vdwg.mxu0
    %3326 = vmatpush.msra.mxu0 %v3270
    %3327 = vmatpush.msra.mxu0 %v3269
    %3328 = vmatpush.msra.mxu0 %v3268
    %3329 = vmatpush.msra.mxu0 %v3267
    %3330 = vmatpush.msra.mxu0 %v3266
    %3331 = vmatpush.msra.mxu0 %v3265
    %3332 = vmatpush.msra.mxu0 %v3264
    %3333 = vmatpush.msra.mxu0 %v3263
    %3334 = vmatpush.msra.mxu0 %v3262
    %3335 = vmatpush.msra.mxu0 %v3261
    %3336 = vmatpush.msra.mxu0 %v3260
    %3337 = vmatpush.msra.mxu0 %v3259
    %3338 = vmatpush.msra.mxu0 %v3258
    %3339 = vmatpush.msra.mxu0 %v3257
    %3340 = vmatpush.msra.mxu0 %v3256
    %3341 = vmatpush.msra.mxu0 %v3255
    %3342 = vmatmul.f32.gmra.mxu0 %v524
    %v3343 = vpop.f32.mrf.mxu0
    %v3344 = vadd.f32 %v3321, %v3343
    %3345 = vmatmul.f32.gmra.mxu0 %v526
    %v3346 = vpop.f32.mrf.mxu0
    %v3347 = vadd.f32 %v3324, %v3346
    %3348 = vdwg.mxu0
    %3349 = vmatpush.msra.mxu0 %v3286
    %3350 = vmatpush.msra.mxu0 %v3285
    %3351 = vmatpush.msra.mxu0 %v3284
    %3352 = vmatpush.msra.mxu0 %v3283
    %3353 = vmatpush.msra.mxu0 %v3282
    %3354 = vmatpush.msra.mxu0 %v3281
    %3355 = vmatpush.msra.mxu0 %v3280
    %3356 = vmatpush.msra.mxu0 %v3279
    %3357 = vmatpush.msra.mxu0 %v3278
    %3358 = vmatpush.msra.mxu0 %v3277
    %3359 = vmatpush.msra.mxu0 %v3276
    %3360 = vmatpush.msra.mxu0 %v3275
    %3361 = vmatpush.msra.mxu0 %v3274
    %3362 = vmatpush.msra.mxu0 %v3273
    %3363 = vmatpush.msra.mxu0 %v3272
    %3364 = vmatpush.msra.mxu0 %v3271
    %3365 = vmatmul.f32.gmra.mxu0 %v613
    %v3366 = vpop.f32.mrf.mxu0
    %v3367 = vadd.f32 %v3344, %v3366
    %3368 = vmatmul.f32.gmra.mxu0 %v615
    %v3369 = vpop.f32.mrf.mxu0
    %v3370 = vadd.f32 %v3347, %v3369
    %3371 = vdwg.mxu0
    %3372 = vmatpush.msra.mxu0 %v3302
    %3373 = vmatpush.msra.mxu0 %v3301
    %3374 = vmatpush.msra.mxu0 %v3300
    %3375 = vmatpush.msra.mxu0 %v3299
    %3376 = vmatpush.msra.mxu0 %v3298
    %3377 = vmatpush.msra.mxu0 %v3297
    %3378 = vmatpush.msra.mxu0 %v3296
    %3379 = vmatpush.msra.mxu0 %v3295
    %3380 = vmatpush.msra.mxu0 %v3294
    %3381 = vmatpush.msra.mxu0 %v3293
    %3382 = vmatpush.msra.mxu0 %v3292
    %3383 = vmatpush.msra.mxu0 %v3291
    %3384 = vmatpush.msra.mxu0 %v3290
    %3385 = vmatpush.msra.mxu0 %v3289
    %3386 = vmatpush.msra.mxu0 %v3288
    %3387 = vmatpush.msra.mxu0 %v3287
    %3388 = vmatmul.f32.gmra.mxu0 %v702
    %v3389 = vpop.f32.mrf.mxu0
    %v3390 = vadd.f32 %v3367, %v3389
    %3391 = vmatmul.f32.gmra.mxu0 %v704
    %v3392 = vpop.f32.mrf.mxu0
    %v3393 = vadd.f32 %v3370, %v3392
    %3394 = vdwg.mxu0
    %v3395 = vadd.f32 %v3172, %v3390
    %v3396 = vadd.f32 %v3173, %v3393
    %s3397 = scalar_lea.vmem %s6, 3072
    %v3398 = vld [vmem:[%s3397] sm:$0xf]
    %v3399 = vld [vmem:[%s3397 + $0x4] sm:$0xf]
    %v3400 = vld [vmem:[%s3397 + $0x8] sm:$0xf]
    %v3401 = vld [vmem:[%s3397 + $0xc] sm:$0xf]
    %v3402 = vld [vmem:[%s3397 + $0x10] sm:$0xf]
    %v3403 = vld [vmem:[%s3397 + $0x14] sm:$0xf]
    %v3404 = vld [vmem:[%s3397 + $0x18] sm:$0xf]
    %v3405 = vld [vmem:[%s3397 + $0x1c] sm:$0xf]
    %v3406 = vld [vmem:[%s3397 + $0x20] sm:$0xf]
    %v3407 = vld [vmem:[%s3397 + $0x24] sm:$0xf]
    %v3408 = vld [vmem:[%s3397 + $0x28] sm:$0xf]
    %v3409 = vld [vmem:[%s3397 + $0x2c] sm:$0xf]
    %v3410 = vld [vmem:[%s3397 + $0x30] sm:$0xf]
    %v3411 = vld [vmem:[%s3397 + $0x34] sm:$0xf]
    %v3412 = vld [vmem:[%s3397 + $0x38] sm:$0xf]
    %v3413 = vld [vmem:[%s3397 + $0x3c] sm:$0xf]
    %v3414 = vld [vmem:[%s3397 + $0x40] sm:$0xf]
    %v3415 = vld [vmem:[%s3397 + $0x44] sm:$0xf]
    %v3416 = vld [vmem:[%s3397 + $0x48] sm:$0xf]
    %v3417 = vld [vmem:[%s3397 + $0x4c] sm:$0xf]
    %v3418 = vld [vmem:[%s3397 + $0x50] sm:$0xf]
    %v3419 = vld [vmem:[%s3397 + $0x54] sm:$0xf]
    %v3420 = vld [vmem:[%s3397 + $0x58] sm:$0xf]
    %v3421 = vld [vmem:[%s3397 + $0x5c] sm:$0xf]
    %v3422 = vld [vmem:[%s3397 + $0x60] sm:$0xf]
    %v3423 = vld [vmem:[%s3397 + $0x64] sm:$0xf]
    %v3424 = vld [vmem:[%s3397 + $0x68] sm:$0xf]
    %v3425 = vld [vmem:[%s3397 + $0x6c] sm:$0xf]
    %v3426 = vld [vmem:[%s3397 + $0x70] sm:$0xf]
    %v3427 = vld [vmem:[%s3397 + $0x74] sm:$0xf]
    %v3428 = vld [vmem:[%s3397 + $0x78] sm:$0xf]
    %v3429 = vld [vmem:[%s3397 + $0x7c] sm:$0xf]
    %v3430 = vld [vmem:[%s3397 + $0x80] sm:$0xf]
    %v3431 = vld [vmem:[%s3397 + $0x84] sm:$0xf]
    %v3432 = vld [vmem:[%s3397 + $0x88] sm:$0xf]
    %v3433 = vld [vmem:[%s3397 + $0x8c] sm:$0xf]
    %v3434 = vld [vmem:[%s3397 + $0x90] sm:$0xf]
    %v3435 = vld [vmem:[%s3397 + $0x94] sm:$0xf]
    %v3436 = vld [vmem:[%s3397 + $0x98] sm:$0xf]
    %v3437 = vld [vmem:[%s3397 + $0x9c] sm:$0xf]
    %v3438 = vld [vmem:[%s3397 + $0xa0] sm:$0xf]
    %v3439 = vld [vmem:[%s3397 + $0xa4] sm:$0xf]
    %v3440 = vld [vmem:[%s3397 + $0xa8] sm:$0xf]
    %v3441 = vld [vmem:[%s3397 + $0xac] sm:$0xf]
    %v3442 = vld [vmem:[%s3397 + $0xb0] sm:$0xf]
    %v3443 = vld [vmem:[%s3397 + $0xb4] sm:$0xf]
    %v3444 = vld [vmem:[%s3397 + $0xb8] sm:$0xf]
    %v3445 = vld [vmem:[%s3397 + $0xbc] sm:$0xf]
    %v3446 = vld [vmem:[%s3397 + $0xc0] sm:$0xf]
    %v3447 = vld [vmem:[%s3397 + $0xc4] sm:$0xf]
    %v3448 = vld [vmem:[%s3397 + $0xc8] sm:$0xf]
    %v3449 = vld [vmem:[%s3397 + $0xcc] sm:$0xf]
    %v3450 = vld [vmem:[%s3397 + $0xd0] sm:$0xf]
    %v3451 = vld [vmem:[%s3397 + $0xd4] sm:$0xf]
    %v3452 = vld [vmem:[%s3397 + $0xd8] sm:$0xf]
    %v3453 = vld [vmem:[%s3397 + $0xdc] sm:$0xf]
    %v3454 = vld [vmem:[%s3397 + $0xe0] sm:$0xf]
    %v3455 = vld [vmem:[%s3397 + $0xe4] sm:$0xf]
    %v3456 = vld [vmem:[%s3397 + $0xe8] sm:$0xf]
    %v3457 = vld [vmem:[%s3397 + $0xec] sm:$0xf]
    %v3458 = vld [vmem:[%s3397 + $0xf0] sm:$0xf]
    %v3459 = vld [vmem:[%s3397 + $0xf4] sm:$0xf]
    %v3460 = vld [vmem:[%s3397 + $0xf8] sm:$0xf]
    %v3461 = vld [vmem:[%s3397 + $0xfc] sm:$0xf]
    %v3462 = vunpack.c.l.bf16 %v3398
    %v3463 = vunpack.c.l.bf16 %v3399
    %v3464 = vunpack.c.l.bf16 %v3400
    %v3465 = vunpack.c.l.bf16 %v3401
    %v3466 = vunpack.c.l.bf16 %v3402
    %v3467 = vunpack.c.l.bf16 %v3403
    %v3468 = vunpack.c.l.bf16 %v3404
    %v3469 = vunpack.c.l.bf16 %v3405
    %v3470 = vunpack.c.l.bf16 %v3406
    %v3471 = vunpack.c.l.bf16 %v3407
    %v3472 = vunpack.c.l.bf16 %v3408
    %v3473 = vunpack.c.l.bf16 %v3409
    %v3474 = vunpack.c.l.bf16 %v3410
    %v3475 = vunpack.c.l.bf16 %v3411
    %v3476 = vunpack.c.l.bf16 %v3412
    %v3477 = vunpack.c.l.bf16 %v3413
    %v3478 = vunpack.c.l.bf16 %v3414
    %v3479 = vunpack.c.l.bf16 %v3415
    %v3480 = vunpack.c.l.bf16 %v3416
    %v3481 = vunpack.c.l.bf16 %v3417
    %v3482 = vunpack.c.l.bf16 %v3418
    %v3483 = vunpack.c.l.bf16 %v3419
    %v3484 = vunpack.c.l.bf16 %v3420
    %v3485 = vunpack.c.l.bf16 %v3421
    %v3486 = vunpack.c.l.bf16 %v3422
    %v3487 = vunpack.c.l.bf16 %v3423
    %v3488 = vunpack.c.l.bf16 %v3424
    %v3489 = vunpack.c.l.bf16 %v3425
    %v3490 = vunpack.c.l.bf16 %v3426
    %v3491 = vunpack.c.l.bf16 %v3427
    %v3492 = vunpack.c.l.bf16 %v3428
    %v3493 = vunpack.c.l.bf16 %v3429
    %v3494 = vunpack.c.l.bf16 %v3430
    %v3495 = vunpack.c.l.bf16 %v3431
    %v3496 = vunpack.c.l.bf16 %v3432
    %v3497 = vunpack.c.l.bf16 %v3433
    %v3498 = vunpack.c.l.bf16 %v3434
    %v3499 = vunpack.c.l.bf16 %v3435
    %v3500 = vunpack.c.l.bf16 %v3436
    %v3501 = vunpack.c.l.bf16 %v3437
    %v3502 = vunpack.c.l.bf16 %v3438
    %v3503 = vunpack.c.l.bf16 %v3439
    %v3504 = vunpack.c.l.bf16 %v3440
    %v3505 = vunpack.c.l.bf16 %v3441
    %v3506 = vunpack.c.l.bf16 %v3442
    %v3507 = vunpack.c.l.bf16 %v3443
    %v3508 = vunpack.c.l.bf16 %v3444
    %v3509 = vunpack.c.l.bf16 %v3445
    %v3510 = vunpack.c.l.bf16 %v3446
    %v3511 = vunpack.c.l.bf16 %v3447
    %v3512 = vunpack.c.l.bf16 %v3448
    %v3513 = vunpack.c.l.bf16 %v3449
    %v3514 = vunpack.c.l.bf16 %v3450
    %v3515 = vunpack.c.l.bf16 %v3451
    %v3516 = vunpack.c.l.bf16 %v3452
    %v3517 = vunpack.c.l.bf16 %v3453
    %v3518 = vunpack.c.l.bf16 %v3454
    %v3519 = vunpack.c.l.bf16 %v3455
    %v3520 = vunpack.c.l.bf16 %v3456
    %v3521 = vunpack.c.l.bf16 %v3457
    %v3522 = vunpack.c.l.bf16 %v3458
    %v3523 = vunpack.c.l.bf16 %v3459
    %v3524 = vunpack.c.l.bf16 %v3460
    %v3525 = vunpack.c.l.bf16 %v3461
    %3526 = vmatpush.msra.mxu0 %v3477
    %3527 = vmatpush.msra.mxu0 %v3476
    %3528 = vmatpush.msra.mxu0 %v3475
    %3529 = vmatpush.msra.mxu0 %v3474
    %3530 = vmatpush.msra.mxu0 %v3473
    %3531 = vmatpush.msra.mxu0 %v3472
    %3532 = vmatpush.msra.mxu0 %v3471
    %3533 = vmatpush.msra.mxu0 %v3470
    %3534 = vmatpush.msra.mxu0 %v3469
    %3535 = vmatpush.msra.mxu0 %v3468
    %3536 = vmatpush.msra.mxu0 %v3467
    %3537 = vmatpush.msra.mxu0 %v3466
    %3538 = vmatpush.msra.mxu0 %v3465
    %3539 = vmatpush.msra.mxu0 %v3464
    %3540 = vmatpush.msra.mxu0 %v3463
    %3541 = vmatpush.msra.mxu0 %v3462
    %3542 = vmatmul.f32.gmra.mxu0 %v440
    %v3543 = vpop.f32.mrf.mxu0
    %v3544 = vadd.f32 0.0, %v3543
    %3545 = vmatmul.f32.gmra.mxu0 %v442
    %v3546 = vpop.f32.mrf.mxu0
    %v3547 = vadd.f32 0.0, %v3546
    %3548 = vdwg.mxu0
    %3549 = vmatpush.msra.mxu0 %v3493
    %3550 = vmatpush.msra.mxu0 %v3492
    %3551 = vmatpush.msra.mxu0 %v3491
    %3552 = vmatpush.msra.mxu0 %v3490
    %3553 = vmatpush.msra.mxu0 %v3489
    %3554 = vmatpush.msra.mxu0 %v3488
    %3555 = vmatpush.msra.mxu0 %v3487
    %3556 = vmatpush.msra.mxu0 %v3486
    %3557 = vmatpush.msra.mxu0 %v3485
    %3558 = vmatpush.msra.mxu0 %v3484
    %3559 = vmatpush.msra.mxu0 %v3483
    %3560 = vmatpush.msra.mxu0 %v3482
    %3561 = vmatpush.msra.mxu0 %v3481
    %3562 = vmatpush.msra.mxu0 %v3480
    %3563 = vmatpush.msra.mxu0 %v3479
    %3564 = vmatpush.msra.mxu0 %v3478
    %3565 = vmatmul.f32.gmra.mxu0 %v529
    %v3566 = vpop.f32.mrf.mxu0
    %v3567 = vadd.f32 %v3544, %v3566
    %3568 = vmatmul.f32.gmra.mxu0 %v531
    %v3569 = vpop.f32.mrf.mxu0
    %v3570 = vadd.f32 %v3547, %v3569
    %3571 = vdwg.mxu0
    %3572 = vmatpush.msra.mxu0 %v3509
    %3573 = vmatpush.msra.mxu0 %v3508
    %3574 = vmatpush.msra.mxu0 %v3507
    %3575 = vmatpush.msra.mxu0 %v3506
    %3576 = vmatpush.msra.mxu0 %v3505
    %3577 = vmatpush.msra.mxu0 %v3504
    %3578 = vmatpush.msra.mxu0 %v3503
    %3579 = vmatpush.msra.mxu0 %v3502
    %3580 = vmatpush.msra.mxu0 %v3501
    %3581 = vmatpush.msra.mxu0 %v3500
    %3582 = vmatpush.msra.mxu0 %v3499
    %3583 = vmatpush.msra.mxu0 %v3498
    %3584 = vmatpush.msra.mxu0 %v3497
    %3585 = vmatpush.msra.mxu0 %v3496
    %3586 = vmatpush.msra.mxu0 %v3495
    %3587 = vmatpush.msra.mxu0 %v3494
    %3588 = vmatmul.f32.gmra.mxu0 %v618
    %v3589 = vpop.f32.mrf.mxu0
    %v3590 = vadd.f32 %v3567, %v3589
    %3591 = vmatmul.f32.gmra.mxu0 %v620
    %v3592 = vpop.f32.mrf.mxu0
    %v3593 = vadd.f32 %v3570, %v3592
    %3594 = vdwg.mxu0
    %3595 = vmatpush.msra.mxu0 %v3525
    %3596 = vmatpush.msra.mxu0 %v3524
    %3597 = vmatpush.msra.mxu0 %v3523
    %3598 = vmatpush.msra.mxu0 %v3522
    %3599 = vmatpush.msra.mxu0 %v3521
    %3600 = vmatpush.msra.mxu0 %v3520
    %3601 = vmatpush.msra.mxu0 %v3519
    %3602 = vmatpush.msra.mxu0 %v3518
    %3603 = vmatpush.msra.mxu0 %v3517
    %3604 = vmatpush.msra.mxu0 %v3516
    %3605 = vmatpush.msra.mxu0 %v3515
    %3606 = vmatpush.msra.mxu0 %v3514
    %3607 = vmatpush.msra.mxu0 %v3513
    %3608 = vmatpush.msra.mxu0 %v3512
    %3609 = vmatpush.msra.mxu0 %v3511
    %3610 = vmatpush.msra.mxu0 %v3510
    %3611 = vmatmul.f32.gmra.mxu0 %v707
    %v3612 = vpop.f32.mrf.mxu0
    %v3613 = vadd.f32 %v3590, %v3612
    %3614 = vmatmul.f32.gmra.mxu0 %v709
    %v3615 = vpop.f32.mrf.mxu0
    %v3616 = vadd.f32 %v3593, %v3615
    %3617 = vdwg.mxu0
    %v3618 = vadd.f32 %v3395, %v3613
    %v3619 = vadd.f32 %v3396, %v3616
    %s3620 = scalar_lea.vmem %s6, 3328
    %v3621 = vld [vmem:[%s3620] sm:$0xf]
    %v3622 = vld [vmem:[%s3620 + $0x4] sm:$0xf]
    %v3623 = vld [vmem:[%s3620 + $0x8] sm:$0xf]
    %v3624 = vld [vmem:[%s3620 + $0xc] sm:$0xf]
    %v3625 = vld [vmem:[%s3620 + $0x10] sm:$0xf]
    %v3626 = vld [vmem:[%s3620 + $0x14] sm:$0xf]
    %v3627 = vld [vmem:[%s3620 + $0x18] sm:$0xf]
    %v3628 = vld [vmem:[%s3620 + $0x1c] sm:$0xf]
    %v3629 = vld [vmem:[%s3620 + $0x20] sm:$0xf]
    %v3630 = vld [vmem:[%s3620 + $0x24] sm:$0xf]
    %v3631 = vld [vmem:[%s3620 + $0x28] sm:$0xf]
    %v3632 = vld [vmem:[%s3620 + $0x2c] sm:$0xf]
    %v3633 = vld [vmem:[%s3620 + $0x30] sm:$0xf]
    %v3634 = vld [vmem:[%s3620 + $0x34] sm:$0xf]
    %v3635 = vld [vmem:[%s3620 + $0x38] sm:$0xf]
    %v3636 = vld [vmem:[%s3620 + $0x3c] sm:$0xf]
    %v3637 = vld [vmem:[%s3620 + $0x40] sm:$0xf]
    %v3638 = vld [vmem:[%s3620 + $0x44] sm:$0xf]
    %v3639 = vld [vmem:[%s3620 + $0x48] sm:$0xf]
    %v3640 = vld [vmem:[%s3620 + $0x4c] sm:$0xf]
    %v3641 = vld [vmem:[%s3620 + $0x50] sm:$0xf]
    %v3642 = vld [vmem:[%s3620 + $0x54] sm:$0xf]
    %v3643 = vld [vmem:[%s3620 + $0x58] sm:$0xf]
    %v3644 = vld [vmem:[%s3620 + $0x5c] sm:$0xf]
    %v3645 = vld [vmem:[%s3620 + $0x60] sm:$0xf]
    %v3646 = vld [vmem:[%s3620 + $0x64] sm:$0xf]
    %v3647 = vld [vmem:[%s3620 + $0x68] sm:$0xf]
    %v3648 = vld [vmem:[%s3620 + $0x6c] sm:$0xf]
    %v3649 = vld [vmem:[%s3620 + $0x70] sm:$0xf]
    %v3650 = vld [vmem:[%s3620 + $0x74] sm:$0xf]
    %v3651 = vld [vmem:[%s3620 + $0x78] sm:$0xf]
    %v3652 = vld [vmem:[%s3620 + $0x7c] sm:$0xf]
    %v3653 = vld [vmem:[%s3620 + $0x80] sm:$0xf]
    %v3654 = vld [vmem:[%s3620 + $0x84] sm:$0xf]
    %v3655 = vld [vmem:[%s3620 + $0x88] sm:$0xf]
    %v3656 = vld [vmem:[%s3620 + $0x8c] sm:$0xf]
    %v3657 = vld [vmem:[%s3620 + $0x90] sm:$0xf]
    %v3658 = vld [vmem:[%s3620 + $0x94] sm:$0xf]
    %v3659 = vld [vmem:[%s3620 + $0x98] sm:$0xf]
    %v3660 = vld [vmem:[%s3620 + $0x9c] sm:$0xf]
    %v3661 = vld [vmem:[%s3620 + $0xa0] sm:$0xf]
    %v3662 = vld [vmem:[%s3620 + $0xa4] sm:$0xf]
    %v3663 = vld [vmem:[%s3620 + $0xa8] sm:$0xf]
    %v3664 = vld [vmem:[%s3620 + $0xac] sm:$0xf]
    %v3665 = vld [vmem:[%s3620 + $0xb0] sm:$0xf]
    %v3666 = vld [vmem:[%s3620 + $0xb4] sm:$0xf]
    %v3667 = vld [vmem:[%s3620 + $0xb8] sm:$0xf]
    %v3668 = vld [vmem:[%s3620 + $0xbc] sm:$0xf]
    %v3669 = vld [vmem:[%s3620 + $0xc0] sm:$0xf]
    %v3670 = vld [vmem:[%s3620 + $0xc4] sm:$0xf]
    %v3671 = vld [vmem:[%s3620 + $0xc8] sm:$0xf]
    %v3672 = vld [vmem:[%s3620 + $0xcc] sm:$0xf]
    %v3673 = vld [vmem:[%s3620 + $0xd0] sm:$0xf]
    %v3674 = vld [vmem:[%s3620 + $0xd4] sm:$0xf]
    %v3675 = vld [vmem:[%s3620 + $0xd8] sm:$0xf]
    %v3676 = vld [vmem:[%s3620 + $0xdc] sm:$0xf]
    %v3677 = vld [vmem:[%s3620 + $0xe0] sm:$0xf]
    %v3678 = vld [vmem:[%s3620 + $0xe4] sm:$0xf]
    %v3679 = vld [vmem:[%s3620 + $0xe8] sm:$0xf]
    %v3680 = vld [vmem:[%s3620 + $0xec] sm:$0xf]
    %v3681 = vld [vmem:[%s3620 + $0xf0] sm:$0xf]
    %v3682 = vld [vmem:[%s3620 + $0xf4] sm:$0xf]
    %v3683 = vld [vmem:[%s3620 + $0xf8] sm:$0xf]
    %v3684 = vld [vmem:[%s3620 + $0xfc] sm:$0xf]
    %v3685 = vunpack.c.l.bf16 %v3621
    %v3686 = vunpack.c.l.bf16 %v3622
    %v3687 = vunpack.c.l.bf16 %v3623
    %v3688 = vunpack.c.l.bf16 %v3624
    %v3689 = vunpack.c.l.bf16 %v3625
    %v3690 = vunpack.c.l.bf16 %v3626
    %v3691 = vunpack.c.l.bf16 %v3627
    %v3692 = vunpack.c.l.bf16 %v3628
    %v3693 = vunpack.c.l.bf16 %v3629
    %v3694 = vunpack.c.l.bf16 %v3630
    %v3695 = vunpack.c.l.bf16 %v3631
    %v3696 = vunpack.c.l.bf16 %v3632
    %v3697 = vunpack.c.l.bf16 %v3633
    %v3698 = vunpack.c.l.bf16 %v3634
    %v3699 = vunpack.c.l.bf16 %v3635
    %v3700 = vunpack.c.l.bf16 %v3636
    %v3701 = vunpack.c.l.bf16 %v3637
    %v3702 = vunpack.c.l.bf16 %v3638
    %v3703 = vunpack.c.l.bf16 %v3639
    %v3704 = vunpack.c.l.bf16 %v3640
    %v3705 = vunpack.c.l.bf16 %v3641
    %v3706 = vunpack.c.l.bf16 %v3642
    %v3707 = vunpack.c.l.bf16 %v3643
    %v3708 = vunpack.c.l.bf16 %v3644
    %v3709 = vunpack.c.l.bf16 %v3645
    %v3710 = vunpack.c.l.bf16 %v3646
    %v3711 = vunpack.c.l.bf16 %v3647
    %v3712 = vunpack.c.l.bf16 %v3648
    %v3713 = vunpack.c.l.bf16 %v3649
    %v3714 = vunpack.c.l.bf16 %v3650
    %v3715 = vunpack.c.l.bf16 %v3651
    %v3716 = vunpack.c.l.bf16 %v3652
    %v3717 = vunpack.c.l.bf16 %v3653
    %v3718 = vunpack.c.l.bf16 %v3654
    %v3719 = vunpack.c.l.bf16 %v3655
    %v3720 = vunpack.c.l.bf16 %v3656
    %v3721 = vunpack.c.l.bf16 %v3657
    %v3722 = vunpack.c.l.bf16 %v3658
    %v3723 = vunpack.c.l.bf16 %v3659
    %v3724 = vunpack.c.l.bf16 %v3660
    %v3725 = vunpack.c.l.bf16 %v3661
    %v3726 = vunpack.c.l.bf16 %v3662
    %v3727 = vunpack.c.l.bf16 %v3663
    %v3728 = vunpack.c.l.bf16 %v3664
    %v3729 = vunpack.c.l.bf16 %v3665
    %v3730 = vunpack.c.l.bf16 %v3666
    %v3731 = vunpack.c.l.bf16 %v3667
    %v3732 = vunpack.c.l.bf16 %v3668
    %v3733 = vunpack.c.l.bf16 %v3669
    %v3734 = vunpack.c.l.bf16 %v3670
    %v3735 = vunpack.c.l.bf16 %v3671
    %v3736 = vunpack.c.l.bf16 %v3672
    %v3737 = vunpack.c.l.bf16 %v3673
    %v3738 = vunpack.c.l.bf16 %v3674
    %v3739 = vunpack.c.l.bf16 %v3675
    %v3740 = vunpack.c.l.bf16 %v3676
    %v3741 = vunpack.c.l.bf16 %v3677
    %v3742 = vunpack.c.l.bf16 %v3678
    %v3743 = vunpack.c.l.bf16 %v3679
    %v3744 = vunpack.c.l.bf16 %v3680
    %v3745 = vunpack.c.l.bf16 %v3681
    %v3746 = vunpack.c.l.bf16 %v3682
    %v3747 = vunpack.c.l.bf16 %v3683
    %v3748 = vunpack.c.l.bf16 %v3684
    %3749 = vmatpush.msra.mxu0 %v3700
    %3750 = vmatpush.msra.mxu0 %v3699
    %3751 = vmatpush.msra.mxu0 %v3698
    %3752 = vmatpush.msra.mxu0 %v3697
    %3753 = vmatpush.msra.mxu0 %v3696
    %3754 = vmatpush.msra.mxu0 %v3695
    %3755 = vmatpush.msra.mxu0 %v3694
    %3756 = vmatpush.msra.mxu0 %v3693
    %3757 = vmatpush.msra.mxu0 %v3692
    %3758 = vmatpush.msra.mxu0 %v3691
    %3759 = vmatpush.msra.mxu0 %v3690
    %3760 = vmatpush.msra.mxu0 %v3689
    %3761 = vmatpush.msra.mxu0 %v3688
    %3762 = vmatpush.msra.mxu0 %v3687
    %3763 = vmatpush.msra.mxu0 %v3686
    %3764 = vmatpush.msra.mxu0 %v3685
    %3765 = vmatmul.f32.gmra.mxu0 %v445
    %v3766 = vpop.f32.mrf.mxu0
    %v3767 = vadd.f32 0.0, %v3766
    %3768 = vmatmul.f32.gmra.mxu0 %v447
    %v3769 = vpop.f32.mrf.mxu0
    %v3770 = vadd.f32 0.0, %v3769
    %3771 = vdwg.mxu0
    %3772 = vmatpush.msra.mxu0 %v3716
    %3773 = vmatpush.msra.mxu0 %v3715
    %3774 = vmatpush.msra.mxu0 %v3714
    %3775 = vmatpush.msra.mxu0 %v3713
    %3776 = vmatpush.msra.mxu0 %v3712
    %3777 = vmatpush.msra.mxu0 %v3711
    %3778 = vmatpush.msra.mxu0 %v3710
    %3779 = vmatpush.msra.mxu0 %v3709
    %3780 = vmatpush.msra.mxu0 %v3708
    %3781 = vmatpush.msra.mxu0 %v3707
    %3782 = vmatpush.msra.mxu0 %v3706
    %3783 = vmatpush.msra.mxu0 %v3705
    %3784 = vmatpush.msra.mxu0 %v3704
    %3785 = vmatpush.msra.mxu0 %v3703
    %3786 = vmatpush.msra.mxu0 %v3702
    %3787 = vmatpush.msra.mxu0 %v3701
    %3788 = vmatmul.f32.gmra.mxu0 %v534
    %v3789 = vpop.f32.mrf.mxu0
    %v3790 = vadd.f32 %v3767, %v3789
    %3791 = vmatmul.f32.gmra.mxu0 %v536
    %v3792 = vpop.f32.mrf.mxu0
    %v3793 = vadd.f32 %v3770, %v3792
    %3794 = vdwg.mxu0
    %3795 = vmatpush.msra.mxu0 %v3732
    %3796 = vmatpush.msra.mxu0 %v3731
    %3797 = vmatpush.msra.mxu0 %v3730
    %3798 = vmatpush.msra.mxu0 %v3729
    %3799 = vmatpush.msra.mxu0 %v3728
    %3800 = vmatpush.msra.mxu0 %v3727
    %3801 = vmatpush.msra.mxu0 %v3726
    %3802 = vmatpush.msra.mxu0 %v3725
    %3803 = vmatpush.msra.mxu0 %v3724
    %3804 = vmatpush.msra.mxu0 %v3723
    %3805 = vmatpush.msra.mxu0 %v3722
    %3806 = vmatpush.msra.mxu0 %v3721
    %3807 = vmatpush.msra.mxu0 %v3720
    %3808 = vmatpush.msra.mxu0 %v3719
    %3809 = vmatpush.msra.mxu0 %v3718
    %3810 = vmatpush.msra.mxu0 %v3717
    %3811 = vmatmul.f32.gmra.mxu0 %v623
    %v3812 = vpop.f32.mrf.mxu0
    %v3813 = vadd.f32 %v3790, %v3812
    %3814 = vmatmul.f32.gmra.mxu0 %v625
    %v3815 = vpop.f32.mrf.mxu0
    %v3816 = vadd.f32 %v3793, %v3815
    %3817 = vdwg.mxu0
    %3818 = vmatpush.msra.mxu0 %v3748
    %3819 = vmatpush.msra.mxu0 %v3747
    %3820 = vmatpush.msra.mxu0 %v3746
    %3821 = vmatpush.msra.mxu0 %v3745
    %3822 = vmatpush.msra.mxu0 %v3744
    %3823 = vmatpush.msra.mxu0 %v3743
    %3824 = vmatpush.msra.mxu0 %v3742
    %3825 = vmatpush.msra.mxu0 %v3741
    %3826 = vmatpush.msra.mxu0 %v3740
    %3827 = vmatpush.msra.mxu0 %v3739
    %3828 = vmatpush.msra.mxu0 %v3738
    %3829 = vmatpush.msra.mxu0 %v3737
    %3830 = vmatpush.msra.mxu0 %v3736
    %3831 = vmatpush.msra.mxu0 %v3735
    %3832 = vmatpush.msra.mxu0 %v3734
    %3833 = vmatpush.msra.mxu0 %v3733
    %3834 = vmatmul.f32.gmra.mxu0 %v712
    %v3835 = vpop.f32.mrf.mxu0
    %v3836 = vadd.f32 %v3813, %v3835
    %3837 = vmatmul.f32.gmra.mxu0 %v714
    %v3838 = vpop.f32.mrf.mxu0
    %v3839 = vadd.f32 %v3816, %v3838
    %3840 = vdwg.mxu0
    %v3841 = vadd.f32 %v3618, %v3836
    %v3842 = vadd.f32 %v3619, %v3839
    %s3843 = scalar_lea.vmem %s6, 3584
    %v3844 = vld [vmem:[%s3843] sm:$0xf]
    %v3845 = vld [vmem:[%s3843 + $0x4] sm:$0xf]
    %v3846 = vld [vmem:[%s3843 + $0x8] sm:$0xf]
    %v3847 = vld [vmem:[%s3843 + $0xc] sm:$0xf]
    %v3848 = vld [vmem:[%s3843 + $0x10] sm:$0xf]
    %v3849 = vld [vmem:[%s3843 + $0x14] sm:$0xf]
    %v3850 = vld [vmem:[%s3843 + $0x18] sm:$0xf]
    %v3851 = vld [vmem:[%s3843 + $0x1c] sm:$0xf]
    %v3852 = vld [vmem:[%s3843 + $0x20] sm:$0xf]
    %v3853 = vld [vmem:[%s3843 + $0x24] sm:$0xf]
    %v3854 = vld [vmem:[%s3843 + $0x28] sm:$0xf]
    %v3855 = vld [vmem:[%s3843 + $0x2c] sm:$0xf]
    %v3856 = vld [vmem:[%s3843 + $0x30] sm:$0xf]
    %v3857 = vld [vmem:[%s3843 + $0x34] sm:$0xf]
    %v3858 = vld [vmem:[%s3843 + $0x38] sm:$0xf]
    %v3859 = vld [vmem:[%s3843 + $0x3c] sm:$0xf]
    %v3860 = vld [vmem:[%s3843 + $0x40] sm:$0xf]
    %v3861 = vld [vmem:[%s3843 + $0x44] sm:$0xf]
    %v3862 = vld [vmem:[%s3843 + $0x48] sm:$0xf]
    %v3863 = vld [vmem:[%s3843 + $0x4c] sm:$0xf]
    %v3864 = vld [vmem:[%s3843 + $0x50] sm:$0xf]
    %v3865 = vld [vmem:[%s3843 + $0x54] sm:$0xf]
    %v3866 = vld [vmem:[%s3843 + $0x58] sm:$0xf]
    %v3867 = vld [vmem:[%s3843 + $0x5c] sm:$0xf]
    %v3868 = vld [vmem:[%s3843 + $0x60] sm:$0xf]
    %v3869 = vld [vmem:[%s3843 + $0x64] sm:$0xf]
    %v3870 = vld [vmem:[%s3843 + $0x68] sm:$0xf]
    %v3871 = vld [vmem:[%s3843 + $0x6c] sm:$0xf]
    %v3872 = vld [vmem:[%s3843 + $0x70] sm:$0xf]
    %v3873 = vld [vmem:[%s3843 + $0x74] sm:$0xf]
    %v3874 = vld [vmem:[%s3843 + $0x78] sm:$0xf]
    %v3875 = vld [vmem:[%s3843 + $0x7c] sm:$0xf]
    %v3876 = vld [vmem:[%s3843 + $0x80] sm:$0xf]
    %v3877 = vld [vmem:[%s3843 + $0x84] sm:$0xf]
    %v3878 = vld [vmem:[%s3843 + $0x88] sm:$0xf]
    %v3879 = vld [vmem:[%s3843 + $0x8c] sm:$0xf]
    %v3880 = vld [vmem:[%s3843 + $0x90] sm:$0xf]
    %v3881 = vld [vmem:[%s3843 + $0x94] sm:$0xf]
    %v3882 = vld [vmem:[%s3843 + $0x98] sm:$0xf]
    %v3883 = vld [vmem:[%s3843 + $0x9c] sm:$0xf]
    %v3884 = vld [vmem:[%s3843 + $0xa0] sm:$0xf]
    %v3885 = vld [vmem:[%s3843 + $0xa4] sm:$0xf]
    %v3886 = vld [vmem:[%s3843 + $0xa8] sm:$0xf]
    %v3887 = vld [vmem:[%s3843 + $0xac] sm:$0xf]
    %v3888 = vld [vmem:[%s3843 + $0xb0] sm:$0xf]
    %v3889 = vld [vmem:[%s3843 + $0xb4] sm:$0xf]
    %v3890 = vld [vmem:[%s3843 + $0xb8] sm:$0xf]
    %v3891 = vld [vmem:[%s3843 + $0xbc] sm:$0xf]
    %v3892 = vld [vmem:[%s3843 + $0xc0] sm:$0xf]
    %v3893 = vld [vmem:[%s3843 + $0xc4] sm:$0xf]
    %v3894 = vld [vmem:[%s3843 + $0xc8] sm:$0xf]
    %v3895 = vld [vmem:[%s3843 + $0xcc] sm:$0xf]
    %v3896 = vld [vmem:[%s3843 + $0xd0] sm:$0xf]
    %v3897 = vld [vmem:[%s3843 + $0xd4] sm:$0xf]
    %v3898 = vld [vmem:[%s3843 + $0xd8] sm:$0xf]
    %v3899 = vld [vmem:[%s3843 + $0xdc] sm:$0xf]
    %v3900 = vld [vmem:[%s3843 + $0xe0] sm:$0xf]
    %v3901 = vld [vmem:[%s3843 + $0xe4] sm:$0xf]
    %v3902 = vld [vmem:[%s3843 + $0xe8] sm:$0xf]
    %v3903 = vld [vmem:[%s3843 + $0xec] sm:$0xf]
    %v3904 = vld [vmem:[%s3843 + $0xf0] sm:$0xf]
    %v3905 = vld [vmem:[%s3843 + $0xf4] sm:$0xf]
    %v3906 = vld [vmem:[%s3843 + $0xf8] sm:$0xf]
    %v3907 = vld [vmem:[%s3843 + $0xfc] sm:$0xf]
    %v3908 = vunpack.c.l.bf16 %v3844
    %v3909 = vunpack.c.l.bf16 %v3845
    %v3910 = vunpack.c.l.bf16 %v3846
    %v3911 = vunpack.c.l.bf16 %v3847
    %v3912 = vunpack.c.l.bf16 %v3848
    %v3913 = vunpack.c.l.bf16 %v3849
    %v3914 = vunpack.c.l.bf16 %v3850
    %v3915 = vunpack.c.l.bf16 %v3851
    %v3916 = vunpack.c.l.bf16 %v3852
    %v3917 = vunpack.c.l.bf16 %v3853
    %v3918 = vunpack.c.l.bf16 %v3854
    %v3919 = vunpack.c.l.bf16 %v3855
    %v3920 = vunpack.c.l.bf16 %v3856
    %v3921 = vunpack.c.l.bf16 %v3857
    %v3922 = vunpack.c.l.bf16 %v3858
    %v3923 = vunpack.c.l.bf16 %v3859
    %v3924 = vunpack.c.l.bf16 %v3860
    %v3925 = vunpack.c.l.bf16 %v3861
    %v3926 = vunpack.c.l.bf16 %v3862
    %v3927 = vunpack.c.l.bf16 %v3863
    %v3928 = vunpack.c.l.bf16 %v3864
    %v3929 = vunpack.c.l.bf16 %v3865
    %v3930 = vunpack.c.l.bf16 %v3866
    %v3931 = vunpack.c.l.bf16 %v3867
    %v3932 = vunpack.c.l.bf16 %v3868
    %v3933 = vunpack.c.l.bf16 %v3869
    %v3934 = vunpack.c.l.bf16 %v3870
    %v3935 = vunpack.c.l.bf16 %v3871
    %v3936 = vunpack.c.l.bf16 %v3872
    %v3937 = vunpack.c.l.bf16 %v3873
    %v3938 = vunpack.c.l.bf16 %v3874
    %v3939 = vunpack.c.l.bf16 %v3875
    %v3940 = vunpack.c.l.bf16 %v3876
    %v3941 = vunpack.c.l.bf16 %v3877
    %v3942 = vunpack.c.l.bf16 %v3878
    %v3943 = vunpack.c.l.bf16 %v3879
    %v3944 = vunpack.c.l.bf16 %v3880
    %v3945 = vunpack.c.l.bf16 %v3881
    %v3946 = vunpack.c.l.bf16 %v3882
    %v3947 = vunpack.c.l.bf16 %v3883
    %v3948 = vunpack.c.l.bf16 %v3884
    %v3949 = vunpack.c.l.bf16 %v3885
    %v3950 = vunpack.c.l.bf16 %v3886
    %v3951 = vunpack.c.l.bf16 %v3887
    %v3952 = vunpack.c.l.bf16 %v3888
    %v3953 = vunpack.c.l.bf16 %v3889
    %v3954 = vunpack.c.l.bf16 %v3890
    %v3955 = vunpack.c.l.bf16 %v3891
    %v3956 = vunpack.c.l.bf16 %v3892
    %v3957 = vunpack.c.l.bf16 %v3893
    %v3958 = vunpack.c.l.bf16 %v3894
    %v3959 = vunpack.c.l.bf16 %v3895
    %v3960 = vunpack.c.l.bf16 %v3896
    %v3961 = vunpack.c.l.bf16 %v3897
    %v3962 = vunpack.c.l.bf16 %v3898
    %v3963 = vunpack.c.l.bf16 %v3899
    %v3964 = vunpack.c.l.bf16 %v3900
    %v3965 = vunpack.c.l.bf16 %v3901
    %v3966 = vunpack.c.l.bf16 %v3902
    %v3967 = vunpack.c.l.bf16 %v3903
    %v3968 = vunpack.c.l.bf16 %v3904
    %v3969 = vunpack.c.l.bf16 %v3905
    %v3970 = vunpack.c.l.bf16 %v3906
    %v3971 = vunpack.c.l.bf16 %v3907
    %3972 = vmatpush.msra.mxu0 %v3923
    %3973 = vmatpush.msra.mxu0 %v3922
    %3974 = vmatpush.msra.mxu0 %v3921
    %3975 = vmatpush.msra.mxu0 %v3920
    %3976 = vmatpush.msra.mxu0 %v3919
    %3977 = vmatpush.msra.mxu0 %v3918
    %3978 = vmatpush.msra.mxu0 %v3917
    %3979 = vmatpush.msra.mxu0 %v3916
    %3980 = vmatpush.msra.mxu0 %v3915
    %3981 = vmatpush.msra.mxu0 %v3914
    %3982 = vmatpush.msra.mxu0 %v3913
    %3983 = vmatpush.msra.mxu0 %v3912
    %3984 = vmatpush.msra.mxu0 %v3911
    %3985 = vmatpush.msra.mxu0 %v3910
    %3986 = vmatpush.msra.mxu0 %v3909
    %3987 = vmatpush.msra.mxu0 %v3908
    %3988 = vmatmul.f32.gmra.mxu0 %v450
    %v3989 = vpop.f32.mrf.mxu0
    %v3990 = vadd.f32 0.0, %v3989
    %3991 = vmatmul.f32.gmra.mxu0 %v452
    %v3992 = vpop.f32.mrf.mxu0
    %v3993 = vadd.f32 0.0, %v3992
    %3994 = vdwg.mxu0
    %3995 = vmatpush.msra.mxu0 %v3939
    %3996 = vmatpush.msra.mxu0 %v3938
    %3997 = vmatpush.msra.mxu0 %v3937
    %3998 = vmatpush.msra.mxu0 %v3936
    %3999 = vmatpush.msra.mxu0 %v3935
    %4000 = vmatpush.msra.mxu0 %v3934
    %4001 = vmatpush.msra.mxu0 %v3933
    %4002 = vmatpush.msra.mxu0 %v3932
    %4003 = vmatpush.msra.mxu0 %v3931
    %4004 = vmatpush.msra.mxu0 %v3930
    %4005 = vmatpush.msra.mxu0 %v3929
    %4006 = vmatpush.msra.mxu0 %v3928
    %4007 = vmatpush.msra.mxu0 %v3927
    %4008 = vmatpush.msra.mxu0 %v3926
    %4009 = vmatpush.msra.mxu0 %v3925
    %4010 = vmatpush.msra.mxu0 %v3924
    %4011 = vmatmul.f32.gmra.mxu0 %v539
    %v4012 = vpop.f32.mrf.mxu0
    %v4013 = vadd.f32 %v3990, %v4012
    %4014 = vmatmul.f32.gmra.mxu0 %v541
    %v4015 = vpop.f32.mrf.mxu0
    %v4016 = vadd.f32 %v3993, %v4015
    %4017 = vdwg.mxu0
    %4018 = vmatpush.msra.mxu0 %v3955
    %4019 = vmatpush.msra.mxu0 %v3954
    %4020 = vmatpush.msra.mxu0 %v3953
    %4021 = vmatpush.msra.mxu0 %v3952
    %4022 = vmatpush.msra.mxu0 %v3951
    %4023 = vmatpush.msra.mxu0 %v3950
    %4024 = vmatpush.msra.mxu0 %v3949
    %4025 = vmatpush.msra.mxu0 %v3948
    %4026 = vmatpush.msra.mxu0 %v3947
    %4027 = vmatpush.msra.mxu0 %v3946
    %4028 = vmatpush.msra.mxu0 %v3945
    %4029 = vmatpush.msra.mxu0 %v3944
    %4030 = vmatpush.msra.mxu0 %v3943
    %4031 = vmatpush.msra.mxu0 %v3942
    %4032 = vmatpush.msra.mxu0 %v3941
    %4033 = vmatpush.msra.mxu0 %v3940
    %4034 = vmatmul.f32.gmra.mxu0 %v628
    %v4035 = vpop.f32.mrf.mxu0
    %v4036 = vadd.f32 %v4013, %v4035
    %4037 = vmatmul.f32.gmra.mxu0 %v630
    %v4038 = vpop.f32.mrf.mxu0
    %v4039 = vadd.f32 %v4016, %v4038
    %4040 = vdwg.mxu0
    %4041 = vmatpush.msra.mxu0 %v3971
    %4042 = vmatpush.msra.mxu0 %v3970
    %4043 = vmatpush.msra.mxu0 %v3969
    %4044 = vmatpush.msra.mxu0 %v3968
    %4045 = vmatpush.msra.mxu0 %v3967
    %4046 = vmatpush.msra.mxu0 %v3966
    %4047 = vmatpush.msra.mxu0 %v3965
    %4048 = vmatpush.msra.mxu0 %v3964
    %4049 = vmatpush.msra.mxu0 %v3963
    %4050 = vmatpush.msra.mxu0 %v3962
    %4051 = vmatpush.msra.mxu0 %v3961
    %4052 = vmatpush.msra.mxu0 %v3960
    %4053 = vmatpush.msra.mxu0 %v3959
    %4054 = vmatpush.msra.mxu0 %v3958
    %4055 = vmatpush.msra.mxu0 %v3957
    %4056 = vmatpush.msra.mxu0 %v3956
    %4057 = vmatmul.f32.gmra.mxu0 %v717
    %v4058 = vpop.f32.mrf.mxu0
    %v4059 = vadd.f32 %v4036, %v4058
    %4060 = vmatmul.f32.gmra.mxu0 %v719
    %v4061 = vpop.f32.mrf.mxu0
    %v4062 = vadd.f32 %v4039, %v4061
    %4063 = vdwg.mxu0
    %v4064 = vadd.f32 %v3841, %v4059
    %v4065 = vadd.f32 %v3842, %v4062
    %s4066 = scalar_lea.vmem %s6, 3840
    %v4067 = vld [vmem:[%s4066] sm:$0xf]
    %v4068 = vld [vmem:[%s4066 + $0x4] sm:$0xf]
    %v4069 = vld [vmem:[%s4066 + $0x8] sm:$0xf]
    %v4070 = vld [vmem:[%s4066 + $0xc] sm:$0xf]
    %v4071 = vld [vmem:[%s4066 + $0x10] sm:$0xf]
    %v4072 = vld [vmem:[%s4066 + $0x14] sm:$0xf]
    %v4073 = vld [vmem:[%s4066 + $0x18] sm:$0xf]
    %v4074 = vld [vmem:[%s4066 + $0x1c] sm:$0xf]
    %v4075 = vld [vmem:[%s4066 + $0x20] sm:$0xf]
    %v4076 = vld [vmem:[%s4066 + $0x24] sm:$0xf]
    %v4077 = vld [vmem:[%s4066 + $0x28] sm:$0xf]
    %v4078 = vld [vmem:[%s4066 + $0x2c] sm:$0xf]
    %v4079 = vld [vmem:[%s4066 + $0x30] sm:$0xf]
    %v4080 = vld [vmem:[%s4066 + $0x34] sm:$0xf]
    %v4081 = vld [vmem:[%s4066 + $0x38] sm:$0xf]
    %v4082 = vld [vmem:[%s4066 + $0x3c] sm:$0xf]
    %v4083 = vld [vmem:[%s4066 + $0x40] sm:$0xf]
    %v4084 = vld [vmem:[%s4066 + $0x44] sm:$0xf]
    %v4085 = vld [vmem:[%s4066 + $0x48] sm:$0xf]
    %v4086 = vld [vmem:[%s4066 + $0x4c] sm:$0xf]
    %v4087 = vld [vmem:[%s4066 + $0x50] sm:$0xf]
    %v4088 = vld [vmem:[%s4066 + $0x54] sm:$0xf]
    %v4089 = vld [vmem:[%s4066 + $0x58] sm:$0xf]
    %v4090 = vld [vmem:[%s4066 + $0x5c] sm:$0xf]
    %v4091 = vld [vmem:[%s4066 + $0x60] sm:$0xf]
    %v4092 = vld [vmem:[%s4066 + $0x64] sm:$0xf]
    %v4093 = vld [vmem:[%s4066 + $0x68] sm:$0xf]
    %v4094 = vld [vmem:[%s4066 + $0x6c] sm:$0xf]
    %v4095 = vld [vmem:[%s4066 + $0x70] sm:$0xf]
    %v4096 = vld [vmem:[%s4066 + $0x74] sm:$0xf]
    %v4097 = vld [vmem:[%s4066 + $0x78] sm:$0xf]
    %v4098 = vld [vmem:[%s4066 + $0x7c] sm:$0xf]
    %v4099 = vld [vmem:[%s4066 + $0x80] sm:$0xf]
    %v4100 = vld [vmem:[%s4066 + $0x84] sm:$0xf]
    %v4101 = vld [vmem:[%s4066 + $0x88] sm:$0xf]
    %v4102 = vld [vmem:[%s4066 + $0x8c] sm:$0xf]
    %v4103 = vld [vmem:[%s4066 + $0x90] sm:$0xf]
    %v4104 = vld [vmem:[%s4066 + $0x94] sm:$0xf]
    %v4105 = vld [vmem:[%s4066 + $0x98] sm:$0xf]
    %v4106 = vld [vmem:[%s4066 + $0x9c] sm:$0xf]
    %v4107 = vld [vmem:[%s4066 + $0xa0] sm:$0xf]
    %v4108 = vld [vmem:[%s4066 + $0xa4] sm:$0xf]
    %v4109 = vld [vmem:[%s4066 + $0xa8] sm:$0xf]
    %v4110 = vld [vmem:[%s4066 + $0xac] sm:$0xf]
    %v4111 = vld [vmem:[%s4066 + $0xb0] sm:$0xf]
    %v4112 = vld [vmem:[%s4066 + $0xb4] sm:$0xf]
    %v4113 = vld [vmem:[%s4066 + $0xb8] sm:$0xf]
    %v4114 = vld [vmem:[%s4066 + $0xbc] sm:$0xf]
    %v4115 = vld [vmem:[%s4066 + $0xc0] sm:$0xf]
    %v4116 = vld [vmem:[%s4066 + $0xc4] sm:$0xf]
    %v4117 = vld [vmem:[%s4066 + $0xc8] sm:$0xf]
    %v4118 = vld [vmem:[%s4066 + $0xcc] sm:$0xf]
    %v4119 = vld [vmem:[%s4066 + $0xd0] sm:$0xf]
    %v4120 = vld [vmem:[%s4066 + $0xd4] sm:$0xf]
    %v4121 = vld [vmem:[%s4066 + $0xd8] sm:$0xf]
    %v4122 = vld [vmem:[%s4066 + $0xdc] sm:$0xf]
    %v4123 = vld [vmem:[%s4066 + $0xe0] sm:$0xf]
    %v4124 = vld [vmem:[%s4066 + $0xe4] sm:$0xf]
    %v4125 = vld [vmem:[%s4066 + $0xe8] sm:$0xf]
    %v4126 = vld [vmem:[%s4066 + $0xec] sm:$0xf]
    %v4127 = vld [vmem:[%s4066 + $0xf0] sm:$0xf]
    %v4128 = vld [vmem:[%s4066 + $0xf4] sm:$0xf]
    %v4129 = vld [vmem:[%s4066 + $0xf8] sm:$0xf]
    %v4130 = vld [vmem:[%s4066 + $0xfc] sm:$0xf]
    %v4131 = vunpack.c.l.bf16 %v4067
    %v4132 = vunpack.c.l.bf16 %v4068
    %v4133 = vunpack.c.l.bf16 %v4069
    %v4134 = vunpack.c.l.bf16 %v4070
    %v4135 = vunpack.c.l.bf16 %v4071
    %v4136 = vunpack.c.l.bf16 %v4072
    %v4137 = vunpack.c.l.bf16 %v4073
    %v4138 = vunpack.c.l.bf16 %v4074
    %v4139 = vunpack.c.l.bf16 %v4075
    %v4140 = vunpack.c.l.bf16 %v4076
    %v4141 = vunpack.c.l.bf16 %v4077
    %v4142 = vunpack.c.l.bf16 %v4078
    %v4143 = vunpack.c.l.bf16 %v4079
    %v4144 = vunpack.c.l.bf16 %v4080
    %v4145 = vunpack.c.l.bf16 %v4081
    %v4146 = vunpack.c.l.bf16 %v4082
    %v4147 = vunpack.c.l.bf16 %v4083
    %v4148 = vunpack.c.l.bf16 %v4084
    %v4149 = vunpack.c.l.bf16 %v4085
    %v4150 = vunpack.c.l.bf16 %v4086
    %v4151 = vunpack.c.l.bf16 %v4087
    %v4152 = vunpack.c.l.bf16 %v4088
    %v4153 = vunpack.c.l.bf16 %v4089
    %v4154 = vunpack.c.l.bf16 %v4090
    %v4155 = vunpack.c.l.bf16 %v4091
    %v4156 = vunpack.c.l.bf16 %v4092
    %v4157 = vunpack.c.l.bf16 %v4093
    %v4158 = vunpack.c.l.bf16 %v4094
    %v4159 = vunpack.c.l.bf16 %v4095
    %v4160 = vunpack.c.l.bf16 %v4096
    %v4161 = vunpack.c.l.bf16 %v4097
    %v4162 = vunpack.c.l.bf16 %v4098
    %v4163 = vunpack.c.l.bf16 %v4099
    %v4164 = vunpack.c.l.bf16 %v4100
    %v4165 = vunpack.c.l.bf16 %v4101
    %v4166 = vunpack.c.l.bf16 %v4102
    %v4167 = vunpack.c.l.bf16 %v4103
    %v4168 = vunpack.c.l.bf16 %v4104
    %v4169 = vunpack.c.l.bf16 %v4105
    %v4170 = vunpack.c.l.bf16 %v4106
    %v4171 = vunpack.c.l.bf16 %v4107
    %v4172 = vunpack.c.l.bf16 %v4108
    %v4173 = vunpack.c.l.bf16 %v4109
    %v4174 = vunpack.c.l.bf16 %v4110
    %v4175 = vunpack.c.l.bf16 %v4111
    %v4176 = vunpack.c.l.bf16 %v4112
    %v4177 = vunpack.c.l.bf16 %v4113
    %v4178 = vunpack.c.l.bf16 %v4114
    %v4179 = vunpack.c.l.bf16 %v4115
    %v4180 = vunpack.c.l.bf16 %v4116
    %v4181 = vunpack.c.l.bf16 %v4117
    %v4182 = vunpack.c.l.bf16 %v4118
    %v4183 = vunpack.c.l.bf16 %v4119
    %v4184 = vunpack.c.l.bf16 %v4120
    %v4185 = vunpack.c.l.bf16 %v4121
    %v4186 = vunpack.c.l.bf16 %v4122
    %v4187 = vunpack.c.l.bf16 %v4123
    %v4188 = vunpack.c.l.bf16 %v4124
    %v4189 = vunpack.c.l.bf16 %v4125
    %v4190 = vunpack.c.l.bf16 %v4126
    %v4191 = vunpack.c.l.bf16 %v4127
    %v4192 = vunpack.c.l.bf16 %v4128
    %v4193 = vunpack.c.l.bf16 %v4129
    %v4194 = vunpack.c.l.bf16 %v4130
    %4195 = vmatpush.msra.mxu0 %v4146
    %4196 = vmatpush.msra.mxu0 %v4145
    %4197 = vmatpush.msra.mxu0 %v4144
    %4198 = vmatpush.msra.mxu0 %v4143
    %4199 = vmatpush.msra.mxu0 %v4142
    %4200 = vmatpush.msra.mxu0 %v4141
    %4201 = vmatpush.msra.mxu0 %v4140
    %4202 = vmatpush.msra.mxu0 %v4139
    %4203 = vmatpush.msra.mxu0 %v4138
    %4204 = vmatpush.msra.mxu0 %v4137
    %4205 = vmatpush.msra.mxu0 %v4136
    %4206 = vmatpush.msra.mxu0 %v4135
    %4207 = vmatpush.msra.mxu0 %v4134
    %4208 = vmatpush.msra.mxu0 %v4133
    %4209 = vmatpush.msra.mxu0 %v4132
    %4210 = vmatpush.msra.mxu0 %v4131
    %4211 = vmatmul.f32.gmra.mxu0 %v455
    %v4212 = vpop.f32.mrf.mxu0
    %v4213 = vadd.f32 0.0, %v4212
    %4214 = vmatmul.f32.gmra.mxu0 %v457
    %v4215 = vpop.f32.mrf.mxu0
    %v4216 = vadd.f32 0.0, %v4215
    %4217 = vdwg.mxu0
    %4218 = vmatpush.msra.mxu0 %v4162
    %4219 = vmatpush.msra.mxu0 %v4161
    %4220 = vmatpush.msra.mxu0 %v4160
    %4221 = vmatpush.msra.mxu0 %v4159
    %4222 = vmatpush.msra.mxu0 %v4158
    %4223 = vmatpush.msra.mxu0 %v4157
    %4224 = vmatpush.msra.mxu0 %v4156
    %4225 = vmatpush.msra.mxu0 %v4155
    %4226 = vmatpush.msra.mxu0 %v4154
    %4227 = vmatpush.msra.mxu0 %v4153
    %4228 = vmatpush.msra.mxu0 %v4152
    %4229 = vmatpush.msra.mxu0 %v4151
    %4230 = vmatpush.msra.mxu0 %v4150
    %4231 = vmatpush.msra.mxu0 %v4149
    %4232 = vmatpush.msra.mxu0 %v4148
    %4233 = vmatpush.msra.mxu0 %v4147
    %4234 = vmatmul.f32.gmra.mxu0 %v544
    %v4235 = vpop.f32.mrf.mxu0
    %v4236 = vadd.f32 %v4213, %v4235
    %4237 = vmatmul.f32.gmra.mxu0 %v546
    %v4238 = vpop.f32.mrf.mxu0
    %v4239 = vadd.f32 %v4216, %v4238
    %4240 = vdwg.mxu0
    %4241 = vmatpush.msra.mxu0 %v4178
    %4242 = vmatpush.msra.mxu0 %v4177
    %4243 = vmatpush.msra.mxu0 %v4176
    %4244 = vmatpush.msra.mxu0 %v4175
    %4245 = vmatpush.msra.mxu0 %v4174
    %4246 = vmatpush.msra.mxu0 %v4173
    %4247 = vmatpush.msra.mxu0 %v4172
    %4248 = vmatpush.msra.mxu0 %v4171
    %4249 = vmatpush.msra.mxu0 %v4170
    %4250 = vmatpush.msra.mxu0 %v4169
    %4251 = vmatpush.msra.mxu0 %v4168
    %4252 = vmatpush.msra.mxu0 %v4167
    %4253 = vmatpush.msra.mxu0 %v4166
    %4254 = vmatpush.msra.mxu0 %v4165
    %4255 = vmatpush.msra.mxu0 %v4164
    %4256 = vmatpush.msra.mxu0 %v4163
    %4257 = vmatmul.f32.gmra.mxu0 %v633
    %v4258 = vpop.f32.mrf.mxu0
    %v4259 = vadd.f32 %v4236, %v4258
    %4260 = vmatmul.f32.gmra.mxu0 %v635
    %v4261 = vpop.f32.mrf.mxu0
    %v4262 = vadd.f32 %v4239, %v4261
    %4263 = vdwg.mxu0
    %4264 = vmatpush.msra.mxu0 %v4194
    %4265 = vmatpush.msra.mxu0 %v4193
    %4266 = vmatpush.msra.mxu0 %v4192
    %4267 = vmatpush.msra.mxu0 %v4191
    %4268 = vmatpush.msra.mxu0 %v4190
    %4269 = vmatpush.msra.mxu0 %v4189
    %4270 = vmatpush.msra.mxu0 %v4188
    %4271 = vmatpush.msra.mxu0 %v4187
    %4272 = vmatpush.msra.mxu0 %v4186
    %4273 = vmatpush.msra.mxu0 %v4185
    %4274 = vmatpush.msra.mxu0 %v4184
    %4275 = vmatpush.msra.mxu0 %v4183
    %4276 = vmatpush.msra.mxu0 %v4182
    %4277 = vmatpush.msra.mxu0 %v4181
    %4278 = vmatpush.msra.mxu0 %v4180
    %4279 = vmatpush.msra.mxu0 %v4179
    %4280 = vmatmul.f32.gmra.mxu0 %v722
    %v4281 = vpop.f32.mrf.mxu0
    %v4282 = vadd.f32 %v4259, %v4281
    %4283 = vmatmul.f32.gmra.mxu0 %v724
    %v4284 = vpop.f32.mrf.mxu0
    %v4285 = vadd.f32 %v4262, %v4284
    %4286 = vdwg.mxu0
    %v4287 = vadd.f32 %v4064, %v4282
    %v4288 = vadd.f32 %v4065, %v4285
    %4289 = vadd.xlane.f32.xlu0 %v4287
    %v4290 = vpop.xlane.xlu0 %4289
    %4291 = vadd.xlane.f32.xlu0 %v4288
    %v4292 = vpop.xlane.xlu0 %4291
    %v4293 = vmul.f32 %v4287, %v4287
    %v4294 = vmul.f32 %v4288, %v4288
    %4295 = vadd.xlane.f32.xlu0 %v4293
    %v4296 = vpop.xlane.xlu0 %4295
    %4297 = vadd.xlane.f32.xlu0 %v4294
    %v4298 = vpop.xlane.xlu0 %4297
    %v4299 = vmul.f32 %v4290, 0.0078125
    %v4300 = vmul.f32 %v4292, 0.0078125
    %v4301 = vmul.f32 %v4296, 0.0078125
    %v4302 = vmul.f32 %v4298, 0.0078125
    %v4303 = vmul.f32 %v4299, %v4299
    %v4304 = vmul.f32 %v4300, %v4300
    %v4305 = vsub.f32 %v4301, %v4303
    %v4306 = vsub.f32 %v4302, %v4304
    %v4307 = vadd.f32 %v4305, 1e-05
    %v4308 = vadd.f32 %v4306, 1e-05
    %v4309 = vrsqrt.pop %v4307
    %v4310 = vmul.f32 %v4309, %v4307
    %v4311 = vmul.f32 %v4310, %v4309
    %v4312 = vmul.f32 0.5, %v4311
    %v4313 = vsub.f32 1.5, %v4312
    %v4314 = vmul.f32 %v4309, %v4313
    %vm4315 = vweird.f32 %v4307
    %vm4316 = vweird.f32 %v4309
    %vm4317 = vmor %vm4315, %vm4316
    %v4318 = vsel %vm4317, %v4309, %v4314
    %v4319 = vrsqrt.pop %v4308
    %v4320 = vmul.f32 %v4319, %v4308
    %v4321 = vmul.f32 %v4320, %v4319
    %v4322 = vmul.f32 0.5, %v4321
    %v4323 = vsub.f32 1.5, %v4322
    %v4324 = vmul.f32 %v4319, %v4323
    %vm4325 = vweird.f32 %v4308
    %vm4326 = vweird.f32 %v4319
    %vm4327 = vmor %vm4325, %vm4326
    %v4328 = vsel %vm4327, %v4319, %v4324
    %v4329 = vsub.f32 %v4287, %v4299
    %v4330 = vsub.f32 %v4288, %v4300
    %v4331 = vld [vmem:[%s10] sm:$0xff]
    %v4332 = vld [vmem:[%s10 + $0x8] sm:$0xff]
    %v4333 = vmul.f32 %v4318, %v4331
    %v4334 = vmul.f32 %v4328, %v4332
    %4336 = vset.pattern.permute.xlu0 0
    %4337 = vperm.xlu0 %4336, %v4333
    %v4338 = vpop.permute.xlu0 %4337
    %4341 = vset.pattern.permute.xlu0 0
    %4342 = vperm.xlu0 %4341, %v4334
    %v4343 = vpop.permute.xlu0 %4342
    %v4345 = vmul.f32 %v4329, %v4338
    %v4346 = vmul.f32 %v4330, %v4343
    %v4347 = vld [vmem:[%s11] sm:$0xff]
    %v4348 = vld [vmem:[%s11 + $0x8] sm:$0xff]
    %4350 = vset.pattern.permute.xlu0 0
    %4351 = vperm.xlu0 %4350, %v4347
    %v4352 = vpop.permute.xlu0 %4351
    %4355 = vset.pattern.permute.xlu0 0
    %4356 = vperm.xlu0 %4355, %v4348
    %v4357 = vpop.permute.xlu0 %4356
    %v4359 = vadd.f32 %v4345, %v4352
    %v4360 = vadd.f32 %v4346, %v4357
    %v4361 = vmul.f32 %v4359, 0.2
    %v4362 = vmul.f32 %v4360, 0.2
    %v4363 = vmax.f32 %v4359, %v4361
    %v4364 = vmax.f32 %v4360, %v4362
    %v4365 = vld [vmem:[%s3] sm:$0xf]
    %v4366 = vld [vmem:[%s3 + $0x4] sm:$0xf]
    %v4367 = vld [vmem:[%s3 + $0x8] sm:$0xf]
    %v4368 = vld [vmem:[%s3 + $0xc] sm:$0xf]
    %v4369 = vld [vmem:[%s3 + $0x10] sm:$0xf]
    %v4370 = vld [vmem:[%s3 + $0x14] sm:$0xf]
    %v4371 = vld [vmem:[%s3 + $0x18] sm:$0xf]
    %v4372 = vld [vmem:[%s3 + $0x1c] sm:$0xf]
    %v4373 = vld [vmem:[%s3 + $0x20] sm:$0xf]
    %v4374 = vld [vmem:[%s3 + $0x24] sm:$0xf]
    %v4375 = vld [vmem:[%s3 + $0x28] sm:$0xf]
    %v4376 = vld [vmem:[%s3 + $0x2c] sm:$0xf]
    %v4377 = vld [vmem:[%s3 + $0x30] sm:$0xf]
    %v4378 = vld [vmem:[%s3 + $0x34] sm:$0xf]
    %v4379 = vld [vmem:[%s3 + $0x38] sm:$0xf]
    %v4380 = vld [vmem:[%s3 + $0x3c] sm:$0xf]
    %v4381 = vld [vmem:[%s3 + $0x40] sm:$0xf]
    %v4382 = vld [vmem:[%s3 + $0x44] sm:$0xf]
    %v4383 = vld [vmem:[%s3 + $0x48] sm:$0xf]
    %v4384 = vld [vmem:[%s3 + $0x4c] sm:$0xf]
    %v4385 = vld [vmem:[%s3 + $0x50] sm:$0xf]
    %v4386 = vld [vmem:[%s3 + $0x54] sm:$0xf]
    %v4387 = vld [vmem:[%s3 + $0x58] sm:$0xf]
    %v4388 = vld [vmem:[%s3 + $0x5c] sm:$0xf]
    %v4389 = vld [vmem:[%s3 + $0x60] sm:$0xf]
    %v4390 = vld [vmem:[%s3 + $0x64] sm:$0xf]
    %v4391 = vld [vmem:[%s3 + $0x68] sm:$0xf]
    %v4392 = vld [vmem:[%s3 + $0x6c] sm:$0xf]
    %v4393 = vld [vmem:[%s3 + $0x70] sm:$0xf]
    %v4394 = vld [vmem:[%s3 + $0x74] sm:$0xf]
    %v4395 = vld [vmem:[%s3 + $0x78] sm:$0xf]
    %v4396 = vld [vmem:[%s3 + $0x7c] sm:$0xf]
    %v4397 = vld [vmem:[%s3 + $0x80] sm:$0xf]
    %v4398 = vld [vmem:[%s3 + $0x84] sm:$0xf]
    %v4399 = vld [vmem:[%s3 + $0x88] sm:$0xf]
    %v4400 = vld [vmem:[%s3 + $0x8c] sm:$0xf]
    %v4401 = vld [vmem:[%s3 + $0x90] sm:$0xf]
    %v4402 = vld [vmem:[%s3 + $0x94] sm:$0xf]
    %v4403 = vld [vmem:[%s3 + $0x98] sm:$0xf]
    %v4404 = vld [vmem:[%s3 + $0x9c] sm:$0xf]
    %v4405 = vld [vmem:[%s3 + $0xa0] sm:$0xf]
    %v4406 = vld [vmem:[%s3 + $0xa4] sm:$0xf]
    %v4407 = vld [vmem:[%s3 + $0xa8] sm:$0xf]
    %v4408 = vld [vmem:[%s3 + $0xac] sm:$0xf]
    %v4409 = vld [vmem:[%s3 + $0xb0] sm:$0xf]
    %v4410 = vld [vmem:[%s3 + $0xb4] sm:$0xf]
    %v4411 = vld [vmem:[%s3 + $0xb8] sm:$0xf]
    %v4412 = vld [vmem:[%s3 + $0xbc] sm:$0xf]
    %v4413 = vld [vmem:[%s3 + $0xc0] sm:$0xf]
    %v4414 = vld [vmem:[%s3 + $0xc4] sm:$0xf]
    %v4415 = vld [vmem:[%s3 + $0xc8] sm:$0xf]
    %v4416 = vld [vmem:[%s3 + $0xcc] sm:$0xf]
    %v4417 = vld [vmem:[%s3 + $0xd0] sm:$0xf]
    %v4418 = vld [vmem:[%s3 + $0xd4] sm:$0xf]
    %v4419 = vld [vmem:[%s3 + $0xd8] sm:$0xf]
    %v4420 = vld [vmem:[%s3 + $0xdc] sm:$0xf]
    %v4421 = vld [vmem:[%s3 + $0xe0] sm:$0xf]
    %v4422 = vld [vmem:[%s3 + $0xe4] sm:$0xf]
    %v4423 = vld [vmem:[%s3 + $0xe8] sm:$0xf]
    %v4424 = vld [vmem:[%s3 + $0xec] sm:$0xf]
    %v4425 = vld [vmem:[%s3 + $0xf0] sm:$0xf]
    %v4426 = vld [vmem:[%s3 + $0xf4] sm:$0xf]
    %v4427 = vld [vmem:[%s3 + $0xf8] sm:$0xf]
    %v4428 = vld [vmem:[%s3 + $0xfc] sm:$0xf]
    %v4429 = vpack.c.bf16 %v4364, %v4363
    %v4494 = vunpack.c.l.b16 %v4365
    %v4495 = vunpack.c.l.b16 %v4366
    %v4496 = vunpack.c.l.b16 %v4367
    %v4497 = vunpack.c.l.b16 %v4368
    %v4498 = vunpack.c.l.b16 %v4369
    %v4499 = vunpack.c.l.b16 %v4370
    %v4500 = vunpack.c.l.b16 %v4371
    %v4501 = vunpack.c.l.b16 %v4372
    %v4502 = vunpack.c.l.b16 %v4373
    %v4503 = vunpack.c.l.b16 %v4374
    %v4504 = vunpack.c.l.b16 %v4375
    %v4505 = vunpack.c.l.b16 %v4376
    %v4506 = vunpack.c.l.b16 %v4377
    %v4507 = vunpack.c.l.b16 %v4378
    %v4508 = vunpack.c.l.b16 %v4379
    %v4509 = vunpack.c.l.b16 %v4380
    %v4510 = vunpack.c.l.b16 %v4381
    %v4511 = vunpack.c.l.b16 %v4382
    %v4512 = vunpack.c.l.b16 %v4383
    %v4513 = vunpack.c.l.b16 %v4384
    %v4514 = vunpack.c.l.b16 %v4385
    %v4515 = vunpack.c.l.b16 %v4386
    %v4516 = vunpack.c.l.b16 %v4387
    %v4517 = vunpack.c.l.b16 %v4388
    %v4518 = vunpack.c.l.b16 %v4389
    %v4519 = vunpack.c.l.b16 %v4390
    %v4520 = vunpack.c.l.b16 %v4391
    %v4521 = vunpack.c.l.b16 %v4392
    %v4522 = vunpack.c.l.b16 %v4393
    %v4523 = vunpack.c.l.b16 %v4394
    %v4524 = vunpack.c.l.b16 %v4395
    %v4525 = vunpack.c.l.b16 %v4396
    %v4526 = vunpack.c.l.b16 %v4397
    %v4527 = vunpack.c.l.b16 %v4398
    %v4528 = vunpack.c.l.b16 %v4399
    %v4529 = vunpack.c.l.b16 %v4400
    %v4530 = vunpack.c.l.b16 %v4401
    %v4531 = vunpack.c.l.b16 %v4402
    %v4532 = vunpack.c.l.b16 %v4403
    %v4533 = vunpack.c.l.b16 %v4404
    %v4534 = vunpack.c.l.b16 %v4405
    %v4535 = vunpack.c.l.b16 %v4406
    %v4536 = vunpack.c.l.b16 %v4407
    %v4537 = vunpack.c.l.b16 %v4408
    %v4538 = vunpack.c.l.b16 %v4409
    %v4539 = vunpack.c.l.b16 %v4410
    %v4540 = vunpack.c.l.b16 %v4411
    %v4541 = vunpack.c.l.b16 %v4412
    %v4542 = vunpack.c.l.b16 %v4413
    %v4543 = vunpack.c.l.b16 %v4414
    %v4544 = vunpack.c.l.b16 %v4415
    %v4545 = vunpack.c.l.b16 %v4416
    %v4546 = vunpack.c.l.b16 %v4417
    %v4547 = vunpack.c.l.b16 %v4418
    %v4548 = vunpack.c.l.b16 %v4419
    %v4549 = vunpack.c.l.b16 %v4420
    %v4550 = vunpack.c.l.b16 %v4421
    %v4551 = vunpack.c.l.b16 %v4422
    %v4552 = vunpack.c.l.b16 %v4423
    %v4553 = vunpack.c.l.b16 %v4424
    %v4554 = vunpack.c.l.b16 %v4425
    %v4555 = vunpack.c.l.b16 %v4426
    %v4556 = vunpack.c.l.b16 %v4427
    %v4557 = vunpack.c.l.b16 %v4428
    %v4558 = vpack.c.b16 %v4495, %v4494
    %v4559 = vpack.c.b16 %v4497, %v4496
    %v4560 = vpack.c.b16 %v4499, %v4498
    %v4561 = vpack.c.b16 %v4501, %v4500
    %v4562 = vpack.c.b16 %v4503, %v4502
    %v4563 = vpack.c.b16 %v4505, %v4504
    %v4564 = vpack.c.b16 %v4507, %v4506
    %v4565 = vpack.c.b16 %v4509, %v4508
    %v4566 = vpack.c.b16 %v4511, %v4510
    %v4567 = vpack.c.b16 %v4513, %v4512
    %v4568 = vpack.c.b16 %v4515, %v4514
    %v4569 = vpack.c.b16 %v4517, %v4516
    %v4570 = vpack.c.b16 %v4519, %v4518
    %v4571 = vpack.c.b16 %v4521, %v4520
    %v4572 = vpack.c.b16 %v4523, %v4522
    %v4573 = vpack.c.b16 %v4525, %v4524
    %v4574 = vpack.c.b16 %v4527, %v4526
    %v4575 = vpack.c.b16 %v4529, %v4528
    %v4576 = vpack.c.b16 %v4531, %v4530
    %v4577 = vpack.c.b16 %v4533, %v4532
    %v4578 = vpack.c.b16 %v4535, %v4534
    %v4579 = vpack.c.b16 %v4537, %v4536
    %v4580 = vpack.c.b16 %v4539, %v4538
    %v4581 = vpack.c.b16 %v4541, %v4540
    %v4582 = vpack.c.b16 %v4543, %v4542
    %v4583 = vpack.c.b16 %v4545, %v4544
    %v4584 = vpack.c.b16 %v4547, %v4546
    %v4585 = vpack.c.b16 %v4549, %v4548
    %v4586 = vpack.c.b16 %v4551, %v4550
    %v4587 = vpack.c.b16 %v4553, %v4552
    %v4588 = vpack.c.b16 %v4555, %v4554
    %v4589 = vpack.c.b16 %v4557, %v4556
    %vm4590 = vcmask 130048
    %v4592 = vsel %vm4590, %v4558, 0
    %v4595 = vsel %vm4590, %v4559, 0
    %v4598 = vsel %vm4590, %v4560, 0
    %v4601 = vsel %vm4590, %v4561, 0
    %v4604 = vsel %vm4590, %v4562, 0
    %v4607 = vsel %vm4590, %v4563, 0
    %v4610 = vsel %vm4590, %v4564, 0
    %v4613 = vsel %vm4590, %v4565, 0
    %v4616 = vsel %vm4590, %v4566, 0
    %v4619 = vsel %vm4590, %v4567, 0
    %v4622 = vsel %vm4590, %v4568, 0
    %v4625 = vsel %vm4590, %v4569, 0
    %v4628 = vsel %vm4590, %v4570, 0
    %v4631 = vsel %vm4590, %v4571, 0
    %v4634 = vsel %vm4590, %v4572, 0
    %v4637 = vsel %vm4590, %v4573, 0
    %v4640 = vsel %vm4590, %v4574, 0
    %v4643 = vsel %vm4590, %v4575, 0
    %v4646 = vsel %vm4590, %v4576, 0
    %v4649 = vsel %vm4590, %v4577, 0
    %v4652 = vsel %vm4590, %v4578, 0
    %v4655 = vsel %vm4590, %v4579, 0
    %v4658 = vsel %vm4590, %v4580, 0
    %v4661 = vsel %vm4590, %v4581, 0
    %v4664 = vsel %vm4590, %v4582, 0
    %v4667 = vsel %vm4590, %v4583, 0
    %v4670 = vsel %vm4590, %v4584, 0
    %v4673 = vsel %vm4590, %v4585, 0
    %v4676 = vsel %vm4590, %v4586, 0
    %v4679 = vsel %vm4590, %v4587, 0
    %v4682 = vsel %vm4590, %v4588, 0
    %v4685 = vsel %vm4590, %v4589, 0
    %4687 = vmatpush.bf16.msra.mxu0 0
    %4688 = vmatpush.bf16.msra.mxu0 0
    %4689 = vmatpush.bf16.msra.mxu0 0
    %4690 = vmatpush.bf16.msra.mxu0 0
    %4691 = vmatpush.bf16.msra.mxu0 0
    %4692 = vmatpush.bf16.msra.mxu0 0
    %4693 = vmatpush.bf16.msra.mxu0 0
    %4694 = vmatpush.bf16.msra.mxu0 %v4429
    %4695 = vmatmul.bf16.gmra.mxu0 %v4592
    %v4696 = vpop.f32.mrf.mxu0
    %v4697 = vadd.f32 0.0, %v4696
    %v4698 = vpop.f32.mrf.mxu0
    %v4699 = vadd.f32 0.0, %v4698
    %4700 = vmatmul.bf16.gmra.mxu0 %v4595
    %v4701 = vpop.f32.mrf.mxu0
    %v4702 = vadd.f32 0.0, %v4701
    %v4703 = vpop.f32.mrf.mxu0
    %v4704 = vadd.f32 0.0, %v4703
    %4705 = vmatmul.bf16.gmra.mxu0 %v4598
    %v4706 = vpop.f32.mrf.mxu0
    %v4707 = vadd.f32 0.0, %v4706
    %v4708 = vpop.f32.mrf.mxu0
    %v4709 = vadd.f32 0.0, %v4708
    %4710 = vmatmul.bf16.gmra.mxu0 %v4601
    %v4711 = vpop.f32.mrf.mxu0
    %v4712 = vadd.f32 0.0, %v4711
    %v4713 = vpop.f32.mrf.mxu0
    %v4714 = vadd.f32 0.0, %v4713
    %4715 = vmatmul.bf16.gmra.mxu0 %v4604
    %v4716 = vpop.f32.mrf.mxu0
    %v4717 = vadd.f32 0.0, %v4716
    %v4718 = vpop.f32.mrf.mxu0
    %v4719 = vadd.f32 0.0, %v4718
    %4720 = vmatmul.bf16.gmra.mxu0 %v4607
    %v4721 = vpop.f32.mrf.mxu0
    %v4722 = vadd.f32 0.0, %v4721
    %v4723 = vpop.f32.mrf.mxu0
    %v4724 = vadd.f32 0.0, %v4723
    %4725 = vmatmul.bf16.gmra.mxu0 %v4610
    %v4726 = vpop.f32.mrf.mxu0
    %v4727 = vadd.f32 0.0, %v4726
    %v4728 = vpop.f32.mrf.mxu0
    %v4729 = vadd.f32 0.0, %v4728
    %4730 = vmatmul.bf16.gmra.mxu0 %v4613
    %v4731 = vpop.f32.mrf.mxu0
    %v4732 = vadd.f32 0.0, %v4731
    %v4733 = vpop.f32.mrf.mxu0
    %v4734 = vadd.f32 0.0, %v4733
    %4735 = vmatmul.bf16.gmra.mxu0 %v4616
    %v4736 = vpop.f32.mrf.mxu0
    %v4737 = vadd.f32 0.0, %v4736
    %v4738 = vpop.f32.mrf.mxu0
    %v4739 = vadd.f32 0.0, %v4738
    %4740 = vmatmul.bf16.gmra.mxu0 %v4619
    %v4741 = vpop.f32.mrf.mxu0
    %v4742 = vadd.f32 0.0, %v4741
    %v4743 = vpop.f32.mrf.mxu0
    %v4744 = vadd.f32 0.0, %v4743
    %4745 = vmatmul.bf16.gmra.mxu0 %v4622
    %v4746 = vpop.f32.mrf.mxu0
    %v4747 = vadd.f32 0.0, %v4746
    %v4748 = vpop.f32.mrf.mxu0
    %v4749 = vadd.f32 0.0, %v4748
    %4750 = vmatmul.bf16.gmra.mxu0 %v4625
    %v4751 = vpop.f32.mrf.mxu0
    %v4752 = vadd.f32 0.0, %v4751
    %v4753 = vpop.f32.mrf.mxu0
    %v4754 = vadd.f32 0.0, %v4753
    %4755 = vmatmul.bf16.gmra.mxu0 %v4628
    %v4756 = vpop.f32.mrf.mxu0
    %v4757 = vadd.f32 0.0, %v4756
    %v4758 = vpop.f32.mrf.mxu0
    %v4759 = vadd.f32 0.0, %v4758
    %4760 = vmatmul.bf16.gmra.mxu0 %v4631
    %v4761 = vpop.f32.mrf.mxu0
    %v4762 = vadd.f32 0.0, %v4761
    %v4763 = vpop.f32.mrf.mxu0
    %v4764 = vadd.f32 0.0, %v4763
    %4765 = vmatmul.bf16.gmra.mxu0 %v4634
    %v4766 = vpop.f32.mrf.mxu0
    %v4767 = vadd.f32 0.0, %v4766
    %v4768 = vpop.f32.mrf.mxu0
    %v4769 = vadd.f32 0.0, %v4768
    %4770 = vmatmul.bf16.gmra.mxu0 %v4637
    %v4771 = vpop.f32.mrf.mxu0
    %v4772 = vadd.f32 0.0, %v4771
    %v4773 = vpop.f32.mrf.mxu0
    %v4774 = vadd.f32 0.0, %v4773
    %4775 = vmatmul.bf16.gmra.mxu0 %v4640
    %v4776 = vpop.f32.mrf.mxu0
    %v4777 = vadd.f32 0.0, %v4776
    %v4778 = vpop.f32.mrf.mxu0
    %v4779 = vadd.f32 0.0, %v4778
    %4780 = vmatmul.bf16.gmra.mxu0 %v4643
    %v4781 = vpop.f32.mrf.mxu0
    %v4782 = vadd.f32 0.0, %v4781
    %v4783 = vpop.f32.mrf.mxu0
    %v4784 = vadd.f32 0.0, %v4783
    %4785 = vmatmul.bf16.gmra.mxu0 %v4646
    %v4786 = vpop.f32.mrf.mxu0
    %v4787 = vadd.f32 0.0, %v4786
    %v4788 = vpop.f32.mrf.mxu0
    %v4789 = vadd.f32 0.0, %v4788
    %4790 = vmatmul.bf16.gmra.mxu0 %v4649
    %v4791 = vpop.f32.mrf.mxu0
    %v4792 = vadd.f32 0.0, %v4791
    %v4793 = vpop.f32.mrf.mxu0
    %v4794 = vadd.f32 0.0, %v4793
    %4795 = vmatmul.bf16.gmra.mxu0 %v4652
    %v4796 = vpop.f32.mrf.mxu0
    %v4797 = vadd.f32 0.0, %v4796
    %v4798 = vpop.f32.mrf.mxu0
    %v4799 = vadd.f32 0.0, %v4798
    %4800 = vmatmul.bf16.gmra.mxu0 %v4655
    %v4801 = vpop.f32.mrf.mxu0
    %v4802 = vadd.f32 0.0, %v4801
    %v4803 = vpop.f32.mrf.mxu0
    %v4804 = vadd.f32 0.0, %v4803
    %4805 = vmatmul.bf16.gmra.mxu0 %v4658
    %v4806 = vpop.f32.mrf.mxu0
    %v4807 = vadd.f32 0.0, %v4806
    %v4808 = vpop.f32.mrf.mxu0
    %v4809 = vadd.f32 0.0, %v4808
    %4810 = vmatmul.bf16.gmra.mxu0 %v4661
    %v4811 = vpop.f32.mrf.mxu0
    %v4812 = vadd.f32 0.0, %v4811
    %v4813 = vpop.f32.mrf.mxu0
    %v4814 = vadd.f32 0.0, %v4813
    %4815 = vmatmul.bf16.gmra.mxu0 %v4664
    %v4816 = vpop.f32.mrf.mxu0
    %v4817 = vadd.f32 0.0, %v4816
    %v4818 = vpop.f32.mrf.mxu0
    %v4819 = vadd.f32 0.0, %v4818
    %4820 = vmatmul.bf16.gmra.mxu0 %v4667
    %v4821 = vpop.f32.mrf.mxu0
    %v4822 = vadd.f32 0.0, %v4821
    %v4823 = vpop.f32.mrf.mxu0
    %v4824 = vadd.f32 0.0, %v4823
    %4825 = vmatmul.bf16.gmra.mxu0 %v4670
    %v4826 = vpop.f32.mrf.mxu0
    %v4827 = vadd.f32 0.0, %v4826
    %v4828 = vpop.f32.mrf.mxu0
    %v4829 = vadd.f32 0.0, %v4828
    %4830 = vmatmul.bf16.gmra.mxu0 %v4673
    %v4831 = vpop.f32.mrf.mxu0
    %v4832 = vadd.f32 0.0, %v4831
    %v4833 = vpop.f32.mrf.mxu0
    %v4834 = vadd.f32 0.0, %v4833
    %4835 = vmatmul.bf16.gmra.mxu0 %v4676
    %v4836 = vpop.f32.mrf.mxu0
    %v4837 = vadd.f32 0.0, %v4836
    %v4838 = vpop.f32.mrf.mxu0
    %v4839 = vadd.f32 0.0, %v4838
    %4840 = vmatmul.bf16.gmra.mxu0 %v4679
    %v4841 = vpop.f32.mrf.mxu0
    %v4842 = vadd.f32 0.0, %v4841
    %v4843 = vpop.f32.mrf.mxu0
    %v4844 = vadd.f32 0.0, %v4843
    %4845 = vmatmul.bf16.gmra.mxu0 %v4682
    %v4846 = vpop.f32.mrf.mxu0
    %v4847 = vadd.f32 0.0, %v4846
    %v4848 = vpop.f32.mrf.mxu0
    %v4849 = vadd.f32 0.0, %v4848
    %4850 = vmatmul.bf16.gmra.mxu0 %v4685
    %v4851 = vpop.f32.mrf.mxu0
    %v4852 = vadd.f32 0.0, %v4851
    %v4853 = vpop.f32.mrf.mxu0
    %v4854 = vadd.f32 0.0, %v4853
    %4855 = vdwg.mxu0
    %v4856 = vld [vmem:[%s7] sm:$0xf]
    %v4857 = vld [vmem:[%s7 + $0x4] sm:$0xf]
    %v4858 = vld [vmem:[%s7 + $0x8] sm:$0xf]
    %v4859 = vld [vmem:[%s7 + $0xc] sm:$0xf]
    %v4860 = vld [vmem:[%s7 + $0x10] sm:$0xf]
    %v4861 = vld [vmem:[%s7 + $0x14] sm:$0xf]
    %v4862 = vld [vmem:[%s7 + $0x18] sm:$0xf]
    %v4863 = vld [vmem:[%s7 + $0x1c] sm:$0xf]
    %v4864 = vld [vmem:[%s7 + $0x20] sm:$0xf]
    %v4865 = vld [vmem:[%s7 + $0x24] sm:$0xf]
    %v4866 = vld [vmem:[%s7 + $0x28] sm:$0xf]
    %v4867 = vld [vmem:[%s7 + $0x2c] sm:$0xf]
    %v4868 = vld [vmem:[%s7 + $0x30] sm:$0xf]
    %v4869 = vld [vmem:[%s7 + $0x34] sm:$0xf]
    %v4870 = vld [vmem:[%s7 + $0x38] sm:$0xf]
    %v4871 = vld [vmem:[%s7 + $0x3c] sm:$0xf]
    %v4872 = vunpack.c.l.bf16 %v4856
    %v4873 = vunpack.c.l.bf16 %v4857
    %v4874 = vunpack.c.l.bf16 %v4858
    %v4875 = vunpack.c.l.bf16 %v4859
    %v4876 = vunpack.c.l.bf16 %v4860
    %v4877 = vunpack.c.l.bf16 %v4861
    %v4878 = vunpack.c.l.bf16 %v4862
    %v4879 = vunpack.c.l.bf16 %v4863
    %v4880 = vunpack.c.l.bf16 %v4864
    %v4881 = vunpack.c.l.bf16 %v4865
    %v4882 = vunpack.c.l.bf16 %v4866
    %v4883 = vunpack.c.l.bf16 %v4867
    %v4884 = vunpack.c.l.bf16 %v4868
    %v4885 = vunpack.c.l.bf16 %v4869
    %v4886 = vunpack.c.l.bf16 %v4870
    %v4887 = vunpack.c.l.bf16 %v4871
    %s4888 = scalar_lea.vmem %s7, 64
    %v4889 = vld [vmem:[%s4888] sm:$0xf]
    %v4890 = vld [vmem:[%s4888 + $0x4] sm:$0xf]
    %v4891 = vld [vmem:[%s4888 + $0x8] sm:$0xf]
    %v4892 = vld [vmem:[%s4888 + $0xc] sm:$0xf]
    %v4893 = vld [vmem:[%s4888 + $0x10] sm:$0xf]
    %v4894 = vld [vmem:[%s4888 + $0x14] sm:$0xf]
    %v4895 = vld [vmem:[%s4888 + $0x18] sm:$0xf]
    %v4896 = vld [vmem:[%s4888 + $0x1c] sm:$0xf]
    %v4897 = vld [vmem:[%s4888 + $0x20] sm:$0xf]
    %v4898 = vld [vmem:[%s4888 + $0x24] sm:$0xf]
    %v4899 = vld [vmem:[%s4888 + $0x28] sm:$0xf]
    %v4900 = vld [vmem:[%s4888 + $0x2c] sm:$0xf]
    %v4901 = vld [vmem:[%s4888 + $0x30] sm:$0xf]
    %v4902 = vld [vmem:[%s4888 + $0x34] sm:$0xf]
    %v4903 = vld [vmem:[%s4888 + $0x38] sm:$0xf]
    %v4904 = vld [vmem:[%s4888 + $0x3c] sm:$0xf]
    %v4905 = vunpack.c.l.bf16 %v4889
    %v4906 = vunpack.c.l.bf16 %v4890
    %v4907 = vunpack.c.l.bf16 %v4891
    %v4908 = vunpack.c.l.bf16 %v4892
    %v4909 = vunpack.c.l.bf16 %v4893
    %v4910 = vunpack.c.l.bf16 %v4894
    %v4911 = vunpack.c.l.bf16 %v4895
    %v4912 = vunpack.c.l.bf16 %v4896
    %v4913 = vunpack.c.l.bf16 %v4897
    %v4914 = vunpack.c.l.bf16 %v4898
    %v4915 = vunpack.c.l.bf16 %v4899
    %v4916 = vunpack.c.l.bf16 %v4900
    %v4917 = vunpack.c.l.bf16 %v4901
    %v4918 = vunpack.c.l.bf16 %v4902
    %v4919 = vunpack.c.l.bf16 %v4903
    %v4920 = vunpack.c.l.bf16 %v4904
    %4921 = vmatpush.msra.mxu0 %v4920
    %4922 = vmatpush.msra.mxu0 %v4919
    %4923 = vmatpush.msra.mxu0 %v4918
    %4924 = vmatpush.msra.mxu0 %v4917
    %4925 = vmatpush.msra.mxu0 %v4916
    %4926 = vmatpush.msra.mxu0 %v4915
    %4927 = vmatpush.msra.mxu0 %v4914
    %4928 = vmatpush.msra.mxu0 %v4913
    %4929 = vmatpush.msra.mxu0 %v4912
    %4930 = vmatpush.msra.mxu0 %v4911
    %4931 = vmatpush.msra.mxu0 %v4910
    %4932 = vmatpush.msra.mxu0 %v4909
    %4933 = vmatpush.msra.mxu0 %v4908
    %4934 = vmatpush.msra.mxu0 %v4907
    %4935 = vmatpush.msra.mxu0 %v4906
    %4936 = vmatpush.msra.mxu0 %v4905
    %4937 = vmatmul.f32.gmra.mxu0 %v4707
    %v4938 = vpop.f32.mrf.mxu0
    %v4939 = vadd.f32 0.0, %v4938
    %4940 = vmatmul.f32.gmra.mxu0 %v4709
    %v4941 = vpop.f32.mrf.mxu0
    %v4942 = vadd.f32 0.0, %v4941
    %4943 = vmatmul.f32.gmra.mxu0 %v4712
    %v4944 = vpop.f32.mrf.mxu0
    %v4945 = vadd.f32 0.0, %v4944
    %4946 = vmatmul.f32.gmra.mxu0 %v4714
    %v4947 = vpop.f32.mrf.mxu0
    %v4948 = vadd.f32 0.0, %v4947
    %4949 = vdwg.mxu0
    %4950 = vmatpush.msra.mxu0 %v4887
    %4951 = vmatpush.msra.mxu0 %v4886
    %4952 = vmatpush.msra.mxu0 %v4885
    %4953 = vmatpush.msra.mxu0 %v4884
    %4954 = vmatpush.msra.mxu0 %v4883
    %4955 = vmatpush.msra.mxu0 %v4882
    %4956 = vmatpush.msra.mxu0 %v4881
    %4957 = vmatpush.msra.mxu0 %v4880
    %4958 = vmatpush.msra.mxu0 %v4879
    %4959 = vmatpush.msra.mxu0 %v4878
    %4960 = vmatpush.msra.mxu0 %v4877
    %4961 = vmatpush.msra.mxu0 %v4876
    %4962 = vmatpush.msra.mxu0 %v4875
    %4963 = vmatpush.msra.mxu0 %v4874
    %4964 = vmatpush.msra.mxu0 %v4873
    %4965 = vmatpush.msra.mxu0 %v4872
    %4966 = vmatmul.f32.gmra.mxu0 %v4697
    %v4967 = vpop.f32.mrf.mxu0
    %v4968 = vadd.f32 %v4939, %v4967
    %4969 = vmatmul.f32.gmra.mxu0 %v4699
    %v4970 = vpop.f32.mrf.mxu0
    %v4971 = vadd.f32 %v4942, %v4970
    %4972 = vmatmul.f32.gmra.mxu0 %v4702
    %v4973 = vpop.f32.mrf.mxu0
    %v4974 = vadd.f32 %v4945, %v4973
    %4975 = vmatmul.f32.gmra.mxu0 %v4704
    %v4976 = vpop.f32.mrf.mxu0
    %v4977 = vadd.f32 %v4948, %v4976
    %4978 = vdwg.mxu0
    %s4979 = scalar_lea.vmem %s7, 128
    %v4980 = vld [vmem:[%s4979] sm:$0xf]
    %v4981 = vld [vmem:[%s4979 + $0x4] sm:$0xf]
    %v4982 = vld [vmem:[%s4979 + $0x8] sm:$0xf]
    %v4983 = vld [vmem:[%s4979 + $0xc] sm:$0xf]
    %v4984 = vld [vmem:[%s4979 + $0x10] sm:$0xf]
    %v4985 = vld [vmem:[%s4979 + $0x14] sm:$0xf]
    %v4986 = vld [vmem:[%s4979 + $0x18] sm:$0xf]
    %v4987 = vld [vmem:[%s4979 + $0x1c] sm:$0xf]
    %v4988 = vld [vmem:[%s4979 + $0x20] sm:$0xf]
    %v4989 = vld [vmem:[%s4979 + $0x24] sm:$0xf]
    %v4990 = vld [vmem:[%s4979 + $0x28] sm:$0xf]
    %v4991 = vld [vmem:[%s4979 + $0x2c] sm:$0xf]
    %v4992 = vld [vmem:[%s4979 + $0x30] sm:$0xf]
    %v4993 = vld [vmem:[%s4979 + $0x34] sm:$0xf]
    %v4994 = vld [vmem:[%s4979 + $0x38] sm:$0xf]
    %v4995 = vld [vmem:[%s4979 + $0x3c] sm:$0xf]
    %v4996 = vunpack.c.l.bf16 %v4980
    %v4997 = vunpack.c.l.bf16 %v4981
    %v4998 = vunpack.c.l.bf16 %v4982
    %v4999 = vunpack.c.l.bf16 %v4983
    %v5000 = vunpack.c.l.bf16 %v4984
    %v5001 = vunpack.c.l.bf16 %v4985
    %v5002 = vunpack.c.l.bf16 %v4986
    %v5003 = vunpack.c.l.bf16 %v4987
    %v5004 = vunpack.c.l.bf16 %v4988
    %v5005 = vunpack.c.l.bf16 %v4989
    %v5006 = vunpack.c.l.bf16 %v4990
    %v5007 = vunpack.c.l.bf16 %v4991
    %v5008 = vunpack.c.l.bf16 %v4992
    %v5009 = vunpack.c.l.bf16 %v4993
    %v5010 = vunpack.c.l.bf16 %v4994
    %v5011 = vunpack.c.l.bf16 %v4995
    %5012 = vmatpush.msra.mxu0 %v5011
    %5013 = vmatpush.msra.mxu0 %v5010
    %5014 = vmatpush.msra.mxu0 %v5009
    %5015 = vmatpush.msra.mxu0 %v5008
    %5016 = vmatpush.msra.mxu0 %v5007
    %5017 = vmatpush.msra.mxu0 %v5006
    %5018 = vmatpush.msra.mxu0 %v5005
    %5019 = vmatpush.msra.mxu0 %v5004
    %5020 = vmatpush.msra.mxu0 %v5003
    %5021 = vmatpush.msra.mxu0 %v5002
    %5022 = vmatpush.msra.mxu0 %v5001
    %5023 = vmatpush.msra.mxu0 %v5000
    %5024 = vmatpush.msra.mxu0 %v4999
    %5025 = vmatpush.msra.mxu0 %v4998
    %5026 = vmatpush.msra.mxu0 %v4997
    %5027 = vmatpush.msra.mxu0 %v4996
    %5028 = vmatmul.f32.gmra.mxu0 %v4717
    %v5029 = vpop.f32.mrf.mxu0
    %v5030 = vadd.f32 0.0, %v5029
    %5031 = vmatmul.f32.gmra.mxu0 %v4719
    %v5032 = vpop.f32.mrf.mxu0
    %v5033 = vadd.f32 0.0, %v5032
    %5034 = vmatmul.f32.gmra.mxu0 %v4722
    %v5035 = vpop.f32.mrf.mxu0
    %v5036 = vadd.f32 0.0, %v5035
    %5037 = vmatmul.f32.gmra.mxu0 %v4724
    %v5038 = vpop.f32.mrf.mxu0
    %v5039 = vadd.f32 0.0, %v5038
    %5040 = vdwg.mxu0
    %v5041 = vadd.f32 %v4968, %v5030
    %v5042 = vadd.f32 %v4971, %v5033
    %v5043 = vadd.f32 %v4974, %v5036
    %v5044 = vadd.f32 %v4977, %v5039
    %s5045 = scalar_lea.vmem %s7, 192
    %v5046 = vld [vmem:[%s5045] sm:$0xf]
    %v5047 = vld [vmem:[%s5045 + $0x4] sm:$0xf]
    %v5048 = vld [vmem:[%s5045 + $0x8] sm:$0xf]
    %v5049 = vld [vmem:[%s5045 + $0xc] sm:$0xf]
    %v5050 = vld [vmem:[%s5045 + $0x10] sm:$0xf]
    %v5051 = vld [vmem:[%s5045 + $0x14] sm:$0xf]
    %v5052 = vld [vmem:[%s5045 + $0x18] sm:$0xf]
    %v5053 = vld [vmem:[%s5045 + $0x1c] sm:$0xf]
    %v5054 = vld [vmem:[%s5045 + $0x20] sm:$0xf]
    %v5055 = vld [vmem:[%s5045 + $0x24] sm:$0xf]
    %v5056 = vld [vmem:[%s5045 + $0x28] sm:$0xf]
    %v5057 = vld [vmem:[%s5045 + $0x2c] sm:$0xf]
    %v5058 = vld [vmem:[%s5045 + $0x30] sm:$0xf]
    %v5059 = vld [vmem:[%s5045 + $0x34] sm:$0xf]
    %v5060 = vld [vmem:[%s5045 + $0x38] sm:$0xf]
    %v5061 = vld [vmem:[%s5045 + $0x3c] sm:$0xf]
    %v5062 = vunpack.c.l.bf16 %v5046
    %v5063 = vunpack.c.l.bf16 %v5047
    %v5064 = vunpack.c.l.bf16 %v5048
    %v5065 = vunpack.c.l.bf16 %v5049
    %v5066 = vunpack.c.l.bf16 %v5050
    %v5067 = vunpack.c.l.bf16 %v5051
    %v5068 = vunpack.c.l.bf16 %v5052
    %v5069 = vunpack.c.l.bf16 %v5053
    %v5070 = vunpack.c.l.bf16 %v5054
    %v5071 = vunpack.c.l.bf16 %v5055
    %v5072 = vunpack.c.l.bf16 %v5056
    %v5073 = vunpack.c.l.bf16 %v5057
    %v5074 = vunpack.c.l.bf16 %v5058
    %v5075 = vunpack.c.l.bf16 %v5059
    %v5076 = vunpack.c.l.bf16 %v5060
    %v5077 = vunpack.c.l.bf16 %v5061
    %5078 = vmatpush.msra.mxu0 %v5077
    %5079 = vmatpush.msra.mxu0 %v5076
    %5080 = vmatpush.msra.mxu0 %v5075
    %5081 = vmatpush.msra.mxu0 %v5074
    %5082 = vmatpush.msra.mxu0 %v5073
    %5083 = vmatpush.msra.mxu0 %v5072
    %5084 = vmatpush.msra.mxu0 %v5071
    %5085 = vmatpush.msra.mxu0 %v5070
    %5086 = vmatpush.msra.mxu0 %v5069
    %5087 = vmatpush.msra.mxu0 %v5068
    %5088 = vmatpush.msra.mxu0 %v5067
    %5089 = vmatpush.msra.mxu0 %v5066
    %5090 = vmatpush.msra.mxu0 %v5065
    %5091 = vmatpush.msra.mxu0 %v5064
    %5092 = vmatpush.msra.mxu0 %v5063
    %5093 = vmatpush.msra.mxu0 %v5062
    %5094 = vmatmul.f32.gmra.mxu0 %v4727
    %v5095 = vpop.f32.mrf.mxu0
    %v5096 = vadd.f32 0.0, %v5095
    %5097 = vmatmul.f32.gmra.mxu0 %v4729
    %v5098 = vpop.f32.mrf.mxu0
    %v5099 = vadd.f32 0.0, %v5098
    %5100 = vmatmul.f32.gmra.mxu0 %v4732
    %v5101 = vpop.f32.mrf.mxu0
    %v5102 = vadd.f32 0.0, %v5101
    %5103 = vmatmul.f32.gmra.mxu0 %v4734
    %v5104 = vpop.f32.mrf.mxu0
    %v5105 = vadd.f32 0.0, %v5104
    %5106 = vdwg.mxu0
    %v5107 = vadd.f32 %v5041, %v5096
    %v5108 = vadd.f32 %v5042, %v5099
    %v5109 = vadd.f32 %v5043, %v5102
    %v5110 = vadd.f32 %v5044, %v5105
    %s5111 = scalar_lea.vmem %s7, 256
    %v5112 = vld [vmem:[%s5111] sm:$0xf]
    %v5113 = vld [vmem:[%s5111 + $0x4] sm:$0xf]
    %v5114 = vld [vmem:[%s5111 + $0x8] sm:$0xf]
    %v5115 = vld [vmem:[%s5111 + $0xc] sm:$0xf]
    %v5116 = vld [vmem:[%s5111 + $0x10] sm:$0xf]
    %v5117 = vld [vmem:[%s5111 + $0x14] sm:$0xf]
    %v5118 = vld [vmem:[%s5111 + $0x18] sm:$0xf]
    %v5119 = vld [vmem:[%s5111 + $0x1c] sm:$0xf]
    %v5120 = vld [vmem:[%s5111 + $0x20] sm:$0xf]
    %v5121 = vld [vmem:[%s5111 + $0x24] sm:$0xf]
    %v5122 = vld [vmem:[%s5111 + $0x28] sm:$0xf]
    %v5123 = vld [vmem:[%s5111 + $0x2c] sm:$0xf]
    %v5124 = vld [vmem:[%s5111 + $0x30] sm:$0xf]
    %v5125 = vld [vmem:[%s5111 + $0x34] sm:$0xf]
    %v5126 = vld [vmem:[%s5111 + $0x38] sm:$0xf]
    %v5127 = vld [vmem:[%s5111 + $0x3c] sm:$0xf]
    %v5128 = vunpack.c.l.bf16 %v5112
    %v5129 = vunpack.c.l.bf16 %v5113
    %v5130 = vunpack.c.l.bf16 %v5114
    %v5131 = vunpack.c.l.bf16 %v5115
    %v5132 = vunpack.c.l.bf16 %v5116
    %v5133 = vunpack.c.l.bf16 %v5117
    %v5134 = vunpack.c.l.bf16 %v5118
    %v5135 = vunpack.c.l.bf16 %v5119
    %v5136 = vunpack.c.l.bf16 %v5120
    %v5137 = vunpack.c.l.bf16 %v5121
    %v5138 = vunpack.c.l.bf16 %v5122
    %v5139 = vunpack.c.l.bf16 %v5123
    %v5140 = vunpack.c.l.bf16 %v5124
    %v5141 = vunpack.c.l.bf16 %v5125
    %v5142 = vunpack.c.l.bf16 %v5126
    %v5143 = vunpack.c.l.bf16 %v5127
    %5144 = vmatpush.msra.mxu0 %v5143
    %5145 = vmatpush.msra.mxu0 %v5142
    %5146 = vmatpush.msra.mxu0 %v5141
    %5147 = vmatpush.msra.mxu0 %v5140
    %5148 = vmatpush.msra.mxu0 %v5139
    %5149 = vmatpush.msra.mxu0 %v5138
    %5150 = vmatpush.msra.mxu0 %v5137
    %5151 = vmatpush.msra.mxu0 %v5136
    %5152 = vmatpush.msra.mxu0 %v5135
    %5153 = vmatpush.msra.mxu0 %v5134
    %5154 = vmatpush.msra.mxu0 %v5133
    %5155 = vmatpush.msra.mxu0 %v5132
    %5156 = vmatpush.msra.mxu0 %v5131
    %5157 = vmatpush.msra.mxu0 %v5130
    %5158 = vmatpush.msra.mxu0 %v5129
    %5159 = vmatpush.msra.mxu0 %v5128
    %5160 = vmatmul.f32.gmra.mxu0 %v4737
    %v5161 = vpop.f32.mrf.mxu0
    %v5162 = vadd.f32 0.0, %v5161
    %5163 = vmatmul.f32.gmra.mxu0 %v4739
    %v5164 = vpop.f32.mrf.mxu0
    %v5165 = vadd.f32 0.0, %v5164
    %5166 = vmatmul.f32.gmra.mxu0 %v4742
    %v5167 = vpop.f32.mrf.mxu0
    %v5168 = vadd.f32 0.0, %v5167
    %5169 = vmatmul.f32.gmra.mxu0 %v4744
    %v5170 = vpop.f32.mrf.mxu0
    %v5171 = vadd.f32 0.0, %v5170
    %5172 = vdwg.mxu0
    %v5173 = vadd.f32 %v5107, %v5162
    %v5174 = vadd.f32 %v5108, %v5165
    %v5175 = vadd.f32 %v5109, %v5168
    %v5176 = vadd.f32 %v5110, %v5171
    %s5177 = scalar_lea.vmem %s7, 320
    %v5178 = vld [vmem:[%s5177] sm:$0xf]
    %v5179 = vld [vmem:[%s5177 + $0x4] sm:$0xf]
    %v5180 = vld [vmem:[%s5177 + $0x8] sm:$0xf]
    %v5181 = vld [vmem:[%s5177 + $0xc] sm:$0xf]
    %v5182 = vld [vmem:[%s5177 + $0x10] sm:$0xf]
    %v5183 = vld [vmem:[%s5177 + $0x14] sm:$0xf]
    %v5184 = vld [vmem:[%s5177 + $0x18] sm:$0xf]
    %v5185 = vld [vmem:[%s5177 + $0x1c] sm:$0xf]
    %v5186 = vld [vmem:[%s5177 + $0x20] sm:$0xf]
    %v5187 = vld [vmem:[%s5177 + $0x24] sm:$0xf]
    %v5188 = vld [vmem:[%s5177 + $0x28] sm:$0xf]
    %v5189 = vld [vmem:[%s5177 + $0x2c] sm:$0xf]
    %v5190 = vld [vmem:[%s5177 + $0x30] sm:$0xf]
    %v5191 = vld [vmem:[%s5177 + $0x34] sm:$0xf]
    %v5192 = vld [vmem:[%s5177 + $0x38] sm:$0xf]
    %v5193 = vld [vmem:[%s5177 + $0x3c] sm:$0xf]
    %v5194 = vunpack.c.l.bf16 %v5178
    %v5195 = vunpack.c.l.bf16 %v5179
    %v5196 = vunpack.c.l.bf16 %v5180
    %v5197 = vunpack.c.l.bf16 %v5181
    %v5198 = vunpack.c.l.bf16 %v5182
    %v5199 = vunpack.c.l.bf16 %v5183
    %v5200 = vunpack.c.l.bf16 %v5184
    %v5201 = vunpack.c.l.bf16 %v5185
    %v5202 = vunpack.c.l.bf16 %v5186
    %v5203 = vunpack.c.l.bf16 %v5187
    %v5204 = vunpack.c.l.bf16 %v5188
    %v5205 = vunpack.c.l.bf16 %v5189
    %v5206 = vunpack.c.l.bf16 %v5190
    %v5207 = vunpack.c.l.bf16 %v5191
    %v5208 = vunpack.c.l.bf16 %v5192
    %v5209 = vunpack.c.l.bf16 %v5193
    %5210 = vmatpush.msra.mxu0 %v5209
    %5211 = vmatpush.msra.mxu0 %v5208
    %5212 = vmatpush.msra.mxu0 %v5207
    %5213 = vmatpush.msra.mxu0 %v5206
    %5214 = vmatpush.msra.mxu0 %v5205
    %5215 = vmatpush.msra.mxu0 %v5204
    %5216 = vmatpush.msra.mxu0 %v5203
    %5217 = vmatpush.msra.mxu0 %v5202
    %5218 = vmatpush.msra.mxu0 %v5201
    %5219 = vmatpush.msra.mxu0 %v5200
    %5220 = vmatpush.msra.mxu0 %v5199
    %5221 = vmatpush.msra.mxu0 %v5198
    %5222 = vmatpush.msra.mxu0 %v5197
    %5223 = vmatpush.msra.mxu0 %v5196
    %5224 = vmatpush.msra.mxu0 %v5195
    %5225 = vmatpush.msra.mxu0 %v5194
    %5226 = vmatmul.f32.gmra.mxu0 %v4747
    %v5227 = vpop.f32.mrf.mxu0
    %v5228 = vadd.f32 0.0, %v5227
    %5229 = vmatmul.f32.gmra.mxu0 %v4749
    %v5230 = vpop.f32.mrf.mxu0
    %v5231 = vadd.f32 0.0, %v5230
    %5232 = vmatmul.f32.gmra.mxu0 %v4752
    %v5233 = vpop.f32.mrf.mxu0
    %v5234 = vadd.f32 0.0, %v5233
    %5235 = vmatmul.f32.gmra.mxu0 %v4754
    %v5236 = vpop.f32.mrf.mxu0
    %v5237 = vadd.f32 0.0, %v5236
    %5238 = vdwg.mxu0
    %v5239 = vadd.f32 %v5173, %v5228
    %v5240 = vadd.f32 %v5174, %v5231
    %v5241 = vadd.f32 %v5175, %v5234
    %v5242 = vadd.f32 %v5176, %v5237
    %s5243 = scalar_lea.vmem %s7, 384
    %v5244 = vld [vmem:[%s5243] sm:$0xf]
    %v5245 = vld [vmem:[%s5243 + $0x4] sm:$0xf]
    %v5246 = vld [vmem:[%s5243 + $0x8] sm:$0xf]
    %v5247 = vld [vmem:[%s5243 + $0xc] sm:$0xf]
    %v5248 = vld [vmem:[%s5243 + $0x10] sm:$0xf]
    %v5249 = vld [vmem:[%s5243 + $0x14] sm:$0xf]
    %v5250 = vld [vmem:[%s5243 + $0x18] sm:$0xf]
    %v5251 = vld [vmem:[%s5243 + $0x1c] sm:$0xf]
    %v5252 = vld [vmem:[%s5243 + $0x20] sm:$0xf]
    %v5253 = vld [vmem:[%s5243 + $0x24] sm:$0xf]
    %v5254 = vld [vmem:[%s5243 + $0x28] sm:$0xf]
    %v5255 = vld [vmem:[%s5243 + $0x2c] sm:$0xf]
    %v5256 = vld [vmem:[%s5243 + $0x30] sm:$0xf]
    %v5257 = vld [vmem:[%s5243 + $0x34] sm:$0xf]
    %v5258 = vld [vmem:[%s5243 + $0x38] sm:$0xf]
    %v5259 = vld [vmem:[%s5243 + $0x3c] sm:$0xf]
    %v5260 = vunpack.c.l.bf16 %v5244
    %v5261 = vunpack.c.l.bf16 %v5245
    %v5262 = vunpack.c.l.bf16 %v5246
    %v5263 = vunpack.c.l.bf16 %v5247
    %v5264 = vunpack.c.l.bf16 %v5248
    %v5265 = vunpack.c.l.bf16 %v5249
    %v5266 = vunpack.c.l.bf16 %v5250
    %v5267 = vunpack.c.l.bf16 %v5251
    %v5268 = vunpack.c.l.bf16 %v5252
    %v5269 = vunpack.c.l.bf16 %v5253
    %v5270 = vunpack.c.l.bf16 %v5254
    %v5271 = vunpack.c.l.bf16 %v5255
    %v5272 = vunpack.c.l.bf16 %v5256
    %v5273 = vunpack.c.l.bf16 %v5257
    %v5274 = vunpack.c.l.bf16 %v5258
    %v5275 = vunpack.c.l.bf16 %v5259
    %5276 = vmatpush.msra.mxu0 %v5275
    %5277 = vmatpush.msra.mxu0 %v5274
    %5278 = vmatpush.msra.mxu0 %v5273
    %5279 = vmatpush.msra.mxu0 %v5272
    %5280 = vmatpush.msra.mxu0 %v5271
    %5281 = vmatpush.msra.mxu0 %v5270
    %5282 = vmatpush.msra.mxu0 %v5269
    %5283 = vmatpush.msra.mxu0 %v5268
    %5284 = vmatpush.msra.mxu0 %v5267
    %5285 = vmatpush.msra.mxu0 %v5266
    %5286 = vmatpush.msra.mxu0 %v5265
    %5287 = vmatpush.msra.mxu0 %v5264
    %5288 = vmatpush.msra.mxu0 %v5263
    %5289 = vmatpush.msra.mxu0 %v5262
    %5290 = vmatpush.msra.mxu0 %v5261
    %5291 = vmatpush.msra.mxu0 %v5260
    %5292 = vmatmul.f32.gmra.mxu0 %v4757
    %v5293 = vpop.f32.mrf.mxu0
    %v5294 = vadd.f32 0.0, %v5293
    %5295 = vmatmul.f32.gmra.mxu0 %v4759
    %v5296 = vpop.f32.mrf.mxu0
    %v5297 = vadd.f32 0.0, %v5296
    %5298 = vmatmul.f32.gmra.mxu0 %v4762
    %v5299 = vpop.f32.mrf.mxu0
    %v5300 = vadd.f32 0.0, %v5299
    %5301 = vmatmul.f32.gmra.mxu0 %v4764
    %v5302 = vpop.f32.mrf.mxu0
    %v5303 = vadd.f32 0.0, %v5302
    %5304 = vdwg.mxu0
    %v5305 = vadd.f32 %v5239, %v5294
    %v5306 = vadd.f32 %v5240, %v5297
    %v5307 = vadd.f32 %v5241, %v5300
    %v5308 = vadd.f32 %v5242, %v5303
    %s5309 = scalar_lea.vmem %s7, 448
    %v5310 = vld [vmem:[%s5309] sm:$0xf]
    %v5311 = vld [vmem:[%s5309 + $0x4] sm:$0xf]
    %v5312 = vld [vmem:[%s5309 + $0x8] sm:$0xf]
    %v5313 = vld [vmem:[%s5309 + $0xc] sm:$0xf]
    %v5314 = vld [vmem:[%s5309 + $0x10] sm:$0xf]
    %v5315 = vld [vmem:[%s5309 + $0x14] sm:$0xf]
    %v5316 = vld [vmem:[%s5309 + $0x18] sm:$0xf]
    %v5317 = vld [vmem:[%s5309 + $0x1c] sm:$0xf]
    %v5318 = vld [vmem:[%s5309 + $0x20] sm:$0xf]
    %v5319 = vld [vmem:[%s5309 + $0x24] sm:$0xf]
    %v5320 = vld [vmem:[%s5309 + $0x28] sm:$0xf]
    %v5321 = vld [vmem:[%s5309 + $0x2c] sm:$0xf]
    %v5322 = vld [vmem:[%s5309 + $0x30] sm:$0xf]
    %v5323 = vld [vmem:[%s5309 + $0x34] sm:$0xf]
    %v5324 = vld [vmem:[%s5309 + $0x38] sm:$0xf]
    %v5325 = vld [vmem:[%s5309 + $0x3c] sm:$0xf]
    %v5326 = vunpack.c.l.bf16 %v5310
    %v5327 = vunpack.c.l.bf16 %v5311
    %v5328 = vunpack.c.l.bf16 %v5312
    %v5329 = vunpack.c.l.bf16 %v5313
    %v5330 = vunpack.c.l.bf16 %v5314
    %v5331 = vunpack.c.l.bf16 %v5315
    %v5332 = vunpack.c.l.bf16 %v5316
    %v5333 = vunpack.c.l.bf16 %v5317
    %v5334 = vunpack.c.l.bf16 %v5318
    %v5335 = vunpack.c.l.bf16 %v5319
    %v5336 = vunpack.c.l.bf16 %v5320
    %v5337 = vunpack.c.l.bf16 %v5321
    %v5338 = vunpack.c.l.bf16 %v5322
    %v5339 = vunpack.c.l.bf16 %v5323
    %v5340 = vunpack.c.l.bf16 %v5324
    %v5341 = vunpack.c.l.bf16 %v5325
    %5342 = vmatpush.msra.mxu0 %v5341
    %5343 = vmatpush.msra.mxu0 %v5340
    %5344 = vmatpush.msra.mxu0 %v5339
    %5345 = vmatpush.msra.mxu0 %v5338
    %5346 = vmatpush.msra.mxu0 %v5337
    %5347 = vmatpush.msra.mxu0 %v5336
    %5348 = vmatpush.msra.mxu0 %v5335
    %5349 = vmatpush.msra.mxu0 %v5334
    %5350 = vmatpush.msra.mxu0 %v5333
    %5351 = vmatpush.msra.mxu0 %v5332
    %5352 = vmatpush.msra.mxu0 %v5331
    %5353 = vmatpush.msra.mxu0 %v5330
    %5354 = vmatpush.msra.mxu0 %v5329
    %5355 = vmatpush.msra.mxu0 %v5328
    %5356 = vmatpush.msra.mxu0 %v5327
    %5357 = vmatpush.msra.mxu0 %v5326
    %5358 = vmatmul.f32.gmra.mxu0 %v4767
    %v5359 = vpop.f32.mrf.mxu0
    %v5360 = vadd.f32 0.0, %v5359
    %5361 = vmatmul.f32.gmra.mxu0 %v4769
    %v5362 = vpop.f32.mrf.mxu0
    %v5363 = vadd.f32 0.0, %v5362
    %5364 = vmatmul.f32.gmra.mxu0 %v4772
    %v5365 = vpop.f32.mrf.mxu0
    %v5366 = vadd.f32 0.0, %v5365
    %5367 = vmatmul.f32.gmra.mxu0 %v4774
    %v5368 = vpop.f32.mrf.mxu0
    %v5369 = vadd.f32 0.0, %v5368
    %5370 = vdwg.mxu0
    %v5371 = vadd.f32 %v5305, %v5360
    %v5372 = vadd.f32 %v5306, %v5363
    %v5373 = vadd.f32 %v5307, %v5366
    %v5374 = vadd.f32 %v5308, %v5369
    %s5375 = scalar_lea.vmem %s7, 512
    %v5376 = vld [vmem:[%s5375] sm:$0xf]
    %v5377 = vld [vmem:[%s5375 + $0x4] sm:$0xf]
    %v5378 = vld [vmem:[%s5375 + $0x8] sm:$0xf]
    %v5379 = vld [vmem:[%s5375 + $0xc] sm:$0xf]
    %v5380 = vld [vmem:[%s5375 + $0x10] sm:$0xf]
    %v5381 = vld [vmem:[%s5375 + $0x14] sm:$0xf]
    %v5382 = vld [vmem:[%s5375 + $0x18] sm:$0xf]
    %v5383 = vld [vmem:[%s5375 + $0x1c] sm:$0xf]
    %v5384 = vld [vmem:[%s5375 + $0x20] sm:$0xf]
    %v5385 = vld [vmem:[%s5375 + $0x24] sm:$0xf]
    %v5386 = vld [vmem:[%s5375 + $0x28] sm:$0xf]
    %v5387 = vld [vmem:[%s5375 + $0x2c] sm:$0xf]
    %v5388 = vld [vmem:[%s5375 + $0x30] sm:$0xf]
    %v5389 = vld [vmem:[%s5375 + $0x34] sm:$0xf]
    %v5390 = vld [vmem:[%s5375 + $0x38] sm:$0xf]
    %v5391 = vld [vmem:[%s5375 + $0x3c] sm:$0xf]
    %v5392 = vunpack.c.l.bf16 %v5376
    %v5393 = vunpack.c.l.bf16 %v5377
    %v5394 = vunpack.c.l.bf16 %v5378
    %v5395 = vunpack.c.l.bf16 %v5379
    %v5396 = vunpack.c.l.bf16 %v5380
    %v5397 = vunpack.c.l.bf16 %v5381
    %v5398 = vunpack.c.l.bf16 %v5382
    %v5399 = vunpack.c.l.bf16 %v5383
    %v5400 = vunpack.c.l.bf16 %v5384
    %v5401 = vunpack.c.l.bf16 %v5385
    %v5402 = vunpack.c.l.bf16 %v5386
    %v5403 = vunpack.c.l.bf16 %v5387
    %v5404 = vunpack.c.l.bf16 %v5388
    %v5405 = vunpack.c.l.bf16 %v5389
    %v5406 = vunpack.c.l.bf16 %v5390
    %v5407 = vunpack.c.l.bf16 %v5391
    %5408 = vmatpush.msra.mxu0 %v5407
    %5409 = vmatpush.msra.mxu0 %v5406
    %5410 = vmatpush.msra.mxu0 %v5405
    %5411 = vmatpush.msra.mxu0 %v5404
    %5412 = vmatpush.msra.mxu0 %v5403
    %5413 = vmatpush.msra.mxu0 %v5402
    %5414 = vmatpush.msra.mxu0 %v5401
    %5415 = vmatpush.msra.mxu0 %v5400
    %5416 = vmatpush.msra.mxu0 %v5399
    %5417 = vmatpush.msra.mxu0 %v5398
    %5418 = vmatpush.msra.mxu0 %v5397
    %5419 = vmatpush.msra.mxu0 %v5396
    %5420 = vmatpush.msra.mxu0 %v5395
    %5421 = vmatpush.msra.mxu0 %v5394
    %5422 = vmatpush.msra.mxu0 %v5393
    %5423 = vmatpush.msra.mxu0 %v5392
    %5424 = vmatmul.f32.gmra.mxu0 %v4777
    %v5425 = vpop.f32.mrf.mxu0
    %v5426 = vadd.f32 0.0, %v5425
    %5427 = vmatmul.f32.gmra.mxu0 %v4779
    %v5428 = vpop.f32.mrf.mxu0
    %v5429 = vadd.f32 0.0, %v5428
    %5430 = vmatmul.f32.gmra.mxu0 %v4782
    %v5431 = vpop.f32.mrf.mxu0
    %v5432 = vadd.f32 0.0, %v5431
    %5433 = vmatmul.f32.gmra.mxu0 %v4784
    %v5434 = vpop.f32.mrf.mxu0
    %v5435 = vadd.f32 0.0, %v5434
    %5436 = vdwg.mxu0
    %v5437 = vadd.f32 %v5371, %v5426
    %v5438 = vadd.f32 %v5372, %v5429
    %v5439 = vadd.f32 %v5373, %v5432
    %v5440 = vadd.f32 %v5374, %v5435
    %s5441 = scalar_lea.vmem %s7, 576
    %v5442 = vld [vmem:[%s5441] sm:$0xf]
    %v5443 = vld [vmem:[%s5441 + $0x4] sm:$0xf]
    %v5444 = vld [vmem:[%s5441 + $0x8] sm:$0xf]
    %v5445 = vld [vmem:[%s5441 + $0xc] sm:$0xf]
    %v5446 = vld [vmem:[%s5441 + $0x10] sm:$0xf]
    %v5447 = vld [vmem:[%s5441 + $0x14] sm:$0xf]
    %v5448 = vld [vmem:[%s5441 + $0x18] sm:$0xf]
    %v5449 = vld [vmem:[%s5441 + $0x1c] sm:$0xf]
    %v5450 = vld [vmem:[%s5441 + $0x20] sm:$0xf]
    %v5451 = vld [vmem:[%s5441 + $0x24] sm:$0xf]
    %v5452 = vld [vmem:[%s5441 + $0x28] sm:$0xf]
    %v5453 = vld [vmem:[%s5441 + $0x2c] sm:$0xf]
    %v5454 = vld [vmem:[%s5441 + $0x30] sm:$0xf]
    %v5455 = vld [vmem:[%s5441 + $0x34] sm:$0xf]
    %v5456 = vld [vmem:[%s5441 + $0x38] sm:$0xf]
    %v5457 = vld [vmem:[%s5441 + $0x3c] sm:$0xf]
    %v5458 = vunpack.c.l.bf16 %v5442
    %v5459 = vunpack.c.l.bf16 %v5443
    %v5460 = vunpack.c.l.bf16 %v5444
    %v5461 = vunpack.c.l.bf16 %v5445
    %v5462 = vunpack.c.l.bf16 %v5446
    %v5463 = vunpack.c.l.bf16 %v5447
    %v5464 = vunpack.c.l.bf16 %v5448
    %v5465 = vunpack.c.l.bf16 %v5449
    %v5466 = vunpack.c.l.bf16 %v5450
    %v5467 = vunpack.c.l.bf16 %v5451
    %v5468 = vunpack.c.l.bf16 %v5452
    %v5469 = vunpack.c.l.bf16 %v5453
    %v5470 = vunpack.c.l.bf16 %v5454
    %v5471 = vunpack.c.l.bf16 %v5455
    %v5472 = vunpack.c.l.bf16 %v5456
    %v5473 = vunpack.c.l.bf16 %v5457
    %5474 = vmatpush.msra.mxu0 %v5473
    %5475 = vmatpush.msra.mxu0 %v5472
    %5476 = vmatpush.msra.mxu0 %v5471
    %5477 = vmatpush.msra.mxu0 %v5470
    %5478 = vmatpush.msra.mxu0 %v5469
    %5479 = vmatpush.msra.mxu0 %v5468
    %5480 = vmatpush.msra.mxu0 %v5467
    %5481 = vmatpush.msra.mxu0 %v5466
    %5482 = vmatpush.msra.mxu0 %v5465
    %5483 = vmatpush.msra.mxu0 %v5464
    %5484 = vmatpush.msra.mxu0 %v5463
    %5485 = vmatpush.msra.mxu0 %v5462
    %5486 = vmatpush.msra.mxu0 %v5461
    %5487 = vmatpush.msra.mxu0 %v5460
    %5488 = vmatpush.msra.mxu0 %v5459
    %5489 = vmatpush.msra.mxu0 %v5458
    %5490 = vmatmul.f32.gmra.mxu0 %v4787
    %v5491 = vpop.f32.mrf.mxu0
    %v5492 = vadd.f32 0.0, %v5491
    %5493 = vmatmul.f32.gmra.mxu0 %v4789
    %v5494 = vpop.f32.mrf.mxu0
    %v5495 = vadd.f32 0.0, %v5494
    %5496 = vmatmul.f32.gmra.mxu0 %v4792
    %v5497 = vpop.f32.mrf.mxu0
    %v5498 = vadd.f32 0.0, %v5497
    %5499 = vmatmul.f32.gmra.mxu0 %v4794
    %v5500 = vpop.f32.mrf.mxu0
    %v5501 = vadd.f32 0.0, %v5500
    %5502 = vdwg.mxu0
    %v5503 = vadd.f32 %v5437, %v5492
    %v5504 = vadd.f32 %v5438, %v5495
    %v5505 = vadd.f32 %v5439, %v5498
    %v5506 = vadd.f32 %v5440, %v5501
    %s5507 = scalar_lea.vmem %s7, 640
    %v5508 = vld [vmem:[%s5507] sm:$0xf]
    %v5509 = vld [vmem:[%s5507 + $0x4] sm:$0xf]
    %v5510 = vld [vmem:[%s5507 + $0x8] sm:$0xf]
    %v5511 = vld [vmem:[%s5507 + $0xc] sm:$0xf]
    %v5512 = vld [vmem:[%s5507 + $0x10] sm:$0xf]
    %v5513 = vld [vmem:[%s5507 + $0x14] sm:$0xf]
    %v5514 = vld [vmem:[%s5507 + $0x18] sm:$0xf]
    %v5515 = vld [vmem:[%s5507 + $0x1c] sm:$0xf]
    %v5516 = vld [vmem:[%s5507 + $0x20] sm:$0xf]
    %v5517 = vld [vmem:[%s5507 + $0x24] sm:$0xf]
    %v5518 = vld [vmem:[%s5507 + $0x28] sm:$0xf]
    %v5519 = vld [vmem:[%s5507 + $0x2c] sm:$0xf]
    %v5520 = vld [vmem:[%s5507 + $0x30] sm:$0xf]
    %v5521 = vld [vmem:[%s5507 + $0x34] sm:$0xf]
    %v5522 = vld [vmem:[%s5507 + $0x38] sm:$0xf]
    %v5523 = vld [vmem:[%s5507 + $0x3c] sm:$0xf]
    %v5524 = vunpack.c.l.bf16 %v5508
    %v5525 = vunpack.c.l.bf16 %v5509
    %v5526 = vunpack.c.l.bf16 %v5510
    %v5527 = vunpack.c.l.bf16 %v5511
    %v5528 = vunpack.c.l.bf16 %v5512
    %v5529 = vunpack.c.l.bf16 %v5513
    %v5530 = vunpack.c.l.bf16 %v5514
    %v5531 = vunpack.c.l.bf16 %v5515
    %v5532 = vunpack.c.l.bf16 %v5516
    %v5533 = vunpack.c.l.bf16 %v5517
    %v5534 = vunpack.c.l.bf16 %v5518
    %v5535 = vunpack.c.l.bf16 %v5519
    %v5536 = vunpack.c.l.bf16 %v5520
    %v5537 = vunpack.c.l.bf16 %v5521
    %v5538 = vunpack.c.l.bf16 %v5522
    %v5539 = vunpack.c.l.bf16 %v5523
    %5540 = vmatpush.msra.mxu0 %v5539
    %5541 = vmatpush.msra.mxu0 %v5538
    %5542 = vmatpush.msra.mxu0 %v5537
    %5543 = vmatpush.msra.mxu0 %v5536
    %5544 = vmatpush.msra.mxu0 %v5535
    %5545 = vmatpush.msra.mxu0 %v5534
    %5546 = vmatpush.msra.mxu0 %v5533
    %5547 = vmatpush.msra.mxu0 %v5532
    %5548 = vmatpush.msra.mxu0 %v5531
    %5549 = vmatpush.msra.mxu0 %v5530
    %5550 = vmatpush.msra.mxu0 %v5529
    %5551 = vmatpush.msra.mxu0 %v5528
    %5552 = vmatpush.msra.mxu0 %v5527
    %5553 = vmatpush.msra.mxu0 %v5526
    %5554 = vmatpush.msra.mxu0 %v5525
    %5555 = vmatpush.msra.mxu0 %v5524
    %5556 = vmatmul.f32.gmra.mxu0 %v4797
    %v5557 = vpop.f32.mrf.mxu0
    %v5558 = vadd.f32 0.0, %v5557
    %5559 = vmatmul.f32.gmra.mxu0 %v4799
    %v5560 = vpop.f32.mrf.mxu0
    %v5561 = vadd.f32 0.0, %v5560
    %5562 = vmatmul.f32.gmra.mxu0 %v4802
    %v5563 = vpop.f32.mrf.mxu0
    %v5564 = vadd.f32 0.0, %v5563
    %5565 = vmatmul.f32.gmra.mxu0 %v4804
    %v5566 = vpop.f32.mrf.mxu0
    %v5567 = vadd.f32 0.0, %v5566
    %5568 = vdwg.mxu0
    %v5569 = vadd.f32 %v5503, %v5558
    %v5570 = vadd.f32 %v5504, %v5561
    %v5571 = vadd.f32 %v5505, %v5564
    %v5572 = vadd.f32 %v5506, %v5567
    %s5573 = scalar_lea.vmem %s7, 704
    %v5574 = vld [vmem:[%s5573] sm:$0xf]
    %v5575 = vld [vmem:[%s5573 + $0x4] sm:$0xf]
    %v5576 = vld [vmem:[%s5573 + $0x8] sm:$0xf]
    %v5577 = vld [vmem:[%s5573 + $0xc] sm:$0xf]
    %v5578 = vld [vmem:[%s5573 + $0x10] sm:$0xf]
    %v5579 = vld [vmem:[%s5573 + $0x14] sm:$0xf]
    %v5580 = vld [vmem:[%s5573 + $0x18] sm:$0xf]
    %v5581 = vld [vmem:[%s5573 + $0x1c] sm:$0xf]
    %v5582 = vld [vmem:[%s5573 + $0x20] sm:$0xf]
    %v5583 = vld [vmem:[%s5573 + $0x24] sm:$0xf]
    %v5584 = vld [vmem:[%s5573 + $0x28] sm:$0xf]
    %v5585 = vld [vmem:[%s5573 + $0x2c] sm:$0xf]
    %v5586 = vld [vmem:[%s5573 + $0x30] sm:$0xf]
    %v5587 = vld [vmem:[%s5573 + $0x34] sm:$0xf]
    %v5588 = vld [vmem:[%s5573 + $0x38] sm:$0xf]
    %v5589 = vld [vmem:[%s5573 + $0x3c] sm:$0xf]
    %v5590 = vunpack.c.l.bf16 %v5574
    %v5591 = vunpack.c.l.bf16 %v5575
    %v5592 = vunpack.c.l.bf16 %v5576
    %v5593 = vunpack.c.l.bf16 %v5577
    %v5594 = vunpack.c.l.bf16 %v5578
    %v5595 = vunpack.c.l.bf16 %v5579
    %v5596 = vunpack.c.l.bf16 %v5580
    %v5597 = vunpack.c.l.bf16 %v5581
    %v5598 = vunpack.c.l.bf16 %v5582
    %v5599 = vunpack.c.l.bf16 %v5583
    %v5600 = vunpack.c.l.bf16 %v5584
    %v5601 = vunpack.c.l.bf16 %v5585
    %v5602 = vunpack.c.l.bf16 %v5586
    %v5603 = vunpack.c.l.bf16 %v5587
    %v5604 = vunpack.c.l.bf16 %v5588
    %v5605 = vunpack.c.l.bf16 %v5589
    %5606 = vmatpush.msra.mxu0 %v5605
    %5607 = vmatpush.msra.mxu0 %v5604
    %5608 = vmatpush.msra.mxu0 %v5603
    %5609 = vmatpush.msra.mxu0 %v5602
    %5610 = vmatpush.msra.mxu0 %v5601
    %5611 = vmatpush.msra.mxu0 %v5600
    %5612 = vmatpush.msra.mxu0 %v5599
    %5613 = vmatpush.msra.mxu0 %v5598
    %5614 = vmatpush.msra.mxu0 %v5597
    %5615 = vmatpush.msra.mxu0 %v5596
    %5616 = vmatpush.msra.mxu0 %v5595
    %5617 = vmatpush.msra.mxu0 %v5594
    %5618 = vmatpush.msra.mxu0 %v5593
    %5619 = vmatpush.msra.mxu0 %v5592
    %5620 = vmatpush.msra.mxu0 %v5591
    %5621 = vmatpush.msra.mxu0 %v5590
    %5622 = vmatmul.f32.gmra.mxu0 %v4807
    %v5623 = vpop.f32.mrf.mxu0
    %v5624 = vadd.f32 0.0, %v5623
    %5625 = vmatmul.f32.gmra.mxu0 %v4809
    %v5626 = vpop.f32.mrf.mxu0
    %v5627 = vadd.f32 0.0, %v5626
    %5628 = vmatmul.f32.gmra.mxu0 %v4812
    %v5629 = vpop.f32.mrf.mxu0
    %v5630 = vadd.f32 0.0, %v5629
    %5631 = vmatmul.f32.gmra.mxu0 %v4814
    %v5632 = vpop.f32.mrf.mxu0
    %v5633 = vadd.f32 0.0, %v5632
    %5634 = vdwg.mxu0
    %v5635 = vadd.f32 %v5569, %v5624
    %v5636 = vadd.f32 %v5570, %v5627
    %v5637 = vadd.f32 %v5571, %v5630
    %v5638 = vadd.f32 %v5572, %v5633
    %s5639 = scalar_lea.vmem %s7, 768
    %v5640 = vld [vmem:[%s5639] sm:$0xf]
    %v5641 = vld [vmem:[%s5639 + $0x4] sm:$0xf]
    %v5642 = vld [vmem:[%s5639 + $0x8] sm:$0xf]
    %v5643 = vld [vmem:[%s5639 + $0xc] sm:$0xf]
    %v5644 = vld [vmem:[%s5639 + $0x10] sm:$0xf]
    %v5645 = vld [vmem:[%s5639 + $0x14] sm:$0xf]
    %v5646 = vld [vmem:[%s5639 + $0x18] sm:$0xf]
    %v5647 = vld [vmem:[%s5639 + $0x1c] sm:$0xf]
    %v5648 = vld [vmem:[%s5639 + $0x20] sm:$0xf]
    %v5649 = vld [vmem:[%s5639 + $0x24] sm:$0xf]
    %v5650 = vld [vmem:[%s5639 + $0x28] sm:$0xf]
    %v5651 = vld [vmem:[%s5639 + $0x2c] sm:$0xf]
    %v5652 = vld [vmem:[%s5639 + $0x30] sm:$0xf]
    %v5653 = vld [vmem:[%s5639 + $0x34] sm:$0xf]
    %v5654 = vld [vmem:[%s5639 + $0x38] sm:$0xf]
    %v5655 = vld [vmem:[%s5639 + $0x3c] sm:$0xf]
    %v5656 = vunpack.c.l.bf16 %v5640
    %v5657 = vunpack.c.l.bf16 %v5641
    %v5658 = vunpack.c.l.bf16 %v5642
    %v5659 = vunpack.c.l.bf16 %v5643
    %v5660 = vunpack.c.l.bf16 %v5644
    %v5661 = vunpack.c.l.bf16 %v5645
    %v5662 = vunpack.c.l.bf16 %v5646
    %v5663 = vunpack.c.l.bf16 %v5647
    %v5664 = vunpack.c.l.bf16 %v5648
    %v5665 = vunpack.c.l.bf16 %v5649
    %v5666 = vunpack.c.l.bf16 %v5650
    %v5667 = vunpack.c.l.bf16 %v5651
    %v5668 = vunpack.c.l.bf16 %v5652
    %v5669 = vunpack.c.l.bf16 %v5653
    %v5670 = vunpack.c.l.bf16 %v5654
    %v5671 = vunpack.c.l.bf16 %v5655
    %5672 = vmatpush.msra.mxu0 %v5671
    %5673 = vmatpush.msra.mxu0 %v5670
    %5674 = vmatpush.msra.mxu0 %v5669
    %5675 = vmatpush.msra.mxu0 %v5668
    %5676 = vmatpush.msra.mxu0 %v5667
    %5677 = vmatpush.msra.mxu0 %v5666
    %5678 = vmatpush.msra.mxu0 %v5665
    %5679 = vmatpush.msra.mxu0 %v5664
    %5680 = vmatpush.msra.mxu0 %v5663
    %5681 = vmatpush.msra.mxu0 %v5662
    %5682 = vmatpush.msra.mxu0 %v5661
    %5683 = vmatpush.msra.mxu0 %v5660
    %5684 = vmatpush.msra.mxu0 %v5659
    %5685 = vmatpush.msra.mxu0 %v5658
    %5686 = vmatpush.msra.mxu0 %v5657
    %5687 = vmatpush.msra.mxu0 %v5656
    %5688 = vmatmul.f32.gmra.mxu0 %v4817
    %v5689 = vpop.f32.mrf.mxu0
    %v5690 = vadd.f32 0.0, %v5689
    %5691 = vmatmul.f32.gmra.mxu0 %v4819
    %v5692 = vpop.f32.mrf.mxu0
    %v5693 = vadd.f32 0.0, %v5692
    %5694 = vmatmul.f32.gmra.mxu0 %v4822
    %v5695 = vpop.f32.mrf.mxu0
    %v5696 = vadd.f32 0.0, %v5695
    %5697 = vmatmul.f32.gmra.mxu0 %v4824
    %v5698 = vpop.f32.mrf.mxu0
    %v5699 = vadd.f32 0.0, %v5698
    %5700 = vdwg.mxu0
    %v5701 = vadd.f32 %v5635, %v5690
    %v5702 = vadd.f32 %v5636, %v5693
    %v5703 = vadd.f32 %v5637, %v5696
    %v5704 = vadd.f32 %v5638, %v5699
    %s5705 = scalar_lea.vmem %s7, 832
    %v5706 = vld [vmem:[%s5705] sm:$0xf]
    %v5707 = vld [vmem:[%s5705 + $0x4] sm:$0xf]
    %v5708 = vld [vmem:[%s5705 + $0x8] sm:$0xf]
    %v5709 = vld [vmem:[%s5705 + $0xc] sm:$0xf]
    %v5710 = vld [vmem:[%s5705 + $0x10] sm:$0xf]
    %v5711 = vld [vmem:[%s5705 + $0x14] sm:$0xf]
    %v5712 = vld [vmem:[%s5705 + $0x18] sm:$0xf]
    %v5713 = vld [vmem:[%s5705 + $0x1c] sm:$0xf]
    %v5714 = vld [vmem:[%s5705 + $0x20] sm:$0xf]
    %v5715 = vld [vmem:[%s5705 + $0x24] sm:$0xf]
    %v5716 = vld [vmem:[%s5705 + $0x28] sm:$0xf]
    %v5717 = vld [vmem:[%s5705 + $0x2c] sm:$0xf]
    %v5718 = vld [vmem:[%s5705 + $0x30] sm:$0xf]
    %v5719 = vld [vmem:[%s5705 + $0x34] sm:$0xf]
    %v5720 = vld [vmem:[%s5705 + $0x38] sm:$0xf]
    %v5721 = vld [vmem:[%s5705 + $0x3c] sm:$0xf]
    %v5722 = vunpack.c.l.bf16 %v5706
    %v5723 = vunpack.c.l.bf16 %v5707
    %v5724 = vunpack.c.l.bf16 %v5708
    %v5725 = vunpack.c.l.bf16 %v5709
    %v5726 = vunpack.c.l.bf16 %v5710
    %v5727 = vunpack.c.l.bf16 %v5711
    %v5728 = vunpack.c.l.bf16 %v5712
    %v5729 = vunpack.c.l.bf16 %v5713
    %v5730 = vunpack.c.l.bf16 %v5714
    %v5731 = vunpack.c.l.bf16 %v5715
    %v5732 = vunpack.c.l.bf16 %v5716
    %v5733 = vunpack.c.l.bf16 %v5717
    %v5734 = vunpack.c.l.bf16 %v5718
    %v5735 = vunpack.c.l.bf16 %v5719
    %v5736 = vunpack.c.l.bf16 %v5720
    %v5737 = vunpack.c.l.bf16 %v5721
    %5738 = vmatpush.msra.mxu0 %v5737
    %5739 = vmatpush.msra.mxu0 %v5736
    %5740 = vmatpush.msra.mxu0 %v5735
    %5741 = vmatpush.msra.mxu0 %v5734
    %5742 = vmatpush.msra.mxu0 %v5733
    %5743 = vmatpush.msra.mxu0 %v5732
    %5744 = vmatpush.msra.mxu0 %v5731
    %5745 = vmatpush.msra.mxu0 %v5730
    %5746 = vmatpush.msra.mxu0 %v5729
    %5747 = vmatpush.msra.mxu0 %v5728
    %5748 = vmatpush.msra.mxu0 %v5727
    %5749 = vmatpush.msra.mxu0 %v5726
    %5750 = vmatpush.msra.mxu0 %v5725
    %5751 = vmatpush.msra.mxu0 %v5724
    %5752 = vmatpush.msra.mxu0 %v5723
    %5753 = vmatpush.msra.mxu0 %v5722
    %5754 = vmatmul.f32.gmra.mxu0 %v4827
    %v5755 = vpop.f32.mrf.mxu0
    %v5756 = vadd.f32 0.0, %v5755
    %5757 = vmatmul.f32.gmra.mxu0 %v4829
    %v5758 = vpop.f32.mrf.mxu0
    %v5759 = vadd.f32 0.0, %v5758
    %5760 = vmatmul.f32.gmra.mxu0 %v4832
    %v5761 = vpop.f32.mrf.mxu0
    %v5762 = vadd.f32 0.0, %v5761
    %5763 = vmatmul.f32.gmra.mxu0 %v4834
    %v5764 = vpop.f32.mrf.mxu0
    %v5765 = vadd.f32 0.0, %v5764
    %5766 = vdwg.mxu0
    %v5767 = vadd.f32 %v5701, %v5756
    %v5768 = vadd.f32 %v5702, %v5759
    %v5769 = vadd.f32 %v5703, %v5762
    %v5770 = vadd.f32 %v5704, %v5765
    %s5771 = scalar_lea.vmem %s7, 896
    %v5772 = vld [vmem:[%s5771] sm:$0xf]
    %v5773 = vld [vmem:[%s5771 + $0x4] sm:$0xf]
    %v5774 = vld [vmem:[%s5771 + $0x8] sm:$0xf]
    %v5775 = vld [vmem:[%s5771 + $0xc] sm:$0xf]
    %v5776 = vld [vmem:[%s5771 + $0x10] sm:$0xf]
    %v5777 = vld [vmem:[%s5771 + $0x14] sm:$0xf]
    %v5778 = vld [vmem:[%s5771 + $0x18] sm:$0xf]
    %v5779 = vld [vmem:[%s5771 + $0x1c] sm:$0xf]
    %v5780 = vld [vmem:[%s5771 + $0x20] sm:$0xf]
    %v5781 = vld [vmem:[%s5771 + $0x24] sm:$0xf]
    %v5782 = vld [vmem:[%s5771 + $0x28] sm:$0xf]
    %v5783 = vld [vmem:[%s5771 + $0x2c] sm:$0xf]
    %v5784 = vld [vmem:[%s5771 + $0x30] sm:$0xf]
    %v5785 = vld [vmem:[%s5771 + $0x34] sm:$0xf]
    %v5786 = vld [vmem:[%s5771 + $0x38] sm:$0xf]
    %v5787 = vld [vmem:[%s5771 + $0x3c] sm:$0xf]
    %v5788 = vunpack.c.l.bf16 %v5772
    %v5789 = vunpack.c.l.bf16 %v5773
    %v5790 = vunpack.c.l.bf16 %v5774
    %v5791 = vunpack.c.l.bf16 %v5775
    %v5792 = vunpack.c.l.bf16 %v5776
    %v5793 = vunpack.c.l.bf16 %v5777
    %v5794 = vunpack.c.l.bf16 %v5778
    %v5795 = vunpack.c.l.bf16 %v5779
    %v5796 = vunpack.c.l.bf16 %v5780
    %v5797 = vunpack.c.l.bf16 %v5781
    %v5798 = vunpack.c.l.bf16 %v5782
    %v5799 = vunpack.c.l.bf16 %v5783
    %v5800 = vunpack.c.l.bf16 %v5784
    %v5801 = vunpack.c.l.bf16 %v5785
    %v5802 = vunpack.c.l.bf16 %v5786
    %v5803 = vunpack.c.l.bf16 %v5787
    %5804 = vmatpush.msra.mxu0 %v5803
    %5805 = vmatpush.msra.mxu0 %v5802
    %5806 = vmatpush.msra.mxu0 %v5801
    %5807 = vmatpush.msra.mxu0 %v5800
    %5808 = vmatpush.msra.mxu0 %v5799
    %5809 = vmatpush.msra.mxu0 %v5798
    %5810 = vmatpush.msra.mxu0 %v5797
    %5811 = vmatpush.msra.mxu0 %v5796
    %5812 = vmatpush.msra.mxu0 %v5795
    %5813 = vmatpush.msra.mxu0 %v5794
    %5814 = vmatpush.msra.mxu0 %v5793
    %5815 = vmatpush.msra.mxu0 %v5792
    %5816 = vmatpush.msra.mxu0 %v5791
    %5817 = vmatpush.msra.mxu0 %v5790
    %5818 = vmatpush.msra.mxu0 %v5789
    %5819 = vmatpush.msra.mxu0 %v5788
    %5820 = vmatmul.f32.gmra.mxu0 %v4837
    %v5821 = vpop.f32.mrf.mxu0
    %v5822 = vadd.f32 0.0, %v5821
    %5823 = vmatmul.f32.gmra.mxu0 %v4839
    %v5824 = vpop.f32.mrf.mxu0
    %v5825 = vadd.f32 0.0, %v5824
    %5826 = vmatmul.f32.gmra.mxu0 %v4842
    %v5827 = vpop.f32.mrf.mxu0
    %v5828 = vadd.f32 0.0, %v5827
    %5829 = vmatmul.f32.gmra.mxu0 %v4844
    %v5830 = vpop.f32.mrf.mxu0
    %v5831 = vadd.f32 0.0, %v5830
    %5832 = vdwg.mxu0
    %v5833 = vadd.f32 %v5767, %v5822
    %v5834 = vadd.f32 %v5768, %v5825
    %v5835 = vadd.f32 %v5769, %v5828
    %v5836 = vadd.f32 %v5770, %v5831
    %s5837 = scalar_lea.vmem %s7, 960
    %v5838 = vld [vmem:[%s5837] sm:$0xf]
    %v5839 = vld [vmem:[%s5837 + $0x4] sm:$0xf]
    %v5840 = vld [vmem:[%s5837 + $0x8] sm:$0xf]
    %v5841 = vld [vmem:[%s5837 + $0xc] sm:$0xf]
    %v5842 = vld [vmem:[%s5837 + $0x10] sm:$0xf]
    %v5843 = vld [vmem:[%s5837 + $0x14] sm:$0xf]
    %v5844 = vld [vmem:[%s5837 + $0x18] sm:$0xf]
    %v5845 = vld [vmem:[%s5837 + $0x1c] sm:$0xf]
    %v5846 = vld [vmem:[%s5837 + $0x20] sm:$0xf]
    %v5847 = vld [vmem:[%s5837 + $0x24] sm:$0xf]
    %v5848 = vld [vmem:[%s5837 + $0x28] sm:$0xf]
    %v5849 = vld [vmem:[%s5837 + $0x2c] sm:$0xf]
    %v5850 = vld [vmem:[%s5837 + $0x30] sm:$0xf]
    %v5851 = vld [vmem:[%s5837 + $0x34] sm:$0xf]
    %v5852 = vld [vmem:[%s5837 + $0x38] sm:$0xf]
    %v5853 = vld [vmem:[%s5837 + $0x3c] sm:$0xf]
    %v5854 = vunpack.c.l.bf16 %v5838
    %v5855 = vunpack.c.l.bf16 %v5839
    %v5856 = vunpack.c.l.bf16 %v5840
    %v5857 = vunpack.c.l.bf16 %v5841
    %v5858 = vunpack.c.l.bf16 %v5842
    %v5859 = vunpack.c.l.bf16 %v5843
    %v5860 = vunpack.c.l.bf16 %v5844
    %v5861 = vunpack.c.l.bf16 %v5845
    %v5862 = vunpack.c.l.bf16 %v5846
    %v5863 = vunpack.c.l.bf16 %v5847
    %v5864 = vunpack.c.l.bf16 %v5848
    %v5865 = vunpack.c.l.bf16 %v5849
    %v5866 = vunpack.c.l.bf16 %v5850
    %v5867 = vunpack.c.l.bf16 %v5851
    %v5868 = vunpack.c.l.bf16 %v5852
    %v5869 = vunpack.c.l.bf16 %v5853
    %5870 = vmatpush.msra.mxu0 %v5869
    %5871 = vmatpush.msra.mxu0 %v5868
    %5872 = vmatpush.msra.mxu0 %v5867
    %5873 = vmatpush.msra.mxu0 %v5866
    %5874 = vmatpush.msra.mxu0 %v5865
    %5875 = vmatpush.msra.mxu0 %v5864
    %5876 = vmatpush.msra.mxu0 %v5863
    %5877 = vmatpush.msra.mxu0 %v5862
    %5878 = vmatpush.msra.mxu0 %v5861
    %5879 = vmatpush.msra.mxu0 %v5860
    %5880 = vmatpush.msra.mxu0 %v5859
    %5881 = vmatpush.msra.mxu0 %v5858
    %5882 = vmatpush.msra.mxu0 %v5857
    %5883 = vmatpush.msra.mxu0 %v5856
    %5884 = vmatpush.msra.mxu0 %v5855
    %5885 = vmatpush.msra.mxu0 %v5854
    %5886 = vmatmul.f32.gmra.mxu0 %v4847
    %v5887 = vpop.f32.mrf.mxu0
    %v5888 = vadd.f32 0.0, %v5887
    %5889 = vmatmul.f32.gmra.mxu0 %v4849
    %v5890 = vpop.f32.mrf.mxu0
    %v5891 = vadd.f32 0.0, %v5890
    %5892 = vmatmul.f32.gmra.mxu0 %v4852
    %v5893 = vpop.f32.mrf.mxu0
    %v5894 = vadd.f32 0.0, %v5893
    %5895 = vmatmul.f32.gmra.mxu0 %v4854
    %v5896 = vpop.f32.mrf.mxu0
    %v5897 = vadd.f32 0.0, %v5896
    %5898 = vdwg.mxu0
    %v5899 = vadd.f32 %v5833, %v5888
    %v5900 = vadd.f32 %v5834, %v5891
    %v5901 = vadd.f32 %v5835, %v5894
    %v5902 = vadd.f32 %v5836, %v5897
    %vm5903 = vcmask 261120
    %v5904 = vsel %vm5903, %v5899, 0.0
    %5905 = vadd.xlane.f32.xlu0 %v5904
    %v5906 = vpop.xlane.xlu0 %5905
    %v5907 = vsel %vm5903, %v5900, 0.0
    %5908 = vadd.xlane.f32.xlu0 %v5907
    %v5909 = vpop.xlane.xlu0 %5908
    %v5910 = vsel %vm5903, %v5901, 0.0
    %5911 = vadd.xlane.f32.xlu0 %v5910
    %v5912 = vpop.xlane.xlu0 %5911
    %v5913 = vsel %vm5903, %v5902, 0.0
    %5914 = vadd.xlane.f32.xlu0 %v5913
    %v5915 = vpop.xlane.xlu0 %5914
    %v5916 = vmul.f32 %v5899, %v5899
    %v5917 = vmul.f32 %v5900, %v5900
    %v5918 = vmul.f32 %v5901, %v5901
    %v5919 = vmul.f32 %v5902, %v5902
    %v5920 = vsel %vm5903, %v5916, 0.0
    %5921 = vadd.xlane.f32.xlu0 %v5920
    %v5922 = vpop.xlane.xlu0 %5921
    %v5923 = vsel %vm5903, %v5917, 0.0
    %5924 = vadd.xlane.f32.xlu0 %v5923
    %v5925 = vpop.xlane.xlu0 %5924
    %v5926 = vsel %vm5903, %v5918, 0.0
    %5927 = vadd.xlane.f32.xlu0 %v5926
    %v5928 = vpop.xlane.xlu0 %5927
    %v5929 = vsel %vm5903, %v5919, 0.0
    %5930 = vadd.xlane.f32.xlu0 %v5929
    %v5931 = vpop.xlane.xlu0 %5930
    %v5932 = vmul.f32 %v5906, 0.03125
    %v5933 = vmul.f32 %v5909, 0.03125
    %v5934 = vmul.f32 %v5912, 0.03125
    %v5935 = vmul.f32 %v5915, 0.03125
    %v5936 = vmul.f32 %v5922, 0.03125
    %v5937 = vmul.f32 %v5925, 0.03125
    %v5938 = vmul.f32 %v5928, 0.03125
    %v5939 = vmul.f32 %v5931, 0.03125
    %v5940 = vmul.f32 %v5932, %v5932
    %v5941 = vmul.f32 %v5933, %v5933
    %v5942 = vmul.f32 %v5934, %v5934
    %v5943 = vmul.f32 %v5935, %v5935
    %v5944 = vsub.f32 %v5936, %v5940
    %v5945 = vsub.f32 %v5937, %v5941
    %v5946 = vsub.f32 %v5938, %v5942
    %v5947 = vsub.f32 %v5939, %v5943
    %v5948 = vadd.f32 %v5944, 1e-05
    %v5949 = vadd.f32 %v5945, 1e-05
    %v5950 = vadd.f32 %v5946, 1e-05
    %v5951 = vadd.f32 %v5947, 1e-05
    %v5952 = vrsqrt.pop %v5948
    %v5953 = vmul.f32 %v5952, %v5948
    %v5954 = vmul.f32 %v5953, %v5952
    %v5955 = vmul.f32 0.5, %v5954
    %v5956 = vsub.f32 1.5, %v5955
    %v5957 = vmul.f32 %v5952, %v5956
    %vm5958 = vweird.f32 %v5948
    %vm5959 = vweird.f32 %v5952
    %vm5960 = vmor %vm5958, %vm5959
    %v5961 = vsel %vm5960, %v5952, %v5957
    %v5962 = vrsqrt.pop %v5949
    %v5963 = vmul.f32 %v5962, %v5949
    %v5964 = vmul.f32 %v5963, %v5962
    %v5965 = vmul.f32 0.5, %v5964
    %v5966 = vsub.f32 1.5, %v5965
    %v5967 = vmul.f32 %v5962, %v5966
    %vm5968 = vweird.f32 %v5949
    %vm5969 = vweird.f32 %v5962
    %vm5970 = vmor %vm5968, %vm5969
    %v5971 = vsel %vm5970, %v5962, %v5967
    %v5972 = vrsqrt.pop %v5950
    %v5973 = vmul.f32 %v5972, %v5950
    %v5974 = vmul.f32 %v5973, %v5972
    %v5975 = vmul.f32 0.5, %v5974
    %v5976 = vsub.f32 1.5, %v5975
    %v5977 = vmul.f32 %v5972, %v5976
    %vm5978 = vweird.f32 %v5950
    %vm5979 = vweird.f32 %v5972
    %vm5980 = vmor %vm5978, %vm5979
    %v5981 = vsel %vm5980, %v5972, %v5977
    %v5982 = vrsqrt.pop %v5951
    %v5983 = vmul.f32 %v5982, %v5951
    %v5984 = vmul.f32 %v5983, %v5982
    %v5985 = vmul.f32 0.5, %v5984
    %v5986 = vsub.f32 1.5, %v5985
    %v5987 = vmul.f32 %v5982, %v5986
    %vm5988 = vweird.f32 %v5951
    %vm5989 = vweird.f32 %v5982
    %vm5990 = vmor %vm5988, %vm5989
    %v5991 = vsel %vm5990, %v5982, %v5987
    %v5992 = vsub.f32 %v5899, %v5932
    %v5993 = vsub.f32 %v5900, %v5933
    %v5994 = vsub.f32 %v5901, %v5934
    %v5995 = vsub.f32 %v5902, %v5935
    %v5996 = vld [vmem:[%s12] sm:$0xff]
    %v5997 = vld [vmem:[%s12 + $0x8] sm:$0xff]
    %v5998 = vld [vmem:[%s12 + $0x10] sm:$0xff]
    %v5999 = vld [vmem:[%s12 + $0x18] sm:$0xff]
    %v6000 = vmul.f32 %v5961, %v5996
    %v6001 = vmul.f32 %v5971, %v5997
    %v6002 = vmul.f32 %v5981, %v5998
    %v6003 = vmul.f32 %v5991, %v5999
    %6005 = vset.pattern.permute.xlu0 0
    %6006 = vperm.xlu0 %6005, %v6000
    %v6007 = vpop.permute.xlu0 %6006
    %6010 = vset.pattern.permute.xlu0 0
    %6011 = vperm.xlu0 %6010, %v6001
    %v6012 = vpop.permute.xlu0 %6011
    %6015 = vset.pattern.permute.xlu0 0
    %6016 = vperm.xlu0 %6015, %v6002
    %v6017 = vpop.permute.xlu0 %6016
    %6020 = vset.pattern.permute.xlu0 0
    %6021 = vperm.xlu0 %6020, %v6003
    %v6022 = vpop.permute.xlu0 %6021
    %v6024 = vmul.f32 %v5992, %v6007
    %v6025 = vmul.f32 %v5993, %v6012
    %v6026 = vmul.f32 %v5994, %v6017
    %v6027 = vmul.f32 %v5995, %v6022
    %v6028 = vld [vmem:[%s13] sm:$0xff]
    %v6029 = vld [vmem:[%s13 + $0x8] sm:$0xff]
    %v6030 = vld [vmem:[%s13 + $0x10] sm:$0xff]
    %v6031 = vld [vmem:[%s13 + $0x18] sm:$0xff]
    %6033 = vset.pattern.permute.xlu0 0
    %6034 = vperm.xlu0 %6033, %v6028
    %v6035 = vpop.permute.xlu0 %6034
    %6038 = vset.pattern.permute.xlu0 0
    %6039 = vperm.xlu0 %6038, %v6029
    %v6040 = vpop.permute.xlu0 %6039
    %6043 = vset.pattern.permute.xlu0 0
    %6044 = vperm.xlu0 %6043, %v6030
    %v6045 = vpop.permute.xlu0 %6044
    %6048 = vset.pattern.permute.xlu0 0
    %6049 = vperm.xlu0 %6048, %v6031
    %v6050 = vpop.permute.xlu0 %6049
    %v6052 = vadd.f32 %v6024, %v6035
    %v6053 = vadd.f32 %v6025, %v6040
    %v6054 = vadd.f32 %v6026, %v6045
    %v6055 = vadd.f32 %v6027, %v6050
    %v6056 = vmul.f32 %v6052, 0.2
    %v6057 = vmul.f32 %v6053, 0.2
    %v6058 = vmul.f32 %v6054, 0.2
    %v6059 = vmul.f32 %v6055, 0.2
    %v6060 = vmax.f32 %v6052, %v6056
    %v6061 = vmax.f32 %v6053, %v6057
    %v6062 = vmax.f32 %v6054, %v6058
    %v6063 = vmax.f32 %v6055, %v6059
    %v6064 = vld [vmem:[%s4] sm:$0xf]
    %v6065 = vld [vmem:[%s4 + $0x4] sm:$0xf]
    %v6066 = vld [vmem:[%s4 + $0x8] sm:$0xf]
    %v6067 = vld [vmem:[%s4 + $0xc] sm:$0xf]
    %v6068 = vld [vmem:[%s4 + $0x10] sm:$0xf]
    %v6069 = vld [vmem:[%s4 + $0x14] sm:$0xf]
    %v6070 = vld [vmem:[%s4 + $0x18] sm:$0xf]
    %v6071 = vld [vmem:[%s4 + $0x1c] sm:$0xf]
    %v6072 = vld [vmem:[%s4 + $0x20] sm:$0xf]
    %v6073 = vld [vmem:[%s4 + $0x24] sm:$0xf]
    %v6074 = vld [vmem:[%s4 + $0x28] sm:$0xf]
    %v6075 = vld [vmem:[%s4 + $0x2c] sm:$0xf]
    %v6076 = vld [vmem:[%s4 + $0x30] sm:$0xf]
    %v6077 = vld [vmem:[%s4 + $0x34] sm:$0xf]
    %v6078 = vld [vmem:[%s4 + $0x38] sm:$0xf]
    %v6079 = vld [vmem:[%s4 + $0x3c] sm:$0xf]
    %v6080 = vld [vmem:[%s4 + $0x40] sm:$0xf]
    %v6081 = vld [vmem:[%s4 + $0x44] sm:$0xf]
    %v6082 = vld [vmem:[%s4 + $0x48] sm:$0xf]
    %v6083 = vld [vmem:[%s4 + $0x4c] sm:$0xf]
    %v6084 = vld [vmem:[%s4 + $0x50] sm:$0xf]
    %v6085 = vld [vmem:[%s4 + $0x54] sm:$0xf]
    %v6086 = vld [vmem:[%s4 + $0x58] sm:$0xf]
    %v6087 = vld [vmem:[%s4 + $0x5c] sm:$0xf]
    %v6088 = vld [vmem:[%s4 + $0x60] sm:$0xf]
    %v6089 = vld [vmem:[%s4 + $0x64] sm:$0xf]
    %v6090 = vld [vmem:[%s4 + $0x68] sm:$0xf]
    %v6091 = vld [vmem:[%s4 + $0x6c] sm:$0xf]
    %v6092 = vld [vmem:[%s4 + $0x70] sm:$0xf]
    %v6093 = vld [vmem:[%s4 + $0x74] sm:$0xf]
    %v6094 = vld [vmem:[%s4 + $0x78] sm:$0xf]
    %v6095 = vld [vmem:[%s4 + $0x7c] sm:$0xf]
    %v6096 = vld [vmem:[%s4 + $0x80] sm:$0xf]
    %v6097 = vld [vmem:[%s4 + $0x84] sm:$0xf]
    %v6098 = vld [vmem:[%s4 + $0x88] sm:$0xf]
    %v6099 = vld [vmem:[%s4 + $0x8c] sm:$0xf]
    %v6100 = vld [vmem:[%s4 + $0x90] sm:$0xf]
    %v6101 = vld [vmem:[%s4 + $0x94] sm:$0xf]
    %v6102 = vld [vmem:[%s4 + $0x98] sm:$0xf]
    %v6103 = vld [vmem:[%s4 + $0x9c] sm:$0xf]
    %v6104 = vld [vmem:[%s4 + $0xa0] sm:$0xf]
    %v6105 = vld [vmem:[%s4 + $0xa4] sm:$0xf]
    %v6106 = vld [vmem:[%s4 + $0xa8] sm:$0xf]
    %v6107 = vld [vmem:[%s4 + $0xac] sm:$0xf]
    %v6108 = vld [vmem:[%s4 + $0xb0] sm:$0xf]
    %v6109 = vld [vmem:[%s4 + $0xb4] sm:$0xf]
    %v6110 = vld [vmem:[%s4 + $0xb8] sm:$0xf]
    %v6111 = vld [vmem:[%s4 + $0xbc] sm:$0xf]
    %v6112 = vld [vmem:[%s4 + $0xc0] sm:$0xf]
    %v6113 = vld [vmem:[%s4 + $0xc4] sm:$0xf]
    %v6114 = vld [vmem:[%s4 + $0xc8] sm:$0xf]
    %v6115 = vld [vmem:[%s4 + $0xcc] sm:$0xf]
    %v6116 = vld [vmem:[%s4 + $0xd0] sm:$0xf]
    %v6117 = vld [vmem:[%s4 + $0xd4] sm:$0xf]
    %v6118 = vld [vmem:[%s4 + $0xd8] sm:$0xf]
    %v6119 = vld [vmem:[%s4 + $0xdc] sm:$0xf]
    %v6120 = vld [vmem:[%s4 + $0xe0] sm:$0xf]
    %v6121 = vld [vmem:[%s4 + $0xe4] sm:$0xf]
    %v6122 = vld [vmem:[%s4 + $0xe8] sm:$0xf]
    %v6123 = vld [vmem:[%s4 + $0xec] sm:$0xf]
    %v6124 = vld [vmem:[%s4 + $0xf0] sm:$0xf]
    %v6125 = vld [vmem:[%s4 + $0xf4] sm:$0xf]
    %v6126 = vld [vmem:[%s4 + $0xf8] sm:$0xf]
    %v6127 = vld [vmem:[%s4 + $0xfc] sm:$0xf]
    %v6128 = vld [vmem:[%s4 + $0x100] sm:$0xf]
    %v6129 = vld [vmem:[%s4 + $0x104] sm:$0xf]
    %v6130 = vld [vmem:[%s4 + $0x108] sm:$0xf]
    %v6131 = vld [vmem:[%s4 + $0x10c] sm:$0xf]
    %v6132 = vld [vmem:[%s4 + $0x110] sm:$0xf]
    %v6133 = vld [vmem:[%s4 + $0x114] sm:$0xf]
    %v6134 = vld [vmem:[%s4 + $0x118] sm:$0xf]
    %v6135 = vld [vmem:[%s4 + $0x11c] sm:$0xf]
    %v6136 = vld [vmem:[%s4 + $0x120] sm:$0xf]
    %v6137 = vld [vmem:[%s4 + $0x124] sm:$0xf]
    %v6138 = vld [vmem:[%s4 + $0x128] sm:$0xf]
    %v6139 = vld [vmem:[%s4 + $0x12c] sm:$0xf]
    %v6140 = vld [vmem:[%s4 + $0x130] sm:$0xf]
    %v6141 = vld [vmem:[%s4 + $0x134] sm:$0xf]
    %v6142 = vld [vmem:[%s4 + $0x138] sm:$0xf]
    %v6143 = vld [vmem:[%s4 + $0x13c] sm:$0xf]
    %v6144 = vld [vmem:[%s4 + $0x140] sm:$0xf]
    %v6145 = vld [vmem:[%s4 + $0x144] sm:$0xf]
    %v6146 = vld [vmem:[%s4 + $0x148] sm:$0xf]
    %v6147 = vld [vmem:[%s4 + $0x14c] sm:$0xf]
    %v6148 = vld [vmem:[%s4 + $0x150] sm:$0xf]
    %v6149 = vld [vmem:[%s4 + $0x154] sm:$0xf]
    %v6150 = vld [vmem:[%s4 + $0x158] sm:$0xf]
    %v6151 = vld [vmem:[%s4 + $0x15c] sm:$0xf]
    %v6152 = vld [vmem:[%s4 + $0x160] sm:$0xf]
    %v6153 = vld [vmem:[%s4 + $0x164] sm:$0xf]
    %v6154 = vld [vmem:[%s4 + $0x168] sm:$0xf]
    %v6155 = vld [vmem:[%s4 + $0x16c] sm:$0xf]
    %v6156 = vld [vmem:[%s4 + $0x170] sm:$0xf]
    %v6157 = vld [vmem:[%s4 + $0x174] sm:$0xf]
    %v6158 = vld [vmem:[%s4 + $0x178] sm:$0xf]
    %v6159 = vld [vmem:[%s4 + $0x17c] sm:$0xf]
    %v6160 = vld [vmem:[%s4 + $0x180] sm:$0xf]
    %v6161 = vld [vmem:[%s4 + $0x184] sm:$0xf]
    %v6162 = vld [vmem:[%s4 + $0x188] sm:$0xf]
    %v6163 = vld [vmem:[%s4 + $0x18c] sm:$0xf]
    %v6164 = vld [vmem:[%s4 + $0x190] sm:$0xf]
    %v6165 = vld [vmem:[%s4 + $0x194] sm:$0xf]
    %v6166 = vld [vmem:[%s4 + $0x198] sm:$0xf]
    %v6167 = vld [vmem:[%s4 + $0x19c] sm:$0xf]
    %v6168 = vld [vmem:[%s4 + $0x1a0] sm:$0xf]
    %v6169 = vld [vmem:[%s4 + $0x1a4] sm:$0xf]
    %v6170 = vld [vmem:[%s4 + $0x1a8] sm:$0xf]
    %v6171 = vld [vmem:[%s4 + $0x1ac] sm:$0xf]
    %v6172 = vld [vmem:[%s4 + $0x1b0] sm:$0xf]
    %v6173 = vld [vmem:[%s4 + $0x1b4] sm:$0xf]
    %v6174 = vld [vmem:[%s4 + $0x1b8] sm:$0xf]
    %v6175 = vld [vmem:[%s4 + $0x1bc] sm:$0xf]
    %v6176 = vld [vmem:[%s4 + $0x1c0] sm:$0xf]
    %v6177 = vld [vmem:[%s4 + $0x1c4] sm:$0xf]
    %v6178 = vld [vmem:[%s4 + $0x1c8] sm:$0xf]
    %v6179 = vld [vmem:[%s4 + $0x1cc] sm:$0xf]
    %v6180 = vld [vmem:[%s4 + $0x1d0] sm:$0xf]
    %v6181 = vld [vmem:[%s4 + $0x1d4] sm:$0xf]
    %v6182 = vld [vmem:[%s4 + $0x1d8] sm:$0xf]
    %v6183 = vld [vmem:[%s4 + $0x1dc] sm:$0xf]
    %v6184 = vld [vmem:[%s4 + $0x1e0] sm:$0xf]
    %v6185 = vld [vmem:[%s4 + $0x1e4] sm:$0xf]
    %v6186 = vld [vmem:[%s4 + $0x1e8] sm:$0xf]
    %v6187 = vld [vmem:[%s4 + $0x1ec] sm:$0xf]
    %v6188 = vld [vmem:[%s4 + $0x1f0] sm:$0xf]
    %v6189 = vld [vmem:[%s4 + $0x1f4] sm:$0xf]
    %v6190 = vld [vmem:[%s4 + $0x1f8] sm:$0xf]
    %v6191 = vld [vmem:[%s4 + $0x1fc] sm:$0xf]
    %v6192 = vpack.c.bf16 %v6061, %v6060
    %v6193 = vpack.c.bf16 %v6063, %v6062
    %v6322 = vunpack.c.l.b16 %v6064
    %v6323 = vunpack.c.l.b16 %v6065
    %v6324 = vunpack.c.l.b16 %v6066
    %v6325 = vunpack.c.l.b16 %v6067
    %v6326 = vunpack.c.l.b16 %v6068
    %v6327 = vunpack.c.l.b16 %v6069
    %v6328 = vunpack.c.l.b16 %v6070
    %v6329 = vunpack.c.l.b16 %v6071
    %v6330 = vunpack.c.l.b16 %v6072
    %v6331 = vunpack.c.l.b16 %v6073
    %v6332 = vunpack.c.l.b16 %v6074
    %v6333 = vunpack.c.l.b16 %v6075
    %v6334 = vunpack.c.l.b16 %v6076
    %v6335 = vunpack.c.l.b16 %v6077
    %v6336 = vunpack.c.l.b16 %v6078
    %v6337 = vunpack.c.l.b16 %v6079
    %v6338 = vunpack.c.l.b16 %v6080
    %v6339 = vunpack.c.l.b16 %v6081
    %v6340 = vunpack.c.l.b16 %v6082
    %v6341 = vunpack.c.l.b16 %v6083
    %v6342 = vunpack.c.l.b16 %v6084
    %v6343 = vunpack.c.l.b16 %v6085
    %v6344 = vunpack.c.l.b16 %v6086
    %v6345 = vunpack.c.l.b16 %v6087
    %v6346 = vunpack.c.l.b16 %v6088
    %v6347 = vunpack.c.l.b16 %v6089
    %v6348 = vunpack.c.l.b16 %v6090
    %v6349 = vunpack.c.l.b16 %v6091
    %v6350 = vunpack.c.l.b16 %v6092
    %v6351 = vunpack.c.l.b16 %v6093
    %v6352 = vunpack.c.l.b16 %v6094
    %v6353 = vunpack.c.l.b16 %v6095
    %v6354 = vunpack.c.l.b16 %v6096
    %v6355 = vunpack.c.l.b16 %v6097
    %v6356 = vunpack.c.l.b16 %v6098
    %v6357 = vunpack.c.l.b16 %v6099
    %v6358 = vunpack.c.l.b16 %v6100
    %v6359 = vunpack.c.l.b16 %v6101
    %v6360 = vunpack.c.l.b16 %v6102
    %v6361 = vunpack.c.l.b16 %v6103
    %v6362 = vunpack.c.l.b16 %v6104
    %v6363 = vunpack.c.l.b16 %v6105
    %v6364 = vunpack.c.l.b16 %v6106
    %v6365 = vunpack.c.l.b16 %v6107
    %v6366 = vunpack.c.l.b16 %v6108
    %v6367 = vunpack.c.l.b16 %v6109
    %v6368 = vunpack.c.l.b16 %v6110
    %v6369 = vunpack.c.l.b16 %v6111
    %v6370 = vunpack.c.l.b16 %v6112
    %v6371 = vunpack.c.l.b16 %v6113
    %v6372 = vunpack.c.l.b16 %v6114
    %v6373 = vunpack.c.l.b16 %v6115
    %v6374 = vunpack.c.l.b16 %v6116
    %v6375 = vunpack.c.l.b16 %v6117
    %v6376 = vunpack.c.l.b16 %v6118
    %v6377 = vunpack.c.l.b16 %v6119
    %v6378 = vunpack.c.l.b16 %v6120
    %v6379 = vunpack.c.l.b16 %v6121
    %v6380 = vunpack.c.l.b16 %v6122
    %v6381 = vunpack.c.l.b16 %v6123
    %v6382 = vunpack.c.l.b16 %v6124
    %v6383 = vunpack.c.l.b16 %v6125
    %v6384 = vunpack.c.l.b16 %v6126
    %v6385 = vunpack.c.l.b16 %v6127
    %v6386 = vunpack.c.l.b16 %v6128
    %v6387 = vunpack.c.l.b16 %v6129
    %v6388 = vunpack.c.l.b16 %v6130
    %v6389 = vunpack.c.l.b16 %v6131
    %v6390 = vunpack.c.l.b16 %v6132
    %v6391 = vunpack.c.l.b16 %v6133
    %v6392 = vunpack.c.l.b16 %v6134
    %v6393 = vunpack.c.l.b16 %v6135
    %v6394 = vunpack.c.l.b16 %v6136
    %v6395 = vunpack.c.l.b16 %v6137
    %v6396 = vunpack.c.l.b16 %v6138
    %v6397 = vunpack.c.l.b16 %v6139
    %v6398 = vunpack.c.l.b16 %v6140
    %v6399 = vunpack.c.l.b16 %v6141
    %v6400 = vunpack.c.l.b16 %v6142
    %v6401 = vunpack.c.l.b16 %v6143
    %v6402 = vunpack.c.l.b16 %v6144
    %v6403 = vunpack.c.l.b16 %v6145
    %v6404 = vunpack.c.l.b16 %v6146
    %v6405 = vunpack.c.l.b16 %v6147
    %v6406 = vunpack.c.l.b16 %v6148
    %v6407 = vunpack.c.l.b16 %v6149
    %v6408 = vunpack.c.l.b16 %v6150
    %v6409 = vunpack.c.l.b16 %v6151
    %v6410 = vunpack.c.l.b16 %v6152
    %v6411 = vunpack.c.l.b16 %v6153
    %v6412 = vunpack.c.l.b16 %v6154
    %v6413 = vunpack.c.l.b16 %v6155
    %v6414 = vunpack.c.l.b16 %v6156
    %v6415 = vunpack.c.l.b16 %v6157
    %v6416 = vunpack.c.l.b16 %v6158
    %v6417 = vunpack.c.l.b16 %v6159
    %v6418 = vunpack.c.l.b16 %v6160
    %v6419 = vunpack.c.l.b16 %v6161
    %v6420 = vunpack.c.l.b16 %v6162
    %v6421 = vunpack.c.l.b16 %v6163
    %v6422 = vunpack.c.l.b16 %v6164
    %v6423 = vunpack.c.l.b16 %v6165
    %v6424 = vunpack.c.l.b16 %v6166
    %v6425 = vunpack.c.l.b16 %v6167
    %v6426 = vunpack.c.l.b16 %v6168
    %v6427 = vunpack.c.l.b16 %v6169
    %v6428 = vunpack.c.l.b16 %v6170
    %v6429 = vunpack.c.l.b16 %v6171
    %v6430 = vunpack.c.l.b16 %v6172
    %v6431 = vunpack.c.l.b16 %v6173
    %v6432 = vunpack.c.l.b16 %v6174
    %v6433 = vunpack.c.l.b16 %v6175
    %v6434 = vunpack.c.l.b16 %v6176
    %v6435 = vunpack.c.l.b16 %v6177
    %v6436 = vunpack.c.l.b16 %v6178
    %v6437 = vunpack.c.l.b16 %v6179
    %v6438 = vunpack.c.l.b16 %v6180
    %v6439 = vunpack.c.l.b16 %v6181
    %v6440 = vunpack.c.l.b16 %v6182
    %v6441 = vunpack.c.l.b16 %v6183
    %v6442 = vunpack.c.l.b16 %v6184
    %v6443 = vunpack.c.l.b16 %v6185
    %v6444 = vunpack.c.l.b16 %v6186
    %v6445 = vunpack.c.l.b16 %v6187
    %v6446 = vunpack.c.l.b16 %v6188
    %v6447 = vunpack.c.l.b16 %v6189
    %v6448 = vunpack.c.l.b16 %v6190
    %v6449 = vunpack.c.l.b16 %v6191
    %v6450 = vpack.c.b16 %v6323, %v6322
    %v6451 = vpack.c.b16 %v6325, %v6324
    %v6452 = vpack.c.b16 %v6327, %v6326
    %v6453 = vpack.c.b16 %v6329, %v6328
    %v6454 = vpack.c.b16 %v6331, %v6330
    %v6455 = vpack.c.b16 %v6333, %v6332
    %v6456 = vpack.c.b16 %v6335, %v6334
    %v6457 = vpack.c.b16 %v6337, %v6336
    %v6458 = vpack.c.b16 %v6339, %v6338
    %v6459 = vpack.c.b16 %v6341, %v6340
    %v6460 = vpack.c.b16 %v6343, %v6342
    %v6461 = vpack.c.b16 %v6345, %v6344
    %v6462 = vpack.c.b16 %v6347, %v6346
    %v6463 = vpack.c.b16 %v6349, %v6348
    %v6464 = vpack.c.b16 %v6351, %v6350
    %v6465 = vpack.c.b16 %v6353, %v6352
    %v6466 = vpack.c.b16 %v6355, %v6354
    %v6467 = vpack.c.b16 %v6357, %v6356
    %v6468 = vpack.c.b16 %v6359, %v6358
    %v6469 = vpack.c.b16 %v6361, %v6360
    %v6470 = vpack.c.b16 %v6363, %v6362
    %v6471 = vpack.c.b16 %v6365, %v6364
    %v6472 = vpack.c.b16 %v6367, %v6366
    %v6473 = vpack.c.b16 %v6369, %v6368
    %v6474 = vpack.c.b16 %v6371, %v6370
    %v6475 = vpack.c.b16 %v6373, %v6372
    %v6476 = vpack.c.b16 %v6375, %v6374
    %v6477 = vpack.c.b16 %v6377, %v6376
    %v6478 = vpack.c.b16 %v6379, %v6378
    %v6479 = vpack.c.b16 %v6381, %v6380
    %v6480 = vpack.c.b16 %v6383, %v6382
    %v6481 = vpack.c.b16 %v6385, %v6384
    %v6482 = vpack.c.b16 %v6387, %v6386
    %v6483 = vpack.c.b16 %v6389, %v6388
    %v6484 = vpack.c.b16 %v6391, %v6390
    %v6485 = vpack.c.b16 %v6393, %v6392
    %v6486 = vpack.c.b16 %v6395, %v6394
    %v6487 = vpack.c.b16 %v6397, %v6396
    %v6488 = vpack.c.b16 %v6399, %v6398
    %v6489 = vpack.c.b16 %v6401, %v6400
    %v6490 = vpack.c.b16 %v6403, %v6402
    %v6491 = vpack.c.b16 %v6405, %v6404
    %v6492 = vpack.c.b16 %v6407, %v6406
    %v6493 = vpack.c.b16 %v6409, %v6408
    %v6494 = vpack.c.b16 %v6411, %v6410
    %v6495 = vpack.c.b16 %v6413, %v6412
    %v6496 = vpack.c.b16 %v6415, %v6414
    %v6497 = vpack.c.b16 %v6417, %v6416
    %v6498 = vpack.c.b16 %v6419, %v6418
    %v6499 = vpack.c.b16 %v6421, %v6420
    %v6500 = vpack.c.b16 %v6423, %v6422
    %v6501 = vpack.c.b16 %v6425, %v6424
    %v6502 = vpack.c.b16 %v6427, %v6426
    %v6503 = vpack.c.b16 %v6429, %v6428
    %v6504 = vpack.c.b16 %v6431, %v6430
    %v6505 = vpack.c.b16 %v6433, %v6432
    %v6506 = vpack.c.b16 %v6435, %v6434
    %v6507 = vpack.c.b16 %v6437, %v6436
    %v6508 = vpack.c.b16 %v6439, %v6438
    %v6509 = vpack.c.b16 %v6441, %v6440
    %v6510 = vpack.c.b16 %v6443, %v6442
    %v6511 = vpack.c.b16 %v6445, %v6444
    %v6512 = vpack.c.b16 %v6447, %v6446
    %v6513 = vpack.c.b16 %v6449, %v6448
    %v6515 = vsel %vm5903, %v6450, 0
    %v6518 = vsel %vm5903, %v6451, 0
    %v6521 = vsel %vm5903, %v6452, 0
    %v6524 = vsel %vm5903, %v6453, 0
    %v6527 = vsel %vm5903, %v6454, 0
    %v6530 = vsel %vm5903, %v6455, 0
    %v6533 = vsel %vm5903, %v6456, 0
    %v6536 = vsel %vm5903, %v6457, 0
    %v6539 = vsel %vm5903, %v6458, 0
    %v6542 = vsel %vm5903, %v6459, 0
    %v6545 = vsel %vm5903, %v6460, 0
    %v6548 = vsel %vm5903, %v6461, 0
    %v6551 = vsel %vm5903, %v6462, 0
    %v6554 = vsel %vm5903, %v6463, 0
    %v6557 = vsel %vm5903, %v6464, 0
    %v6560 = vsel %vm5903, %v6465, 0
    %v6563 = vsel %vm5903, %v6466, 0
    %v6566 = vsel %vm5903, %v6467, 0
    %v6569 = vsel %vm5903, %v6468, 0
    %v6572 = vsel %vm5903, %v6469, 0
    %v6575 = vsel %vm5903, %v6470, 0
    %v6578 = vsel %vm5903, %v6471, 0
    %v6581 = vsel %vm5903, %v6472, 0
    %v6584 = vsel %vm5903, %v6473, 0
    %v6587 = vsel %vm5903, %v6474, 0
    %v6590 = vsel %vm5903, %v6475, 0
    %v6593 = vsel %vm5903, %v6476, 0
    %v6596 = vsel %vm5903, %v6477, 0
    %v6599 = vsel %vm5903, %v6478, 0
    %v6602 = vsel %vm5903, %v6479, 0
    %v6605 = vsel %vm5903, %v6480, 0
    %v6608 = vsel %vm5903, %v6481, 0
    %v6611 = vsel %vm5903, %v6482, 0
    %v6614 = vsel %vm5903, %v6483, 0
    %v6617 = vsel %vm5903, %v6484, 0
    %v6620 = vsel %vm5903, %v6485, 0
    %v6623 = vsel %vm5903, %v6486, 0
    %v6626 = vsel %vm5903, %v6487, 0
    %v6629 = vsel %vm5903, %v6488, 0
    %v6632 = vsel %vm5903, %v6489, 0
    %v6635 = vsel %vm5903, %v6490, 0
    %v6638 = vsel %vm5903, %v6491, 0
    %v6641 = vsel %vm5903, %v6492, 0
    %v6644 = vsel %vm5903, %v6493, 0
    %v6647 = vsel %vm5903, %v6494, 0
    %v6650 = vsel %vm5903, %v6495, 0
    %v6653 = vsel %vm5903, %v6496, 0
    %v6656 = vsel %vm5903, %v6497, 0
    %v6659 = vsel %vm5903, %v6498, 0
    %v6662 = vsel %vm5903, %v6499, 0
    %v6665 = vsel %vm5903, %v6500, 0
    %v6668 = vsel %vm5903, %v6501, 0
    %v6671 = vsel %vm5903, %v6502, 0
    %v6674 = vsel %vm5903, %v6503, 0
    %v6677 = vsel %vm5903, %v6504, 0
    %v6680 = vsel %vm5903, %v6505, 0
    %v6683 = vsel %vm5903, %v6506, 0
    %v6686 = vsel %vm5903, %v6507, 0
    %v6689 = vsel %vm5903, %v6508, 0
    %v6692 = vsel %vm5903, %v6509, 0
    %v6695 = vsel %vm5903, %v6510, 0
    %v6698 = vsel %vm5903, %v6511, 0
    %v6701 = vsel %vm5903, %v6512, 0
    %v6704 = vsel %vm5903, %v6513, 0
    %6706 = vmatpush.bf16.msra.mxu0 0
    %6707 = vmatpush.bf16.msra.mxu0 0
    %6708 = vmatpush.bf16.msra.mxu0 0
    %6709 = vmatpush.bf16.msra.mxu0 0
    %6710 = vmatpush.bf16.msra.mxu0 0
    %6711 = vmatpush.bf16.msra.mxu0 0
    %6712 = vmatpush.bf16.msra.mxu0 %v6193
    %6713 = vmatpush.bf16.msra.mxu0 %v6192
    %6714 = vmatmul.bf16.gmra.mxu0 %v6515
    %v6715 = vpop.f32.mrf.mxu0
    %v6716 = vadd.f32 0.0, %v6715
    %v6717 = vpop.f32.mrf.mxu0
    %v6718 = vadd.f32 0.0, %v6717
    %6719 = vmatmul.bf16.gmra.mxu0 %v6518
    %v6720 = vpop.f32.mrf.mxu0
    %v6721 = vadd.f32 0.0, %v6720
    %v6722 = vpop.f32.mrf.mxu0
    %v6723 = vadd.f32 0.0, %v6722
    %6724 = vmatmul.bf16.gmra.mxu0 %v6521
    %v6725 = vpop.f32.mrf.mxu0
    %v6726 = vadd.f32 0.0, %v6725
    %v6727 = vpop.f32.mrf.mxu0
    %v6728 = vadd.f32 0.0, %v6727
    %6729 = vmatmul.bf16.gmra.mxu0 %v6524
    %v6730 = vpop.f32.mrf.mxu0
    %v6731 = vadd.f32 0.0, %v6730
    %v6732 = vpop.f32.mrf.mxu0
    %v6733 = vadd.f32 0.0, %v6732
    %6734 = vmatmul.bf16.gmra.mxu0 %v6527
    %v6735 = vpop.f32.mrf.mxu0
    %v6736 = vadd.f32 0.0, %v6735
    %v6737 = vpop.f32.mrf.mxu0
    %v6738 = vadd.f32 0.0, %v6737
    %6739 = vmatmul.bf16.gmra.mxu0 %v6530
    %v6740 = vpop.f32.mrf.mxu0
    %v6741 = vadd.f32 0.0, %v6740
    %v6742 = vpop.f32.mrf.mxu0
    %v6743 = vadd.f32 0.0, %v6742
    %6744 = vmatmul.bf16.gmra.mxu0 %v6533
    %v6745 = vpop.f32.mrf.mxu0
    %v6746 = vadd.f32 0.0, %v6745
    %v6747 = vpop.f32.mrf.mxu0
    %v6748 = vadd.f32 0.0, %v6747
    %6749 = vmatmul.bf16.gmra.mxu0 %v6536
    %v6750 = vpop.f32.mrf.mxu0
    %v6751 = vadd.f32 0.0, %v6750
    %v6752 = vpop.f32.mrf.mxu0
    %v6753 = vadd.f32 0.0, %v6752
    %6754 = vmatmul.bf16.gmra.mxu0 %v6539
    %v6755 = vpop.f32.mrf.mxu0
    %v6756 = vadd.f32 0.0, %v6755
    %v6757 = vpop.f32.mrf.mxu0
    %v6758 = vadd.f32 0.0, %v6757
    %6759 = vmatmul.bf16.gmra.mxu0 %v6542
    %v6760 = vpop.f32.mrf.mxu0
    %v6761 = vadd.f32 0.0, %v6760
    %v6762 = vpop.f32.mrf.mxu0
    %v6763 = vadd.f32 0.0, %v6762
    %6764 = vmatmul.bf16.gmra.mxu0 %v6545
    %v6765 = vpop.f32.mrf.mxu0
    %v6766 = vadd.f32 0.0, %v6765
    %v6767 = vpop.f32.mrf.mxu0
    %v6768 = vadd.f32 0.0, %v6767
    %6769 = vmatmul.bf16.gmra.mxu0 %v6548
    %v6770 = vpop.f32.mrf.mxu0
    %v6771 = vadd.f32 0.0, %v6770
    %v6772 = vpop.f32.mrf.mxu0
    %v6773 = vadd.f32 0.0, %v6772
    %6774 = vmatmul.bf16.gmra.mxu0 %v6551
    %v6775 = vpop.f32.mrf.mxu0
    %v6776 = vadd.f32 0.0, %v6775
    %v6777 = vpop.f32.mrf.mxu0
    %v6778 = vadd.f32 0.0, %v6777
    %6779 = vmatmul.bf16.gmra.mxu0 %v6554
    %v6780 = vpop.f32.mrf.mxu0
    %v6781 = vadd.f32 0.0, %v6780
    %v6782 = vpop.f32.mrf.mxu0
    %v6783 = vadd.f32 0.0, %v6782
    %6784 = vmatmul.bf16.gmra.mxu0 %v6557
    %v6785 = vpop.f32.mrf.mxu0
    %v6786 = vadd.f32 0.0, %v6785
    %v6787 = vpop.f32.mrf.mxu0
    %v6788 = vadd.f32 0.0, %v6787
    %6789 = vmatmul.bf16.gmra.mxu0 %v6560
    %v6790 = vpop.f32.mrf.mxu0
    %v6791 = vadd.f32 0.0, %v6790
    %v6792 = vpop.f32.mrf.mxu0
    %v6793 = vadd.f32 0.0, %v6792
    %6794 = vmatmul.bf16.gmra.mxu0 %v6563
    %v6795 = vpop.f32.mrf.mxu0
    %v6796 = vadd.f32 0.0, %v6795
    %v6797 = vpop.f32.mrf.mxu0
    %v6798 = vadd.f32 0.0, %v6797
    %6799 = vmatmul.bf16.gmra.mxu0 %v6566
    %v6800 = vpop.f32.mrf.mxu0
    %v6801 = vadd.f32 0.0, %v6800
    %v6802 = vpop.f32.mrf.mxu0
    %v6803 = vadd.f32 0.0, %v6802
    %6804 = vmatmul.bf16.gmra.mxu0 %v6569
    %v6805 = vpop.f32.mrf.mxu0
    %v6806 = vadd.f32 0.0, %v6805
    %v6807 = vpop.f32.mrf.mxu0
    %v6808 = vadd.f32 0.0, %v6807
    %6809 = vmatmul.bf16.gmra.mxu0 %v6572
    %v6810 = vpop.f32.mrf.mxu0
    %v6811 = vadd.f32 0.0, %v6810
    %v6812 = vpop.f32.mrf.mxu0
    %v6813 = vadd.f32 0.0, %v6812
    %6814 = vmatmul.bf16.gmra.mxu0 %v6575
    %v6815 = vpop.f32.mrf.mxu0
    %v6816 = vadd.f32 0.0, %v6815
    %v6817 = vpop.f32.mrf.mxu0
    %v6818 = vadd.f32 0.0, %v6817
    %6819 = vmatmul.bf16.gmra.mxu0 %v6578
    %v6820 = vpop.f32.mrf.mxu0
    %v6821 = vadd.f32 0.0, %v6820
    %v6822 = vpop.f32.mrf.mxu0
    %v6823 = vadd.f32 0.0, %v6822
    %6824 = vmatmul.bf16.gmra.mxu0 %v6581
    %v6825 = vpop.f32.mrf.mxu0
    %v6826 = vadd.f32 0.0, %v6825
    %v6827 = vpop.f32.mrf.mxu0
    %v6828 = vadd.f32 0.0, %v6827
    %6829 = vmatmul.bf16.gmra.mxu0 %v6584
    %v6830 = vpop.f32.mrf.mxu0
    %v6831 = vadd.f32 0.0, %v6830
    %v6832 = vpop.f32.mrf.mxu0
    %v6833 = vadd.f32 0.0, %v6832
    %6834 = vmatmul.bf16.gmra.mxu0 %v6587
    %v6835 = vpop.f32.mrf.mxu0
    %v6836 = vadd.f32 0.0, %v6835
    %v6837 = vpop.f32.mrf.mxu0
    %v6838 = vadd.f32 0.0, %v6837
    %6839 = vmatmul.bf16.gmra.mxu0 %v6590
    %v6840 = vpop.f32.mrf.mxu0
    %v6841 = vadd.f32 0.0, %v6840
    %v6842 = vpop.f32.mrf.mxu0
    %v6843 = vadd.f32 0.0, %v6842
    %6844 = vmatmul.bf16.gmra.mxu0 %v6593
    %v6845 = vpop.f32.mrf.mxu0
    %v6846 = vadd.f32 0.0, %v6845
    %v6847 = vpop.f32.mrf.mxu0
    %v6848 = vadd.f32 0.0, %v6847
    %6849 = vmatmul.bf16.gmra.mxu0 %v6596
    %v6850 = vpop.f32.mrf.mxu0
    %v6851 = vadd.f32 0.0, %v6850
    %v6852 = vpop.f32.mrf.mxu0
    %v6853 = vadd.f32 0.0, %v6852
    %6854 = vmatmul.bf16.gmra.mxu0 %v6599
    %v6855 = vpop.f32.mrf.mxu0
    %v6856 = vadd.f32 0.0, %v6855
    %v6857 = vpop.f32.mrf.mxu0
    %v6858 = vadd.f32 0.0, %v6857
    %6859 = vmatmul.bf16.gmra.mxu0 %v6602
    %v6860 = vpop.f32.mrf.mxu0
    %v6861 = vadd.f32 0.0, %v6860
    %v6862 = vpop.f32.mrf.mxu0
    %v6863 = vadd.f32 0.0, %v6862
    %6864 = vmatmul.bf16.gmra.mxu0 %v6605
    %v6865 = vpop.f32.mrf.mxu0
    %v6866 = vadd.f32 0.0, %v6865
    %v6867 = vpop.f32.mrf.mxu0
    %v6868 = vadd.f32 0.0, %v6867
    %6869 = vmatmul.bf16.gmra.mxu0 %v6608
    %v6870 = vpop.f32.mrf.mxu0
    %v6871 = vadd.f32 0.0, %v6870
    %v6872 = vpop.f32.mrf.mxu0
    %v6873 = vadd.f32 0.0, %v6872
    %6874 = vmatmul.bf16.gmra.mxu0 %v6611
    %v6875 = vpop.f32.mrf.mxu0
    %v6876 = vadd.f32 0.0, %v6875
    %v6877 = vpop.f32.mrf.mxu0
    %v6878 = vadd.f32 0.0, %v6877
    %6879 = vmatmul.bf16.gmra.mxu0 %v6614
    %v6880 = vpop.f32.mrf.mxu0
    %v6881 = vadd.f32 0.0, %v6880
    %v6882 = vpop.f32.mrf.mxu0
    %v6883 = vadd.f32 0.0, %v6882
    %6884 = vmatmul.bf16.gmra.mxu0 %v6617
    %v6885 = vpop.f32.mrf.mxu0
    %v6886 = vadd.f32 0.0, %v6885
    %v6887 = vpop.f32.mrf.mxu0
    %v6888 = vadd.f32 0.0, %v6887
    %6889 = vmatmul.bf16.gmra.mxu0 %v6620
    %v6890 = vpop.f32.mrf.mxu0
    %v6891 = vadd.f32 0.0, %v6890
    %v6892 = vpop.f32.mrf.mxu0
    %v6893 = vadd.f32 0.0, %v6892
    %6894 = vmatmul.bf16.gmra.mxu0 %v6623
    %v6895 = vpop.f32.mrf.mxu0
    %v6896 = vadd.f32 0.0, %v6895
    %v6897 = vpop.f32.mrf.mxu0
    %v6898 = vadd.f32 0.0, %v6897
    %6899 = vmatmul.bf16.gmra.mxu0 %v6626
    %v6900 = vpop.f32.mrf.mxu0
    %v6901 = vadd.f32 0.0, %v6900
    %v6902 = vpop.f32.mrf.mxu0
    %v6903 = vadd.f32 0.0, %v6902
    %6904 = vmatmul.bf16.gmra.mxu0 %v6629
    %v6905 = vpop.f32.mrf.mxu0
    %v6906 = vadd.f32 0.0, %v6905
    %v6907 = vpop.f32.mrf.mxu0
    %v6908 = vadd.f32 0.0, %v6907
    %6909 = vmatmul.bf16.gmra.mxu0 %v6632
    %v6910 = vpop.f32.mrf.mxu0
    %v6911 = vadd.f32 0.0, %v6910
    %v6912 = vpop.f32.mrf.mxu0
    %v6913 = vadd.f32 0.0, %v6912
    %6914 = vmatmul.bf16.gmra.mxu0 %v6635
    %v6915 = vpop.f32.mrf.mxu0
    %v6916 = vadd.f32 0.0, %v6915
    %v6917 = vpop.f32.mrf.mxu0
    %v6918 = vadd.f32 0.0, %v6917
    %6919 = vmatmul.bf16.gmra.mxu0 %v6638
    %v6920 = vpop.f32.mrf.mxu0
    %v6921 = vadd.f32 0.0, %v6920
    %v6922 = vpop.f32.mrf.mxu0
    %v6923 = vadd.f32 0.0, %v6922
    %6924 = vmatmul.bf16.gmra.mxu0 %v6641
    %v6925 = vpop.f32.mrf.mxu0
    %v6926 = vadd.f32 0.0, %v6925
    %v6927 = vpop.f32.mrf.mxu0
    %v6928 = vadd.f32 0.0, %v6927
    %6929 = vmatmul.bf16.gmra.mxu0 %v6644
    %v6930 = vpop.f32.mrf.mxu0
    %v6931 = vadd.f32 0.0, %v6930
    %v6932 = vpop.f32.mrf.mxu0
    %v6933 = vadd.f32 0.0, %v6932
    %6934 = vmatmul.bf16.gmra.mxu0 %v6647
    %v6935 = vpop.f32.mrf.mxu0
    %v6936 = vadd.f32 0.0, %v6935
    %v6937 = vpop.f32.mrf.mxu0
    %v6938 = vadd.f32 0.0, %v6937
    %6939 = vmatmul.bf16.gmra.mxu0 %v6650
    %v6940 = vpop.f32.mrf.mxu0
    %v6941 = vadd.f32 0.0, %v6940
    %v6942 = vpop.f32.mrf.mxu0
    %v6943 = vadd.f32 0.0, %v6942
    %6944 = vmatmul.bf16.gmra.mxu0 %v6653
    %v6945 = vpop.f32.mrf.mxu0
    %v6946 = vadd.f32 0.0, %v6945
    %v6947 = vpop.f32.mrf.mxu0
    %v6948 = vadd.f32 0.0, %v6947
    %6949 = vmatmul.bf16.gmra.mxu0 %v6656
    %v6950 = vpop.f32.mrf.mxu0
    %v6951 = vadd.f32 0.0, %v6950
    %v6952 = vpop.f32.mrf.mxu0
    %v6953 = vadd.f32 0.0, %v6952
    %6954 = vmatmul.bf16.gmra.mxu0 %v6659
    %v6955 = vpop.f32.mrf.mxu0
    %v6956 = vadd.f32 0.0, %v6955
    %v6957 = vpop.f32.mrf.mxu0
    %v6958 = vadd.f32 0.0, %v6957
    %6959 = vmatmul.bf16.gmra.mxu0 %v6662
    %v6960 = vpop.f32.mrf.mxu0
    %v6961 = vadd.f32 0.0, %v6960
    %v6962 = vpop.f32.mrf.mxu0
    %v6963 = vadd.f32 0.0, %v6962
    %6964 = vmatmul.bf16.gmra.mxu0 %v6665
    %v6965 = vpop.f32.mrf.mxu0
    %v6966 = vadd.f32 0.0, %v6965
    %v6967 = vpop.f32.mrf.mxu0
    %v6968 = vadd.f32 0.0, %v6967
    %6969 = vmatmul.bf16.gmra.mxu0 %v6668
    %v6970 = vpop.f32.mrf.mxu0
    %v6971 = vadd.f32 0.0, %v6970
    %v6972 = vpop.f32.mrf.mxu0
    %v6973 = vadd.f32 0.0, %v6972
    %6974 = vmatmul.bf16.gmra.mxu0 %v6671
    %v6975 = vpop.f32.mrf.mxu0
    %v6976 = vadd.f32 0.0, %v6975
    %v6977 = vpop.f32.mrf.mxu0
    %v6978 = vadd.f32 0.0, %v6977
    %6979 = vmatmul.bf16.gmra.mxu0 %v6674
    %v6980 = vpop.f32.mrf.mxu0
    %v6981 = vadd.f32 0.0, %v6980
    %v6982 = vpop.f32.mrf.mxu0
    %v6983 = vadd.f32 0.0, %v6982
    %6984 = vmatmul.bf16.gmra.mxu0 %v6677
    %v6985 = vpop.f32.mrf.mxu0
    %v6986 = vadd.f32 0.0, %v6985
    %v6987 = vpop.f32.mrf.mxu0
    %v6988 = vadd.f32 0.0, %v6987
    %6989 = vmatmul.bf16.gmra.mxu0 %v6680
    %v6990 = vpop.f32.mrf.mxu0
    %v6991 = vadd.f32 0.0, %v6990
    %v6992 = vpop.f32.mrf.mxu0
    %v6993 = vadd.f32 0.0, %v6992
    %6994 = vmatmul.bf16.gmra.mxu0 %v6683
    %v6995 = vpop.f32.mrf.mxu0
    %v6996 = vadd.f32 0.0, %v6995
    %v6997 = vpop.f32.mrf.mxu0
    %v6998 = vadd.f32 0.0, %v6997
    %6999 = vmatmul.bf16.gmra.mxu0 %v6686
    %v7000 = vpop.f32.mrf.mxu0
    %v7001 = vadd.f32 0.0, %v7000
    %v7002 = vpop.f32.mrf.mxu0
    %v7003 = vadd.f32 0.0, %v7002
    %7004 = vmatmul.bf16.gmra.mxu0 %v6689
    %v7005 = vpop.f32.mrf.mxu0
    %v7006 = vadd.f32 0.0, %v7005
    %v7007 = vpop.f32.mrf.mxu0
    %v7008 = vadd.f32 0.0, %v7007
    %7009 = vmatmul.bf16.gmra.mxu0 %v6692
    %v7010 = vpop.f32.mrf.mxu0
    %v7011 = vadd.f32 0.0, %v7010
    %v7012 = vpop.f32.mrf.mxu0
    %v7013 = vadd.f32 0.0, %v7012
    %7014 = vmatmul.bf16.gmra.mxu0 %v6695
    %v7015 = vpop.f32.mrf.mxu0
    %v7016 = vadd.f32 0.0, %v7015
    %v7017 = vpop.f32.mrf.mxu0
    %v7018 = vadd.f32 0.0, %v7017
    %7019 = vmatmul.bf16.gmra.mxu0 %v6698
    %v7020 = vpop.f32.mrf.mxu0
    %v7021 = vadd.f32 0.0, %v7020
    %v7022 = vpop.f32.mrf.mxu0
    %v7023 = vadd.f32 0.0, %v7022
    %7024 = vmatmul.bf16.gmra.mxu0 %v6701
    %v7025 = vpop.f32.mrf.mxu0
    %v7026 = vadd.f32 0.0, %v7025
    %v7027 = vpop.f32.mrf.mxu0
    %v7028 = vadd.f32 0.0, %v7027
    %7029 = vmatmul.bf16.gmra.mxu0 %v6704
    %v7030 = vpop.f32.mrf.mxu0
    %v7031 = vadd.f32 0.0, %v7030
    %v7032 = vpop.f32.mrf.mxu0
    %v7033 = vadd.f32 0.0, %v7032
    %7034 = vdwg.mxu0
    %v7035 = vld [vmem:[%s8] sm:$0xf]
    %v7036 = vld [vmem:[%s8 + $0x4] sm:$0xf]
    %v7037 = vld [vmem:[%s8 + $0x8] sm:$0xf]
    %v7038 = vld [vmem:[%s8 + $0xc] sm:$0xf]
    %v7039 = vunpack.c.l.bf16 %v7035
    %v7040 = vunpack.c.l.bf16 %v7036
    %v7041 = vunpack.c.l.bf16 %v7037
    %v7042 = vunpack.c.l.bf16 %v7038
    %s7043 = scalar_lea.vmem %s8, 16
    %v7044 = vld [vmem:[%s7043] sm:$0xf]
    %v7045 = vld [vmem:[%s7043 + $0x4] sm:$0xf]
    %v7046 = vld [vmem:[%s7043 + $0x8] sm:$0xf]
    %v7047 = vld [vmem:[%s7043 + $0xc] sm:$0xf]
    %v7048 = vunpack.c.l.bf16 %v7044
    %v7049 = vunpack.c.l.bf16 %v7045
    %v7050 = vunpack.c.l.bf16 %v7046
    %v7051 = vunpack.c.l.bf16 %v7047
    %v7053 = vsel %vm5903, %v6736, 0
    %v7056 = vsel %vm5903, %v6738, 0
    %v7059 = vsel %vm5903, %v6741, 0
    %v7062 = vsel %vm5903, %v6743, 0
    %v7065 = vsel %vm5903, %v6746, 0
    %v7068 = vsel %vm5903, %v6748, 0
    %v7071 = vsel %vm5903, %v6751, 0
    %v7074 = vsel %vm5903, %v6753, 0
    %7076 = vmatpush.msra.mxu0 0.0
    %7077 = vmatpush.msra.mxu0 0.0
    %7078 = vmatpush.msra.mxu0 0.0
    %7079 = vmatpush.msra.mxu0 0.0
    %7080 = vmatpush.msra.mxu0 0.0
    %7081 = vmatpush.msra.mxu0 0.0
    %7082 = vmatpush.msra.mxu0 0.0
    %7083 = vmatpush.msra.mxu0 0.0
    %7084 = vmatpush.msra.mxu0 0.0
    %7085 = vmatpush.msra.mxu0 0.0
    %7086 = vmatpush.msra.mxu0 0.0
    %7087 = vmatpush.msra.mxu0 0.0
    %7088 = vmatpush.msra.mxu0 %v7051
    %7089 = vmatpush.msra.mxu0 %v7050
    %7090 = vmatpush.msra.mxu0 %v7049
    %7091 = vmatpush.msra.mxu0 %v7048
    %7092 = vmatmul.f32.gmra.mxu0 %v7053
    %v7093 = vpop.f32.mrf.mxu0
    %v7094 = vadd.f32 0.0, %v7093
    %7095 = vmatmul.f32.gmra.mxu0 %v7056
    %v7096 = vpop.f32.mrf.mxu0
    %v7097 = vadd.f32 0.0, %v7096
    %7098 = vmatmul.f32.gmra.mxu0 %v7059
    %v7099 = vpop.f32.mrf.mxu0
    %v7100 = vadd.f32 0.0, %v7099
    %7101 = vmatmul.f32.gmra.mxu0 %v7062
    %v7102 = vpop.f32.mrf.mxu0
    %v7103 = vadd.f32 0.0, %v7102
    %7104 = vmatmul.f32.gmra.mxu0 %v7065
    %v7105 = vpop.f32.mrf.mxu0
    %v7106 = vadd.f32 0.0, %v7105
    %7107 = vmatmul.f32.gmra.mxu0 %v7068
    %v7108 = vpop.f32.mrf.mxu0
    %v7109 = vadd.f32 0.0, %v7108
    %7110 = vmatmul.f32.gmra.mxu0 %v7071
    %v7111 = vpop.f32.mrf.mxu0
    %v7112 = vadd.f32 0.0, %v7111
    %7113 = vmatmul.f32.gmra.mxu0 %v7074
    %v7114 = vpop.f32.mrf.mxu0
    %v7115 = vadd.f32 0.0, %v7114
    %7116 = vdwg.mxu0
    %v7118 = vsel %vm5903, %v6716, 0
    %v7121 = vsel %vm5903, %v6718, 0
    %v7124 = vsel %vm5903, %v6721, 0
    %v7127 = vsel %vm5903, %v6723, 0
    %v7130 = vsel %vm5903, %v6726, 0
    %v7133 = vsel %vm5903, %v6728, 0
    %v7136 = vsel %vm5903, %v6731, 0
    %v7139 = vsel %vm5903, %v6733, 0
    %7141 = vmatpush.msra.mxu0 0.0
    %7142 = vmatpush.msra.mxu0 0.0
    %7143 = vmatpush.msra.mxu0 0.0
    %7144 = vmatpush.msra.mxu0 0.0
    %7145 = vmatpush.msra.mxu0 0.0
    %7146 = vmatpush.msra.mxu0 0.0
    %7147 = vmatpush.msra.mxu0 0.0
    %7148 = vmatpush.msra.mxu0 0.0
    %7149 = vmatpush.msra.mxu0 0.0
    %7150 = vmatpush.msra.mxu0 0.0
    %7151 = vmatpush.msra.mxu0 0.0
    %7152 = vmatpush.msra.mxu0 0.0
    %7153 = vmatpush.msra.mxu0 %v7042
    %7154 = vmatpush.msra.mxu0 %v7041
    %7155 = vmatpush.msra.mxu0 %v7040
    %7156 = vmatpush.msra.mxu0 %v7039
    %7157 = vmatmul.f32.gmra.mxu0 %v7118
    %v7158 = vpop.f32.mrf.mxu0
    %v7159 = vadd.f32 %v7094, %v7158
    %7160 = vmatmul.f32.gmra.mxu0 %v7121
    %v7161 = vpop.f32.mrf.mxu0
    %v7162 = vadd.f32 %v7097, %v7161
    %7163 = vmatmul.f32.gmra.mxu0 %v7124
    %v7164 = vpop.f32.mrf.mxu0
    %v7165 = vadd.f32 %v7100, %v7164
    %7166 = vmatmul.f32.gmra.mxu0 %v7127
    %v7167 = vpop.f32.mrf.mxu0
    %v7168 = vadd.f32 %v7103, %v7167
    %7169 = vmatmul.f32.gmra.mxu0 %v7130
    %v7170 = vpop.f32.mrf.mxu0
    %v7171 = vadd.f32 %v7106, %v7170
    %7172 = vmatmul.f32.gmra.mxu0 %v7133
    %v7173 = vpop.f32.mrf.mxu0
    %v7174 = vadd.f32 %v7109, %v7173
    %7175 = vmatmul.f32.gmra.mxu0 %v7136
    %v7176 = vpop.f32.mrf.mxu0
    %v7177 = vadd.f32 %v7112, %v7176
    %7178 = vmatmul.f32.gmra.mxu0 %v7139
    %v7179 = vpop.f32.mrf.mxu0
    %v7180 = vadd.f32 %v7115, %v7179
    %7181 = vdwg.mxu0
    %s7182 = scalar_lea.vmem %s8, 32
    %v7183 = vld [vmem:[%s7182] sm:$0xf]
    %v7184 = vld [vmem:[%s7182 + $0x4] sm:$0xf]
    %v7185 = vld [vmem:[%s7182 + $0x8] sm:$0xf]
    %v7186 = vld [vmem:[%s7182 + $0xc] sm:$0xf]
    %v7187 = vunpack.c.l.bf16 %v7183
    %v7188 = vunpack.c.l.bf16 %v7184
    %v7189 = vunpack.c.l.bf16 %v7185
    %v7190 = vunpack.c.l.bf16 %v7186
    %v7192 = vsel %vm5903, %v6756, 0
    %v7195 = vsel %vm5903, %v6758, 0
    %v7198 = vsel %vm5903, %v6761, 0
    %v7201 = vsel %vm5903, %v6763, 0
    %v7204 = vsel %vm5903, %v6766, 0
    %v7207 = vsel %vm5903, %v6768, 0
    %v7210 = vsel %vm5903, %v6771, 0
    %v7213 = vsel %vm5903, %v6773, 0
    %7215 = vmatpush.msra.mxu0 0.0
    %7216 = vmatpush.msra.mxu0 0.0
    %7217 = vmatpush.msra.mxu0 0.0
    %7218 = vmatpush.msra.mxu0 0.0
    %7219 = vmatpush.msra.mxu0 0.0
    %7220 = vmatpush.msra.mxu0 0.0
    %7221 = vmatpush.msra.mxu0 0.0
    %7222 = vmatpush.msra.mxu0 0.0
    %7223 = vmatpush.msra.mxu0 0.0
    %7224 = vmatpush.msra.mxu0 0.0
    %7225 = vmatpush.msra.mxu0 0.0
    %7226 = vmatpush.msra.mxu0 0.0
    %7227 = vmatpush.msra.mxu0 %v7190
    %7228 = vmatpush.msra.mxu0 %v7189
    %7229 = vmatpush.msra.mxu0 %v7188
    %7230 = vmatpush.msra.mxu0 %v7187
    %7231 = vmatmul.f32.gmra.mxu0 %v7192
    %v7232 = vpop.f32.mrf.mxu0
    %v7233 = vadd.f32 0.0, %v7232
    %7234 = vmatmul.f32.gmra.mxu0 %v7195
    %v7235 = vpop.f32.mrf.mxu0
    %v7236 = vadd.f32 0.0, %v7235
    %7237 = vmatmul.f32.gmra.mxu0 %v7198
    %v7238 = vpop.f32.mrf.mxu0
    %v7239 = vadd.f32 0.0, %v7238
    %7240 = vmatmul.f32.gmra.mxu0 %v7201
    %v7241 = vpop.f32.mrf.mxu0
    %v7242 = vadd.f32 0.0, %v7241
    %7243 = vmatmul.f32.gmra.mxu0 %v7204
    %v7244 = vpop.f32.mrf.mxu0
    %v7245 = vadd.f32 0.0, %v7244
    %7246 = vmatmul.f32.gmra.mxu0 %v7207
    %v7247 = vpop.f32.mrf.mxu0
    %v7248 = vadd.f32 0.0, %v7247
    %7249 = vmatmul.f32.gmra.mxu0 %v7210
    %v7250 = vpop.f32.mrf.mxu0
    %v7251 = vadd.f32 0.0, %v7250
    %7252 = vmatmul.f32.gmra.mxu0 %v7213
    %v7253 = vpop.f32.mrf.mxu0
    %v7254 = vadd.f32 0.0, %v7253
    %7255 = vdwg.mxu0
    %v7256 = vadd.f32 %v7159, %v7233
    %v7257 = vadd.f32 %v7162, %v7236
    %v7258 = vadd.f32 %v7165, %v7239
    %v7259 = vadd.f32 %v7168, %v7242
    %v7260 = vadd.f32 %v7171, %v7245
    %v7261 = vadd.f32 %v7174, %v7248
    %v7262 = vadd.f32 %v7177, %v7251
    %v7263 = vadd.f32 %v7180, %v7254
    %s7264 = scalar_lea.vmem %s8, 48
    %v7265 = vld [vmem:[%s7264] sm:$0xf]
    %v7266 = vld [vmem:[%s7264 + $0x4] sm:$0xf]
    %v7267 = vld [vmem:[%s7264 + $0x8] sm:$0xf]
    %v7268 = vld [vmem:[%s7264 + $0xc] sm:$0xf]
    %v7269 = vunpack.c.l.bf16 %v7265
    %v7270 = vunpack.c.l.bf16 %v7266
    %v7271 = vunpack.c.l.bf16 %v7267
    %v7272 = vunpack.c.l.bf16 %v7268
    %v7274 = vsel %vm5903, %v6776, 0
    %v7277 = vsel %vm5903, %v6778, 0
    %v7280 = vsel %vm5903, %v6781, 0
    %v7283 = vsel %vm5903, %v6783, 0
    %v7286 = vsel %vm5903, %v6786, 0
    %v7289 = vsel %vm5903, %v6788, 0
    %v7292 = vsel %vm5903, %v6791, 0
    %v7295 = vsel %vm5903, %v6793, 0
    %7297 = vmatpush.msra.mxu0 0.0
    %7298 = vmatpush.msra.mxu0 0.0
    %7299 = vmatpush.msra.mxu0 0.0
    %7300 = vmatpush.msra.mxu0 0.0
    %7301 = vmatpush.msra.mxu0 0.0
    %7302 = vmatpush.msra.mxu0 0.0
    %7303 = vmatpush.msra.mxu0 0.0
    %7304 = vmatpush.msra.mxu0 0.0
    %7305 = vmatpush.msra.mxu0 0.0
    %7306 = vmatpush.msra.mxu0 0.0
    %7307 = vmatpush.msra.mxu0 0.0
    %7308 = vmatpush.msra.mxu0 0.0
    %7309 = vmatpush.msra.mxu0 %v7272
    %7310 = vmatpush.msra.mxu0 %v7271
    %7311 = vmatpush.msra.mxu0 %v7270
    %7312 = vmatpush.msra.mxu0 %v7269
    %7313 = vmatmul.f32.gmra.mxu0 %v7274
    %v7314 = vpop.f32.mrf.mxu0
    %v7315 = vadd.f32 0.0, %v7314
    %7316 = vmatmul.f32.gmra.mxu0 %v7277
    %v7317 = vpop.f32.mrf.mxu0
    %v7318 = vadd.f32 0.0, %v7317
    %7319 = vmatmul.f32.gmra.mxu0 %v7280
    %v7320 = vpop.f32.mrf.mxu0
    %v7321 = vadd.f32 0.0, %v7320
    %7322 = vmatmul.f32.gmra.mxu0 %v7283
    %v7323 = vpop.f32.mrf.mxu0
    %v7324 = vadd.f32 0.0, %v7323
    %7325 = vmatmul.f32.gmra.mxu0 %v7286
    %v7326 = vpop.f32.mrf.mxu0
    %v7327 = vadd.f32 0.0, %v7326
    %7328 = vmatmul.f32.gmra.mxu0 %v7289
    %v7329 = vpop.f32.mrf.mxu0
    %v7330 = vadd.f32 0.0, %v7329
    %7331 = vmatmul.f32.gmra.mxu0 %v7292
    %v7332 = vpop.f32.mrf.mxu0
    %v7333 = vadd.f32 0.0, %v7332
    %7334 = vmatmul.f32.gmra.mxu0 %v7295
    %v7335 = vpop.f32.mrf.mxu0
    %v7336 = vadd.f32 0.0, %v7335
    %7337 = vdwg.mxu0
    %v7338 = vadd.f32 %v7256, %v7315
    %v7339 = vadd.f32 %v7257, %v7318
    %v7340 = vadd.f32 %v7258, %v7321
    %v7341 = vadd.f32 %v7259, %v7324
    %v7342 = vadd.f32 %v7260, %v7327
    %v7343 = vadd.f32 %v7261, %v7330
    %v7344 = vadd.f32 %v7262, %v7333
    %v7345 = vadd.f32 %v7263, %v7336
    %s7346 = scalar_lea.vmem %s8, 64
    %v7347 = vld [vmem:[%s7346] sm:$0xf]
    %v7348 = vld [vmem:[%s7346 + $0x4] sm:$0xf]
    %v7349 = vld [vmem:[%s7346 + $0x8] sm:$0xf]
    %v7350 = vld [vmem:[%s7346 + $0xc] sm:$0xf]
    %v7351 = vunpack.c.l.bf16 %v7347
    %v7352 = vunpack.c.l.bf16 %v7348
    %v7353 = vunpack.c.l.bf16 %v7349
    %v7354 = vunpack.c.l.bf16 %v7350
    %v7356 = vsel %vm5903, %v6796, 0
    %v7359 = vsel %vm5903, %v6798, 0
    %v7362 = vsel %vm5903, %v6801, 0
    %v7365 = vsel %vm5903, %v6803, 0
    %v7368 = vsel %vm5903, %v6806, 0
    %v7371 = vsel %vm5903, %v6808, 0
    %v7374 = vsel %vm5903, %v6811, 0
    %v7377 = vsel %vm5903, %v6813, 0
    %7379 = vmatpush.msra.mxu0 0.0
    %7380 = vmatpush.msra.mxu0 0.0
    %7381 = vmatpush.msra.mxu0 0.0
    %7382 = vmatpush.msra.mxu0 0.0
    %7383 = vmatpush.msra.mxu0 0.0
    %7384 = vmatpush.msra.mxu0 0.0
    %7385 = vmatpush.msra.mxu0 0.0
    %7386 = vmatpush.msra.mxu0 0.0
    %7387 = vmatpush.msra.mxu0 0.0
    %7388 = vmatpush.msra.mxu0 0.0
    %7389 = vmatpush.msra.mxu0 0.0
    %7390 = vmatpush.msra.mxu0 0.0
    %7391 = vmatpush.msra.mxu0 %v7354
    %7392 = vmatpush.msra.mxu0 %v7353
    %7393 = vmatpush.msra.mxu0 %v7352
    %7394 = vmatpush.msra.mxu0 %v7351
    %7395 = vmatmul.f32.gmra.mxu0 %v7356
    %v7396 = vpop.f32.mrf.mxu0
    %v7397 = vadd.f32 0.0, %v7396
    %7398 = vmatmul.f32.gmra.mxu0 %v7359
    %v7399 = vpop.f32.mrf.mxu0
    %v7400 = vadd.f32 0.0, %v7399
    %7401 = vmatmul.f32.gmra.mxu0 %v7362
    %v7402 = vpop.f32.mrf.mxu0
    %v7403 = vadd.f32 0.0, %v7402
    %7404 = vmatmul.f32.gmra.mxu0 %v7365
    %v7405 = vpop.f32.mrf.mxu0
    %v7406 = vadd.f32 0.0, %v7405
    %7407 = vmatmul.f32.gmra.mxu0 %v7368
    %v7408 = vpop.f32.mrf.mxu0
    %v7409 = vadd.f32 0.0, %v7408
    %7410 = vmatmul.f32.gmra.mxu0 %v7371
    %v7411 = vpop.f32.mrf.mxu0
    %v7412 = vadd.f32 0.0, %v7411
    %7413 = vmatmul.f32.gmra.mxu0 %v7374
    %v7414 = vpop.f32.mrf.mxu0
    %v7415 = vadd.f32 0.0, %v7414
    %7416 = vmatmul.f32.gmra.mxu0 %v7377
    %v7417 = vpop.f32.mrf.mxu0
    %v7418 = vadd.f32 0.0, %v7417
    %7419 = vdwg.mxu0
    %v7420 = vadd.f32 %v7338, %v7397
    %v7421 = vadd.f32 %v7339, %v7400
    %v7422 = vadd.f32 %v7340, %v7403
    %v7423 = vadd.f32 %v7341, %v7406
    %v7424 = vadd.f32 %v7342, %v7409
    %v7425 = vadd.f32 %v7343, %v7412
    %v7426 = vadd.f32 %v7344, %v7415
    %v7427 = vadd.f32 %v7345, %v7418
    %s7428 = scalar_lea.vmem %s8, 80
    %v7429 = vld [vmem:[%s7428] sm:$0xf]
    %v7430 = vld [vmem:[%s7428 + $0x4] sm:$0xf]
    %v7431 = vld [vmem:[%s7428 + $0x8] sm:$0xf]
    %v7432 = vld [vmem:[%s7428 + $0xc] sm:$0xf]
    %v7433 = vunpack.c.l.bf16 %v7429
    %v7434 = vunpack.c.l.bf16 %v7430
    %v7435 = vunpack.c.l.bf16 %v7431
    %v7436 = vunpack.c.l.bf16 %v7432
    %v7438 = vsel %vm5903, %v6816, 0
    %v7441 = vsel %vm5903, %v6818, 0
    %v7444 = vsel %vm5903, %v6821, 0
    %v7447 = vsel %vm5903, %v6823, 0
    %v7450 = vsel %vm5903, %v6826, 0
    %v7453 = vsel %vm5903, %v6828, 0
    %v7456 = vsel %vm5903, %v6831, 0
    %v7459 = vsel %vm5903, %v6833, 0
    %7461 = vmatpush.msra.mxu0 0.0
    %7462 = vmatpush.msra.mxu0 0.0
    %7463 = vmatpush.msra.mxu0 0.0
    %7464 = vmatpush.msra.mxu0 0.0
    %7465 = vmatpush.msra.mxu0 0.0
    %7466 = vmatpush.msra.mxu0 0.0
    %7467 = vmatpush.msra.mxu0 0.0
    %7468 = vmatpush.msra.mxu0 0.0
    %7469 = vmatpush.msra.mxu0 0.0
    %7470 = vmatpush.msra.mxu0 0.0
    %7471 = vmatpush.msra.mxu0 0.0
    %7472 = vmatpush.msra.mxu0 0.0
    %7473 = vmatpush.msra.mxu0 %v7436
    %7474 = vmatpush.msra.mxu0 %v7435
    %7475 = vmatpush.msra.mxu0 %v7434
    %7476 = vmatpush.msra.mxu0 %v7433
    %7477 = vmatmul.f32.gmra.mxu0 %v7438
    %v7478 = vpop.f32.mrf.mxu0
    %v7479 = vadd.f32 0.0, %v7478
    %7480 = vmatmul.f32.gmra.mxu0 %v7441
    %v7481 = vpop.f32.mrf.mxu0
    %v7482 = vadd.f32 0.0, %v7481
    %7483 = vmatmul.f32.gmra.mxu0 %v7444
    %v7484 = vpop.f32.mrf.mxu0
    %v7485 = vadd.f32 0.0, %v7484
    %7486 = vmatmul.f32.gmra.mxu0 %v7447
    %v7487 = vpop.f32.mrf.mxu0
    %v7488 = vadd.f32 0.0, %v7487
    %7489 = vmatmul.f32.gmra.mxu0 %v7450
    %v7490 = vpop.f32.mrf.mxu0
    %v7491 = vadd.f32 0.0, %v7490
    %7492 = vmatmul.f32.gmra.mxu0 %v7453
    %v7493 = vpop.f32.mrf.mxu0
    %v7494 = vadd.f32 0.0, %v7493
    %7495 = vmatmul.f32.gmra.mxu0 %v7456
    %v7496 = vpop.f32.mrf.mxu0
    %v7497 = vadd.f32 0.0, %v7496
    %7498 = vmatmul.f32.gmra.mxu0 %v7459
    %v7499 = vpop.f32.mrf.mxu0
    %v7500 = vadd.f32 0.0, %v7499
    %7501 = vdwg.mxu0
    %v7502 = vadd.f32 %v7420, %v7479
    %v7503 = vadd.f32 %v7421, %v7482
    %v7504 = vadd.f32 %v7422, %v7485
    %v7505 = vadd.f32 %v7423, %v7488
    %v7506 = vadd.f32 %v7424, %v7491
    %v7507 = vadd.f32 %v7425, %v7494
    %v7508 = vadd.f32 %v7426, %v7497
    %v7509 = vadd.f32 %v7427, %v7500
    %s7510 = scalar_lea.vmem %s8, 96
    %v7511 = vld [vmem:[%s7510] sm:$0xf]
    %v7512 = vld [vmem:[%s7510 + $0x4] sm:$0xf]
    %v7513 = vld [vmem:[%s7510 + $0x8] sm:$0xf]
    %v7514 = vld [vmem:[%s7510 + $0xc] sm:$0xf]
    %v7515 = vunpack.c.l.bf16 %v7511
    %v7516 = vunpack.c.l.bf16 %v7512
    %v7517 = vunpack.c.l.bf16 %v7513
    %v7518 = vunpack.c.l.bf16 %v7514
    %v7520 = vsel %vm5903, %v6836, 0
    %v7523 = vsel %vm5903, %v6838, 0
    %v7526 = vsel %vm5903, %v6841, 0
    %v7529 = vsel %vm5903, %v6843, 0
    %v7532 = vsel %vm5903, %v6846, 0
    %v7535 = vsel %vm5903, %v6848, 0
    %v7538 = vsel %vm5903, %v6851, 0
    %v7541 = vsel %vm5903, %v6853, 0
    %7543 = vmatpush.msra.mxu0 0.0
    %7544 = vmatpush.msra.mxu0 0.0
    %7545 = vmatpush.msra.mxu0 0.0
    %7546 = vmatpush.msra.mxu0 0.0
    %7547 = vmatpush.msra.mxu0 0.0
    %7548 = vmatpush.msra.mxu0 0.0
    %7549 = vmatpush.msra.mxu0 0.0
    %7550 = vmatpush.msra.mxu0 0.0
    %7551 = vmatpush.msra.mxu0 0.0
    %7552 = vmatpush.msra.mxu0 0.0
    %7553 = vmatpush.msra.mxu0 0.0
    %7554 = vmatpush.msra.mxu0 0.0
    %7555 = vmatpush.msra.mxu0 %v7518
    %7556 = vmatpush.msra.mxu0 %v7517
    %7557 = vmatpush.msra.mxu0 %v7516
    %7558 = vmatpush.msra.mxu0 %v7515
    %7559 = vmatmul.f32.gmra.mxu0 %v7520
    %v7560 = vpop.f32.mrf.mxu0
    %v7561 = vadd.f32 0.0, %v7560
    %7562 = vmatmul.f32.gmra.mxu0 %v7523
    %v7563 = vpop.f32.mrf.mxu0
    %v7564 = vadd.f32 0.0, %v7563
    %7565 = vmatmul.f32.gmra.mxu0 %v7526
    %v7566 = vpop.f32.mrf.mxu0
    %v7567 = vadd.f32 0.0, %v7566
    %7568 = vmatmul.f32.gmra.mxu0 %v7529
    %v7569 = vpop.f32.mrf.mxu0
    %v7570 = vadd.f32 0.0, %v7569
    %7571 = vmatmul.f32.gmra.mxu0 %v7532
    %v7572 = vpop.f32.mrf.mxu0
    %v7573 = vadd.f32 0.0, %v7572
    %7574 = vmatmul.f32.gmra.mxu0 %v7535
    %v7575 = vpop.f32.mrf.mxu0
    %v7576 = vadd.f32 0.0, %v7575
    %7577 = vmatmul.f32.gmra.mxu0 %v7538
    %v7578 = vpop.f32.mrf.mxu0
    %v7579 = vadd.f32 0.0, %v7578
    %7580 = vmatmul.f32.gmra.mxu0 %v7541
    %v7581 = vpop.f32.mrf.mxu0
    %v7582 = vadd.f32 0.0, %v7581
    %7583 = vdwg.mxu0
    %v7584 = vadd.f32 %v7502, %v7561
    %v7585 = vadd.f32 %v7503, %v7564
    %v7586 = vadd.f32 %v7504, %v7567
    %v7587 = vadd.f32 %v7505, %v7570
    %v7588 = vadd.f32 %v7506, %v7573
    %v7589 = vadd.f32 %v7507, %v7576
    %v7590 = vadd.f32 %v7508, %v7579
    %v7591 = vadd.f32 %v7509, %v7582
    %s7592 = scalar_lea.vmem %s8, 112
    %v7593 = vld [vmem:[%s7592] sm:$0xf]
    %v7594 = vld [vmem:[%s7592 + $0x4] sm:$0xf]
    %v7595 = vld [vmem:[%s7592 + $0x8] sm:$0xf]
    %v7596 = vld [vmem:[%s7592 + $0xc] sm:$0xf]
    %v7597 = vunpack.c.l.bf16 %v7593
    %v7598 = vunpack.c.l.bf16 %v7594
    %v7599 = vunpack.c.l.bf16 %v7595
    %v7600 = vunpack.c.l.bf16 %v7596
    %v7602 = vsel %vm5903, %v6856, 0
    %v7605 = vsel %vm5903, %v6858, 0
    %v7608 = vsel %vm5903, %v6861, 0
    %v7611 = vsel %vm5903, %v6863, 0
    %v7614 = vsel %vm5903, %v6866, 0
    %v7617 = vsel %vm5903, %v6868, 0
    %v7620 = vsel %vm5903, %v6871, 0
    %v7623 = vsel %vm5903, %v6873, 0
    %7625 = vmatpush.msra.mxu0 0.0
    %7626 = vmatpush.msra.mxu0 0.0
    %7627 = vmatpush.msra.mxu0 0.0
    %7628 = vmatpush.msra.mxu0 0.0
    %7629 = vmatpush.msra.mxu0 0.0
    %7630 = vmatpush.msra.mxu0 0.0
    %7631 = vmatpush.msra.mxu0 0.0
    %7632 = vmatpush.msra.mxu0 0.0
    %7633 = vmatpush.msra.mxu0 0.0
    %7634 = vmatpush.msra.mxu0 0.0
    %7635 = vmatpush.msra.mxu0 0.0
    %7636 = vmatpush.msra.mxu0 0.0
    %7637 = vmatpush.msra.mxu0 %v7600
    %7638 = vmatpush.msra.mxu0 %v7599
    %7639 = vmatpush.msra.mxu0 %v7598
    %7640 = vmatpush.msra.mxu0 %v7597
    %7641 = vmatmul.f32.gmra.mxu0 %v7602
    %v7642 = vpop.f32.mrf.mxu0
    %v7643 = vadd.f32 0.0, %v7642
    %7644 = vmatmul.f32.gmra.mxu0 %v7605
    %v7645 = vpop.f32.mrf.mxu0
    %v7646 = vadd.f32 0.0, %v7645
    %7647 = vmatmul.f32.gmra.mxu0 %v7608
    %v7648 = vpop.f32.mrf.mxu0
    %v7649 = vadd.f32 0.0, %v7648
    %7650 = vmatmul.f32.gmra.mxu0 %v7611
    %v7651 = vpop.f32.mrf.mxu0
    %v7652 = vadd.f32 0.0, %v7651
    %7653 = vmatmul.f32.gmra.mxu0 %v7614
    %v7654 = vpop.f32.mrf.mxu0
    %v7655 = vadd.f32 0.0, %v7654
    %7656 = vmatmul.f32.gmra.mxu0 %v7617
    %v7657 = vpop.f32.mrf.mxu0
    %v7658 = vadd.f32 0.0, %v7657
    %7659 = vmatmul.f32.gmra.mxu0 %v7620
    %v7660 = vpop.f32.mrf.mxu0
    %v7661 = vadd.f32 0.0, %v7660
    %7662 = vmatmul.f32.gmra.mxu0 %v7623
    %v7663 = vpop.f32.mrf.mxu0
    %v7664 = vadd.f32 0.0, %v7663
    %7665 = vdwg.mxu0
    %v7666 = vadd.f32 %v7584, %v7643
    %v7667 = vadd.f32 %v7585, %v7646
    %v7668 = vadd.f32 %v7586, %v7649
    %v7669 = vadd.f32 %v7587, %v7652
    %v7670 = vadd.f32 %v7588, %v7655
    %v7671 = vadd.f32 %v7589, %v7658
    %v7672 = vadd.f32 %v7590, %v7661
    %v7673 = vadd.f32 %v7591, %v7664
    %s7674 = scalar_lea.vmem %s8, 128
    %v7675 = vld [vmem:[%s7674] sm:$0xf]
    %v7676 = vld [vmem:[%s7674 + $0x4] sm:$0xf]
    %v7677 = vld [vmem:[%s7674 + $0x8] sm:$0xf]
    %v7678 = vld [vmem:[%s7674 + $0xc] sm:$0xf]
    %v7679 = vunpack.c.l.bf16 %v7675
    %v7680 = vunpack.c.l.bf16 %v7676
    %v7681 = vunpack.c.l.bf16 %v7677
    %v7682 = vunpack.c.l.bf16 %v7678
    %v7684 = vsel %vm5903, %v6876, 0
    %v7687 = vsel %vm5903, %v6878, 0
    %v7690 = vsel %vm5903, %v6881, 0
    %v7693 = vsel %vm5903, %v6883, 0
    %v7696 = vsel %vm5903, %v6886, 0
    %v7699 = vsel %vm5903, %v6888, 0
    %v7702 = vsel %vm5903, %v6891, 0
    %v7705 = vsel %vm5903, %v6893, 0
    %7707 = vmatpush.msra.mxu0 0.0
    %7708 = vmatpush.msra.mxu0 0.0
    %7709 = vmatpush.msra.mxu0 0.0
    %7710 = vmatpush.msra.mxu0 0.0
    %7711 = vmatpush.msra.mxu0 0.0
    %7712 = vmatpush.msra.mxu0 0.0
    %7713 = vmatpush.msra.mxu0 0.0
    %7714 = vmatpush.msra.mxu0 0.0
    %7715 = vmatpush.msra.mxu0 0.0
    %7716 = vmatpush.msra.mxu0 0.0
    %7717 = vmatpush.msra.mxu0 0.0
    %7718 = vmatpush.msra.mxu0 0.0
    %7719 = vmatpush.msra.mxu0 %v7682
    %7720 = vmatpush.msra.mxu0 %v7681
    %7721 = vmatpush.msra.mxu0 %v7680
    %7722 = vmatpush.msra.mxu0 %v7679
    %7723 = vmatmul.f32.gmra.mxu0 %v7684
    %v7724 = vpop.f32.mrf.mxu0
    %v7725 = vadd.f32 0.0, %v7724
    %7726 = vmatmul.f32.gmra.mxu0 %v7687
    %v7727 = vpop.f32.mrf.mxu0
    %v7728 = vadd.f32 0.0, %v7727
    %7729 = vmatmul.f32.gmra.mxu0 %v7690
    %v7730 = vpop.f32.mrf.mxu0
    %v7731 = vadd.f32 0.0, %v7730
    %7732 = vmatmul.f32.gmra.mxu0 %v7693
    %v7733 = vpop.f32.mrf.mxu0
    %v7734 = vadd.f32 0.0, %v7733
    %7735 = vmatmul.f32.gmra.mxu0 %v7696
    %v7736 = vpop.f32.mrf.mxu0
    %v7737 = vadd.f32 0.0, %v7736
    %7738 = vmatmul.f32.gmra.mxu0 %v7699
    %v7739 = vpop.f32.mrf.mxu0
    %v7740 = vadd.f32 0.0, %v7739
    %7741 = vmatmul.f32.gmra.mxu0 %v7702
    %v7742 = vpop.f32.mrf.mxu0
    %v7743 = vadd.f32 0.0, %v7742
    %7744 = vmatmul.f32.gmra.mxu0 %v7705
    %v7745 = vpop.f32.mrf.mxu0
    %v7746 = vadd.f32 0.0, %v7745
    %7747 = vdwg.mxu0
    %v7748 = vadd.f32 %v7666, %v7725
    %v7749 = vadd.f32 %v7667, %v7728
    %v7750 = vadd.f32 %v7668, %v7731
    %v7751 = vadd.f32 %v7669, %v7734
    %v7752 = vadd.f32 %v7670, %v7737
    %v7753 = vadd.f32 %v7671, %v7740
    %v7754 = vadd.f32 %v7672, %v7743
    %v7755 = vadd.f32 %v7673, %v7746
    %s7756 = scalar_lea.vmem %s8, 144
    %v7757 = vld [vmem:[%s7756] sm:$0xf]
    %v7758 = vld [vmem:[%s7756 + $0x4] sm:$0xf]
    %v7759 = vld [vmem:[%s7756 + $0x8] sm:$0xf]
    %v7760 = vld [vmem:[%s7756 + $0xc] sm:$0xf]
    %v7761 = vunpack.c.l.bf16 %v7757
    %v7762 = vunpack.c.l.bf16 %v7758
    %v7763 = vunpack.c.l.bf16 %v7759
    %v7764 = vunpack.c.l.bf16 %v7760
    %v7766 = vsel %vm5903, %v6896, 0
    %v7769 = vsel %vm5903, %v6898, 0
    %v7772 = vsel %vm5903, %v6901, 0
    %v7775 = vsel %vm5903, %v6903, 0
    %v7778 = vsel %vm5903, %v6906, 0
    %v7781 = vsel %vm5903, %v6908, 0
    %v7784 = vsel %vm5903, %v6911, 0
    %v7787 = vsel %vm5903, %v6913, 0
    %7789 = vmatpush.msra.mxu0 0.0
    %7790 = vmatpush.msra.mxu0 0.0
    %7791 = vmatpush.msra.mxu0 0.0
    %7792 = vmatpush.msra.mxu0 0.0
    %7793 = vmatpush.msra.mxu0 0.0
    %7794 = vmatpush.msra.mxu0 0.0
    %7795 = vmatpush.msra.mxu0 0.0
    %7796 = vmatpush.msra.mxu0 0.0
    %7797 = vmatpush.msra.mxu0 0.0
    %7798 = vmatpush.msra.mxu0 0.0
    %7799 = vmatpush.msra.mxu0 0.0
    %7800 = vmatpush.msra.mxu0 0.0
    %7801 = vmatpush.msra.mxu0 %v7764
    %7802 = vmatpush.msra.mxu0 %v7763
    %7803 = vmatpush.msra.mxu0 %v7762
    %7804 = vmatpush.msra.mxu0 %v7761
    %7805 = vmatmul.f32.gmra.mxu0 %v7766
    %v7806 = vpop.f32.mrf.mxu0
    %v7807 = vadd.f32 0.0, %v7806
    %7808 = vmatmul.f32.gmra.mxu0 %v7769
    %v7809 = vpop.f32.mrf.mxu0
    %v7810 = vadd.f32 0.0, %v7809
    %7811 = vmatmul.f32.gmra.mxu0 %v7772
    %v7812 = vpop.f32.mrf.mxu0
    %v7813 = vadd.f32 0.0, %v7812
    %7814 = vmatmul.f32.gmra.mxu0 %v7775
    %v7815 = vpop.f32.mrf.mxu0
    %v7816 = vadd.f32 0.0, %v7815
    %7817 = vmatmul.f32.gmra.mxu0 %v7778
    %v7818 = vpop.f32.mrf.mxu0
    %v7819 = vadd.f32 0.0, %v7818
    %7820 = vmatmul.f32.gmra.mxu0 %v7781
    %v7821 = vpop.f32.mrf.mxu0
    %v7822 = vadd.f32 0.0, %v7821
    %7823 = vmatmul.f32.gmra.mxu0 %v7784
    %v7824 = vpop.f32.mrf.mxu0
    %v7825 = vadd.f32 0.0, %v7824
    %7826 = vmatmul.f32.gmra.mxu0 %v7787
    %v7827 = vpop.f32.mrf.mxu0
    %v7828 = vadd.f32 0.0, %v7827
    %7829 = vdwg.mxu0
    %v7830 = vadd.f32 %v7748, %v7807
    %v7831 = vadd.f32 %v7749, %v7810
    %v7832 = vadd.f32 %v7750, %v7813
    %v7833 = vadd.f32 %v7751, %v7816
    %v7834 = vadd.f32 %v7752, %v7819
    %v7835 = vadd.f32 %v7753, %v7822
    %v7836 = vadd.f32 %v7754, %v7825
    %v7837 = vadd.f32 %v7755, %v7828
    %s7838 = scalar_lea.vmem %s8, 160
    %v7839 = vld [vmem:[%s7838] sm:$0xf]
    %v7840 = vld [vmem:[%s7838 + $0x4] sm:$0xf]
    %v7841 = vld [vmem:[%s7838 + $0x8] sm:$0xf]
    %v7842 = vld [vmem:[%s7838 + $0xc] sm:$0xf]
    %v7843 = vunpack.c.l.bf16 %v7839
    %v7844 = vunpack.c.l.bf16 %v7840
    %v7845 = vunpack.c.l.bf16 %v7841
    %v7846 = vunpack.c.l.bf16 %v7842
    %v7848 = vsel %vm5903, %v6916, 0
    %v7851 = vsel %vm5903, %v6918, 0
    %v7854 = vsel %vm5903, %v6921, 0
    %v7857 = vsel %vm5903, %v6923, 0
    %v7860 = vsel %vm5903, %v6926, 0
    %v7863 = vsel %vm5903, %v6928, 0
    %v7866 = vsel %vm5903, %v6931, 0
    %v7869 = vsel %vm5903, %v6933, 0
    %7871 = vmatpush.msra.mxu0 0.0
    %7872 = vmatpush.msra.mxu0 0.0
    %7873 = vmatpush.msra.mxu0 0.0
    %7874 = vmatpush.msra.mxu0 0.0
    %7875 = vmatpush.msra.mxu0 0.0
    %7876 = vmatpush.msra.mxu0 0.0
    %7877 = vmatpush.msra.mxu0 0.0
    %7878 = vmatpush.msra.mxu0 0.0
    %7879 = vmatpush.msra.mxu0 0.0
    %7880 = vmatpush.msra.mxu0 0.0
    %7881 = vmatpush.msra.mxu0 0.0
    %7882 = vmatpush.msra.mxu0 0.0
    %7883 = vmatpush.msra.mxu0 %v7846
    %7884 = vmatpush.msra.mxu0 %v7845
    %7885 = vmatpush.msra.mxu0 %v7844
    %7886 = vmatpush.msra.mxu0 %v7843
    %7887 = vmatmul.f32.gmra.mxu0 %v7848
    %v7888 = vpop.f32.mrf.mxu0
    %v7889 = vadd.f32 0.0, %v7888
    %7890 = vmatmul.f32.gmra.mxu0 %v7851
    %v7891 = vpop.f32.mrf.mxu0
    %v7892 = vadd.f32 0.0, %v7891
    %7893 = vmatmul.f32.gmra.mxu0 %v7854
    %v7894 = vpop.f32.mrf.mxu0
    %v7895 = vadd.f32 0.0, %v7894
    %7896 = vmatmul.f32.gmra.mxu0 %v7857
    %v7897 = vpop.f32.mrf.mxu0
    %v7898 = vadd.f32 0.0, %v7897
    %7899 = vmatmul.f32.gmra.mxu0 %v7860
    %v7900 = vpop.f32.mrf.mxu0
    %v7901 = vadd.f32 0.0, %v7900
    %7902 = vmatmul.f32.gmra.mxu0 %v7863
    %v7903 = vpop.f32.mrf.mxu0
    %v7904 = vadd.f32 0.0, %v7903
    %7905 = vmatmul.f32.gmra.mxu0 %v7866
    %v7906 = vpop.f32.mrf.mxu0
    %v7907 = vadd.f32 0.0, %v7906
    %7908 = vmatmul.f32.gmra.mxu0 %v7869
    %v7909 = vpop.f32.mrf.mxu0
    %v7910 = vadd.f32 0.0, %v7909
    %7911 = vdwg.mxu0
    %v7912 = vadd.f32 %v7830, %v7889
    %v7913 = vadd.f32 %v7831, %v7892
    %v7914 = vadd.f32 %v7832, %v7895
    %v7915 = vadd.f32 %v7833, %v7898
    %v7916 = vadd.f32 %v7834, %v7901
    %v7917 = vadd.f32 %v7835, %v7904
    %v7918 = vadd.f32 %v7836, %v7907
    %v7919 = vadd.f32 %v7837, %v7910
    %s7920 = scalar_lea.vmem %s8, 176
    %v7921 = vld [vmem:[%s7920] sm:$0xf]
    %v7922 = vld [vmem:[%s7920 + $0x4] sm:$0xf]
    %v7923 = vld [vmem:[%s7920 + $0x8] sm:$0xf]
    %v7924 = vld [vmem:[%s7920 + $0xc] sm:$0xf]
    %v7925 = vunpack.c.l.bf16 %v7921
    %v7926 = vunpack.c.l.bf16 %v7922
    %v7927 = vunpack.c.l.bf16 %v7923
    %v7928 = vunpack.c.l.bf16 %v7924
    %v7930 = vsel %vm5903, %v6936, 0
    %v7933 = vsel %vm5903, %v6938, 0
    %v7936 = vsel %vm5903, %v6941, 0
    %v7939 = vsel %vm5903, %v6943, 0
    %v7942 = vsel %vm5903, %v6946, 0
    %v7945 = vsel %vm5903, %v6948, 0
    %v7948 = vsel %vm5903, %v6951, 0
    %v7951 = vsel %vm5903, %v6953, 0
    %7953 = vmatpush.msra.mxu0 0.0
    %7954 = vmatpush.msra.mxu0 0.0
    %7955 = vmatpush.msra.mxu0 0.0
    %7956 = vmatpush.msra.mxu0 0.0
    %7957 = vmatpush.msra.mxu0 0.0
    %7958 = vmatpush.msra.mxu0 0.0
    %7959 = vmatpush.msra.mxu0 0.0
    %7960 = vmatpush.msra.mxu0 0.0
    %7961 = vmatpush.msra.mxu0 0.0
    %7962 = vmatpush.msra.mxu0 0.0
    %7963 = vmatpush.msra.mxu0 0.0
    %7964 = vmatpush.msra.mxu0 0.0
    %7965 = vmatpush.msra.mxu0 %v7928
    %7966 = vmatpush.msra.mxu0 %v7927
    %7967 = vmatpush.msra.mxu0 %v7926
    %7968 = vmatpush.msra.mxu0 %v7925
    %7969 = vmatmul.f32.gmra.mxu0 %v7930
    %v7970 = vpop.f32.mrf.mxu0
    %v7971 = vadd.f32 0.0, %v7970
    %7972 = vmatmul.f32.gmra.mxu0 %v7933
    %v7973 = vpop.f32.mrf.mxu0
    %v7974 = vadd.f32 0.0, %v7973
    %7975 = vmatmul.f32.gmra.mxu0 %v7936
    %v7976 = vpop.f32.mrf.mxu0
    %v7977 = vadd.f32 0.0, %v7976
    %7978 = vmatmul.f32.gmra.mxu0 %v7939
    %v7979 = vpop.f32.mrf.mxu0
    %v7980 = vadd.f32 0.0, %v7979
    %7981 = vmatmul.f32.gmra.mxu0 %v7942
    %v7982 = vpop.f32.mrf.mxu0
    %v7983 = vadd.f32 0.0, %v7982
    %7984 = vmatmul.f32.gmra.mxu0 %v7945
    %v7985 = vpop.f32.mrf.mxu0
    %v7986 = vadd.f32 0.0, %v7985
    %7987 = vmatmul.f32.gmra.mxu0 %v7948
    %v7988 = vpop.f32.mrf.mxu0
    %v7989 = vadd.f32 0.0, %v7988
    %7990 = vmatmul.f32.gmra.mxu0 %v7951
    %v7991 = vpop.f32.mrf.mxu0
    %v7992 = vadd.f32 0.0, %v7991
    %7993 = vdwg.mxu0
    %v7994 = vadd.f32 %v7912, %v7971
    %v7995 = vadd.f32 %v7913, %v7974
    %v7996 = vadd.f32 %v7914, %v7977
    %v7997 = vadd.f32 %v7915, %v7980
    %v7998 = vadd.f32 %v7916, %v7983
    %v7999 = vadd.f32 %v7917, %v7986
    %v8000 = vadd.f32 %v7918, %v7989
    %v8001 = vadd.f32 %v7919, %v7992
    %s8002 = scalar_lea.vmem %s8, 192
    %v8003 = vld [vmem:[%s8002] sm:$0xf]
    %v8004 = vld [vmem:[%s8002 + $0x4] sm:$0xf]
    %v8005 = vld [vmem:[%s8002 + $0x8] sm:$0xf]
    %v8006 = vld [vmem:[%s8002 + $0xc] sm:$0xf]
    %v8007 = vunpack.c.l.bf16 %v8003
    %v8008 = vunpack.c.l.bf16 %v8004
    %v8009 = vunpack.c.l.bf16 %v8005
    %v8010 = vunpack.c.l.bf16 %v8006
    %v8012 = vsel %vm5903, %v6956, 0
    %v8015 = vsel %vm5903, %v6958, 0
    %v8018 = vsel %vm5903, %v6961, 0
    %v8021 = vsel %vm5903, %v6963, 0
    %v8024 = vsel %vm5903, %v6966, 0
    %v8027 = vsel %vm5903, %v6968, 0
    %v8030 = vsel %vm5903, %v6971, 0
    %v8033 = vsel %vm5903, %v6973, 0
    %8035 = vmatpush.msra.mxu0 0.0
    %8036 = vmatpush.msra.mxu0 0.0
    %8037 = vmatpush.msra.mxu0 0.0
    %8038 = vmatpush.msra.mxu0 0.0
    %8039 = vmatpush.msra.mxu0 0.0
    %8040 = vmatpush.msra.mxu0 0.0
    %8041 = vmatpush.msra.mxu0 0.0
    %8042 = vmatpush.msra.mxu0 0.0
    %8043 = vmatpush.msra.mxu0 0.0
    %8044 = vmatpush.msra.mxu0 0.0
    %8045 = vmatpush.msra.mxu0 0.0
    %8046 = vmatpush.msra.mxu0 0.0
    %8047 = vmatpush.msra.mxu0 %v8010
    %8048 = vmatpush.msra.mxu0 %v8009
    %8049 = vmatpush.msra.mxu0 %v8008
    %8050 = vmatpush.msra.mxu0 %v8007
    %8051 = vmatmul.f32.gmra.mxu0 %v8012
    %v8052 = vpop.f32.mrf.mxu0
    %v8053 = vadd.f32 0.0, %v8052
    %8054 = vmatmul.f32.gmra.mxu0 %v8015
    %v8055 = vpop.f32.mrf.mxu0
    %v8056 = vadd.f32 0.0, %v8055
    %8057 = vmatmul.f32.gmra.mxu0 %v8018
    %v8058 = vpop.f32.mrf.mxu0
    %v8059 = vadd.f32 0.0, %v8058
    %8060 = vmatmul.f32.gmra.mxu0 %v8021
    %v8061 = vpop.f32.mrf.mxu0
    %v8062 = vadd.f32 0.0, %v8061
    %8063 = vmatmul.f32.gmra.mxu0 %v8024
    %v8064 = vpop.f32.mrf.mxu0
    %v8065 = vadd.f32 0.0, %v8064
    %8066 = vmatmul.f32.gmra.mxu0 %v8027
    %v8067 = vpop.f32.mrf.mxu0
    %v8068 = vadd.f32 0.0, %v8067
    %8069 = vmatmul.f32.gmra.mxu0 %v8030
    %v8070 = vpop.f32.mrf.mxu0
    %v8071 = vadd.f32 0.0, %v8070
    %8072 = vmatmul.f32.gmra.mxu0 %v8033
    %v8073 = vpop.f32.mrf.mxu0
    %v8074 = vadd.f32 0.0, %v8073
    %8075 = vdwg.mxu0
    %v8076 = vadd.f32 %v7994, %v8053
    %v8077 = vadd.f32 %v7995, %v8056
    %v8078 = vadd.f32 %v7996, %v8059
    %v8079 = vadd.f32 %v7997, %v8062
    %v8080 = vadd.f32 %v7998, %v8065
    %v8081 = vadd.f32 %v7999, %v8068
    %v8082 = vadd.f32 %v8000, %v8071
    %v8083 = vadd.f32 %v8001, %v8074
    %s8084 = scalar_lea.vmem %s8, 208
    %v8085 = vld [vmem:[%s8084] sm:$0xf]
    %v8086 = vld [vmem:[%s8084 + $0x4] sm:$0xf]
    %v8087 = vld [vmem:[%s8084 + $0x8] sm:$0xf]
    %v8088 = vld [vmem:[%s8084 + $0xc] sm:$0xf]
    %v8089 = vunpack.c.l.bf16 %v8085
    %v8090 = vunpack.c.l.bf16 %v8086
    %v8091 = vunpack.c.l.bf16 %v8087
    %v8092 = vunpack.c.l.bf16 %v8088
    %v8094 = vsel %vm5903, %v6976, 0
    %v8097 = vsel %vm5903, %v6978, 0
    %v8100 = vsel %vm5903, %v6981, 0
    %v8103 = vsel %vm5903, %v6983, 0
    %v8106 = vsel %vm5903, %v6986, 0
    %v8109 = vsel %vm5903, %v6988, 0
    %v8112 = vsel %vm5903, %v6991, 0
    %v8115 = vsel %vm5903, %v6993, 0
    %8117 = vmatpush.msra.mxu0 0.0
    %8118 = vmatpush.msra.mxu0 0.0
    %8119 = vmatpush.msra.mxu0 0.0
    %8120 = vmatpush.msra.mxu0 0.0
    %8121 = vmatpush.msra.mxu0 0.0
    %8122 = vmatpush.msra.mxu0 0.0
    %8123 = vmatpush.msra.mxu0 0.0
    %8124 = vmatpush.msra.mxu0 0.0
    %8125 = vmatpush.msra.mxu0 0.0
    %8126 = vmatpush.msra.mxu0 0.0
    %8127 = vmatpush.msra.mxu0 0.0
    %8128 = vmatpush.msra.mxu0 0.0
    %8129 = vmatpush.msra.mxu0 %v8092
    %8130 = vmatpush.msra.mxu0 %v8091
    %8131 = vmatpush.msra.mxu0 %v8090
    %8132 = vmatpush.msra.mxu0 %v8089
    %8133 = vmatmul.f32.gmra.mxu0 %v8094
    %v8134 = vpop.f32.mrf.mxu0
    %v8135 = vadd.f32 0.0, %v8134
    %8136 = vmatmul.f32.gmra.mxu0 %v8097
    %v8137 = vpop.f32.mrf.mxu0
    %v8138 = vadd.f32 0.0, %v8137
    %8139 = vmatmul.f32.gmra.mxu0 %v8100
    %v8140 = vpop.f32.mrf.mxu0
    %v8141 = vadd.f32 0.0, %v8140
    %8142 = vmatmul.f32.gmra.mxu0 %v8103
    %v8143 = vpop.f32.mrf.mxu0
    %v8144 = vadd.f32 0.0, %v8143
    %8145 = vmatmul.f32.gmra.mxu0 %v8106
    %v8146 = vpop.f32.mrf.mxu0
    %v8147 = vadd.f32 0.0, %v8146
    %8148 = vmatmul.f32.gmra.mxu0 %v8109
    %v8149 = vpop.f32.mrf.mxu0
    %v8150 = vadd.f32 0.0, %v8149
    %8151 = vmatmul.f32.gmra.mxu0 %v8112
    %v8152 = vpop.f32.mrf.mxu0
    %v8153 = vadd.f32 0.0, %v8152
    %8154 = vmatmul.f32.gmra.mxu0 %v8115
    %v8155 = vpop.f32.mrf.mxu0
    %v8156 = vadd.f32 0.0, %v8155
    %8157 = vdwg.mxu0
    %v8158 = vadd.f32 %v8076, %v8135
    %v8159 = vadd.f32 %v8077, %v8138
    %v8160 = vadd.f32 %v8078, %v8141
    %v8161 = vadd.f32 %v8079, %v8144
    %v8162 = vadd.f32 %v8080, %v8147
    %v8163 = vadd.f32 %v8081, %v8150
    %v8164 = vadd.f32 %v8082, %v8153
    %v8165 = vadd.f32 %v8083, %v8156
    %s8166 = scalar_lea.vmem %s8, 224
    %v8167 = vld [vmem:[%s8166] sm:$0xf]
    %v8168 = vld [vmem:[%s8166 + $0x4] sm:$0xf]
    %v8169 = vld [vmem:[%s8166 + $0x8] sm:$0xf]
    %v8170 = vld [vmem:[%s8166 + $0xc] sm:$0xf]
    %v8171 = vunpack.c.l.bf16 %v8167
    %v8172 = vunpack.c.l.bf16 %v8168
    %v8173 = vunpack.c.l.bf16 %v8169
    %v8174 = vunpack.c.l.bf16 %v8170
    %v8176 = vsel %vm5903, %v6996, 0
    %v8179 = vsel %vm5903, %v6998, 0
    %v8182 = vsel %vm5903, %v7001, 0
    %v8185 = vsel %vm5903, %v7003, 0
    %v8188 = vsel %vm5903, %v7006, 0
    %v8191 = vsel %vm5903, %v7008, 0
    %v8194 = vsel %vm5903, %v7011, 0
    %v8197 = vsel %vm5903, %v7013, 0
    %8199 = vmatpush.msra.mxu0 0.0
    %8200 = vmatpush.msra.mxu0 0.0
    %8201 = vmatpush.msra.mxu0 0.0
    %8202 = vmatpush.msra.mxu0 0.0
    %8203 = vmatpush.msra.mxu0 0.0
    %8204 = vmatpush.msra.mxu0 0.0
    %8205 = vmatpush.msra.mxu0 0.0
    %8206 = vmatpush.msra.mxu0 0.0
    %8207 = vmatpush.msra.mxu0 0.0
    %8208 = vmatpush.msra.mxu0 0.0
    %8209 = vmatpush.msra.mxu0 0.0
    %8210 = vmatpush.msra.mxu0 0.0
    %8211 = vmatpush.msra.mxu0 %v8174
    %8212 = vmatpush.msra.mxu0 %v8173
    %8213 = vmatpush.msra.mxu0 %v8172
    %8214 = vmatpush.msra.mxu0 %v8171
    %8215 = vmatmul.f32.gmra.mxu0 %v8176
    %v8216 = vpop.f32.mrf.mxu0
    %v8217 = vadd.f32 0.0, %v8216
    %8218 = vmatmul.f32.gmra.mxu0 %v8179
    %v8219 = vpop.f32.mrf.mxu0
    %v8220 = vadd.f32 0.0, %v8219
    %8221 = vmatmul.f32.gmra.mxu0 %v8182
    %v8222 = vpop.f32.mrf.mxu0
    %v8223 = vadd.f32 0.0, %v8222
    %8224 = vmatmul.f32.gmra.mxu0 %v8185
    %v8225 = vpop.f32.mrf.mxu0
    %v8226 = vadd.f32 0.0, %v8225
    %8227 = vmatmul.f32.gmra.mxu0 %v8188
    %v8228 = vpop.f32.mrf.mxu0
    %v8229 = vadd.f32 0.0, %v8228
    %8230 = vmatmul.f32.gmra.mxu0 %v8191
    %v8231 = vpop.f32.mrf.mxu0
    %v8232 = vadd.f32 0.0, %v8231
    %8233 = vmatmul.f32.gmra.mxu0 %v8194
    %v8234 = vpop.f32.mrf.mxu0
    %v8235 = vadd.f32 0.0, %v8234
    %8236 = vmatmul.f32.gmra.mxu0 %v8197
    %v8237 = vpop.f32.mrf.mxu0
    %v8238 = vadd.f32 0.0, %v8237
    %8239 = vdwg.mxu0
    %v8240 = vadd.f32 %v8158, %v8217
    %v8241 = vadd.f32 %v8159, %v8220
    %v8242 = vadd.f32 %v8160, %v8223
    %v8243 = vadd.f32 %v8161, %v8226
    %v8244 = vadd.f32 %v8162, %v8229
    %v8245 = vadd.f32 %v8163, %v8232
    %v8246 = vadd.f32 %v8164, %v8235
    %v8247 = vadd.f32 %v8165, %v8238
    %s8248 = scalar_lea.vmem %s8, 240
    %v8249 = vld [vmem:[%s8248] sm:$0xf]
    %v8250 = vld [vmem:[%s8248 + $0x4] sm:$0xf]
    %v8251 = vld [vmem:[%s8248 + $0x8] sm:$0xf]
    %v8252 = vld [vmem:[%s8248 + $0xc] sm:$0xf]
    %v8253 = vunpack.c.l.bf16 %v8249
    %v8254 = vunpack.c.l.bf16 %v8250
    %v8255 = vunpack.c.l.bf16 %v8251
    %v8256 = vunpack.c.l.bf16 %v8252
    %v8258 = vsel %vm5903, %v7016, 0
    %v8261 = vsel %vm5903, %v7018, 0
    %v8264 = vsel %vm5903, %v7021, 0
    %v8267 = vsel %vm5903, %v7023, 0
    %v8270 = vsel %vm5903, %v7026, 0
    %v8273 = vsel %vm5903, %v7028, 0
    %v8276 = vsel %vm5903, %v7031, 0
    %v8279 = vsel %vm5903, %v7033, 0
    %8281 = vmatpush.msra.mxu0 0.0
    %8282 = vmatpush.msra.mxu0 0.0
    %8283 = vmatpush.msra.mxu0 0.0
    %8284 = vmatpush.msra.mxu0 0.0
    %8285 = vmatpush.msra.mxu0 0.0
    %8286 = vmatpush.msra.mxu0 0.0
    %8287 = vmatpush.msra.mxu0 0.0
    %8288 = vmatpush.msra.mxu0 0.0
    %8289 = vmatpush.msra.mxu0 0.0
    %8290 = vmatpush.msra.mxu0 0.0
    %8291 = vmatpush.msra.mxu0 0.0
    %8292 = vmatpush.msra.mxu0 0.0
    %8293 = vmatpush.msra.mxu0 %v8256
    %8294 = vmatpush.msra.mxu0 %v8255
    %8295 = vmatpush.msra.mxu0 %v8254
    %8296 = vmatpush.msra.mxu0 %v8253
    %8297 = vmatmul.f32.gmra.mxu0 %v8258
    %v8298 = vpop.f32.mrf.mxu0
    %v8299 = vadd.f32 0.0, %v8298
    %8300 = vmatmul.f32.gmra.mxu0 %v8261
    %v8301 = vpop.f32.mrf.mxu0
    %v8302 = vadd.f32 0.0, %v8301
    %8303 = vmatmul.f32.gmra.mxu0 %v8264
    %v8304 = vpop.f32.mrf.mxu0
    %v8305 = vadd.f32 0.0, %v8304
    %8306 = vmatmul.f32.gmra.mxu0 %v8267
    %v8307 = vpop.f32.mrf.mxu0
    %v8308 = vadd.f32 0.0, %v8307
    %8309 = vmatmul.f32.gmra.mxu0 %v8270
    %v8310 = vpop.f32.mrf.mxu0
    %v8311 = vadd.f32 0.0, %v8310
    %8312 = vmatmul.f32.gmra.mxu0 %v8273
    %v8313 = vpop.f32.mrf.mxu0
    %v8314 = vadd.f32 0.0, %v8313
    %8315 = vmatmul.f32.gmra.mxu0 %v8276
    %v8316 = vpop.f32.mrf.mxu0
    %v8317 = vadd.f32 0.0, %v8316
    %8318 = vmatmul.f32.gmra.mxu0 %v8279
    %v8319 = vpop.f32.mrf.mxu0
    %v8320 = vadd.f32 0.0, %v8319
    %8321 = vdwg.mxu0
    %v8322 = vadd.f32 %v8240, %v8299
    %v8323 = vadd.f32 %v8241, %v8302
    %v8324 = vadd.f32 %v8242, %v8305
    %v8325 = vadd.f32 %v8243, %v8308
    %v8326 = vadd.f32 %v8244, %v8311
    %v8327 = vadd.f32 %v8245, %v8314
    %v8328 = vadd.f32 %v8246, %v8317
    %v8329 = vadd.f32 %v8247, %v8320
    %v8330 = vsel %vm308, %v8322, 0.0
    %8331 = vadd.xlane.f32.xlu0 %v8330
    %v8332 = vpop.xlane.xlu0 %8331
    %v8333 = vsel %vm308, %v8323, 0.0
    %8334 = vadd.xlane.f32.xlu0 %v8333
    %v8335 = vpop.xlane.xlu0 %8334
    %v8336 = vsel %vm308, %v8324, 0.0
    %8337 = vadd.xlane.f32.xlu0 %v8336
    %v8338 = vpop.xlane.xlu0 %8337
    %v8339 = vsel %vm308, %v8325, 0.0
    %8340 = vadd.xlane.f32.xlu0 %v8339
    %v8341 = vpop.xlane.xlu0 %8340
    %v8342 = vsel %vm308, %v8326, 0.0
    %8343 = vadd.xlane.f32.xlu0 %v8342
    %v8344 = vpop.xlane.xlu0 %8343
    %v8345 = vsel %vm308, %v8327, 0.0
    %8346 = vadd.xlane.f32.xlu0 %v8345
    %v8347 = vpop.xlane.xlu0 %8346
    %v8348 = vsel %vm308, %v8328, 0.0
    %8349 = vadd.xlane.f32.xlu0 %v8348
    %v8350 = vpop.xlane.xlu0 %8349
    %v8351 = vsel %vm308, %v8329, 0.0
    %8352 = vadd.xlane.f32.xlu0 %v8351
    %v8353 = vpop.xlane.xlu0 %8352
    %v8354 = vmul.f32 %v8322, %v8322
    %v8355 = vmul.f32 %v8323, %v8323
    %v8356 = vmul.f32 %v8324, %v8324
    %v8357 = vmul.f32 %v8325, %v8325
    %v8358 = vmul.f32 %v8326, %v8326
    %v8359 = vmul.f32 %v8327, %v8327
    %v8360 = vmul.f32 %v8328, %v8328
    %v8361 = vmul.f32 %v8329, %v8329
    %v8362 = vsel %vm308, %v8354, 0.0
    %8363 = vadd.xlane.f32.xlu0 %v8362
    %v8364 = vpop.xlane.xlu0 %8363
    %v8365 = vsel %vm308, %v8355, 0.0
    %8366 = vadd.xlane.f32.xlu0 %v8365
    %v8367 = vpop.xlane.xlu0 %8366
    %v8368 = vsel %vm308, %v8356, 0.0
    %8369 = vadd.xlane.f32.xlu0 %v8368
    %v8370 = vpop.xlane.xlu0 %8369
    %v8371 = vsel %vm308, %v8357, 0.0
    %8372 = vadd.xlane.f32.xlu0 %v8371
    %v8373 = vpop.xlane.xlu0 %8372
    %v8374 = vsel %vm308, %v8358, 0.0
    %8375 = vadd.xlane.f32.xlu0 %v8374
    %v8376 = vpop.xlane.xlu0 %8375
    %v8377 = vsel %vm308, %v8359, 0.0
    %8378 = vadd.xlane.f32.xlu0 %v8377
    %v8379 = vpop.xlane.xlu0 %8378
    %v8380 = vsel %vm308, %v8360, 0.0
    %8381 = vadd.xlane.f32.xlu0 %v8380
    %v8382 = vpop.xlane.xlu0 %8381
    %v8383 = vsel %vm308, %v8361, 0.0
    %8384 = vadd.xlane.f32.xlu0 %v8383
    %v8385 = vpop.xlane.xlu0 %8384
    %v8386 = vmul.f32 %v8332, 0.125
    %v8387 = vmul.f32 %v8335, 0.125
    %v8388 = vmul.f32 %v8338, 0.125
    %v8389 = vmul.f32 %v8341, 0.125
    %v8390 = vmul.f32 %v8344, 0.125
    %v8391 = vmul.f32 %v8347, 0.125
    %v8392 = vmul.f32 %v8350, 0.125
    %v8393 = vmul.f32 %v8353, 0.125
    %v8394 = vmul.f32 %v8364, 0.125
    %v8395 = vmul.f32 %v8367, 0.125
    %v8396 = vmul.f32 %v8370, 0.125
    %v8397 = vmul.f32 %v8373, 0.125
    %v8398 = vmul.f32 %v8376, 0.125
    %v8399 = vmul.f32 %v8379, 0.125
    %v8400 = vmul.f32 %v8382, 0.125
    %v8401 = vmul.f32 %v8385, 0.125
    %v8402 = vmul.f32 %v8386, %v8386
    %v8403 = vmul.f32 %v8387, %v8387
    %v8404 = vmul.f32 %v8388, %v8388
    %v8405 = vmul.f32 %v8389, %v8389
    %v8406 = vmul.f32 %v8390, %v8390
    %v8407 = vmul.f32 %v8391, %v8391
    %v8408 = vmul.f32 %v8392, %v8392
    %v8409 = vmul.f32 %v8393, %v8393
    %v8410 = vsub.f32 %v8394, %v8402
    %v8411 = vsub.f32 %v8395, %v8403
    %v8412 = vsub.f32 %v8396, %v8404
    %v8413 = vsub.f32 %v8397, %v8405
    %v8414 = vsub.f32 %v8398, %v8406
    %v8415 = vsub.f32 %v8399, %v8407
    %v8416 = vsub.f32 %v8400, %v8408
    %v8417 = vsub.f32 %v8401, %v8409
    %v8418 = vadd.f32 %v8410, 1e-05
    %v8419 = vadd.f32 %v8411, 1e-05
    %v8420 = vadd.f32 %v8412, 1e-05
    %v8421 = vadd.f32 %v8413, 1e-05
    %v8422 = vadd.f32 %v8414, 1e-05
    %v8423 = vadd.f32 %v8415, 1e-05
    %v8424 = vadd.f32 %v8416, 1e-05
    %v8425 = vadd.f32 %v8417, 1e-05
    %v8426 = vrsqrt.pop %v8418
    %v8427 = vmul.f32 %v8426, %v8418
    %v8428 = vmul.f32 %v8427, %v8426
    %v8429 = vmul.f32 0.5, %v8428
    %v8430 = vsub.f32 1.5, %v8429
    %v8431 = vmul.f32 %v8426, %v8430
    %vm8432 = vweird.f32 %v8418
    %vm8433 = vweird.f32 %v8426
    %vm8434 = vmor %vm8432, %vm8433
    %v8435 = vsel %vm8434, %v8426, %v8431
    %v8436 = vrsqrt.pop %v8419
    %v8437 = vmul.f32 %v8436, %v8419
    %v8438 = vmul.f32 %v8437, %v8436
    %v8439 = vmul.f32 0.5, %v8438
    %v8440 = vsub.f32 1.5, %v8439
    %v8441 = vmul.f32 %v8436, %v8440
    %vm8442 = vweird.f32 %v8419
    %vm8443 = vweird.f32 %v8436
    %vm8444 = vmor %vm8442, %vm8443
    %v8445 = vsel %vm8444, %v8436, %v8441
    %v8446 = vrsqrt.pop %v8420
    %v8447 = vmul.f32 %v8446, %v8420
    %v8448 = vmul.f32 %v8447, %v8446
    %v8449 = vmul.f32 0.5, %v8448
    %v8450 = vsub.f32 1.5, %v8449
    %v8451 = vmul.f32 %v8446, %v8450
    %vm8452 = vweird.f32 %v8420
    %vm8453 = vweird.f32 %v8446
    %vm8454 = vmor %vm8452, %vm8453
    %v8455 = vsel %vm8454, %v8446, %v8451
    %v8456 = vrsqrt.pop %v8421
    %v8457 = vmul.f32 %v8456, %v8421
    %v8458 = vmul.f32 %v8457, %v8456
    %v8459 = vmul.f32 0.5, %v8458
    %v8460 = vsub.f32 1.5, %v8459
    %v8461 = vmul.f32 %v8456, %v8460
    %vm8462 = vweird.f32 %v8421
    %vm8463 = vweird.f32 %v8456
    %vm8464 = vmor %vm8462, %vm8463
    %v8465 = vsel %vm8464, %v8456, %v8461
    %v8466 = vrsqrt.pop %v8422
    %v8467 = vmul.f32 %v8466, %v8422
    %v8468 = vmul.f32 %v8467, %v8466
    %v8469 = vmul.f32 0.5, %v8468
    %v8470 = vsub.f32 1.5, %v8469
    %v8471 = vmul.f32 %v8466, %v8470
    %vm8472 = vweird.f32 %v8422
    %vm8473 = vweird.f32 %v8466
    %vm8474 = vmor %vm8472, %vm8473
    %v8475 = vsel %vm8474, %v8466, %v8471
    %v8476 = vrsqrt.pop %v8423
    %v8477 = vmul.f32 %v8476, %v8423
    %v8478 = vmul.f32 %v8477, %v8476
    %v8479 = vmul.f32 0.5, %v8478
    %v8480 = vsub.f32 1.5, %v8479
    %v8481 = vmul.f32 %v8476, %v8480
    %vm8482 = vweird.f32 %v8423
    %vm8483 = vweird.f32 %v8476
    %vm8484 = vmor %vm8482, %vm8483
    %v8485 = vsel %vm8484, %v8476, %v8481
    %v8486 = vrsqrt.pop %v8424
    %v8487 = vmul.f32 %v8486, %v8424
    %v8488 = vmul.f32 %v8487, %v8486
    %v8489 = vmul.f32 0.5, %v8488
    %v8490 = vsub.f32 1.5, %v8489
    %v8491 = vmul.f32 %v8486, %v8490
    %vm8492 = vweird.f32 %v8424
    %vm8493 = vweird.f32 %v8486
    %vm8494 = vmor %vm8492, %vm8493
    %v8495 = vsel %vm8494, %v8486, %v8491
    %v8496 = vrsqrt.pop %v8425
    %v8497 = vmul.f32 %v8496, %v8425
    %v8498 = vmul.f32 %v8497, %v8496
    %v8499 = vmul.f32 0.5, %v8498
    %v8500 = vsub.f32 1.5, %v8499
    %v8501 = vmul.f32 %v8496, %v8500
    %vm8502 = vweird.f32 %v8425
    %vm8503 = vweird.f32 %v8496
    %vm8504 = vmor %vm8502, %vm8503
    %v8505 = vsel %vm8504, %v8496, %v8501
    %v8506 = vsub.f32 %v8322, %v8386
    %v8507 = vsub.f32 %v8323, %v8387
    %v8508 = vsub.f32 %v8324, %v8388
    %v8509 = vsub.f32 %v8325, %v8389
    %v8510 = vsub.f32 %v8326, %v8390
    %v8511 = vsub.f32 %v8327, %v8391
    %v8512 = vsub.f32 %v8328, %v8392
    %v8513 = vsub.f32 %v8329, %v8393
    %v8514 = vld [vmem:[%s14] sm:$0xff]
    %v8515 = vld [vmem:[%s14 + $0x8] sm:$0xff]
    %v8516 = vld [vmem:[%s14 + $0x10] sm:$0xff]
    %v8517 = vld [vmem:[%s14 + $0x18] sm:$0xff]
    %v8518 = vld [vmem:[%s14 + $0x20] sm:$0xff]
    %v8519 = vld [vmem:[%s14 + $0x28] sm:$0xff]
    %v8520 = vld [vmem:[%s14 + $0x30] sm:$0xff]
    %v8521 = vld [vmem:[%s14 + $0x38] sm:$0xff]
    %v8522 = vmul.f32 %v8435, %v8514
    %v8523 = vmul.f32 %v8445, %v8515
    %v8524 = vmul.f32 %v8455, %v8516
    %v8525 = vmul.f32 %v8465, %v8517
    %v8526 = vmul.f32 %v8475, %v8518
    %v8527 = vmul.f32 %v8485, %v8519
    %v8528 = vmul.f32 %v8495, %v8520
    %v8529 = vmul.f32 %v8505, %v8521
    %8531 = vset.pattern.permute.xlu0 0
    %8532 = vperm.xlu0 %8531, %v8522
    %v8533 = vpop.permute.xlu0 %8532
    %8536 = vset.pattern.permute.xlu0 0
    %8537 = vperm.xlu0 %8536, %v8523
    %v8538 = vpop.permute.xlu0 %8537
    %8541 = vset.pattern.permute.xlu0 0
    %8542 = vperm.xlu0 %8541, %v8524
    %v8543 = vpop.permute.xlu0 %8542
    %8546 = vset.pattern.permute.xlu0 0
    %8547 = vperm.xlu0 %8546, %v8525
    %v8548 = vpop.permute.xlu0 %8547
    %8551 = vset.pattern.permute.xlu0 0
    %8552 = vperm.xlu0 %8551, %v8526
    %v8553 = vpop.permute.xlu0 %8552
    %8556 = vset.pattern.permute.xlu0 0
    %8557 = vperm.xlu0 %8556, %v8527
    %v8558 = vpop.permute.xlu0 %8557
    %8561 = vset.pattern.permute.xlu0 0
    %8562 = vperm.xlu0 %8561, %v8528
    %v8563 = vpop.permute.xlu0 %8562
    %8566 = vset.pattern.permute.xlu0 0
    %8567 = vperm.xlu0 %8566, %v8529
    %v8568 = vpop.permute.xlu0 %8567
    %v8570 = vmul.f32 %v8506, %v8533
    %v8571 = vmul.f32 %v8507, %v8538
    %v8572 = vmul.f32 %v8508, %v8543
    %v8573 = vmul.f32 %v8509, %v8548
    %v8574 = vmul.f32 %v8510, %v8553
    %v8575 = vmul.f32 %v8511, %v8558
    %v8576 = vmul.f32 %v8512, %v8563
    %v8577 = vmul.f32 %v8513, %v8568
    %v8578 = vld [vmem:[%s15] sm:$0xff]
    %v8579 = vld [vmem:[%s15 + $0x8] sm:$0xff]
    %v8580 = vld [vmem:[%s15 + $0x10] sm:$0xff]
    %v8581 = vld [vmem:[%s15 + $0x18] sm:$0xff]
    %v8582 = vld [vmem:[%s15 + $0x20] sm:$0xff]
    %v8583 = vld [vmem:[%s15 + $0x28] sm:$0xff]
    %v8584 = vld [vmem:[%s15 + $0x30] sm:$0xff]
    %v8585 = vld [vmem:[%s15 + $0x38] sm:$0xff]
    %8587 = vset.pattern.permute.xlu0 0
    %8588 = vperm.xlu0 %8587, %v8578
    %v8589 = vpop.permute.xlu0 %8588
    %8592 = vset.pattern.permute.xlu0 0
    %8593 = vperm.xlu0 %8592, %v8579
    %v8594 = vpop.permute.xlu0 %8593
    %8597 = vset.pattern.permute.xlu0 0
    %8598 = vperm.xlu0 %8597, %v8580
    %v8599 = vpop.permute.xlu0 %8598
    %8602 = vset.pattern.permute.xlu0 0
    %8603 = vperm.xlu0 %8602, %v8581
    %v8604 = vpop.permute.xlu0 %8603
    %8607 = vset.pattern.permute.xlu0 0
    %8608 = vperm.xlu0 %8607, %v8582
    %v8609 = vpop.permute.xlu0 %8608
    %8612 = vset.pattern.permute.xlu0 0
    %8613 = vperm.xlu0 %8612, %v8583
    %v8614 = vpop.permute.xlu0 %8613
    %8617 = vset.pattern.permute.xlu0 0
    %8618 = vperm.xlu0 %8617, %v8584
    %v8619 = vpop.permute.xlu0 %8618
    %8622 = vset.pattern.permute.xlu0 0
    %8623 = vperm.xlu0 %8622, %v8585
    %v8624 = vpop.permute.xlu0 %8623
    %v8626 = vadd.f32 %v8570, %v8589
    %v8627 = vadd.f32 %v8571, %v8594
    %v8628 = vadd.f32 %v8572, %v8599
    %v8629 = vadd.f32 %v8573, %v8604
    %v8630 = vadd.f32 %v8574, %v8609
    %v8631 = vadd.f32 %v8575, %v8614
    %v8632 = vadd.f32 %v8576, %v8619
    %v8633 = vadd.f32 %v8577, %v8624
    %v8634 = vmul.f32 %v8626, 0.2
    %v8635 = vmul.f32 %v8627, 0.2
    %v8636 = vmul.f32 %v8628, 0.2
    %v8637 = vmul.f32 %v8629, 0.2
    %v8638 = vmul.f32 %v8630, 0.2
    %v8639 = vmul.f32 %v8631, 0.2
    %v8640 = vmul.f32 %v8632, 0.2
    %v8641 = vmul.f32 %v8633, 0.2
    %v8642 = vmax.f32 %v8626, %v8634
    %v8643 = vmax.f32 %v8627, %v8635
    %v8644 = vmax.f32 %v8628, %v8636
    %v8645 = vmax.f32 %v8629, %v8637
    %v8646 = vmax.f32 %v8630, %v8638
    %v8647 = vmax.f32 %v8631, %v8639
    %v8648 = vmax.f32 %v8632, %v8640
    %v8649 = vmax.f32 %v8633, %v8641
    %v8650 = vld [vmem:[%s5] sm:$0x3]
    %v8651 = vpack.c.bf16 %v8643, %v8642
    %v8652 = vpack.c.bf16 %v8645, %v8644
    %v8653 = vpack.c.bf16 %v8647, %v8646
    %v8654 = vpack.c.bf16 %v8649, %v8648
    %vm8655 = vcmask 523264
    %v8657 = vsel %vm8655, %v8650, 0
    %8659 = vmatpush.bf16.msra.mxu0 0
    %8660 = vmatpush.bf16.msra.mxu0 0
    %8661 = vmatpush.bf16.msra.mxu0 0
    %8662 = vmatpush.bf16.msra.mxu0 0
    %8663 = vmatpush.bf16.msra.mxu0 %v8654
    %8664 = vmatpush.bf16.msra.mxu0 %v8653
    %8665 = vmatpush.bf16.msra.mxu0 %v8652
    %8666 = vmatpush.bf16.msra.mxu0 %v8651
    %8667 = vmatmul.bf16.gmra.mxu0 %v8657
    %v8668 = vpop.f32.mrf.mxu0
    %v8669 = vadd.f32 0.0, %v8668
    %v8670 = vpop.f32.mrf.mxu0
    %8671 = vdwg.mxu0
    %v8672 = vld [vmem:[%s9] sm:$0xf]
    %v8673 = vunpack.c.l.bf16 %v8672
    %s8674 = scalar_lea.vmem %s9, 4
    %v8675 = vld [vmem:[%s8674] sm:$0xf]
    %v8676 = vunpack.c.l.bf16 %v8675
    %v8678 = vrot.slane %v8669, 1
    %v8679 = vsel %vm308, %v8678, 0
    %8681 = vmatpush.msra.mxu0 0.0
    %8682 = vmatpush.msra.mxu0 0.0
    %8683 = vmatpush.msra.mxu0 0.0
    %8684 = vmatpush.msra.mxu0 0.0
    %8685 = vmatpush.msra.mxu0 0.0
    %8686 = vmatpush.msra.mxu0 0.0
    %8687 = vmatpush.msra.mxu0 0.0
    %8688 = vmatpush.msra.mxu0 0.0
    %8689 = vmatpush.msra.mxu0 0.0
    %8690 = vmatpush.msra.mxu0 0.0
    %8691 = vmatpush.msra.mxu0 0.0
    %8692 = vmatpush.msra.mxu0 0.0
    %8693 = vmatpush.msra.mxu0 0.0
    %8694 = vmatpush.msra.mxu0 0.0
    %8695 = vmatpush.msra.mxu0 0.0
    %8696 = vmatpush.msra.mxu0 %v8676
    %8697 = vmatmul.f32.gmra.mxu0 %v8679
    %v8698 = vpop.f32.mrf.mxu0
    %v8699 = vadd.f32 0.0, %v8698
    %8700 = vdwg.mxu0
    %v8701 = vsel %vm308, %v8669, 0
    %8703 = vmatpush.msra.mxu0 0.0
    %8704 = vmatpush.msra.mxu0 0.0
    %8705 = vmatpush.msra.mxu0 0.0
    %8706 = vmatpush.msra.mxu0 0.0
    %8707 = vmatpush.msra.mxu0 0.0
    %8708 = vmatpush.msra.mxu0 0.0
    %8709 = vmatpush.msra.mxu0 0.0
    %8710 = vmatpush.msra.mxu0 0.0
    %8711 = vmatpush.msra.mxu0 0.0
    %8712 = vmatpush.msra.mxu0 0.0
    %8713 = vmatpush.msra.mxu0 0.0
    %8714 = vmatpush.msra.mxu0 0.0
    %8715 = vmatpush.msra.mxu0 0.0
    %8716 = vmatpush.msra.mxu0 0.0
    %8717 = vmatpush.msra.mxu0 0.0
    %8718 = vmatpush.msra.mxu0 %v8673
    %8719 = vmatmul.f32.gmra.mxu0 %v8701
    %v8720 = vpop.f32.mrf.mxu0
    %v8721 = vadd.f32 %v8699, %v8720
    %8722 = vdwg.mxu0
    %s8723 = scalar_lea.vmem %s9, 8
    %v8724 = vld [vmem:[%s8723] sm:$0xf]
    %v8725 = vunpack.c.l.bf16 %v8724
    %v8726 = vrot.slane %v8669, 2
    %v8727 = vsel %vm308, %v8726, 0
    %8729 = vmatpush.msra.mxu0 0.0
    %8730 = vmatpush.msra.mxu0 0.0
    %8731 = vmatpush.msra.mxu0 0.0
    %8732 = vmatpush.msra.mxu0 0.0
    %8733 = vmatpush.msra.mxu0 0.0
    %8734 = vmatpush.msra.mxu0 0.0
    %8735 = vmatpush.msra.mxu0 0.0
    %8736 = vmatpush.msra.mxu0 0.0
    %8737 = vmatpush.msra.mxu0 0.0
    %8738 = vmatpush.msra.mxu0 0.0
    %8739 = vmatpush.msra.mxu0 0.0
    %8740 = vmatpush.msra.mxu0 0.0
    %8741 = vmatpush.msra.mxu0 0.0
    %8742 = vmatpush.msra.mxu0 0.0
    %8743 = vmatpush.msra.mxu0 0.0
    %8744 = vmatpush.msra.mxu0 %v8725
    %8745 = vmatmul.f32.gmra.mxu0 %v8727
    %v8746 = vpop.f32.mrf.mxu0
    %v8747 = vadd.f32 0.0, %v8746
    %8748 = vdwg.mxu0
    %v8749 = vadd.f32 %v8721, %v8747
    %s8750 = scalar_lea.vmem %s9, 12
    %v8751 = vld [vmem:[%s8750] sm:$0xf]
    %v8752 = vunpack.c.l.bf16 %v8751
    %v8753 = vrot.slane %v8669, 3
    %v8754 = vsel %vm308, %v8753, 0
    %8756 = vmatpush.msra.mxu0 0.0
    %8757 = vmatpush.msra.mxu0 0.0
    %8758 = vmatpush.msra.mxu0 0.0
    %8759 = vmatpush.msra.mxu0 0.0
    %8760 = vmatpush.msra.mxu0 0.0
    %8761 = vmatpush.msra.mxu0 0.0
    %8762 = vmatpush.msra.mxu0 0.0
    %8763 = vmatpush.msra.mxu0 0.0
    %8764 = vmatpush.msra.mxu0 0.0
    %8765 = vmatpush.msra.mxu0 0.0
    %8766 = vmatpush.msra.mxu0 0.0
    %8767 = vmatpush.msra.mxu0 0.0
    %8768 = vmatpush.msra.mxu0 0.0
    %8769 = vmatpush.msra.mxu0 0.0
    %8770 = vmatpush.msra.mxu0 0.0
    %8771 = vmatpush.msra.mxu0 %v8752
    %8772 = vmatmul.f32.gmra.mxu0 %v8754
    %v8773 = vpop.f32.mrf.mxu0
    %v8774 = vadd.f32 0.0, %v8773
    %8775 = vdwg.mxu0
    %v8776 = vadd.f32 %v8749, %v8774
    %vm8777 = vcmask 8192
    %8778 = vst.msk [vmem:[#allocation2] sm:$0x1] %vm8777, %v8776
    // Predicated region
    $region66: #{discriminator_forward.1} parent=1 // pred_check
      _
    $region67: #{discriminator_forward.1} parent=1 // pred_check_branch
      %8780 = sbr.rel (0) target = $region69
    $region68: #{discriminator_forward.1} parent=1 // pred_region
      %8782 = vsyncadd [#allocation3], 0
      %s8784 = sshll.u32 [#allocation2], 4
      %s8785 = int_to_ptr.vmem [resolvable:$true] %s8784
      %s8786 = sshll.u32 %s16, 4
      %s8787 = int_to_ptr.hbm [resolvable:$true] %s8786
      %8789 = dma.vmem_to_hbm [thread:$0]  %s8785, 16, %s8787, [#allocation3]
    $region69: #{discriminator_forward.1} parent=1 // pred_fallthru
      _
    // Predicated region
    $region70: #{discriminator_forward.1} parent=1 // pred_check
      _
    $region71: #{discriminator_forward.1} parent=1 // pred_check_branch
      %8791 = sbr.rel (0) target = $region73
    $region72: #{discriminator_forward.1} parent=1 // pred_region
      %8793 = dma.done [#allocation3], 16
    $region73: #{discriminator_forward.1} parent=1 // pred_fallthru
      _
    %8794 = vsyncpa [#allocation3], 1

</llo_original>
